<compile_context>
chip_gen: v6e
topology: v6e:2x2x1
jax: 0.10.0
libtpu: 0.0.40
codegen_flags: <defaults>
</compile_context>

<pallas_src>
import jax
import jax.numpy as jnp
from jax.experimental import pallas as pl
from jax.experimental.pallas import tpu as pltpu

D = 8            # number of pts layers
W = 256          # hidden width
W2 = W // 2      # view-branch width
IN_CH = 3        # input_ch
IN_DIR = 3       # input_ch_dir
IN_PAD = 8       # padded input lane width (pts lanes 0..2, dirs lanes 3..5)
TN = 2048        # default batch tile (rows per grid step)


def nerf_kernel(x_ref,
                win_ref, b0_ref,
                wl_ref, bl_ref,
                wfa_ref, bfa_ref,
                wvf_ref, bv_ref,
                wrgb_ref, brgb_ref,
                out_ref):
    x = x_ref[...]                                       # [TN, 8] bf16

    # One tiny bf16 matmul produces every input-driven contribution at once:
    #   lanes [0, W)        : input_pts @ W_pts0           (layer 0, pre-bias)
    #   lanes [W, 2W)       : input_pts @ W_skip           (skip rows, layer 5)
    #   lanes [2W, 2W + W2) : input_dirs @ W_view_dirs     (dirs rows, view layer)
    pre = jnp.dot(x, win_ref[...], preferred_element_type=jnp.float32)
    h = jnp.maximum(pre[:, :W] + b0_ref[...], 0.0)       # pts_linears[0] + ReLU
    # Long-lived across the 7-layer loop -> keep them bf16 to halve VMEM.
    skip_pre = pre[:, W:2 * W].astype(jnp.bfloat16)
    dirs_pre = pre[:, 2 * W:2 * W + W2].astype(jnp.bfloat16)

    # ---- pts_linears[1..7]: bf16 MXU matmuls, bias/ReLU in f32 ----
    for j in range(D - 1):                               # j -> pts layer j+1
        z = jnp.dot(h.astype(jnp.bfloat16), wl_ref[j],
                    preferred_element_type=jnp.float32) + bl_ref[j]
        if j == 4:                                       # layer 5 sees cat([pts, h])
            z = z + skip_pre.astype(jnp.float32)
        h = jnp.maximum(z, 0.0)

    # ---- fused feature + alpha head: lanes [0,W) = feature, lane W+3 = alpha ----
    fa = jnp.dot(h.astype(jnp.bfloat16), wfa_ref[...],
                 preferred_element_type=jnp.float32) + bfa_ref[...]
    feature = fa[:, :W]
    alpha4 = fa[:, W:W + 4]                              # lanes 0..2 == 0, lane 3 = alpha

    # ---- view branch ----
    hv = jnp.maximum(
        jnp.dot(feature.astype(jnp.bfloat16), wvf_ref[...],
                preferred_element_type=jnp.float32)
        + dirs_pre.astype(jnp.float32) + bv_ref[...],
        0.0)

    # ---- rgb head (only columns 0..2 of wrgb are nonzero) ----
    rgb = jnp.dot(hv.astype(jnp.bfloat16), wrgb_ref[...],
                  preferred_element_type=jnp.float32)    # [TN, 128]

    # rgb occupies lanes 0..2, alpha occupies lane 3 (disjoint by construction).
    out_ref[...] = rgb[:, :4] + brgb_ref[...] + alpha4


def _full_spec(shape):
    rank = len(shape)
    return pl.BlockSpec(shape, lambda i, _r=rank: (0,) * _r)


def _round_up(v, m):
    return ((v + m - 1) // m) * m


def pack_params(params):
    """One-time packing of raw NeRF params into kernel-ready (fused, bf16) arrays."""
    f32, bf16 = jnp.float32, jnp.bfloat16

    # Fused input weight [8, 2W + W2]: layer-0 | skip | view-dirs contributions.
    win = jnp.zeros((IN_PAD, 2 * W + W2), f32)
    win = win.at[:IN_CH, :W].set(params["w_pts0"])
    win = win.at[:IN_CH, W:2 * W].set(params["w_skip"])
    win = win.at[IN_CH:IN_CH + IN_DIR, 2 * W:].set(params["w_view_dir"])
    win = win.astype(bf16)

    b0 = params["b_pts0"].reshape(1, W)
    wl = params["w_pts"].astype(bf16)                    # [7, W, W]
    bl = params["b_pts"].reshape(D - 1, 1, W)            # [7, 1, W]

    # Fused feature + alpha weight [W, W+128]; alpha in column W+3.
    wfa = jnp.zeros((W, W + 128), f32)
    wfa = wfa.at[:, :W].set(params["w_feat"])
    wfa = wfa.at[:, W + 3:W + 4].set(params["w_alpha"])
    wfa = wfa.astype(bf16)
    bfa = jnp.zeros((1, W + 128), f32)
    bfa = bfa.at[0, :W].set(params["b_feat"])
    bfa = bfa.at[0, W + 3].set(params["b_alpha"][0])

    wvf = params["w_view_feat"].astype(bf16)             # [W, W2]
    bv = params["b_view"].reshape(1, W2)

    wrgb = jnp.zeros((W2, 128), f32).at[:, :3].set(params["w_rgb"]).astype(bf16)
    brgb = jnp.zeros((1, 4), f32).at[0, :3].set(params["b_rgb"])

    return (win, b0, wl, bl, wfa, bfa, wvf, bv, wrgb, brgb)


def nerf_forward(x, packed, *, tn=TN):
    """x: [N, IN_CH + IN_DIR] float32, packed: pack_params(...) -> [N, 4] float32."""
    N = x.shape[0]

    # Keep at least 2 grid steps so both v7x TensorCores get work under the
    # "parallel" batch axis; tile must stay a multiple of 8 sublanes.
    half = _round_up(max(-(-N // 2), 8), 8)
    tn = min(tn, half)
    n_pad = _round_up(N, tn)

    # Input: pad 6 -> 8 lanes (bf16, 16 B/sample) and pad batch to a tile multiple.
    x8 = jnp.zeros((n_pad, IN_PAD), jnp.bfloat16)
    x8 = x8.at[:N, :IN_CH + IN_DIR].set(x.astype(jnp.bfloat16))

    weights = packed

    flops_per_row = 2 * (IN_PAD * (2 * W + W2)      # fused input matmul
                         + (D - 1) * W * W          # pts_linears[1..7]
                         + W * (W + 128)            # fused feature + alpha
                         + W * W2                   # view branch
                         + W2 * 128)                # rgb head (padded)
    weight_bytes = sum(int(w.size) * w.dtype.itemsize for w in weights)
    cost = pl.CostEstimate(
        flops=flops_per_row * n_pad,
        transcendentals=0,
        bytes_accessed=n_pad * (IN_PAD * 2 + 4 * 4) + weight_bytes)

    out = pl.pallas_call(
        nerf_kernel,
        out_shape=jax.ShapeDtypeStruct((n_pad, 4), jnp.float32),
        grid_spec=pltpu.PrefetchScalarGridSpec(
            num_scalar_prefetch=0,
            grid=(n_pad // tn,),
            in_specs=[pl.BlockSpec((tn, IN_PAD), lambda i: (i, 0))]
                     + [_full_spec(w.shape) for w in weights],
            out_specs=pl.BlockSpec((tn, 4), lambda i: (i, 0)),
        ),
        compiler_params=pltpu.CompilerParams(
            dimension_semantics=("parallel",),
            vmem_limit_bytes=48 << 20),
        cost_estimate=cost,
    )(x8, *weights)

    return out[:N]


def make_params(key):
    """Deterministic synthetic NeRF parameters, stored as [in, out] matrices."""
    keys = jax.random.split(key, 32)
    k = iter(keys)
    s = 0.05
    p = {}
    p["w_pts0"] = jax.random.normal(next(k), (IN_CH, W), jnp.float32) * s
    p["b_pts0"] = jax.random.normal(next(k), (W,), jnp.float32) * s
    wl, bl = [], []
    w_skip = None
    for i in range(D - 1):        # pts layers 1..7 (layer 5 has the skip input)
        if i == 4:
            full = jax.random.normal(next(k), (W + IN_CH, W), jnp.float32) * s
            w_skip = full[:IN_CH]          # rows hit by input_pts (concat order [pts, h])
            wl.append(full[IN_CH:])        # rows hit by h
        else:
            wl.append(jax.random.normal(next(k), (W, W), jnp.float32) * s)
        bl.append(jax.random.normal(next(k), (W,), jnp.float32) * s)
    p["w_pts"] = jnp.stack(wl)             # [7, W, W]
    p["b_pts"] = jnp.stack(bl)             # [7, W]
    p["w_skip"] = w_skip                   # [3, W]
    p["w_feat"] = jax.random.normal(next(k), (W, W), jnp.float32) * s
    p["b_feat"] = jax.random.normal(next(k), (W,), jnp.float32) * s
    p["w_alpha"] = jax.random.normal(next(k), (W, 1), jnp.float32) * s
    p["b_alpha"] = jax.random.normal(next(k), (1,), jnp.float32) * s
    wv = jax.random.normal(next(k), (W + IN_DIR, W2), jnp.float32) * s
    p["w_view_feat"] = wv[:W]              # feature part (concat order: [feature, dirs])
    p["w_view_dir"] = wv[W:]               # dirs part
    p["b_view"] = jax.random.normal(next(k), (W2,), jnp.float32) * s
    p["w_rgb"] = jax.random.normal(next(k), (W2, 3), jnp.float32) * s
    p["b_rgb"] = jax.random.normal(next(k), (3,), jnp.float32) * s
    return p


def nerf_reference(x, p):
    """Pure-JAX f32 reference reproducing the PyTorch forward exactly."""
    pts = x[:, :IN_CH]
    dirs = x[:, IN_CH:IN_CH + IN_DIR]
    h = jax.nn.relu(pts @ p["w_pts0"] + p["b_pts0"])
    for i in range(D - 1):
        if i == 4:
            z = pts @ p["w_skip"] + h @ p["w_pts"][i] + p["b_pts"][i]
        else:
            z = h @ p["w_pts"][i] + p["b_pts"][i]
        h = jax.nn.relu(z)
    alpha = h @ p["w_alpha"] + p["b_alpha"]
    feature = h @ p["w_feat"] + p["b_feat"]
    hv = jax.nn.relu(feature @ p["w_view_feat"] + dirs @ p["w_view_dir"] + p["b_view"])
    rgb = hv @ p["w_rgb"] + p["b_rgb"]
    return jnp.concatenate([rgb, alpha], axis=-1)


if __name__ == "__main__":
    key = jax.random.PRNGKey(0)
    k_param, k_x = jax.random.split(key)
    params = make_params(k_param)
    packed = pack_params(params)                    # one-time weight packing

    N = 1024                                        # small batch of rays/samples
    x = jax.random.normal(k_x, (N, IN_CH + IN_DIR), jnp.float32)

    out = jax.jit(nerf_forward)(x, packed)
    out = jax.block_until_ready(out)

    ref = nerf_reference(x, params)
    assert out.shape == (N, 4)
    max_err = float(jnp.max(jnp.abs(out - ref)))
    # bf16 matmuls (incl. the fused input matmul) with f32 accumulation:
    # relaxed tolerance vs the pure-f32 reference.
    assert jnp.allclose(out, ref, rtol=5e-2, atol=2e-2), max_err

    print("KERNEL_OK")
</pallas_src>

<mosaic_0001>
module attributes {stable_mosaic.version = 11 : i64} {
  func.func @nerf_kernel(%arg0: i32, %arg1: memref<512x8xbf16, #tpu.memory_space<vmem>>, %arg2: memref<8x640xbf16, #tpu.memory_space<vmem>>, %arg3: memref<1x256xf32, #tpu.memory_space<vmem>>, %arg4: memref<7x256x256xbf16, #tpu.memory_space<vmem>>, %arg5: memref<7x1x256xf32, #tpu.memory_space<vmem>>, %arg6: memref<256x384xbf16, #tpu.memory_space<vmem>>, %arg7: memref<1x384xf32, #tpu.memory_space<vmem>>, %arg8: memref<256x128xbf16, #tpu.memory_space<vmem>>, %arg9: memref<1x128xf32, #tpu.memory_space<vmem>>, %arg10: memref<128x128xbf16, #tpu.memory_space<vmem>>, %arg11: memref<1x4xf32, #tpu.memory_space<vmem>>, %arg12: memref<512x4xf32, #tpu.memory_space<vmem>>) attributes {dimension_semantics = [#tpu.dimension_semantics<parallel>], iteration_bounds = array<i64: 2>, scalar_prefetch = 0 : i64, scratch_operands = 0 : i64, tpu.core_type = #tpu.core_type<tc>, window_params = [{transform_indices = @transform_0, window_bounds = array<i64: 512, 8>}, {pipeline_mode = #tpu.pipeline_mode<synchronous>, transform_indices = @transform_1, window_bounds = array<i64: 8, 640>}, {pipeline_mode = #tpu.pipeline_mode<synchronous>, transform_indices = @transform_2, window_bounds = array<i64: 1, 256>}, {pipeline_mode = #tpu.pipeline_mode<synchronous>, transform_indices = @transform_3, window_bounds = array<i64: 7, 256, 256>}, {pipeline_mode = #tpu.pipeline_mode<synchronous>, transform_indices = @transform_4, window_bounds = array<i64: 7, 1, 256>}, {pipeline_mode = #tpu.pipeline_mode<synchronous>, transform_indices = @transform_5, window_bounds = array<i64: 256, 384>}, {pipeline_mode = #tpu.pipeline_mode<synchronous>, transform_indices = @transform_6, window_bounds = array<i64: 1, 384>}, {pipeline_mode = #tpu.pipeline_mode<synchronous>, transform_indices = @transform_7, window_bounds = array<i64: 256, 128>}, {pipeline_mode = #tpu.pipeline_mode<synchronous>, transform_indices = @transform_8, window_bounds = array<i64: 1, 128>}, {pipeline_mode = #tpu.pipeline_mode<synchronous>, transform_indices = @transform_9, window_bounds = array<i64: 128, 128>}, {pipeline_mode = #tpu.pipeline_mode<synchronous>, transform_indices = @transform_10, window_bounds = array<i64: 1, 4>}, {transform_indices = @transform_11, window_bounds = array<i64: 512, 4>}]} {
    %c0 = arith.constant 0 : index
    %c0_0 = arith.constant 0 : index
    %0 = vector.load %arg1[%c0, %c0_0] : memref<512x8xbf16, #tpu.memory_space<vmem>>, vector<512x8xbf16>
    %c0_1 = arith.constant 0 : index
    %c0_2 = arith.constant 0 : index
    %1 = vector.load %arg2[%c0_1, %c0_2] : memref<8x640xbf16, #tpu.memory_space<vmem>>, vector<8x640xbf16>
    %cst = arith.constant dense<0.000000e+00> : vector<512x640xf32>
    %2 = tpu.matmul %0, %1, %cst {dimension_numbers = #tpu.dot_dimension_numbers<[1], [0], [0], [1], [0, 0, 1, 1], [], []>} : vector<512x8xbf16>, vector<8x640xbf16>, vector<512x640xf32> -> vector<512x640xf32>
    %3 = vector.extract_strided_slice %2 {offsets = [0, 0], sizes = [512, 256], strides = [1, 1]} : vector<512x640xf32> to vector<512x256xf32>
    %c0_3 = arith.constant 0 : index
    %c0_4 = arith.constant 0 : index
    %4 = vector.load %arg3[%c0_3, %c0_4] : memref<1x256xf32, #tpu.memory_space<vmem>>, vector<1x256xf32>
    %5 = vector.broadcast %4 : vector<1x256xf32> to vector<512x256xf32>
    %6 = arith.addf %3, %5 : vector<512x256xf32>
    %cst_5 = arith.constant 0.000000e+00 : f32
    %7 = vector.broadcast %cst_5 : f32 to vector<512x256xf32>
    %8 = arith.maximumf %6, %7 : vector<512x256xf32>
    %9 = vector.extract_strided_slice %2 {offsets = [0, 256], sizes = [512, 256], strides = [1, 1]} : vector<512x640xf32> to vector<512x256xf32>
    %10 = arith.truncf %9 : vector<512x256xf32> to vector<512x256xbf16>
    %11 = vector.extract_strided_slice %2 {offsets = [0, 512], sizes = [512, 128], strides = [1, 1]} : vector<512x640xf32> to vector<512x128xf32>
    %12 = arith.truncf %11 : vector<512x128xf32> to vector<512x128xbf16>
    %13 = arith.truncf %8 : vector<512x256xf32> to vector<512x256xbf16>
    %c0_6 = arith.constant 0 : index
    %c0_7 = arith.constant 0 : index
    %c0_8 = arith.constant 0 : index
    %14 = vector.load %arg4[%c0_6, %c0_7, %c0_8] : memref<7x256x256xbf16, #tpu.memory_space<vmem>>, vector<1x256x256xbf16>
    %15 = vector.shape_cast %14 : vector<1x256x256xbf16> to vector<256x256xbf16>
    %cst_9 = arith.constant dense<0.000000e+00> : vector<512x256xf32>
    %16 = tpu.matmul %13, %15, %cst_9 {dimension_numbers = #tpu.dot_dimension_numbers<[1], [0], [0], [1], [0, 0, 1, 1], [], []>} : vector<512x256xbf16>, vector<256x256xbf16>, vector<512x256xf32> -> vector<512x256xf32>
    %c0_10 = arith.constant 0 : index
    %c0_11 = arith.constant 0 : index
    %c0_12 = arith.constant 0 : index
    %17 = vector.load %arg5[%c0_10, %c0_11, %c0_12] : memref<7x1x256xf32, #tpu.memory_space<vmem>>, vector<1x1x256xf32>
    %18 = vector.shape_cast %17 : vector<1x1x256xf32> to vector<1x256xf32>
    %19 = vector.broadcast %18 : vector<1x256xf32> to vector<512x256xf32>
    %20 = arith.addf %16, %19 : vector<512x256xf32>
    %cst_13 = arith.constant 0.000000e+00 : f32
    %21 = vector.broadcast %cst_13 : f32 to vector<512x256xf32>
    %22 = arith.maximumf %20, %21 : vector<512x256xf32>
    %23 = arith.truncf %22 : vector<512x256xf32> to vector<512x256xbf16>
    %c1 = arith.constant 1 : index
    %c0_14 = arith.constant 0 : index
    %c0_15 = arith.constant 0 : index
    %24 = vector.load %arg4[%c1, %c0_14, %c0_15] : memref<7x256x256xbf16, #tpu.memory_space<vmem>>, vector<1x256x256xbf16>
    %25 = vector.shape_cast %24 : vector<1x256x256xbf16> to vector<256x256xbf16>
    %cst_16 = arith.constant dense<0.000000e+00> : vector<512x256xf32>
    %26 = tpu.matmul %23, %25, %cst_16 {dimension_numbers = #tpu.dot_dimension_numbers<[1], [0], [0], [1], [0, 0, 1, 1], [], []>} : vector<512x256xbf16>, vector<256x256xbf16>, vector<512x256xf32> -> vector<512x256xf32>
    %c1_17 = arith.constant 1 : index
    %c0_18 = arith.constant 0 : index
    %c0_19 = arith.constant 0 : index
    %27 = vector.load %arg5[%c1_17, %c0_18, %c0_19] : memref<7x1x256xf32, #tpu.memory_space<vmem>>, vector<1x1x256xf32>
    %28 = vector.shape_cast %27 : vector<1x1x256xf32> to vector<1x256xf32>
    %29 = vector.broadcast %28 : vector<1x256xf32> to vector<512x256xf32>
    %30 = arith.addf %26, %29 : vector<512x256xf32>
    %cst_20 = arith.constant 0.000000e+00 : f32
    %31 = vector.broadcast %cst_20 : f32 to vector<512x256xf32>
    %32 = arith.maximumf %30, %31 : vector<512x256xf32>
    %33 = arith.truncf %32 : vector<512x256xf32> to vector<512x256xbf16>
    %c2 = arith.constant 2 : index
    %c0_21 = arith.constant 0 : index
    %c0_22 = arith.constant 0 : index
    %34 = vector.load %arg4[%c2, %c0_21, %c0_22] : memref<7x256x256xbf16, #tpu.memory_space<vmem>>, vector<1x256x256xbf16>
    %35 = vector.shape_cast %34 : vector<1x256x256xbf16> to vector<256x256xbf16>
    %cst_23 = arith.constant dense<0.000000e+00> : vector<512x256xf32>
    %36 = tpu.matmul %33, %35, %cst_23 {dimension_numbers = #tpu.dot_dimension_numbers<[1], [0], [0], [1], [0, 0, 1, 1], [], []>} : vector<512x256xbf16>, vector<256x256xbf16>, vector<512x256xf32> -> vector<512x256xf32>
    %c2_24 = arith.constant 2 : index
    %c0_25 = arith.constant 0 : index
    %c0_26 = arith.constant 0 : index
    %37 = vector.load %arg5[%c2_24, %c0_25, %c0_26] : memref<7x1x256xf32, #tpu.memory_space<vmem>>, vector<1x1x256xf32>
    %38 = vector.shape_cast %37 : vector<1x1x256xf32> to vector<1x256xf32>
    %39 = vector.broadcast %38 : vector<1x256xf32> to vector<512x256xf32>
    %40 = arith.addf %36, %39 : vector<512x256xf32>
    %cst_27 = arith.constant 0.000000e+00 : f32
    %41 = vector.broadcast %cst_27 : f32 to vector<512x256xf32>
    %42 = arith.maximumf %40, %41 : vector<512x256xf32>
    %43 = arith.truncf %42 : vector<512x256xf32> to vector<512x256xbf16>
    %c3 = arith.constant 3 : index
    %c0_28 = arith.constant 0 : index
    %c0_29 = arith.constant 0 : index
    %44 = vector.load %arg4[%c3, %c0_28, %c0_29] : memref<7x256x256xbf16, #tpu.memory_space<vmem>>, vector<1x256x256xbf16>
    %45 = vector.shape_cast %44 : vector<1x256x256xbf16> to vector<256x256xbf16>
    %cst_30 = arith.constant dense<0.000000e+00> : vector<512x256xf32>
    %46 = tpu.matmul %43, %45, %cst_30 {dimension_numbers = #tpu.dot_dimension_numbers<[1], [0], [0], [1], [0, 0, 1, 1], [], []>} : vector<512x256xbf16>, vector<256x256xbf16>, vector<512x256xf32> -> vector<512x256xf32>
    %c3_31 = arith.constant 3 : index
    %c0_32 = arith.constant 0 : index
    %c0_33 = arith.constant 0 : index
    %47 = vector.load %arg5[%c3_31, %c0_32, %c0_33] : memref<7x1x256xf32, #tpu.memory_space<vmem>>, vector<1x1x256xf32>
    %48 = vector.shape_cast %47 : vector<1x1x256xf32> to vector<1x256xf32>
    %49 = vector.broadcast %48 : vector<1x256xf32> to vector<512x256xf32>
    %50 = arith.addf %46, %49 : vector<512x256xf32>
    %cst_34 = arith.constant 0.000000e+00 : f32
    %51 = vector.broadcast %cst_34 : f32 to vector<512x256xf32>
    %52 = arith.maximumf %50, %51 : vector<512x256xf32>
    %53 = arith.truncf %52 : vector<512x256xf32> to vector<512x256xbf16>
    %c4 = arith.constant 4 : index
    %c0_35 = arith.constant 0 : index
    %c0_36 = arith.constant 0 : index
    %54 = vector.load %arg4[%c4, %c0_35, %c0_36] : memref<7x256x256xbf16, #tpu.memory_space<vmem>>, vector<1x256x256xbf16>
    %55 = vector.shape_cast %54 : vector<1x256x256xbf16> to vector<256x256xbf16>
    %cst_37 = arith.constant dense<0.000000e+00> : vector<512x256xf32>
    %56 = tpu.matmul %53, %55, %cst_37 {dimension_numbers = #tpu.dot_dimension_numbers<[1], [0], [0], [1], [0, 0, 1, 1], [], []>} : vector<512x256xbf16>, vector<256x256xbf16>, vector<512x256xf32> -> vector<512x256xf32>
    %c4_38 = arith.constant 4 : index
    %c0_39 = arith.constant 0 : index
    %c0_40 = arith.constant 0 : index
    %57 = vector.load %arg5[%c4_38, %c0_39, %c0_40] : memref<7x1x256xf32, #tpu.memory_space<vmem>>, vector<1x1x256xf32>
    %58 = vector.shape_cast %57 : vector<1x1x256xf32> to vector<1x256xf32>
    %59 = vector.broadcast %58 : vector<1x256xf32> to vector<512x256xf32>
    %60 = arith.addf %56, %59 : vector<512x256xf32>
    %61 = arith.extf %10 : vector<512x256xbf16> to vector<512x256xf32>
    %62 = arith.addf %60, %61 : vector<512x256xf32>
    %cst_41 = arith.constant 0.000000e+00 : f32
    %63 = vector.broadcast %cst_41 : f32 to vector<512x256xf32>
    %64 = arith.maximumf %62, %63 : vector<512x256xf32>
    %65 = arith.truncf %64 : vector<512x256xf32> to vector<512x256xbf16>
    %c5 = arith.constant 5 : index
    %c0_42 = arith.constant 0 : index
    %c0_43 = arith.constant 0 : index
    %66 = vector.load %arg4[%c5, %c0_42, %c0_43] : memref<7x256x256xbf16, #tpu.memory_space<vmem>>, vector<1x256x256xbf16>
    %67 = vector.shape_cast %66 : vector<1x256x256xbf16> to vector<256x256xbf16>
    %cst_44 = arith.constant dense<0.000000e+00> : vector<512x256xf32>
    %68 = tpu.matmul %65, %67, %cst_44 {dimension_numbers = #tpu.dot_dimension_numbers<[1], [0], [0], [1], [0, 0, 1, 1], [], []>} : vector<512x256xbf16>, vector<256x256xbf16>, vector<512x256xf32> -> vector<512x256xf32>
    %c5_45 = arith.constant 5 : index
    %c0_46 = arith.constant 0 : index
    %c0_47 = arith.constant 0 : index
    %69 = vector.load %arg5[%c5_45, %c0_46, %c0_47] : memref<7x1x256xf32, #tpu.memory_space<vmem>>, vector<1x1x256xf32>
    %70 = vector.shape_cast %69 : vector<1x1x256xf32> to vector<1x256xf32>
    %71 = vector.broadcast %70 : vector<1x256xf32> to vector<512x256xf32>
    %72 = arith.addf %68, %71 : vector<512x256xf32>
    %cst_48 = arith.constant 0.000000e+00 : f32
    %73 = vector.broadcast %cst_48 : f32 to vector<512x256xf32>
    %74 = arith.maximumf %72, %73 : vector<512x256xf32>
    %75 = arith.truncf %74 : vector<512x256xf32> to vector<512x256xbf16>
    %c6 = arith.constant 6 : index
    %c0_49 = arith.constant 0 : index
    %c0_50 = arith.constant 0 : index
    %76 = vector.load %arg4[%c6, %c0_49, %c0_50] : memref<7x256x256xbf16, #tpu.memory_space<vmem>>, vector<1x256x256xbf16>
    %77 = vector.shape_cast %76 : vector<1x256x256xbf16> to vector<256x256xbf16>
    %cst_51 = arith.constant dense<0.000000e+00> : vector<512x256xf32>
    %78 = tpu.matmul %75, %77, %cst_51 {dimension_numbers = #tpu.dot_dimension_numbers<[1], [0], [0], [1], [0, 0, 1, 1], [], []>} : vector<512x256xbf16>, vector<256x256xbf16>, vector<512x256xf32> -> vector<512x256xf32>
    %c6_52 = arith.constant 6 : index
    %c0_53 = arith.constant 0 : index
    %c0_54 = arith.constant 0 : index
    %79 = vector.load %arg5[%c6_52, %c0_53, %c0_54] : memref<7x1x256xf32, #tpu.memory_space<vmem>>, vector<1x1x256xf32>
    %80 = vector.shape_cast %79 : vector<1x1x256xf32> to vector<1x256xf32>
    %81 = vector.broadcast %80 : vector<1x256xf32> to vector<512x256xf32>
    %82 = arith.addf %78, %81 : vector<512x256xf32>
    %cst_55 = arith.constant 0.000000e+00 : f32
    %83 = vector.broadcast %cst_55 : f32 to vector<512x256xf32>
    %84 = arith.maximumf %82, %83 : vector<512x256xf32>
    %85 = arith.truncf %84 : vector<512x256xf32> to vector<512x256xbf16>
    %c0_56 = arith.constant 0 : index
    %c0_57 = arith.constant 0 : index
    %86 = vector.load %arg6[%c0_56, %c0_57] : memref<256x384xbf16, #tpu.memory_space<vmem>>, vector<256x384xbf16>
    %cst_58 = arith.constant dense<0.000000e+00> : vector<512x384xf32>
    %87 = tpu.matmul %85, %86, %cst_58 {dimension_numbers = #tpu.dot_dimension_numbers<[1], [0], [0], [1], [0, 0, 1, 1], [], []>} : vector<512x256xbf16>, vector<256x384xbf16>, vector<512x384xf32> -> vector<512x384xf32>
    %c0_59 = arith.constant 0 : index
    %c0_60 = arith.constant 0 : index
    %88 = vector.load %arg7[%c0_59, %c0_60] : memref<1x384xf32, #tpu.memory_space<vmem>>, vector<1x384xf32>
    %89 = vector.broadcast %88 : vector<1x384xf32> to vector<512x384xf32>
    %90 = arith.addf %87, %89 : vector<512x384xf32>
    %91 = vector.extract_strided_slice %90 {offsets = [0, 0], sizes = [512, 256], strides = [1, 1]} : vector<512x384xf32> to vector<512x256xf32>
    %92 = vector.extract_strided_slice %90 {offsets = [0, 256], sizes = [512, 4], strides = [1, 1]} : vector<512x384xf32> to vector<512x4xf32>
    %93 = arith.truncf %91 : vector<512x256xf32> to vector<512x256xbf16>
    %c0_61 = arith.constant 0 : index
    %c0_62 = arith.constant 0 : index
    %94 = vector.load %arg8[%c0_61, %c0_62] : memref<256x128xbf16, #tpu.memory_space<vmem>>, vector<256x128xbf16>
    %cst_63 = arith.constant dense<0.000000e+00> : vector<512x128xf32>
    %95 = tpu.matmul %93, %94, %cst_63 {dimension_numbers = #tpu.dot_dimension_numbers<[1], [0], [0], [1], [0, 0, 1, 1], [], []>} : vector<512x256xbf16>, vector<256x128xbf16>, vector<512x128xf32> -> vector<512x128xf32>
    %96 = arith.extf %12 : vector<512x128xbf16> to vector<512x128xf32>
    %97 = arith.addf %95, %96 : vector<512x128xf32>
    %c0_64 = arith.constant 0 : index
    %c0_65 = arith.constant 0 : index
    %98 = vector.load %arg9[%c0_64, %c0_65] : memref<1x128xf32, #tpu.memory_space<vmem>>, vector<1x128xf32>
    %99 = vector.broadcast %98 : vector<1x128xf32> to vector<512x128xf32>
    %100 = arith.addf %97, %99 : vector<512x128xf32>
    %cst_66 = arith.constant 0.000000e+00 : f32
    %101 = vector.broadcast %cst_66 : f32 to vector<512x128xf32>
    %102 = arith.maximumf %100, %101 : vector<512x128xf32>
    %103 = arith.truncf %102 : vector<512x128xf32> to vector<512x128xbf16>
    %c0_67 = arith.constant 0 : index
    %c0_68 = arith.constant 0 : index
    %104 = vector.load %arg10[%c0_67, %c0_68] : memref<128x128xbf16, #tpu.memory_space<vmem>>, vector<128x128xbf16>
    %cst_69 = arith.constant dense<0.000000e+00> : vector<512x128xf32>
    %105 = tpu.matmul %103, %104, %cst_69 {dimension_numbers = #tpu.dot_dimension_numbers<[1], [0], [0], [1], [0, 0, 1, 1], [], []>} : vector<512x128xbf16>, vector<128x128xbf16>, vector<512x128xf32> -> vector<512x128xf32>
    %106 = vector.extract_strided_slice %105 {offsets = [0, 0], sizes = [512, 4], strides = [1, 1]} : vector<512x128xf32> to vector<512x4xf32>
    %c0_70 = arith.constant 0 : index
    %c0_71 = arith.constant 0 : index
    %107 = vector.load %arg11[%c0_70, %c0_71] : memref<1x4xf32, #tpu.memory_space<vmem>>, vector<1x4xf32>
    %108 = vector.broadcast %107 : vector<1x4xf32> to vector<512x4xf32>
    %109 = arith.addf %106, %108 : vector<512x4xf32>
    %110 = arith.addf %109, %92 : vector<512x4xf32>
    %c0_72 = arith.constant 0 : index
    %c0_73 = arith.constant 0 : index
    %111 = vector.load %arg12[%c0_72, %c0_73] : memref<512x4xf32, #tpu.memory_space<vmem>>, vector<512x4xf32>
    tpu.vector_store %arg12[%c0_72, %c0_73], %110 {strides = array<i32>} : memref<512x4xf32, #tpu.memory_space<vmem>>, vector<512x4xf32>,
    return
  }
  func.func @transform_0(%arg0: i32) -> (i32, i32) {
    %c0_i32 = arith.constant 0 : i32
    %c0_i32_0 = arith.constant 0 : i32
    return %arg0, %c0_i32 : i32, i32
  }
  func.func @transform_1(%arg0: i32) -> (i32, i32) {
    %c0_i32 = arith.constant 0 : i32
    %c0_i32_0 = arith.constant 0 : i32
    %c0_i32_1 = arith.constant 0 : i32
    return %c0_i32, %c0_i32_0 : i32, i32
  }
  func.func @transform_2(%arg0: i32) -> (i32, i32) {
    %c0_i32 = arith.constant 0 : i32
    %c0_i32_0 = arith.constant 0 : i32
    %c0_i32_1 = arith.constant 0 : i32
    return %c0_i32, %c0_i32_0 : i32, i32
  }
  func.func @transform_3(%arg0: i32) -> (i32, i32, i32) {
    %c0_i32 = arith.constant 0 : i32
    %c0_i32_0 = arith.constant 0 : i32
    %c0_i32_1 = arith.constant 0 : i32
    %c0_i32_2 = arith.constant 0 : i32
    return %c0_i32, %c0_i32_0, %c0_i32_1 : i32, i32, i32
  }
  func.func @transform_4(%arg0: i32) -> (i32, i32, i32) {
    %c0_i32 = arith.constant 0 : i32
    %c0_i32_0 = arith.constant 0 : i32
    %c0_i32_1 = arith.constant 0 : i32
    %c0_i32_2 = arith.constant 0 : i32
    return %c0_i32, %c0_i32_0, %c0_i32_1 : i32, i32, i32
  }
  func.func @transform_5(%arg0: i32) -> (i32, i32) {
    %c0_i32 = arith.constant 0 : i32
    %c0_i32_0 = arith.constant 0 : i32
    %c0_i32_1 = arith.constant 0 : i32
    return %c0_i32, %c0_i32_0 : i32, i32
  }
  func.func @transform_6(%arg0: i32) -> (i32, i32) {
    %c0_i32 = arith.constant 0 : i32
    %c0_i32_0 = arith.constant 0 : i32
    %c0_i32_1 = arith.constant 0 : i32
    return %c0_i32, %c0_i32_0 : i32, i32
  }
  func.func @transform_7(%arg0: i32) -> (i32, i32) {
    %c0_i32 = arith.constant 0 : i32
    %c0_i32_0 = arith.constant 0 : i32
    %c0_i32_1 = arith.constant 0 : i32
    return %c0_i32, %c0_i32_0 : i32, i32
  }
  func.func @transform_8(%arg0: i32) -> (i32, i32) {
    %c0_i32 = arith.constant 0 : i32
    %c0_i32_0 = arith.constant 0 : i32
    %c0_i32_1 = arith.constant 0 : i32
    return %c0_i32, %c0_i32_0 : i32, i32
  }
  func.func @transform_9(%arg0: i32) -> (i32, i32) {
    %c0_i32 = arith.constant 0 : i32
    %c0_i32_0 = arith.constant 0 : i32
    %c0_i32_1 = arith.constant 0 : i32
    return %c0_i32, %c0_i32_0 : i32, i32
  }
  func.func @transform_10(%arg0: i32) -> (i32, i32) {
    %c0_i32 = arith.constant 0 : i32
    %c0_i32_0 = arith.constant 0 : i32
    %c0_i32_1 = arith.constant 0 : i32
    return %c0_i32, %c0_i32_0 : i32, i32
  }
  func.func @transform_11(%arg0: i32) -> (i32, i32) {
    %c0_i32 = arith.constant 0 : i32
    %c0_i32_0 = arith.constant 0 : i32
    return %arg0, %c0_i32 : i32, i32
  }
}

</mosaic_0001>

<llo_original>
// kernel: nerf_forward.1
$region0: #{nerf_forward.1}
  #allocation0 [shape = 'u32[]', space=smem, size = 0x4, offset = 0x4, fixed_abs, tag = 'smem constant byte address 0x4 - core index']
  #allocation1 [shape = 'u32[144,128]{1,0:T(1,128)}', space=vmem, size = 0x12000, scoped, tag = 'internal scratch']
  %s0 = inlined_call_operand.vmem [shape: bf16[1024,8], index: 0, kind: input, shape index: {}]
  %s1 = inlined_call_operand.vmem [shape: bf16[8,640], index: 1, kind: input, shape index: {}]
  %s2 = inlined_call_operand.vmem [shape: f32[1,256], index: 2, kind: input, shape index: {}]
  %s3 = inlined_call_operand.vmem [shape: bf16[7,256,256], index: 3, kind: input, shape index: {}]
  %s4 = inlined_call_operand.vmem [shape: f32[7,1,256], index: 4, kind: input, shape index: {}]
  %s5 = inlined_call_operand.vmem [shape: bf16[256,384], index: 5, kind: input, shape index: {}]
  %s6 = inlined_call_operand.vmem [shape: f32[1,384], index: 6, kind: input, shape index: {}]
  %s7 = inlined_call_operand.vmem [shape: bf16[256,128], index: 7, kind: input, shape index: {}]
  %s8 = inlined_call_operand.vmem [shape: f32[1,128], index: 8, kind: input, shape index: {}]
  %s9 = inlined_call_operand.vmem [shape: bf16[128,128], index: 9, kind: input, shape index: {}]
  %s10 = inlined_call_operand.vmem [shape: f32[1,4], index: 10, kind: input, shape index: {}]
  %s11 = inlined_call_operand.vmem [shape: f32[1024,4], index: 11, kind: output, shape index: {}]
  %s12 = sld [smem:[#allocation0]]
  $region77: #{nerf_forward.1} parent=0
    _
  %s14 = ssub.s32 1, %s12
  %s15 = scalar_select 0, %s14, %s12
  loop: start=0, step=1, limit=4
  $region2: #{nerf_forward.1} parent=0 // loop_pre_header
    _
  $region3: #{nerf_forward.1} parent=0 // loop_header
    %s17 = sphi 0, %s21
    %p18 = scmp.ge.s32.totalorder %s17, 4
    %s27 = sphi 0, %s29
    %s30 = sphi 0, %s27
    %s31 = sphi 0, %s30
    %s47 = sphi 0, %s31
    %s51 = sphi 0, %s51
    %s53 = sphi 0, %s51
    %s54 = sphi 0, %s53
    %s68 = sphi 0, %s54
    %s72 = sphi 0, %s72
    %s74 = sphi 0, %s72
    %s75 = sphi 0, %s74
    %s89 = sphi 0, %s75
    %s93 = sphi 0, %s93
    %s95 = sphi 0, %s93
    %s96 = sphi 0, %s95
    %s110 = sphi 0, %s96
    %s114 = sphi 0, %s114
    %s116 = sphi 0, %s114
    %s117 = sphi 0, %s116
    %s131 = sphi 0, %s117
    %s135 = sphi 0, %s135
    %s137 = sphi 0, %s135
    %s138 = sphi 0, %s137
    %s152 = sphi 0, %s138
    %s156 = sphi 0, %s156
    %s158 = sphi 0, %s156
    %s159 = sphi 0, %s158
    %s173 = sphi 0, %s159
    %s177 = sphi 0, %s177
    %s179 = sphi 0, %s177
    %s180 = sphi 0, %s179
    %s194 = sphi 0, %s180
    %s198 = sphi 0, %s198
    %s200 = sphi 0, %s198
    %s201 = sphi 0, %s200
    %s215 = sphi 0, %s201
    %s219 = sphi 0, %s219
    %s221 = sphi 0, %s219
    %s222 = sphi 0, %s221
    %s236 = sphi 0, %s222
    %s240 = sphi 0, %s240
    %s242 = sphi 0, %s240
    %s243 = sphi 0, %s242
    %s257 = sphi 0, %s243
    %s263 = sphi 0, %s265
    %s266 = sphi 0, %s263
    %s267 = sphi 0, %s266
    %s283 = sphi 0, %s267
  $region4: #{nerf_forward.1} parent=0 // loop_header_branch
    %20 = sbr.rel (%p18) target = $region8
  $region5: #{nerf_forward.1} parent=0 // loop_body
    %s22 = ssub.s32 %s17, 1
    %s23 = ssub.s32 %s17, 2
    %s24 = sadd.s32 %s17, 1
    %s25 = ssub.s32 %s17, %s24
    %p26 = scmp.eq.s32.totalorder %s25, 0
    %s28 = sadd.s32 %s27, 1
    %s29 = scalar_select %p26, %s27, %s28
    %p32 = pneg %p26
    %p33 = scmp.eq.s32.totalorder %s17, 1
    %p34 = por %p32, %p33
    %p35 = scmp.ne.s32.totalorder %s27, %s30
    %p36 = scmp.eq.s32.totalorder %s17, 0
    %p37 = por %p35, %p36
    %p38 = scmp.ne.s32.totalorder %s27, %s30
    %p39 = scmp.eq.s32.totalorder %s22, 1
    %p40 = por %p38, %p39
    %p41 = scmp.ne.s32.totalorder %s30, %s31
    %p42 = scmp.eq.s32.totalorder %s22, 0
    %p43 = por %p41, %p42
    %p44 = scmp.ne.s32.totalorder %s30, %s31
    %p45 = scmp.eq.s32.totalorder %s23, 1
    %p46 = por %p44, %p45
    %p48 = scmp.ne.s32.totalorder %s31, %s47
    %p49 = scmp.eq.s32.totalorder %s23, 0
    %p50 = por %p48, %p49
    %s52 = sadd.s32 %s51, 1
    %p55 = scmp.eq.s32.totalorder %s17, 1
    %p56 = scmp.ne.s32.totalorder %s51, %s53
    %p57 = scmp.eq.s32.totalorder %s17, 0
    %p58 = por %p56, %p57
    %p59 = scmp.ne.s32.totalorder %s51, %s53
    %p60 = scmp.eq.s32.totalorder %s22, 1
    %p61 = por %p59, %p60
    %p62 = scmp.ne.s32.totalorder %s53, %s54
    %p63 = scmp.eq.s32.totalorder %s22, 0
    %p64 = por %p62, %p63
    %p65 = scmp.ne.s32.totalorder %s53, %s54
    %p66 = scmp.eq.s32.totalorder %s23, 1
    %p67 = por %p65, %p66
    %p69 = scmp.ne.s32.totalorder %s54, %s68
    %p70 = scmp.eq.s32.totalorder %s23, 0
    %p71 = por %p69, %p70
    %s73 = sadd.s32 %s72, 1
    %p76 = scmp.eq.s32.totalorder %s17, 1
    %p77 = scmp.ne.s32.totalorder %s72, %s74
    %p78 = scmp.eq.s32.totalorder %s17, 0
    %p79 = por %p77, %p78
    %p80 = scmp.ne.s32.totalorder %s72, %s74
    %p81 = scmp.eq.s32.totalorder %s22, 1
    %p82 = por %p80, %p81
    %p83 = scmp.ne.s32.totalorder %s74, %s75
    %p84 = scmp.eq.s32.totalorder %s22, 0
    %p85 = por %p83, %p84
    %p86 = scmp.ne.s32.totalorder %s74, %s75
    %p87 = scmp.eq.s32.totalorder %s23, 1
    %p88 = por %p86, %p87
    %p90 = scmp.ne.s32.totalorder %s75, %s89
    %p91 = scmp.eq.s32.totalorder %s23, 0
    %p92 = por %p90, %p91
    %s94 = sadd.s32 %s93, 1
    %p97 = scmp.eq.s32.totalorder %s17, 1
    %p98 = scmp.ne.s32.totalorder %s93, %s95
    %p99 = scmp.eq.s32.totalorder %s17, 0
    %p100 = por %p98, %p99
    %p101 = scmp.ne.s32.totalorder %s93, %s95
    %p102 = scmp.eq.s32.totalorder %s22, 1
    %p103 = por %p101, %p102
    %p104 = scmp.ne.s32.totalorder %s95, %s96
    %p105 = scmp.eq.s32.totalorder %s22, 0
    %p106 = por %p104, %p105
    %p107 = scmp.ne.s32.totalorder %s95, %s96
    %p108 = scmp.eq.s32.totalorder %s23, 1
    %p109 = por %p107, %p108
    %p111 = scmp.ne.s32.totalorder %s96, %s110
    %p112 = scmp.eq.s32.totalorder %s23, 0
    %p113 = por %p111, %p112
    %s115 = sadd.s32 %s114, 1
    %p118 = scmp.eq.s32.totalorder %s17, 1
    %p119 = scmp.ne.s32.totalorder %s114, %s116
    %p120 = scmp.eq.s32.totalorder %s17, 0
    %p121 = por %p119, %p120
    %p122 = scmp.ne.s32.totalorder %s114, %s116
    %p123 = scmp.eq.s32.totalorder %s22, 1
    %p124 = por %p122, %p123
    %p125 = scmp.ne.s32.totalorder %s116, %s117
    %p126 = scmp.eq.s32.totalorder %s22, 0
    %p127 = por %p125, %p126
    %p128 = scmp.ne.s32.totalorder %s116, %s117
    %p129 = scmp.eq.s32.totalorder %s23, 1
    %p130 = por %p128, %p129
    %p132 = scmp.ne.s32.totalorder %s117, %s131
    %p133 = scmp.eq.s32.totalorder %s23, 0
    %p134 = por %p132, %p133
    %s136 = sadd.s32 %s135, 1
    %p139 = scmp.eq.s32.totalorder %s17, 1
    %p140 = scmp.ne.s32.totalorder %s135, %s137
    %p141 = scmp.eq.s32.totalorder %s17, 0
    %p142 = por %p140, %p141
    %p143 = scmp.ne.s32.totalorder %s135, %s137
    %p144 = scmp.eq.s32.totalorder %s22, 1
    %p145 = por %p143, %p144
    %p146 = scmp.ne.s32.totalorder %s137, %s138
    %p147 = scmp.eq.s32.totalorder %s22, 0
    %p148 = por %p146, %p147
    %p149 = scmp.ne.s32.totalorder %s137, %s138
    %p150 = scmp.eq.s32.totalorder %s23, 1
    %p151 = por %p149, %p150
    %p153 = scmp.ne.s32.totalorder %s138, %s152
    %p154 = scmp.eq.s32.totalorder %s23, 0
    %p155 = por %p153, %p154
    %s157 = sadd.s32 %s156, 1
    %p160 = scmp.eq.s32.totalorder %s17, 1
    %p161 = scmp.ne.s32.totalorder %s156, %s158
    %p162 = scmp.eq.s32.totalorder %s17, 0
    %p163 = por %p161, %p162
    %p164 = scmp.ne.s32.totalorder %s156, %s158
    %p165 = scmp.eq.s32.totalorder %s22, 1
    %p166 = por %p164, %p165
    %p167 = scmp.ne.s32.totalorder %s158, %s159
    %p168 = scmp.eq.s32.totalorder %s22, 0
    %p169 = por %p167, %p168
    %p170 = scmp.ne.s32.totalorder %s158, %s159
    %p171 = scmp.eq.s32.totalorder %s23, 1
    %p172 = por %p170, %p171
    %p174 = scmp.ne.s32.totalorder %s159, %s173
    %p175 = scmp.eq.s32.totalorder %s23, 0
    %p176 = por %p174, %p175
    %s178 = sadd.s32 %s177, 1
    %p181 = scmp.eq.s32.totalorder %s17, 1
    %p182 = scmp.ne.s32.totalorder %s177, %s179
    %p183 = scmp.eq.s32.totalorder %s17, 0
    %p184 = por %p182, %p183
    %p185 = scmp.ne.s32.totalorder %s177, %s179
    %p186 = scmp.eq.s32.totalorder %s22, 1
    %p187 = por %p185, %p186
    %p188 = scmp.ne.s32.totalorder %s179, %s180
    %p189 = scmp.eq.s32.totalorder %s22, 0
    %p190 = por %p188, %p189
    %p191 = scmp.ne.s32.totalorder %s179, %s180
    %p192 = scmp.eq.s32.totalorder %s23, 1
    %p193 = por %p191, %p192
    %p195 = scmp.ne.s32.totalorder %s180, %s194
    %p196 = scmp.eq.s32.totalorder %s23, 0
    %p197 = por %p195, %p196
    %s199 = sadd.s32 %s198, 1
    %p202 = scmp.eq.s32.totalorder %s17, 1
    %p203 = scmp.ne.s32.totalorder %s198, %s200
    %p204 = scmp.eq.s32.totalorder %s17, 0
    %p205 = por %p203, %p204
    %p206 = scmp.ne.s32.totalorder %s198, %s200
    %p207 = scmp.eq.s32.totalorder %s22, 1
    %p208 = por %p206, %p207
    %p209 = scmp.ne.s32.totalorder %s200, %s201
    %p210 = scmp.eq.s32.totalorder %s22, 0
    %p211 = por %p209, %p210
    %p212 = scmp.ne.s32.totalorder %s200, %s201
    %p213 = scmp.eq.s32.totalorder %s23, 1
    %p214 = por %p212, %p213
    %p216 = scmp.ne.s32.totalorder %s201, %s215
    %p217 = scmp.eq.s32.totalorder %s23, 0
    %p218 = por %p216, %p217
    %s220 = sadd.s32 %s219, 1
    %p223 = scmp.eq.s32.totalorder %s17, 1
    %p224 = scmp.ne.s32.totalorder %s219, %s221
    %p225 = scmp.eq.s32.totalorder %s17, 0
    %p226 = por %p224, %p225
    %p227 = scmp.ne.s32.totalorder %s219, %s221
    %p228 = scmp.eq.s32.totalorder %s22, 1
    %p229 = por %p227, %p228
    %p230 = scmp.ne.s32.totalorder %s221, %s222
    %p231 = scmp.eq.s32.totalorder %s22, 0
    %p232 = por %p230, %p231
    %p233 = scmp.ne.s32.totalorder %s221, %s222
    %p234 = scmp.eq.s32.totalorder %s23, 1
    %p235 = por %p233, %p234
    %p237 = scmp.ne.s32.totalorder %s222, %s236
    %p238 = scmp.eq.s32.totalorder %s23, 0
    %p239 = por %p237, %p238
    %s241 = sadd.s32 %s240, 1
    %p244 = scmp.eq.s32.totalorder %s17, 1
    %p245 = scmp.ne.s32.totalorder %s240, %s242
    %p246 = scmp.eq.s32.totalorder %s17, 0
    %p247 = por %p245, %p246
    %p248 = scmp.ne.s32.totalorder %s240, %s242
    %p249 = scmp.eq.s32.totalorder %s22, 1
    %p250 = por %p248, %p249
    %p251 = scmp.ne.s32.totalorder %s242, %s243
    %p252 = scmp.eq.s32.totalorder %s22, 0
    %p253 = por %p251, %p252
    %p254 = scmp.ne.s32.totalorder %s242, %s243
    %p255 = scmp.eq.s32.totalorder %s23, 1
    %p256 = por %p254, %p255
    %p258 = scmp.ne.s32.totalorder %s243, %s257
    %p259 = scmp.eq.s32.totalorder %s23, 0
    %p260 = por %p258, %p259
    %s261 = ssub.s32 %s17, %s24
    %p262 = scmp.eq.s32.totalorder %s261, 0
    %s264 = sadd.s32 %s263, 1
    %s265 = scalar_select %p262, %s263, %s264
    %p268 = pneg %p262
    %p269 = scmp.eq.s32.totalorder %s17, 1
    %p270 = por %p268, %p269
    %p271 = scmp.ne.s32.totalorder %s263, %s266
    %p272 = scmp.eq.s32.totalorder %s17, 0
    %p273 = por %p271, %p272
    %p274 = scmp.ne.s32.totalorder %s263, %s266
    %p275 = scmp.eq.s32.totalorder %s22, 1
    %p276 = por %p274, %p275
    %p277 = scmp.ne.s32.totalorder %s266, %s267
    %p278 = scmp.eq.s32.totalorder %s22, 0
    %p279 = por %p277, %p278
    %p280 = scmp.ne.s32.totalorder %s266, %s267
    %p281 = scmp.eq.s32.totalorder %s23, 1
    %p282 = por %p280, %p281
    %p284 = scmp.ne.s32.totalorder %s267, %s283
    %p285 = scmp.eq.s32.totalorder %s23, 0
    %p286 = por %p284, %p285
    %p287 = scmp.le.s32.totalorder 1, %s17
    %p288 = scmp.lt.s32.totalorder %s17, 3
    %p289 = pnand %p287, %p288
    %p290 = pneg %p289
    // Predicated region
    $region9: #{nerf_forward.1} parent=5 // pred_check
      _
    $region10: #{nerf_forward.1} parent=5 // pred_check_branch
      %292 = sbr.rel (%p289) target = $region12
    $region11: #{nerf_forward.1} parent=5 // pred_region
      %s293 = ssub.s32 %s17, 1
      // Predicated region
      $region13: #{nerf_forward.1} parent=11 // pred_check
        %p294 = pneg %p64
      $region14: #{nerf_forward.1} parent=11 // pred_check_branch
        %296 = sbr.rel (%p294) target = $region16
      $region15: #{nerf_forward.1} parent=11 // pred_region
        _
      $region16: #{nerf_forward.1} parent=11 // pred_fallthru
        _
      // Predicated region
      $region17: #{nerf_forward.1} parent=11 // pred_check
        %p297 = pneg %p85
      $region18: #{nerf_forward.1} parent=11 // pred_check_branch
        %299 = sbr.rel (%p297) target = $region20
      $region19: #{nerf_forward.1} parent=11 // pred_region
        _
      $region20: #{nerf_forward.1} parent=11 // pred_fallthru
        _
      // Predicated region
      $region21: #{nerf_forward.1} parent=11 // pred_check
        %p300 = pneg %p106
      $region22: #{nerf_forward.1} parent=11 // pred_check_branch
        %302 = sbr.rel (%p300) target = $region24
      $region23: #{nerf_forward.1} parent=11 // pred_region
        _
      $region24: #{nerf_forward.1} parent=11 // pred_fallthru
        _
      // Predicated region
      $region25: #{nerf_forward.1} parent=11 // pred_check
        %p303 = pneg %p127
      $region26: #{nerf_forward.1} parent=11 // pred_check_branch
        %305 = sbr.rel (%p303) target = $region28
      $region27: #{nerf_forward.1} parent=11 // pred_region
        _
      $region28: #{nerf_forward.1} parent=11 // pred_fallthru
        _
      // Predicated region
      $region29: #{nerf_forward.1} parent=11 // pred_check
        %p306 = pneg %p148
      $region30: #{nerf_forward.1} parent=11 // pred_check_branch
        %308 = sbr.rel (%p306) target = $region32
      $region31: #{nerf_forward.1} parent=11 // pred_region
        _
      $region32: #{nerf_forward.1} parent=11 // pred_fallthru
        _
      // Predicated region
      $region33: #{nerf_forward.1} parent=11 // pred_check
        %p309 = pneg %p169
      $region34: #{nerf_forward.1} parent=11 // pred_check_branch
        %311 = sbr.rel (%p309) target = $region36
      $region35: #{nerf_forward.1} parent=11 // pred_region
        _
      $region36: #{nerf_forward.1} parent=11 // pred_fallthru
        _
      // Predicated region
      $region37: #{nerf_forward.1} parent=11 // pred_check
        %p312 = pneg %p190
      $region38: #{nerf_forward.1} parent=11 // pred_check_branch
        %314 = sbr.rel (%p312) target = $region40
      $region39: #{nerf_forward.1} parent=11 // pred_region
        _
      $region40: #{nerf_forward.1} parent=11 // pred_fallthru
        _
      // Predicated region
      $region41: #{nerf_forward.1} parent=11 // pred_check
        %p315 = pneg %p211
      $region42: #{nerf_forward.1} parent=11 // pred_check_branch
        %317 = sbr.rel (%p315) target = $region44
      $region43: #{nerf_forward.1} parent=11 // pred_region
        _
      $region44: #{nerf_forward.1} parent=11 // pred_fallthru
        _
      // Predicated region
      $region45: #{nerf_forward.1} parent=11 // pred_check
        %p318 = pneg %p232
      $region46: #{nerf_forward.1} parent=11 // pred_check_branch
        %320 = sbr.rel (%p318) target = $region48
      $region47: #{nerf_forward.1} parent=11 // pred_region
        _
      $region48: #{nerf_forward.1} parent=11 // pred_fallthru
        _
      // Predicated region
      $region49: #{nerf_forward.1} parent=11 // pred_check
        %p321 = pneg %p253
      $region50: #{nerf_forward.1} parent=11 // pred_check_branch
        %323 = sbr.rel (%p321) target = $region52
      $region51: #{nerf_forward.1} parent=11 // pred_region
        _
      $region52: #{nerf_forward.1} parent=11 // pred_fallthru
        _
    $region12: #{nerf_forward.1} parent=5 // pred_fallthru
      _
    %p324 = scmp.lt.s32.totalorder %s17, 2
    // Predicated region
    $region53: #{nerf_forward.1} parent=5 // pred_check
      %p325 = pneg %p324
    $region54: #{nerf_forward.1} parent=5 // pred_check_branch
      %327 = sbr.rel (%p325) target = $region56
    $region55: #{nerf_forward.1} parent=5 // pred_region
      // Predicated region
      $region57: #{nerf_forward.1} parent=55 // pred_check
        %p328 = pneg %p37
      $region58: #{nerf_forward.1} parent=55 // pred_check_branch
        %330 = sbr.rel (%p328) target = $region60
      $region59: #{nerf_forward.1} parent=55 // pred_region
        %s331 = smul.u32 64, %s17
        %p332 = scmp.lt.s32.totalorder %s331, 127
        %s333 = scalar_select %p332, %s331, 127
        %s334 = smul.addr %s333, 4
        %s335 = scalar_lea.vmem %s0, %s334
        %s336 = smul.u32 64, %s17
      $region60: #{nerf_forward.1} parent=55 // pred_fallthru
        _
    $region56: #{nerf_forward.1} parent=5 // pred_fallthru
      _
    %p337 = scmp.le.s32.totalorder 1, %s17
    %p338 = scmp.lt.s32.totalorder %s17, 3
    %p339 = pnand %p337, %p338
    %p340 = pneg %p339
    // Predicated region
    $region61: #{nerf_forward.1} parent=5 // pred_check
      _
    $region62: #{nerf_forward.1} parent=5 // pred_check_branch
      %342 = sbr.rel (%p339) target = $region64
    $region63: #{nerf_forward.1} parent=5 // pred_region
      %s343 = ssub.s32 %s17, 1
      %s344 = smul.u32 64, %s22
      %p345 = scmp.lt.s32.totalorder %s344, 127
      %s346 = scalar_select %p345, %s344, 127
      %s347 = smul.addr %s346, 4
      %s348 = scalar_lea.vmem %s0, %s347
      %p349 = pneg %p43
      %p350 = pneg %p40
      %p351 = pneg %p64
      %p352 = pneg %p61
      %p353 = pneg %p85
      %p354 = pneg %p82
      %p355 = pneg %p106
      %p356 = pneg %p103
      %p357 = pneg %p127
      %p358 = pneg %p124
      %p359 = pneg %p148
      %p360 = pneg %p145
      %p361 = pneg %p169
      %p362 = pneg %p166
      %p363 = pneg %p190
      %p364 = pneg %p187
      %p365 = pneg %p211
      %p366 = pneg %p208
      %p367 = pneg %p232
      %p368 = pneg %p229
      %p369 = pneg %p253
      %p370 = pneg %p250
      %p371 = pneg %p279
      %p372 = pneg %p276
      %s373 = smul.u32 64, %s22
      %p374 = scmp.lt.s32.totalorder %s373, 127
      %s375 = scalar_select %p374, %s373, 127
      %s376 = smul.addr %s375, 8
      %s377 = scalar_lea.vmem %s11, %s376
      %s378 = smul.u32 64, %s22
      %p379 = scmp.lt.s32.totalorder %s378, 127
      %s380 = scalar_select %p379, %s378, 127
      %s381 = smul.addr %s380, 4
      %s382 = scalar_lea.vmem %s0, %s381
      %s383 = smul.u32 64, %s22
      %s384 = smul.u32 64, %s22
      %p385 = scmp.lt.s32.totalorder %s384, 127
      %s386 = scalar_select %p385, %s384, 127
      %s387 = smul.addr %s386, 8
      %s388 = scalar_lea.vmem %s11, %s387
      %s389 = smul.u32 64, %s22
      %v391 = vld [vmem:[%s382] sm:$0xf]
      %v392 = vld [vmem:[%s382 + $0x4] sm:$0xf]
      %v393 = vld [vmem:[%s382 + $0x8] sm:$0xf]
      %v394 = vld [vmem:[%s382 + $0xc] sm:$0xf]
      %v395 = vld [vmem:[%s382 + $0x10] sm:$0xf]
      %v396 = vld [vmem:[%s382 + $0x14] sm:$0xf]
      %v397 = vld [vmem:[%s382 + $0x18] sm:$0xf]
      %v398 = vld [vmem:[%s382 + $0x1c] sm:$0xf]
      %v399 = vld [vmem:[%s382 + $0x20] sm:$0xf]
      %v400 = vld [vmem:[%s382 + $0x24] sm:$0xf]
      %v401 = vld [vmem:[%s382 + $0x28] sm:$0xf]
      %v402 = vld [vmem:[%s382 + $0x2c] sm:$0xf]
      %v403 = vld [vmem:[%s382 + $0x30] sm:$0xf]
      %v404 = vld [vmem:[%s382 + $0x34] sm:$0xf]
      %v405 = vld [vmem:[%s382 + $0x38] sm:$0xf]
      %v406 = vld [vmem:[%s382 + $0x3c] sm:$0xf]
      %v407 = vld [vmem:[%s382 + $0x40] sm:$0xf]
      %v408 = vld [vmem:[%s382 + $0x44] sm:$0xf]
      %v409 = vld [vmem:[%s382 + $0x48] sm:$0xf]
      %v410 = vld [vmem:[%s382 + $0x4c] sm:$0xf]
      %v411 = vld [vmem:[%s382 + $0x50] sm:$0xf]
      %v412 = vld [vmem:[%s382 + $0x54] sm:$0xf]
      %v413 = vld [vmem:[%s382 + $0x58] sm:$0xf]
      %v414 = vld [vmem:[%s382 + $0x5c] sm:$0xf]
      %v415 = vld [vmem:[%s382 + $0x60] sm:$0xf]
      %v416 = vld [vmem:[%s382 + $0x64] sm:$0xf]
      %v417 = vld [vmem:[%s382 + $0x68] sm:$0xf]
      %v418 = vld [vmem:[%s382 + $0x6c] sm:$0xf]
      %v419 = vld [vmem:[%s382 + $0x70] sm:$0xf]
      %v420 = vld [vmem:[%s382 + $0x74] sm:$0xf]
      %v421 = vld [vmem:[%s382 + $0x78] sm:$0xf]
      %v422 = vld [vmem:[%s382 + $0x7c] sm:$0xf]
      %v423 = vld [vmem:[%s382 + $0x80] sm:$0xf]
      %v424 = vld [vmem:[%s382 + $0x84] sm:$0xf]
      %v425 = vld [vmem:[%s382 + $0x88] sm:$0xf]
      %v426 = vld [vmem:[%s382 + $0x8c] sm:$0xf]
      %v427 = vld [vmem:[%s382 + $0x90] sm:$0xf]
      %v428 = vld [vmem:[%s382 + $0x94] sm:$0xf]
      %v429 = vld [vmem:[%s382 + $0x98] sm:$0xf]
      %v430 = vld [vmem:[%s382 + $0x9c] sm:$0xf]
      %v431 = vld [vmem:[%s382 + $0xa0] sm:$0xf]
      %v432 = vld [vmem:[%s382 + $0xa4] sm:$0xf]
      %v433 = vld [vmem:[%s382 + $0xa8] sm:$0xf]
      %v434 = vld [vmem:[%s382 + $0xac] sm:$0xf]
      %v435 = vld [vmem:[%s382 + $0xb0] sm:$0xf]
      %v436 = vld [vmem:[%s382 + $0xb4] sm:$0xf]
      %v437 = vld [vmem:[%s382 + $0xb8] sm:$0xf]
      %v438 = vld [vmem:[%s382 + $0xbc] sm:$0xf]
      %v439 = vld [vmem:[%s382 + $0xc0] sm:$0xf]
      %v440 = vld [vmem:[%s382 + $0xc4] sm:$0xf]
      %v441 = vld [vmem:[%s382 + $0xc8] sm:$0xf]
      %v442 = vld [vmem:[%s382 + $0xcc] sm:$0xf]
      %v443 = vld [vmem:[%s382 + $0xd0] sm:$0xf]
      %v444 = vld [vmem:[%s382 + $0xd4] sm:$0xf]
      %v445 = vld [vmem:[%s382 + $0xd8] sm:$0xf]
      %v446 = vld [vmem:[%s382 + $0xdc] sm:$0xf]
      %v447 = vld [vmem:[%s382 + $0xe0] sm:$0xf]
      %v448 = vld [vmem:[%s382 + $0xe4] sm:$0xf]
      %v449 = vld [vmem:[%s382 + $0xe8] sm:$0xf]
      %v450 = vld [vmem:[%s382 + $0xec] sm:$0xf]
      %v451 = vld [vmem:[%s382 + $0xf0] sm:$0xf]
      %v452 = vld [vmem:[%s382 + $0xf4] sm:$0xf]
      %v453 = vld [vmem:[%s382 + $0xf8] sm:$0xf]
      %v454 = vld [vmem:[%s382 + $0xfc] sm:$0xf]
      %v455 = vld [vmem:[%s1] sm:$0xff]
      %v456 = vld [vmem:[%s1 + $0x8] sm:$0xff]
      %v457 = vld [vmem:[%s1 + $0x10] sm:$0xf]
      %v522 = vunpack.c.l.b16 %v391
      %v523 = vunpack.c.l.b16 %v392
      %v524 = vunpack.c.l.b16 %v393
      %v525 = vunpack.c.l.b16 %v394
      %v526 = vunpack.c.l.b16 %v395
      %v527 = vunpack.c.l.b16 %v396
      %v528 = vunpack.c.l.b16 %v397
      %v529 = vunpack.c.l.b16 %v398
      %v530 = vunpack.c.l.b16 %v399
      %v531 = vunpack.c.l.b16 %v400
      %v532 = vunpack.c.l.b16 %v401
      %v533 = vunpack.c.l.b16 %v402
      %v534 = vunpack.c.l.b16 %v403
      %v535 = vunpack.c.l.b16 %v404
      %v536 = vunpack.c.l.b16 %v405
      %v537 = vunpack.c.l.b16 %v406
      %v538 = vunpack.c.l.b16 %v407
      %v539 = vunpack.c.l.b16 %v408
      %v540 = vunpack.c.l.b16 %v409
      %v541 = vunpack.c.l.b16 %v410
      %v542 = vunpack.c.l.b16 %v411
      %v543 = vunpack.c.l.b16 %v412
      %v544 = vunpack.c.l.b16 %v413
      %v545 = vunpack.c.l.b16 %v414
      %v546 = vunpack.c.l.b16 %v415
      %v547 = vunpack.c.l.b16 %v416
      %v548 = vunpack.c.l.b16 %v417
      %v549 = vunpack.c.l.b16 %v418
      %v550 = vunpack.c.l.b16 %v419
      %v551 = vunpack.c.l.b16 %v420
      %v552 = vunpack.c.l.b16 %v421
      %v553 = vunpack.c.l.b16 %v422
      %v554 = vunpack.c.l.b16 %v423
      %v555 = vunpack.c.l.b16 %v424
      %v556 = vunpack.c.l.b16 %v425
      %v557 = vunpack.c.l.b16 %v426
      %v558 = vunpack.c.l.b16 %v427
      %v559 = vunpack.c.l.b16 %v428
      %v560 = vunpack.c.l.b16 %v429
      %v561 = vunpack.c.l.b16 %v430
      %v562 = vunpack.c.l.b16 %v431
      %v563 = vunpack.c.l.b16 %v432
      %v564 = vunpack.c.l.b16 %v433
      %v565 = vunpack.c.l.b16 %v434
      %v566 = vunpack.c.l.b16 %v435
      %v567 = vunpack.c.l.b16 %v436
      %v568 = vunpack.c.l.b16 %v437
      %v569 = vunpack.c.l.b16 %v438
      %v570 = vunpack.c.l.b16 %v439
      %v571 = vunpack.c.l.b16 %v440
      %v572 = vunpack.c.l.b16 %v441
      %v573 = vunpack.c.l.b16 %v442
      %v574 = vunpack.c.l.b16 %v443
      %v575 = vunpack.c.l.b16 %v444
      %v576 = vunpack.c.l.b16 %v445
      %v577 = vunpack.c.l.b16 %v446
      %v578 = vunpack.c.l.b16 %v447
      %v579 = vunpack.c.l.b16 %v448
      %v580 = vunpack.c.l.b16 %v449
      %v581 = vunpack.c.l.b16 %v450
      %v582 = vunpack.c.l.b16 %v451
      %v583 = vunpack.c.l.b16 %v452
      %v584 = vunpack.c.l.b16 %v453
      %v585 = vunpack.c.l.b16 %v454
      %v586 = vpack.c.b16 %v523, %v522
      %v587 = vpack.c.b16 %v525, %v524
      %v588 = vpack.c.b16 %v527, %v526
      %v589 = vpack.c.b16 %v529, %v528
      %v590 = vpack.c.b16 %v531, %v530
      %v591 = vpack.c.b16 %v533, %v532
      %v592 = vpack.c.b16 %v535, %v534
      %v593 = vpack.c.b16 %v537, %v536
      %v594 = vpack.c.b16 %v539, %v538
      %v595 = vpack.c.b16 %v541, %v540
      %v596 = vpack.c.b16 %v543, %v542
      %v597 = vpack.c.b16 %v545, %v544
      %v598 = vpack.c.b16 %v547, %v546
      %v599 = vpack.c.b16 %v549, %v548
      %v600 = vpack.c.b16 %v551, %v550
      %v601 = vpack.c.b16 %v553, %v552
      %v602 = vpack.c.b16 %v555, %v554
      %v603 = vpack.c.b16 %v557, %v556
      %v604 = vpack.c.b16 %v559, %v558
      %v605 = vpack.c.b16 %v561, %v560
      %v606 = vpack.c.b16 %v563, %v562
      %v607 = vpack.c.b16 %v565, %v564
      %v608 = vpack.c.b16 %v567, %v566
      %v609 = vpack.c.b16 %v569, %v568
      %v610 = vpack.c.b16 %v571, %v570
      %v611 = vpack.c.b16 %v573, %v572
      %v612 = vpack.c.b16 %v575, %v574
      %v613 = vpack.c.b16 %v577, %v576
      %v614 = vpack.c.b16 %v579, %v578
      %v615 = vpack.c.b16 %v581, %v580
      %v616 = vpack.c.b16 %v583, %v582
      %v617 = vpack.c.b16 %v585, %v584
      %v621 = vunpack.c.l.b16 %v455
      %v622 = vunpack.c.h.b16 %v455
      %v623 = vunpack.c.l.b16 %v456
      %v624 = vunpack.c.h.b16 %v456
      %v625 = vunpack.c.l.b16 %v457
      %v626 = vpack.c.b16 %v621, %v621
      %v627 = vpack.c.b16 %v622, %v622
      %v628 = vpack.c.b16 %v623, %v623
      %v629 = vpack.c.b16 %v624, %v624
      %v630 = vpack.c.b16 %v625, %v625
      %vm631 = vcmask 64512
      %v633 = vsel %vm631, %v586, 0
      %v636 = vsel %vm631, %v587, 0
      %v639 = vsel %vm631, %v588, 0
      %v642 = vsel %vm631, %v589, 0
      %v645 = vsel %vm631, %v590, 0
      %v648 = vsel %vm631, %v591, 0
      %v651 = vsel %vm631, %v592, 0
      %v654 = vsel %vm631, %v593, 0
      %v657 = vsel %vm631, %v594, 0
      %v660 = vsel %vm631, %v595, 0
      %v663 = vsel %vm631, %v596, 0
      %v666 = vsel %vm631, %v597, 0
      %v669 = vsel %vm631, %v598, 0
      %v672 = vsel %vm631, %v599, 0
      %v675 = vsel %vm631, %v600, 0
      %v678 = vsel %vm631, %v601, 0
      %v681 = vsel %vm631, %v602, 0
      %v684 = vsel %vm631, %v603, 0
      %v687 = vsel %vm631, %v604, 0
      %v690 = vsel %vm631, %v605, 0
      %v693 = vsel %vm631, %v606, 0
      %v696 = vsel %vm631, %v607, 0
      %v699 = vsel %vm631, %v608, 0
      %v702 = vsel %vm631, %v609, 0
      %v705 = vsel %vm631, %v610, 0
      %v708 = vsel %vm631, %v611, 0
      %v711 = vsel %vm631, %v612, 0
      %v714 = vsel %vm631, %v613, 0
      %v717 = vsel %vm631, %v614, 0
      %v720 = vsel %vm631, %v615, 0
      %v723 = vsel %vm631, %v616, 0
      %v726 = vsel %vm631, %v617, 0
      %vm728 = vcmask 1043456
      %v730 = vsel %vm728, %v626, 0
      %v733 = vsel %vm728, %v627, 0
      %v736 = vsel %vm728, %v628, 0
      %v739 = vsel %vm728, %v629, 0
      %v742 = vsel %vm728, %v630, 0
      %744 = vmatprep.subr.bf16.mxu0 0
      %745 = vmatpush1.bf16.msra.mxu0 0
      %746 = vmatprep.subr.bf16.mxu0 0
      %747 = vmatpush1.bf16.msra.mxu0 0
      %748 = vmatprep.subr.bf16.mxu0 0
      %749 = vmatpush1.bf16.msra.mxu0 0
      %750 = vmatprep.subr.bf16.mxu0 0
      %751 = vmatpush1.bf16.msra.mxu0 0
      %752 = vmatprep.subr.bf16.mxu0 0
      %753 = vmatpush1.bf16.msra.mxu0 0
      %754 = vmatprep.subr.bf16.mxu0 0
      %755 = vmatpush1.bf16.msra.mxu0 0
      %756 = vmatprep.subr.bf16.mxu0 0
      %757 = vmatpush1.bf16.msra.mxu0 0
      %758 = vmatprep.subr.bf16.mxu0 %v733
      %759 = vmatpush1.bf16.msra.mxu0 %v730
      %760 = vmatprep.subr.bf16.mxu0 0
      %761 = vmatpush2.bf16.msra.mxu0 0
      %762 = vmatprep.subr.bf16.mxu0 0
      %763 = vmatpush2.bf16.msra.mxu0 0
      %764 = vmatprep.subr.bf16.mxu0 0
      %765 = vmatpush2.bf16.msra.mxu0 0
      %766 = vmatprep.subr.bf16.mxu0 0
      %767 = vmatpush2.bf16.msra.mxu0 0
      %768 = vmatprep.subr.bf16.mxu0 0
      %769 = vmatpush2.bf16.msra.mxu0 0
      %770 = vmatprep.subr.bf16.mxu0 0
      %771 = vmatpush2.bf16.msra.mxu0 0
      %772 = vmatprep.subr.bf16.mxu0 0
      %773 = vmatpush2.bf16.msra.mxu0 0
      %774 = vmatprep.subr.bf16.mxu0 0
      %775 = vmatpush2.bf16.msra.mxu0 0
      %776 = vmatprep.mubr.bf16.mxu0 0
      %777 = vmatmul.mubr.bf16.gmra.mxu0 %v633
      %v778 = vpop.f32.mrf.mxu0
      %v779 = vadd.f32 0.0, %v778
      %v780 = vpop.f32.mrf.mxu0
      %v781 = vadd.f32 0.0, %v780
      %v782 = vpop.f32.mrf.mxu0
      %v783 = vadd.f32 0.0, %v782
      %v784 = vpop.f32.mrf.mxu0
      %v785 = vadd.f32 0.0, %v784
      %786 = vmatprep.mubr.bf16.mxu0 0
      %787 = vmatmul.mubr.bf16.gmra.mxu0 %v636
      %v788 = vpop.f32.mrf.mxu0
      %v789 = vadd.f32 0.0, %v788
      %v790 = vpop.f32.mrf.mxu0
      %v791 = vadd.f32 0.0, %v790
      %v792 = vpop.f32.mrf.mxu0
      %v793 = vadd.f32 0.0, %v792
      %v794 = vpop.f32.mrf.mxu0
      %v795 = vadd.f32 0.0, %v794
      %796 = vmatprep.mubr.bf16.mxu0 0
      %797 = vmatmul.mubr.bf16.gmra.mxu0 %v639
      %v798 = vpop.f32.mrf.mxu0
      %v799 = vadd.f32 0.0, %v798
      %v800 = vpop.f32.mrf.mxu0
      %v801 = vadd.f32 0.0, %v800
      %v802 = vpop.f32.mrf.mxu0
      %v803 = vadd.f32 0.0, %v802
      %v804 = vpop.f32.mrf.mxu0
      %v805 = vadd.f32 0.0, %v804
      %806 = vmatprep.mubr.bf16.mxu0 0
      %807 = vmatmul.mubr.bf16.gmra.mxu0 %v642
      %v808 = vpop.f32.mrf.mxu0
      %v809 = vadd.f32 0.0, %v808
      %v810 = vpop.f32.mrf.mxu0
      %v811 = vadd.f32 0.0, %v810
      %v812 = vpop.f32.mrf.mxu0
      %v813 = vadd.f32 0.0, %v812
      %v814 = vpop.f32.mrf.mxu0
      %v815 = vadd.f32 0.0, %v814
      %816 = vmatprep.mubr.bf16.mxu0 0
      %817 = vmatmul.mubr.bf16.gmra.mxu0 %v645
      %v818 = vpop.f32.mrf.mxu0
      %v819 = vadd.f32 0.0, %v818
      %v820 = vpop.f32.mrf.mxu0
      %v821 = vadd.f32 0.0, %v820
      %v822 = vpop.f32.mrf.mxu0
      %v823 = vadd.f32 0.0, %v822
      %v824 = vpop.f32.mrf.mxu0
      %v825 = vadd.f32 0.0, %v824
      %826 = vmatprep.mubr.bf16.mxu0 0
      %827 = vmatmul.mubr.bf16.gmra.mxu0 %v648
      %v828 = vpop.f32.mrf.mxu0
      %v829 = vadd.f32 0.0, %v828
      %v830 = vpop.f32.mrf.mxu0
      %v831 = vadd.f32 0.0, %v830
      %v832 = vpop.f32.mrf.mxu0
      %v833 = vadd.f32 0.0, %v832
      %v834 = vpop.f32.mrf.mxu0
      %v835 = vadd.f32 0.0, %v834
      %836 = vmatprep.mubr.bf16.mxu0 0
      %837 = vmatmul.mubr.bf16.gmra.mxu0 %v651
      %v838 = vpop.f32.mrf.mxu0
      %v839 = vadd.f32 0.0, %v838
      %v840 = vpop.f32.mrf.mxu0
      %v841 = vadd.f32 0.0, %v840
      %v842 = vpop.f32.mrf.mxu0
      %v843 = vadd.f32 0.0, %v842
      %v844 = vpop.f32.mrf.mxu0
      %v845 = vadd.f32 0.0, %v844
      %846 = vmatprep.mubr.bf16.mxu0 0
      %847 = vmatmul.mubr.bf16.gmra.mxu0 %v654
      %v848 = vpop.f32.mrf.mxu0
      %v849 = vadd.f32 0.0, %v848
      %v850 = vpop.f32.mrf.mxu0
      %v851 = vadd.f32 0.0, %v850
      %v852 = vpop.f32.mrf.mxu0
      %v853 = vadd.f32 0.0, %v852
      %v854 = vpop.f32.mrf.mxu0
      %v855 = vadd.f32 0.0, %v854
      %856 = vmatprep.mubr.bf16.mxu0 0
      %857 = vmatmul.mubr.bf16.gmra.mxu0 %v657
      %v858 = vpop.f32.mrf.mxu0
      %v859 = vadd.f32 0.0, %v858
      %v860 = vpop.f32.mrf.mxu0
      %v861 = vadd.f32 0.0, %v860
      %v862 = vpop.f32.mrf.mxu0
      %v863 = vadd.f32 0.0, %v862
      %v864 = vpop.f32.mrf.mxu0
      %v865 = vadd.f32 0.0, %v864
      %866 = vmatprep.mubr.bf16.mxu0 0
      %867 = vmatmul.mubr.bf16.gmra.mxu0 %v660
      %v868 = vpop.f32.mrf.mxu0
      %v869 = vadd.f32 0.0, %v868
      %v870 = vpop.f32.mrf.mxu0
      %v871 = vadd.f32 0.0, %v870
      %v872 = vpop.f32.mrf.mxu0
      %v873 = vadd.f32 0.0, %v872
      %v874 = vpop.f32.mrf.mxu0
      %v875 = vadd.f32 0.0, %v874
      %876 = vmatprep.mubr.bf16.mxu0 0
      %877 = vmatmul.mubr.bf16.gmra.mxu0 %v663
      %v878 = vpop.f32.mrf.mxu0
      %v879 = vadd.f32 0.0, %v878
      %v880 = vpop.f32.mrf.mxu0
      %v881 = vadd.f32 0.0, %v880
      %v882 = vpop.f32.mrf.mxu0
      %v883 = vadd.f32 0.0, %v882
      %v884 = vpop.f32.mrf.mxu0
      %v885 = vadd.f32 0.0, %v884
      %886 = vmatprep.mubr.bf16.mxu0 0
      %887 = vmatmul.mubr.bf16.gmra.mxu0 %v666
      %v888 = vpop.f32.mrf.mxu0
      %v889 = vadd.f32 0.0, %v888
      %v890 = vpop.f32.mrf.mxu0
      %v891 = vadd.f32 0.0, %v890
      %v892 = vpop.f32.mrf.mxu0
      %v893 = vadd.f32 0.0, %v892
      %v894 = vpop.f32.mrf.mxu0
      %v895 = vadd.f32 0.0, %v894
      %896 = vmatprep.mubr.bf16.mxu0 0
      %897 = vmatmul.mubr.bf16.gmra.mxu0 %v669
      %v898 = vpop.f32.mrf.mxu0
      %v899 = vadd.f32 0.0, %v898
      %v900 = vpop.f32.mrf.mxu0
      %v901 = vadd.f32 0.0, %v900
      %v902 = vpop.f32.mrf.mxu0
      %v903 = vadd.f32 0.0, %v902
      %v904 = vpop.f32.mrf.mxu0
      %v905 = vadd.f32 0.0, %v904
      %906 = vmatprep.mubr.bf16.mxu0 0
      %907 = vmatmul.mubr.bf16.gmra.mxu0 %v672
      %v908 = vpop.f32.mrf.mxu0
      %v909 = vadd.f32 0.0, %v908
      %v910 = vpop.f32.mrf.mxu0
      %v911 = vadd.f32 0.0, %v910
      %v912 = vpop.f32.mrf.mxu0
      %v913 = vadd.f32 0.0, %v912
      %v914 = vpop.f32.mrf.mxu0
      %v915 = vadd.f32 0.0, %v914
      %916 = vmatprep.mubr.bf16.mxu0 0
      %917 = vmatmul.mubr.bf16.gmra.mxu0 %v675
      %v918 = vpop.f32.mrf.mxu0
      %v919 = vadd.f32 0.0, %v918
      %v920 = vpop.f32.mrf.mxu0
      %v921 = vadd.f32 0.0, %v920
      %v922 = vpop.f32.mrf.mxu0
      %v923 = vadd.f32 0.0, %v922
      %v924 = vpop.f32.mrf.mxu0
      %v925 = vadd.f32 0.0, %v924
      %926 = vmatprep.mubr.bf16.mxu0 0
      %927 = vmatmul.mubr.bf16.gmra.mxu0 %v678
      %v928 = vpop.f32.mrf.mxu0
      %v929 = vadd.f32 0.0, %v928
      %v930 = vpop.f32.mrf.mxu0
      %v931 = vadd.f32 0.0, %v930
      %v932 = vpop.f32.mrf.mxu0
      %v933 = vadd.f32 0.0, %v932
      %v934 = vpop.f32.mrf.mxu0
      %v935 = vadd.f32 0.0, %v934
      %936 = vmatprep.mubr.bf16.mxu0 0
      %937 = vmatmul.mubr.bf16.gmra.mxu0 %v681
      %v938 = vpop.f32.mrf.mxu0
      %v939 = vadd.f32 0.0, %v938
      %v940 = vpop.f32.mrf.mxu0
      %v941 = vadd.f32 0.0, %v940
      %v942 = vpop.f32.mrf.mxu0
      %v943 = vadd.f32 0.0, %v942
      %v944 = vpop.f32.mrf.mxu0
      %v945 = vadd.f32 0.0, %v944
      %946 = vmatprep.mubr.bf16.mxu0 0
      %947 = vmatmul.mubr.bf16.gmra.mxu0 %v684
      %v948 = vpop.f32.mrf.mxu0
      %v949 = vadd.f32 0.0, %v948
      %v950 = vpop.f32.mrf.mxu0
      %v951 = vadd.f32 0.0, %v950
      %v952 = vpop.f32.mrf.mxu0
      %v953 = vadd.f32 0.0, %v952
      %v954 = vpop.f32.mrf.mxu0
      %v955 = vadd.f32 0.0, %v954
      %956 = vmatprep.mubr.bf16.mxu0 0
      %957 = vmatmul.mubr.bf16.gmra.mxu0 %v687
      %v958 = vpop.f32.mrf.mxu0
      %v959 = vadd.f32 0.0, %v958
      %v960 = vpop.f32.mrf.mxu0
      %v961 = vadd.f32 0.0, %v960
      %v962 = vpop.f32.mrf.mxu0
      %v963 = vadd.f32 0.0, %v962
      %v964 = vpop.f32.mrf.mxu0
      %v965 = vadd.f32 0.0, %v964
      %966 = vmatprep.mubr.bf16.mxu0 0
      %967 = vmatmul.mubr.bf16.gmra.mxu0 %v690
      %v968 = vpop.f32.mrf.mxu0
      %v969 = vadd.f32 0.0, %v968
      %v970 = vpop.f32.mrf.mxu0
      %v971 = vadd.f32 0.0, %v970
      %v972 = vpop.f32.mrf.mxu0
      %v973 = vadd.f32 0.0, %v972
      %v974 = vpop.f32.mrf.mxu0
      %v975 = vadd.f32 0.0, %v974
      %976 = vmatprep.mubr.bf16.mxu0 0
      %977 = vmatmul.mubr.bf16.gmra.mxu0 %v693
      %v978 = vpop.f32.mrf.mxu0
      %v979 = vadd.f32 0.0, %v978
      %v980 = vpop.f32.mrf.mxu0
      %v981 = vadd.f32 0.0, %v980
      %v982 = vpop.f32.mrf.mxu0
      %v983 = vadd.f32 0.0, %v982
      %v984 = vpop.f32.mrf.mxu0
      %v985 = vadd.f32 0.0, %v984
      %986 = vmatprep.mubr.bf16.mxu0 0
      %987 = vmatmul.mubr.bf16.gmra.mxu0 %v696
      %v988 = vpop.f32.mrf.mxu0
      %v989 = vadd.f32 0.0, %v988
      %v990 = vpop.f32.mrf.mxu0
      %v991 = vadd.f32 0.0, %v990
      %v992 = vpop.f32.mrf.mxu0
      %v993 = vadd.f32 0.0, %v992
      %v994 = vpop.f32.mrf.mxu0
      %v995 = vadd.f32 0.0, %v994
      %996 = vmatprep.mubr.bf16.mxu0 0
      %997 = vmatmul.mubr.bf16.gmra.mxu0 %v699
      %v998 = vpop.f32.mrf.mxu0
      %v999 = vadd.f32 0.0, %v998
      %v1000 = vpop.f32.mrf.mxu0
      %v1001 = vadd.f32 0.0, %v1000
      %v1002 = vpop.f32.mrf.mxu0
      %v1003 = vadd.f32 0.0, %v1002
      %v1004 = vpop.f32.mrf.mxu0
      %v1005 = vadd.f32 0.0, %v1004
      %1006 = vmatprep.mubr.bf16.mxu0 0
      %1007 = vmatmul.mubr.bf16.gmra.mxu0 %v702
      %v1008 = vpop.f32.mrf.mxu0
      %v1009 = vadd.f32 0.0, %v1008
      %v1010 = vpop.f32.mrf.mxu0
      %v1011 = vadd.f32 0.0, %v1010
      %v1012 = vpop.f32.mrf.mxu0
      %v1013 = vadd.f32 0.0, %v1012
      %v1014 = vpop.f32.mrf.mxu0
      %v1015 = vadd.f32 0.0, %v1014
      %1016 = vmatprep.mubr.bf16.mxu0 0
      %1017 = vmatmul.mubr.bf16.gmra.mxu0 %v705
      %v1018 = vpop.f32.mrf.mxu0
      %v1019 = vadd.f32 0.0, %v1018
      %v1020 = vpop.f32.mrf.mxu0
      %v1021 = vadd.f32 0.0, %v1020
      %v1022 = vpop.f32.mrf.mxu0
      %v1023 = vadd.f32 0.0, %v1022
      %v1024 = vpop.f32.mrf.mxu0
      %v1025 = vadd.f32 0.0, %v1024
      %1026 = vmatprep.mubr.bf16.mxu0 0
      %1027 = vmatmul.mubr.bf16.gmra.mxu0 %v708
      %v1028 = vpop.f32.mrf.mxu0
      %v1029 = vadd.f32 0.0, %v1028
      %v1030 = vpop.f32.mrf.mxu0
      %v1031 = vadd.f32 0.0, %v1030
      %v1032 = vpop.f32.mrf.mxu0
      %v1033 = vadd.f32 0.0, %v1032
      %v1034 = vpop.f32.mrf.mxu0
      %v1035 = vadd.f32 0.0, %v1034
      %1036 = vmatprep.mubr.bf16.mxu0 0
      %1037 = vmatmul.mubr.bf16.gmra.mxu0 %v711
      %v1038 = vpop.f32.mrf.mxu0
      %v1039 = vadd.f32 0.0, %v1038
      %v1040 = vpop.f32.mrf.mxu0
      %v1041 = vadd.f32 0.0, %v1040
      %v1042 = vpop.f32.mrf.mxu0
      %v1043 = vadd.f32 0.0, %v1042
      %v1044 = vpop.f32.mrf.mxu0
      %v1045 = vadd.f32 0.0, %v1044
      %1046 = vmatprep.mubr.bf16.mxu0 0
      %1047 = vmatmul.mubr.bf16.gmra.mxu0 %v714
      %v1048 = vpop.f32.mrf.mxu0
      %v1049 = vadd.f32 0.0, %v1048
      %v1050 = vpop.f32.mrf.mxu0
      %v1051 = vadd.f32 0.0, %v1050
      %v1052 = vpop.f32.mrf.mxu0
      %v1053 = vadd.f32 0.0, %v1052
      %v1054 = vpop.f32.mrf.mxu0
      %v1055 = vadd.f32 0.0, %v1054
      %1056 = vmatprep.mubr.bf16.mxu0 0
      %1057 = vmatmul.mubr.bf16.gmra.mxu0 %v717
      %v1058 = vpop.f32.mrf.mxu0
      %v1059 = vadd.f32 0.0, %v1058
      %v1060 = vpop.f32.mrf.mxu0
      %v1061 = vadd.f32 0.0, %v1060
      %v1062 = vpop.f32.mrf.mxu0
      %v1063 = vadd.f32 0.0, %v1062
      %v1064 = vpop.f32.mrf.mxu0
      %v1065 = vadd.f32 0.0, %v1064
      %1066 = vmatprep.mubr.bf16.mxu0 0
      %1067 = vmatmul.mubr.bf16.gmra.mxu0 %v720
      %v1068 = vpop.f32.mrf.mxu0
      %v1069 = vadd.f32 0.0, %v1068
      %v1070 = vpop.f32.mrf.mxu0
      %v1071 = vadd.f32 0.0, %v1070
      %v1072 = vpop.f32.mrf.mxu0
      %v1073 = vadd.f32 0.0, %v1072
      %v1074 = vpop.f32.mrf.mxu0
      %v1075 = vadd.f32 0.0, %v1074
      %1076 = vmatprep.mubr.bf16.mxu0 0
      %1077 = vmatmul.mubr.bf16.gmra.mxu0 %v723
      %v1078 = vpop.f32.mrf.mxu0
      %v1079 = vadd.f32 0.0, %v1078
      %v1080 = vpop.f32.mrf.mxu0
      %v1081 = vadd.f32 0.0, %v1080
      %v1082 = vpop.f32.mrf.mxu0
      %v1083 = vadd.f32 0.0, %v1082
      %v1084 = vpop.f32.mrf.mxu0
      %v1085 = vadd.f32 0.0, %v1084
      %1086 = vmatprep.mubr.bf16.mxu0 0
      %1087 = vmatmul.mubr.bf16.gmra.mxu0 %v726
      %v1088 = vpop.f32.mrf.mxu0
      %v1089 = vadd.f32 0.0, %v1088
      %v1090 = vpop.f32.mrf.mxu0
      %v1091 = vadd.f32 0.0, %v1090
      %v1092 = vpop.f32.mrf.mxu0
      %v1093 = vadd.f32 0.0, %v1092
      %v1094 = vpop.f32.mrf.mxu0
      %v1095 = vadd.f32 0.0, %v1094
      %1096 = vdwg.mxu0
      %1097 = vmatprep.subr.bf16.mxu0 0
      %1098 = vmatpush1.bf16.msra.mxu0 0
      %1099 = vmatprep.subr.bf16.mxu0 0
      %1100 = vmatpush1.bf16.msra.mxu0 0
      %1101 = vmatprep.subr.bf16.mxu0 0
      %1102 = vmatpush1.bf16.msra.mxu0 0
      %1103 = vmatprep.subr.bf16.mxu0 0
      %1104 = vmatpush1.bf16.msra.mxu0 0
      %1105 = vmatprep.subr.bf16.mxu0 0
      %1106 = vmatpush1.bf16.msra.mxu0 0
      %1107 = vmatprep.subr.bf16.mxu0 0
      %1108 = vmatpush1.bf16.msra.mxu0 0
      %1109 = vmatprep.subr.bf16.mxu0 0
      %1110 = vmatpush1.bf16.msra.mxu0 0
      %1111 = vmatprep.subr.bf16.mxu0 %v739
      %1112 = vmatpush1.bf16.msra.mxu0 %v736
      %1113 = vmatprep.subr.bf16.mxu0 0
      %1114 = vmatpush2.bf16.msra.mxu0 0
      %1115 = vmatprep.subr.bf16.mxu0 0
      %1116 = vmatpush2.bf16.msra.mxu0 0
      %1117 = vmatprep.subr.bf16.mxu0 0
      %1118 = vmatpush2.bf16.msra.mxu0 0
      %1119 = vmatprep.subr.bf16.mxu0 0
      %1120 = vmatpush2.bf16.msra.mxu0 0
      %1121 = vmatprep.subr.bf16.mxu0 0
      %1122 = vmatpush2.bf16.msra.mxu0 0
      %1123 = vmatprep.subr.bf16.mxu0 0
      %1124 = vmatpush2.bf16.msra.mxu0 0
      %1125 = vmatprep.subr.bf16.mxu0 0
      %1126 = vmatpush2.bf16.msra.mxu0 0
      %1127 = vmatprep.subr.bf16.mxu0 0
      %1128 = vmatpush2.bf16.msra.mxu0 0
      %1129 = vmatprep.mubr.bf16.mxu0 0
      %1130 = vmatmul.mubr.bf16.gmra.mxu0 %v633
      %v1131 = vpop.f32.mrf.mxu0
      %v1132 = vadd.f32 0.0, %v1131
      %v1133 = vpop.f32.mrf.mxu0
      %v1134 = vadd.f32 0.0, %v1133
      %v1135 = vpop.f32.mrf.mxu0
      %v1136 = vadd.f32 0.0, %v1135
      %v1137 = vpop.f32.mrf.mxu0
      %v1138 = vadd.f32 0.0, %v1137
      %1139 = vmatprep.mubr.bf16.mxu0 0
      %1140 = vmatmul.mubr.bf16.gmra.mxu0 %v636
      %v1141 = vpop.f32.mrf.mxu0
      %v1142 = vadd.f32 0.0, %v1141
      %v1143 = vpop.f32.mrf.mxu0
      %v1144 = vadd.f32 0.0, %v1143
      %v1145 = vpop.f32.mrf.mxu0
      %v1146 = vadd.f32 0.0, %v1145
      %v1147 = vpop.f32.mrf.mxu0
      %v1148 = vadd.f32 0.0, %v1147
      %1149 = vmatprep.mubr.bf16.mxu0 0
      %1150 = vmatmul.mubr.bf16.gmra.mxu0 %v639
      %v1151 = vpop.f32.mrf.mxu0
      %v1152 = vadd.f32 0.0, %v1151
      %v1153 = vpop.f32.mrf.mxu0
      %v1154 = vadd.f32 0.0, %v1153
      %v1155 = vpop.f32.mrf.mxu0
      %v1156 = vadd.f32 0.0, %v1155
      %v1157 = vpop.f32.mrf.mxu0
      %v1158 = vadd.f32 0.0, %v1157
      %1159 = vmatprep.mubr.bf16.mxu0 0
      %1160 = vmatmul.mubr.bf16.gmra.mxu0 %v642
      %v1161 = vpop.f32.mrf.mxu0
      %v1162 = vadd.f32 0.0, %v1161
      %v1163 = vpop.f32.mrf.mxu0
      %v1164 = vadd.f32 0.0, %v1163
      %v1165 = vpop.f32.mrf.mxu0
      %v1166 = vadd.f32 0.0, %v1165
      %v1167 = vpop.f32.mrf.mxu0
      %v1168 = vadd.f32 0.0, %v1167
      %1169 = vmatprep.mubr.bf16.mxu0 0
      %1170 = vmatmul.mubr.bf16.gmra.mxu0 %v645
      %v1171 = vpop.f32.mrf.mxu0
      %v1172 = vadd.f32 0.0, %v1171
      %v1173 = vpop.f32.mrf.mxu0
      %v1174 = vadd.f32 0.0, %v1173
      %v1175 = vpop.f32.mrf.mxu0
      %v1176 = vadd.f32 0.0, %v1175
      %v1177 = vpop.f32.mrf.mxu0
      %v1178 = vadd.f32 0.0, %v1177
      %1179 = vmatprep.mubr.bf16.mxu0 0
      %1180 = vmatmul.mubr.bf16.gmra.mxu0 %v648
      %v1181 = vpop.f32.mrf.mxu0
      %v1182 = vadd.f32 0.0, %v1181
      %v1183 = vpop.f32.mrf.mxu0
      %v1184 = vadd.f32 0.0, %v1183
      %v1185 = vpop.f32.mrf.mxu0
      %v1186 = vadd.f32 0.0, %v1185
      %v1187 = vpop.f32.mrf.mxu0
      %v1188 = vadd.f32 0.0, %v1187
      %1189 = vmatprep.mubr.bf16.mxu0 0
      %1190 = vmatmul.mubr.bf16.gmra.mxu0 %v651
      %v1191 = vpop.f32.mrf.mxu0
      %v1192 = vadd.f32 0.0, %v1191
      %v1193 = vpop.f32.mrf.mxu0
      %v1194 = vadd.f32 0.0, %v1193
      %v1195 = vpop.f32.mrf.mxu0
      %v1196 = vadd.f32 0.0, %v1195
      %v1197 = vpop.f32.mrf.mxu0
      %v1198 = vadd.f32 0.0, %v1197
      %1199 = vmatprep.mubr.bf16.mxu0 0
      %1200 = vmatmul.mubr.bf16.gmra.mxu0 %v654
      %v1201 = vpop.f32.mrf.mxu0
      %v1202 = vadd.f32 0.0, %v1201
      %v1203 = vpop.f32.mrf.mxu0
      %v1204 = vadd.f32 0.0, %v1203
      %v1205 = vpop.f32.mrf.mxu0
      %v1206 = vadd.f32 0.0, %v1205
      %v1207 = vpop.f32.mrf.mxu0
      %v1208 = vadd.f32 0.0, %v1207
      %1209 = vmatprep.mubr.bf16.mxu0 0
      %1210 = vmatmul.mubr.bf16.gmra.mxu0 %v657
      %v1211 = vpop.f32.mrf.mxu0
      %v1212 = vadd.f32 0.0, %v1211
      %v1213 = vpop.f32.mrf.mxu0
      %v1214 = vadd.f32 0.0, %v1213
      %v1215 = vpop.f32.mrf.mxu0
      %v1216 = vadd.f32 0.0, %v1215
      %v1217 = vpop.f32.mrf.mxu0
      %v1218 = vadd.f32 0.0, %v1217
      %1219 = vmatprep.mubr.bf16.mxu0 0
      %1220 = vmatmul.mubr.bf16.gmra.mxu0 %v660
      %v1221 = vpop.f32.mrf.mxu0
      %v1222 = vadd.f32 0.0, %v1221
      %v1223 = vpop.f32.mrf.mxu0
      %v1224 = vadd.f32 0.0, %v1223
      %v1225 = vpop.f32.mrf.mxu0
      %v1226 = vadd.f32 0.0, %v1225
      %v1227 = vpop.f32.mrf.mxu0
      %v1228 = vadd.f32 0.0, %v1227
      %1229 = vmatprep.mubr.bf16.mxu0 0
      %1230 = vmatmul.mubr.bf16.gmra.mxu0 %v663
      %v1231 = vpop.f32.mrf.mxu0
      %v1232 = vadd.f32 0.0, %v1231
      %v1233 = vpop.f32.mrf.mxu0
      %v1234 = vadd.f32 0.0, %v1233
      %v1235 = vpop.f32.mrf.mxu0
      %v1236 = vadd.f32 0.0, %v1235
      %v1237 = vpop.f32.mrf.mxu0
      %v1238 = vadd.f32 0.0, %v1237
      %1239 = vmatprep.mubr.bf16.mxu0 0
      %1240 = vmatmul.mubr.bf16.gmra.mxu0 %v666
      %v1241 = vpop.f32.mrf.mxu0
      %v1242 = vadd.f32 0.0, %v1241
      %v1243 = vpop.f32.mrf.mxu0
      %v1244 = vadd.f32 0.0, %v1243
      %v1245 = vpop.f32.mrf.mxu0
      %v1246 = vadd.f32 0.0, %v1245
      %v1247 = vpop.f32.mrf.mxu0
      %v1248 = vadd.f32 0.0, %v1247
      %1249 = vmatprep.mubr.bf16.mxu0 0
      %1250 = vmatmul.mubr.bf16.gmra.mxu0 %v669
      %v1251 = vpop.f32.mrf.mxu0
      %v1252 = vadd.f32 0.0, %v1251
      %v1253 = vpop.f32.mrf.mxu0
      %v1254 = vadd.f32 0.0, %v1253
      %v1255 = vpop.f32.mrf.mxu0
      %v1256 = vadd.f32 0.0, %v1255
      %v1257 = vpop.f32.mrf.mxu0
      %v1258 = vadd.f32 0.0, %v1257
      %1259 = vmatprep.mubr.bf16.mxu0 0
      %1260 = vmatmul.mubr.bf16.gmra.mxu0 %v672
      %v1261 = vpop.f32.mrf.mxu0
      %v1262 = vadd.f32 0.0, %v1261
      %v1263 = vpop.f32.mrf.mxu0
      %v1264 = vadd.f32 0.0, %v1263
      %v1265 = vpop.f32.mrf.mxu0
      %v1266 = vadd.f32 0.0, %v1265
      %v1267 = vpop.f32.mrf.mxu0
      %v1268 = vadd.f32 0.0, %v1267
      %1269 = vmatprep.mubr.bf16.mxu0 0
      %1270 = vmatmul.mubr.bf16.gmra.mxu0 %v675
      %v1271 = vpop.f32.mrf.mxu0
      %v1272 = vadd.f32 0.0, %v1271
      %v1273 = vpop.f32.mrf.mxu0
      %v1274 = vadd.f32 0.0, %v1273
      %v1275 = vpop.f32.mrf.mxu0
      %v1276 = vadd.f32 0.0, %v1275
      %v1277 = vpop.f32.mrf.mxu0
      %v1278 = vadd.f32 0.0, %v1277
      %1279 = vmatprep.mubr.bf16.mxu0 0
      %1280 = vmatmul.mubr.bf16.gmra.mxu0 %v678
      %v1281 = vpop.f32.mrf.mxu0
      %v1282 = vadd.f32 0.0, %v1281
      %v1283 = vpop.f32.mrf.mxu0
      %v1284 = vadd.f32 0.0, %v1283
      %v1285 = vpop.f32.mrf.mxu0
      %v1286 = vadd.f32 0.0, %v1285
      %v1287 = vpop.f32.mrf.mxu0
      %v1288 = vadd.f32 0.0, %v1287
      %1289 = vmatprep.mubr.bf16.mxu0 0
      %1290 = vmatmul.mubr.bf16.gmra.mxu0 %v681
      %v1291 = vpop.f32.mrf.mxu0
      %v1292 = vadd.f32 0.0, %v1291
      %v1293 = vpop.f32.mrf.mxu0
      %v1294 = vadd.f32 0.0, %v1293
      %v1295 = vpop.f32.mrf.mxu0
      %v1296 = vadd.f32 0.0, %v1295
      %v1297 = vpop.f32.mrf.mxu0
      %v1298 = vadd.f32 0.0, %v1297
      %1299 = vmatprep.mubr.bf16.mxu0 0
      %1300 = vmatmul.mubr.bf16.gmra.mxu0 %v684
      %v1301 = vpop.f32.mrf.mxu0
      %v1302 = vadd.f32 0.0, %v1301
      %v1303 = vpop.f32.mrf.mxu0
      %v1304 = vadd.f32 0.0, %v1303
      %v1305 = vpop.f32.mrf.mxu0
      %v1306 = vadd.f32 0.0, %v1305
      %v1307 = vpop.f32.mrf.mxu0
      %v1308 = vadd.f32 0.0, %v1307
      %1309 = vmatprep.mubr.bf16.mxu0 0
      %1310 = vmatmul.mubr.bf16.gmra.mxu0 %v687
      %v1311 = vpop.f32.mrf.mxu0
      %v1312 = vadd.f32 0.0, %v1311
      %v1313 = vpop.f32.mrf.mxu0
      %v1314 = vadd.f32 0.0, %v1313
      %v1315 = vpop.f32.mrf.mxu0
      %v1316 = vadd.f32 0.0, %v1315
      %v1317 = vpop.f32.mrf.mxu0
      %v1318 = vadd.f32 0.0, %v1317
      %1319 = vmatprep.mubr.bf16.mxu0 0
      %1320 = vmatmul.mubr.bf16.gmra.mxu0 %v690
      %v1321 = vpop.f32.mrf.mxu0
      %v1322 = vadd.f32 0.0, %v1321
      %v1323 = vpop.f32.mrf.mxu0
      %v1324 = vadd.f32 0.0, %v1323
      %v1325 = vpop.f32.mrf.mxu0
      %v1326 = vadd.f32 0.0, %v1325
      %v1327 = vpop.f32.mrf.mxu0
      %v1328 = vadd.f32 0.0, %v1327
      %1329 = vmatprep.mubr.bf16.mxu0 0
      %1330 = vmatmul.mubr.bf16.gmra.mxu0 %v693
      %v1331 = vpop.f32.mrf.mxu0
      %v1332 = vadd.f32 0.0, %v1331
      %v1333 = vpop.f32.mrf.mxu0
      %v1334 = vadd.f32 0.0, %v1333
      %v1335 = vpop.f32.mrf.mxu0
      %v1336 = vadd.f32 0.0, %v1335
      %v1337 = vpop.f32.mrf.mxu0
      %v1338 = vadd.f32 0.0, %v1337
      %1339 = vmatprep.mubr.bf16.mxu0 0
      %1340 = vmatmul.mubr.bf16.gmra.mxu0 %v696
      %v1341 = vpop.f32.mrf.mxu0
      %v1342 = vadd.f32 0.0, %v1341
      %v1343 = vpop.f32.mrf.mxu0
      %v1344 = vadd.f32 0.0, %v1343
      %v1345 = vpop.f32.mrf.mxu0
      %v1346 = vadd.f32 0.0, %v1345
      %v1347 = vpop.f32.mrf.mxu0
      %v1348 = vadd.f32 0.0, %v1347
      %1349 = vmatprep.mubr.bf16.mxu0 0
      %1350 = vmatmul.mubr.bf16.gmra.mxu0 %v699
      %v1351 = vpop.f32.mrf.mxu0
      %v1352 = vadd.f32 0.0, %v1351
      %v1353 = vpop.f32.mrf.mxu0
      %v1354 = vadd.f32 0.0, %v1353
      %v1355 = vpop.f32.mrf.mxu0
      %v1356 = vadd.f32 0.0, %v1355
      %v1357 = vpop.f32.mrf.mxu0
      %v1358 = vadd.f32 0.0, %v1357
      %1359 = vmatprep.mubr.bf16.mxu0 0
      %1360 = vmatmul.mubr.bf16.gmra.mxu0 %v702
      %v1361 = vpop.f32.mrf.mxu0
      %v1362 = vadd.f32 0.0, %v1361
      %v1363 = vpop.f32.mrf.mxu0
      %v1364 = vadd.f32 0.0, %v1363
      %v1365 = vpop.f32.mrf.mxu0
      %v1366 = vadd.f32 0.0, %v1365
      %v1367 = vpop.f32.mrf.mxu0
      %v1368 = vadd.f32 0.0, %v1367
      %1369 = vmatprep.mubr.bf16.mxu0 0
      %1370 = vmatmul.mubr.bf16.gmra.mxu0 %v705
      %v1371 = vpop.f32.mrf.mxu0
      %v1372 = vadd.f32 0.0, %v1371
      %v1373 = vpop.f32.mrf.mxu0
      %v1374 = vadd.f32 0.0, %v1373
      %v1375 = vpop.f32.mrf.mxu0
      %v1376 = vadd.f32 0.0, %v1375
      %v1377 = vpop.f32.mrf.mxu0
      %v1378 = vadd.f32 0.0, %v1377
      %1379 = vmatprep.mubr.bf16.mxu0 0
      %1380 = vmatmul.mubr.bf16.gmra.mxu0 %v708
      %v1381 = vpop.f32.mrf.mxu0
      %v1382 = vadd.f32 0.0, %v1381
      %v1383 = vpop.f32.mrf.mxu0
      %v1384 = vadd.f32 0.0, %v1383
      %v1385 = vpop.f32.mrf.mxu0
      %v1386 = vadd.f32 0.0, %v1385
      %v1387 = vpop.f32.mrf.mxu0
      %v1388 = vadd.f32 0.0, %v1387
      %1389 = vmatprep.mubr.bf16.mxu0 0
      %1390 = vmatmul.mubr.bf16.gmra.mxu0 %v711
      %v1391 = vpop.f32.mrf.mxu0
      %v1392 = vadd.f32 0.0, %v1391
      %v1393 = vpop.f32.mrf.mxu0
      %v1394 = vadd.f32 0.0, %v1393
      %v1395 = vpop.f32.mrf.mxu0
      %v1396 = vadd.f32 0.0, %v1395
      %v1397 = vpop.f32.mrf.mxu0
      %v1398 = vadd.f32 0.0, %v1397
      %1399 = vmatprep.mubr.bf16.mxu0 0
      %1400 = vmatmul.mubr.bf16.gmra.mxu0 %v714
      %v1401 = vpop.f32.mrf.mxu0
      %v1402 = vadd.f32 0.0, %v1401
      %v1403 = vpop.f32.mrf.mxu0
      %v1404 = vadd.f32 0.0, %v1403
      %v1405 = vpop.f32.mrf.mxu0
      %v1406 = vadd.f32 0.0, %v1405
      %v1407 = vpop.f32.mrf.mxu0
      %v1408 = vadd.f32 0.0, %v1407
      %1409 = vmatprep.mubr.bf16.mxu0 0
      %1410 = vmatmul.mubr.bf16.gmra.mxu0 %v717
      %v1411 = vpop.f32.mrf.mxu0
      %v1412 = vadd.f32 0.0, %v1411
      %v1413 = vpop.f32.mrf.mxu0
      %v1414 = vadd.f32 0.0, %v1413
      %v1415 = vpop.f32.mrf.mxu0
      %v1416 = vadd.f32 0.0, %v1415
      %v1417 = vpop.f32.mrf.mxu0
      %v1418 = vadd.f32 0.0, %v1417
      %1419 = vmatprep.mubr.bf16.mxu0 0
      %1420 = vmatmul.mubr.bf16.gmra.mxu0 %v720
      %v1421 = vpop.f32.mrf.mxu0
      %v1422 = vadd.f32 0.0, %v1421
      %v1423 = vpop.f32.mrf.mxu0
      %v1424 = vadd.f32 0.0, %v1423
      %v1425 = vpop.f32.mrf.mxu0
      %v1426 = vadd.f32 0.0, %v1425
      %v1427 = vpop.f32.mrf.mxu0
      %v1428 = vadd.f32 0.0, %v1427
      %1429 = vmatprep.mubr.bf16.mxu0 0
      %1430 = vmatmul.mubr.bf16.gmra.mxu0 %v723
      %v1431 = vpop.f32.mrf.mxu0
      %v1432 = vadd.f32 0.0, %v1431
      %v1433 = vpop.f32.mrf.mxu0
      %v1434 = vadd.f32 0.0, %v1433
      %v1435 = vpop.f32.mrf.mxu0
      %v1436 = vadd.f32 0.0, %v1435
      %v1437 = vpop.f32.mrf.mxu0
      %v1438 = vadd.f32 0.0, %v1437
      %1439 = vmatprep.mubr.bf16.mxu0 0
      %1440 = vmatmul.mubr.bf16.gmra.mxu0 %v726
      %v1441 = vpop.f32.mrf.mxu0
      %v1442 = vadd.f32 0.0, %v1441
      %v1443 = vpop.f32.mrf.mxu0
      %v1444 = vadd.f32 0.0, %v1443
      %v1445 = vpop.f32.mrf.mxu0
      %v1446 = vadd.f32 0.0, %v1445
      %v1447 = vpop.f32.mrf.mxu0
      %v1448 = vadd.f32 0.0, %v1447
      %1449 = vdwg.mxu0
      %1450 = vmatprep.subr.bf16.mxu0 0
      %1451 = vmatpush1.bf16.msra.mxu0 0
      %1452 = vmatprep.subr.bf16.mxu0 0
      %1453 = vmatpush1.bf16.msra.mxu0 0
      %1454 = vmatprep.subr.bf16.mxu0 0
      %1455 = vmatpush1.bf16.msra.mxu0 0
      %1456 = vmatprep.subr.bf16.mxu0 0
      %1457 = vmatpush1.bf16.msra.mxu0 0
      %1458 = vmatprep.subr.bf16.mxu0 0
      %1459 = vmatpush1.bf16.msra.mxu0 0
      %1460 = vmatprep.subr.bf16.mxu0 0
      %1461 = vmatpush1.bf16.msra.mxu0 0
      %1462 = vmatprep.subr.bf16.mxu0 0
      %1463 = vmatpush1.bf16.msra.mxu0 0
      %1464 = vmatprep.subr.bf16.mxu0 0
      %1465 = vmatpush1.bf16.msra.mxu0 %v742
      %1466 = vmatprep.subr.bf16.mxu0 0
      %1467 = vmatpush2.bf16.msra.mxu0 0
      %1468 = vmatprep.subr.bf16.mxu0 0
      %1469 = vmatpush2.bf16.msra.mxu0 0
      %1470 = vmatprep.subr.bf16.mxu0 0
      %1471 = vmatpush2.bf16.msra.mxu0 0
      %1472 = vmatprep.subr.bf16.mxu0 0
      %1473 = vmatpush2.bf16.msra.mxu0 0
      %1474 = vmatprep.subr.bf16.mxu0 0
      %1475 = vmatpush2.bf16.msra.mxu0 0
      %1476 = vmatprep.subr.bf16.mxu0 0
      %1477 = vmatpush2.bf16.msra.mxu0 0
      %1478 = vmatprep.subr.bf16.mxu0 0
      %1479 = vmatpush2.bf16.msra.mxu0 0
      %1480 = vmatprep.subr.bf16.mxu0 0
      %1481 = vmatpush2.bf16.msra.mxu0 0
      %1482 = vmatprep.mubr.bf16.mxu0 0
      %1483 = vmatmul.mubr.bf16.gmra.mxu0 %v633
      %v1484 = vpop.f32.mrf.mxu0
      %v1485 = vadd.f32 0.0, %v1484
      %v1486 = vpop.f32.mrf.mxu0
      %v1487 = vpop.f32.mrf.mxu0
      %v1488 = vadd.f32 0.0, %v1487
      %v1489 = vpop.f32.mrf.mxu0
      %1490 = vmatprep.mubr.bf16.mxu0 0
      %1491 = vmatmul.mubr.bf16.gmra.mxu0 %v636
      %v1492 = vpop.f32.mrf.mxu0
      %v1493 = vadd.f32 0.0, %v1492
      %v1494 = vpop.f32.mrf.mxu0
      %v1495 = vpop.f32.mrf.mxu0
      %v1496 = vadd.f32 0.0, %v1495
      %v1497 = vpop.f32.mrf.mxu0
      %1498 = vmatprep.mubr.bf16.mxu0 0
      %1499 = vmatmul.mubr.bf16.gmra.mxu0 %v639
      %v1500 = vpop.f32.mrf.mxu0
      %v1501 = vadd.f32 0.0, %v1500
      %v1502 = vpop.f32.mrf.mxu0
      %v1503 = vpop.f32.mrf.mxu0
      %v1504 = vadd.f32 0.0, %v1503
      %v1505 = vpop.f32.mrf.mxu0
      %1506 = vmatprep.mubr.bf16.mxu0 0
      %1507 = vmatmul.mubr.bf16.gmra.mxu0 %v642
      %v1508 = vpop.f32.mrf.mxu0
      %v1509 = vadd.f32 0.0, %v1508
      %v1510 = vpop.f32.mrf.mxu0
      %v1511 = vpop.f32.mrf.mxu0
      %v1512 = vadd.f32 0.0, %v1511
      %v1513 = vpop.f32.mrf.mxu0
      %1514 = vmatprep.mubr.bf16.mxu0 0
      %1515 = vmatmul.mubr.bf16.gmra.mxu0 %v645
      %v1516 = vpop.f32.mrf.mxu0
      %v1517 = vadd.f32 0.0, %v1516
      %v1518 = vpop.f32.mrf.mxu0
      %v1519 = vpop.f32.mrf.mxu0
      %v1520 = vadd.f32 0.0, %v1519
      %v1521 = vpop.f32.mrf.mxu0
      %1522 = vmatprep.mubr.bf16.mxu0 0
      %1523 = vmatmul.mubr.bf16.gmra.mxu0 %v648
      %v1524 = vpop.f32.mrf.mxu0
      %v1525 = vadd.f32 0.0, %v1524
      %v1526 = vpop.f32.mrf.mxu0
      %v1527 = vpop.f32.mrf.mxu0
      %v1528 = vadd.f32 0.0, %v1527
      %v1529 = vpop.f32.mrf.mxu0
      %1530 = vmatprep.mubr.bf16.mxu0 0
      %1531 = vmatmul.mubr.bf16.gmra.mxu0 %v651
      %v1532 = vpop.f32.mrf.mxu0
      %v1533 = vadd.f32 0.0, %v1532
      %v1534 = vpop.f32.mrf.mxu0
      %v1535 = vpop.f32.mrf.mxu0
      %v1536 = vadd.f32 0.0, %v1535
      %v1537 = vpop.f32.mrf.mxu0
      %1538 = vmatprep.mubr.bf16.mxu0 0
      %1539 = vmatmul.mubr.bf16.gmra.mxu0 %v654
      %v1540 = vpop.f32.mrf.mxu0
      %v1541 = vadd.f32 0.0, %v1540
      %v1542 = vpop.f32.mrf.mxu0
      %v1543 = vpop.f32.mrf.mxu0
      %v1544 = vadd.f32 0.0, %v1543
      %v1545 = vpop.f32.mrf.mxu0
      %1546 = vmatprep.mubr.bf16.mxu0 0
      %1547 = vmatmul.mubr.bf16.gmra.mxu0 %v657
      %v1548 = vpop.f32.mrf.mxu0
      %v1549 = vadd.f32 0.0, %v1548
      %v1550 = vpop.f32.mrf.mxu0
      %v1551 = vpop.f32.mrf.mxu0
      %v1552 = vadd.f32 0.0, %v1551
      %v1553 = vpop.f32.mrf.mxu0
      %1554 = vmatprep.mubr.bf16.mxu0 0
      %1555 = vmatmul.mubr.bf16.gmra.mxu0 %v660
      %v1556 = vpop.f32.mrf.mxu0
      %v1557 = vadd.f32 0.0, %v1556
      %v1558 = vpop.f32.mrf.mxu0
      %v1559 = vpop.f32.mrf.mxu0
      %v1560 = vadd.f32 0.0, %v1559
      %v1561 = vpop.f32.mrf.mxu0
      %1562 = vmatprep.mubr.bf16.mxu0 0
      %1563 = vmatmul.mubr.bf16.gmra.mxu0 %v663
      %v1564 = vpop.f32.mrf.mxu0
      %v1565 = vadd.f32 0.0, %v1564
      %v1566 = vpop.f32.mrf.mxu0
      %v1567 = vpop.f32.mrf.mxu0
      %v1568 = vadd.f32 0.0, %v1567
      %v1569 = vpop.f32.mrf.mxu0
      %1570 = vmatprep.mubr.bf16.mxu0 0
      %1571 = vmatmul.mubr.bf16.gmra.mxu0 %v666
      %v1572 = vpop.f32.mrf.mxu0
      %v1573 = vadd.f32 0.0, %v1572
      %v1574 = vpop.f32.mrf.mxu0
      %v1575 = vpop.f32.mrf.mxu0
      %v1576 = vadd.f32 0.0, %v1575
      %v1577 = vpop.f32.mrf.mxu0
      %1578 = vmatprep.mubr.bf16.mxu0 0
      %1579 = vmatmul.mubr.bf16.gmra.mxu0 %v669
      %v1580 = vpop.f32.mrf.mxu0
      %v1581 = vadd.f32 0.0, %v1580
      %v1582 = vpop.f32.mrf.mxu0
      %v1583 = vpop.f32.mrf.mxu0
      %v1584 = vadd.f32 0.0, %v1583
      %v1585 = vpop.f32.mrf.mxu0
      %1586 = vmatprep.mubr.bf16.mxu0 0
      %1587 = vmatmul.mubr.bf16.gmra.mxu0 %v672
      %v1588 = vpop.f32.mrf.mxu0
      %v1589 = vadd.f32 0.0, %v1588
      %v1590 = vpop.f32.mrf.mxu0
      %v1591 = vpop.f32.mrf.mxu0
      %v1592 = vadd.f32 0.0, %v1591
      %v1593 = vpop.f32.mrf.mxu0
      %1594 = vmatprep.mubr.bf16.mxu0 0
      %1595 = vmatmul.mubr.bf16.gmra.mxu0 %v675
      %v1596 = vpop.f32.mrf.mxu0
      %v1597 = vadd.f32 0.0, %v1596
      %v1598 = vpop.f32.mrf.mxu0
      %v1599 = vpop.f32.mrf.mxu0
      %v1600 = vadd.f32 0.0, %v1599
      %v1601 = vpop.f32.mrf.mxu0
      %1602 = vmatprep.mubr.bf16.mxu0 0
      %1603 = vmatmul.mubr.bf16.gmra.mxu0 %v678
      %v1604 = vpop.f32.mrf.mxu0
      %v1605 = vadd.f32 0.0, %v1604
      %v1606 = vpop.f32.mrf.mxu0
      %v1607 = vpop.f32.mrf.mxu0
      %v1608 = vadd.f32 0.0, %v1607
      %v1609 = vpop.f32.mrf.mxu0
      %1610 = vmatprep.mubr.bf16.mxu0 0
      %1611 = vmatmul.mubr.bf16.gmra.mxu0 %v681
      %v1612 = vpop.f32.mrf.mxu0
      %v1613 = vadd.f32 0.0, %v1612
      %v1614 = vpop.f32.mrf.mxu0
      %v1615 = vpop.f32.mrf.mxu0
      %v1616 = vadd.f32 0.0, %v1615
      %v1617 = vpop.f32.mrf.mxu0
      %1618 = vmatprep.mubr.bf16.mxu0 0
      %1619 = vmatmul.mubr.bf16.gmra.mxu0 %v684
      %v1620 = vpop.f32.mrf.mxu0
      %v1621 = vadd.f32 0.0, %v1620
      %v1622 = vpop.f32.mrf.mxu0
      %v1623 = vpop.f32.mrf.mxu0
      %v1624 = vadd.f32 0.0, %v1623
      %v1625 = vpop.f32.mrf.mxu0
      %1626 = vmatprep.mubr.bf16.mxu0 0
      %1627 = vmatmul.mubr.bf16.gmra.mxu0 %v687
      %v1628 = vpop.f32.mrf.mxu0
      %v1629 = vadd.f32 0.0, %v1628
      %v1630 = vpop.f32.mrf.mxu0
      %v1631 = vpop.f32.mrf.mxu0
      %v1632 = vadd.f32 0.0, %v1631
      %v1633 = vpop.f32.mrf.mxu0
      %1634 = vmatprep.mubr.bf16.mxu0 0
      %1635 = vmatmul.mubr.bf16.gmra.mxu0 %v690
      %v1636 = vpop.f32.mrf.mxu0
      %v1637 = vadd.f32 0.0, %v1636
      %v1638 = vpop.f32.mrf.mxu0
      %v1639 = vpop.f32.mrf.mxu0
      %v1640 = vadd.f32 0.0, %v1639
      %v1641 = vpop.f32.mrf.mxu0
      %1642 = vmatprep.mubr.bf16.mxu0 0
      %1643 = vmatmul.mubr.bf16.gmra.mxu0 %v693
      %v1644 = vpop.f32.mrf.mxu0
      %v1645 = vadd.f32 0.0, %v1644
      %v1646 = vpop.f32.mrf.mxu0
      %v1647 = vpop.f32.mrf.mxu0
      %v1648 = vadd.f32 0.0, %v1647
      %v1649 = vpop.f32.mrf.mxu0
      %1650 = vmatprep.mubr.bf16.mxu0 0
      %1651 = vmatmul.mubr.bf16.gmra.mxu0 %v696
      %v1652 = vpop.f32.mrf.mxu0
      %v1653 = vadd.f32 0.0, %v1652
      %v1654 = vpop.f32.mrf.mxu0
      %v1655 = vpop.f32.mrf.mxu0
      %v1656 = vadd.f32 0.0, %v1655
      %v1657 = vpop.f32.mrf.mxu0
      %1658 = vmatprep.mubr.bf16.mxu0 0
      %1659 = vmatmul.mubr.bf16.gmra.mxu0 %v699
      %v1660 = vpop.f32.mrf.mxu0
      %v1661 = vadd.f32 0.0, %v1660
      %v1662 = vpop.f32.mrf.mxu0
      %v1663 = vpop.f32.mrf.mxu0
      %v1664 = vadd.f32 0.0, %v1663
      %v1665 = vpop.f32.mrf.mxu0
      %1666 = vmatprep.mubr.bf16.mxu0 0
      %1667 = vmatmul.mubr.bf16.gmra.mxu0 %v702
      %v1668 = vpop.f32.mrf.mxu0
      %v1669 = vadd.f32 0.0, %v1668
      %v1670 = vpop.f32.mrf.mxu0
      %v1671 = vpop.f32.mrf.mxu0
      %v1672 = vadd.f32 0.0, %v1671
      %v1673 = vpop.f32.mrf.mxu0
      %1674 = vmatprep.mubr.bf16.mxu0 0
      %1675 = vmatmul.mubr.bf16.gmra.mxu0 %v705
      %v1676 = vpop.f32.mrf.mxu0
      %v1677 = vadd.f32 0.0, %v1676
      %v1678 = vpop.f32.mrf.mxu0
      %v1679 = vpop.f32.mrf.mxu0
      %v1680 = vadd.f32 0.0, %v1679
      %v1681 = vpop.f32.mrf.mxu0
      %1682 = vmatprep.mubr.bf16.mxu0 0
      %1683 = vmatmul.mubr.bf16.gmra.mxu0 %v708
      %v1684 = vpop.f32.mrf.mxu0
      %v1685 = vadd.f32 0.0, %v1684
      %v1686 = vpop.f32.mrf.mxu0
      %v1687 = vpop.f32.mrf.mxu0
      %v1688 = vadd.f32 0.0, %v1687
      %v1689 = vpop.f32.mrf.mxu0
      %1690 = vmatprep.mubr.bf16.mxu0 0
      %1691 = vmatmul.mubr.bf16.gmra.mxu0 %v711
      %v1692 = vpop.f32.mrf.mxu0
      %v1693 = vadd.f32 0.0, %v1692
      %v1694 = vpop.f32.mrf.mxu0
      %v1695 = vpop.f32.mrf.mxu0
      %v1696 = vadd.f32 0.0, %v1695
      %v1697 = vpop.f32.mrf.mxu0
      %1698 = vmatprep.mubr.bf16.mxu0 0
      %1699 = vmatmul.mubr.bf16.gmra.mxu0 %v714
      %v1700 = vpop.f32.mrf.mxu0
      %v1701 = vadd.f32 0.0, %v1700
      %v1702 = vpop.f32.mrf.mxu0
      %v1703 = vpop.f32.mrf.mxu0
      %v1704 = vadd.f32 0.0, %v1703
      %v1705 = vpop.f32.mrf.mxu0
      %1706 = vmatprep.mubr.bf16.mxu0 0
      %1707 = vmatmul.mubr.bf16.gmra.mxu0 %v717
      %v1708 = vpop.f32.mrf.mxu0
      %v1709 = vadd.f32 0.0, %v1708
      %v1710 = vpop.f32.mrf.mxu0
      %v1711 = vpop.f32.mrf.mxu0
      %v1712 = vadd.f32 0.0, %v1711
      %v1713 = vpop.f32.mrf.mxu0
      %1714 = vmatprep.mubr.bf16.mxu0 0
      %1715 = vmatmul.mubr.bf16.gmra.mxu0 %v720
      %v1716 = vpop.f32.mrf.mxu0
      %v1717 = vadd.f32 0.0, %v1716
      %v1718 = vpop.f32.mrf.mxu0
      %v1719 = vpop.f32.mrf.mxu0
      %v1720 = vadd.f32 0.0, %v1719
      %v1721 = vpop.f32.mrf.mxu0
      %1722 = vmatprep.mubr.bf16.mxu0 0
      %1723 = vmatmul.mubr.bf16.gmra.mxu0 %v723
      %v1724 = vpop.f32.mrf.mxu0
      %v1725 = vadd.f32 0.0, %v1724
      %v1726 = vpop.f32.mrf.mxu0
      %v1727 = vpop.f32.mrf.mxu0
      %v1728 = vadd.f32 0.0, %v1727
      %v1729 = vpop.f32.mrf.mxu0
      %1730 = vmatprep.mubr.bf16.mxu0 0
      %1731 = vmatmul.mubr.bf16.gmra.mxu0 %v726
      %v1732 = vpop.f32.mrf.mxu0
      %v1733 = vadd.f32 0.0, %v1732
      %v1734 = vpop.f32.mrf.mxu0
      %v1735 = vpop.f32.mrf.mxu0
      %v1736 = vadd.f32 0.0, %v1735
      %v1737 = vpop.f32.mrf.mxu0
      %1738 = vdwg.mxu0
      %v1739 = vld [vmem:[%s2] sm:$0x3]
      %v1741 = vlaneseq
      %v1742 = vshrl.u32 %v1741, 7
      %v1743 = vsub.s32 0, %v1742
      %v1744 = vrot.slane %v1739, %v1743
      %v1745 = vlaneseq
      %v1746 = vshrl.u32 %v1745, 7
      %v1747 = vsub.s32 1, %v1746
      %v1748 = vrot.slane %v1739, %v1747
      %v1751 = vadd.f32 %v779, %v1744
      %v1752 = vadd.f32 %v781, %v1748
      %v1753 = vadd.f32 %v783, %v1744
      %v1754 = vadd.f32 %v785, %v1748
      %v1755 = vadd.f32 %v789, %v1744
      %v1756 = vadd.f32 %v791, %v1748
      %v1757 = vadd.f32 %v793, %v1744
      %v1758 = vadd.f32 %v795, %v1748
      %v1759 = vadd.f32 %v799, %v1744
      %v1760 = vadd.f32 %v801, %v1748
      %v1761 = vadd.f32 %v803, %v1744
      %v1762 = vadd.f32 %v805, %v1748
      %v1763 = vadd.f32 %v809, %v1744
      %v1764 = vadd.f32 %v811, %v1748
      %v1765 = vadd.f32 %v813, %v1744
      %v1766 = vadd.f32 %v815, %v1748
      %v1767 = vadd.f32 %v819, %v1744
      %v1768 = vadd.f32 %v821, %v1748
      %v1769 = vadd.f32 %v823, %v1744
      %v1770 = vadd.f32 %v825, %v1748
      %v1771 = vadd.f32 %v829, %v1744
      %v1772 = vadd.f32 %v831, %v1748
      %v1773 = vadd.f32 %v833, %v1744
      %v1774 = vadd.f32 %v835, %v1748
      %v1775 = vadd.f32 %v839, %v1744
      %v1776 = vadd.f32 %v841, %v1748
      %v1777 = vadd.f32 %v843, %v1744
      %v1778 = vadd.f32 %v845, %v1748
      %v1779 = vadd.f32 %v849, %v1744
      %v1780 = vadd.f32 %v851, %v1748
      %v1781 = vadd.f32 %v853, %v1744
      %v1782 = vadd.f32 %v855, %v1748
      %v1783 = vadd.f32 %v859, %v1744
      %v1784 = vadd.f32 %v861, %v1748
      %v1785 = vadd.f32 %v863, %v1744
      %v1786 = vadd.f32 %v865, %v1748
      %v1787 = vadd.f32 %v869, %v1744
      %v1788 = vadd.f32 %v871, %v1748
      %v1789 = vadd.f32 %v873, %v1744
      %v1790 = vadd.f32 %v875, %v1748
      %v1791 = vadd.f32 %v879, %v1744
      %v1792 = vadd.f32 %v881, %v1748
      %v1793 = vadd.f32 %v883, %v1744
      %v1794 = vadd.f32 %v885, %v1748
      %v1795 = vadd.f32 %v889, %v1744
      %v1796 = vadd.f32 %v891, %v1748
      %v1797 = vadd.f32 %v893, %v1744
      %v1798 = vadd.f32 %v895, %v1748
      %v1799 = vadd.f32 %v899, %v1744
      %v1800 = vadd.f32 %v901, %v1748
      %v1801 = vadd.f32 %v903, %v1744
      %v1802 = vadd.f32 %v905, %v1748
      %v1803 = vadd.f32 %v909, %v1744
      %v1804 = vadd.f32 %v911, %v1748
      %v1805 = vadd.f32 %v913, %v1744
      %v1806 = vadd.f32 %v915, %v1748
      %v1807 = vadd.f32 %v919, %v1744
      %v1808 = vadd.f32 %v921, %v1748
      %v1809 = vadd.f32 %v923, %v1744
      %v1810 = vadd.f32 %v925, %v1748
      %v1811 = vadd.f32 %v929, %v1744
      %v1812 = vadd.f32 %v931, %v1748
      %v1813 = vadd.f32 %v933, %v1744
      %v1814 = vadd.f32 %v935, %v1748
      %v1815 = vadd.f32 %v939, %v1744
      %v1816 = vadd.f32 %v941, %v1748
      %v1817 = vadd.f32 %v943, %v1744
      %v1818 = vadd.f32 %v945, %v1748
      %v1819 = vadd.f32 %v949, %v1744
      %v1820 = vadd.f32 %v951, %v1748
      %v1821 = vadd.f32 %v953, %v1744
      %v1822 = vadd.f32 %v955, %v1748
      %v1823 = vadd.f32 %v959, %v1744
      %v1824 = vadd.f32 %v961, %v1748
      %v1825 = vadd.f32 %v963, %v1744
      %v1826 = vadd.f32 %v965, %v1748
      %v1827 = vadd.f32 %v969, %v1744
      %v1828 = vadd.f32 %v971, %v1748
      %v1829 = vadd.f32 %v973, %v1744
      %v1830 = vadd.f32 %v975, %v1748
      %v1831 = vadd.f32 %v979, %v1744
      %v1832 = vadd.f32 %v981, %v1748
      %v1833 = vadd.f32 %v983, %v1744
      %v1834 = vadd.f32 %v985, %v1748
      %v1835 = vadd.f32 %v989, %v1744
      %v1836 = vadd.f32 %v991, %v1748
      %v1837 = vadd.f32 %v993, %v1744
      %v1838 = vadd.f32 %v995, %v1748
      %v1839 = vadd.f32 %v999, %v1744
      %v1840 = vadd.f32 %v1001, %v1748
      %v1841 = vadd.f32 %v1003, %v1744
      %v1842 = vadd.f32 %v1005, %v1748
      %v1843 = vadd.f32 %v1009, %v1744
      %v1844 = vadd.f32 %v1011, %v1748
      %v1845 = vadd.f32 %v1013, %v1744
      %v1846 = vadd.f32 %v1015, %v1748
      %v1847 = vadd.f32 %v1019, %v1744
      %v1848 = vadd.f32 %v1021, %v1748
      %v1849 = vadd.f32 %v1023, %v1744
      %v1850 = vadd.f32 %v1025, %v1748
      %v1851 = vadd.f32 %v1029, %v1744
      %v1852 = vadd.f32 %v1031, %v1748
      %v1853 = vadd.f32 %v1033, %v1744
      %v1854 = vadd.f32 %v1035, %v1748
      %v1855 = vadd.f32 %v1039, %v1744
      %v1856 = vadd.f32 %v1041, %v1748
      %v1857 = vadd.f32 %v1043, %v1744
      %v1858 = vadd.f32 %v1045, %v1748
      %v1859 = vadd.f32 %v1049, %v1744
      %v1860 = vadd.f32 %v1051, %v1748
      %v1861 = vadd.f32 %v1053, %v1744
      %v1862 = vadd.f32 %v1055, %v1748
      %v1863 = vadd.f32 %v1059, %v1744
      %v1864 = vadd.f32 %v1061, %v1748
      %v1865 = vadd.f32 %v1063, %v1744
      %v1866 = vadd.f32 %v1065, %v1748
      %v1867 = vadd.f32 %v1069, %v1744
      %v1868 = vadd.f32 %v1071, %v1748
      %v1869 = vadd.f32 %v1073, %v1744
      %v1870 = vadd.f32 %v1075, %v1748
      %v1871 = vadd.f32 %v1079, %v1744
      %v1872 = vadd.f32 %v1081, %v1748
      %v1873 = vadd.f32 %v1083, %v1744
      %v1874 = vadd.f32 %v1085, %v1748
      %v1875 = vadd.f32 %v1089, %v1744
      %v1876 = vadd.f32 %v1091, %v1748
      %v1877 = vadd.f32 %v1093, %v1744
      %v1878 = vadd.f32 %v1095, %v1748
      %v1879 = vmax.f32 %v1751, 0.0
      %v1880 = vmax.f32 %v1752, 0.0
      %v1881 = vmax.f32 %v1753, 0.0
      %v1882 = vmax.f32 %v1754, 0.0
      %v1883 = vmax.f32 %v1755, 0.0
      %v1884 = vmax.f32 %v1756, 0.0
      %v1885 = vmax.f32 %v1757, 0.0
      %v1886 = vmax.f32 %v1758, 0.0
      %v1887 = vmax.f32 %v1759, 0.0
      %v1888 = vmax.f32 %v1760, 0.0
      %v1889 = vmax.f32 %v1761, 0.0
      %v1890 = vmax.f32 %v1762, 0.0
      %v1891 = vmax.f32 %v1763, 0.0
      %v1892 = vmax.f32 %v1764, 0.0
      %v1893 = vmax.f32 %v1765, 0.0
      %v1894 = vmax.f32 %v1766, 0.0
      %v1895 = vmax.f32 %v1767, 0.0
      %v1896 = vmax.f32 %v1768, 0.0
      %v1897 = vmax.f32 %v1769, 0.0
      %v1898 = vmax.f32 %v1770, 0.0
      %v1899 = vmax.f32 %v1771, 0.0
      %v1900 = vmax.f32 %v1772, 0.0
      %v1901 = vmax.f32 %v1773, 0.0
      %v1902 = vmax.f32 %v1774, 0.0
      %v1903 = vmax.f32 %v1775, 0.0
      %v1904 = vmax.f32 %v1776, 0.0
      %v1905 = vmax.f32 %v1777, 0.0
      %v1906 = vmax.f32 %v1778, 0.0
      %v1907 = vmax.f32 %v1779, 0.0
      %v1908 = vmax.f32 %v1780, 0.0
      %v1909 = vmax.f32 %v1781, 0.0
      %v1910 = vmax.f32 %v1782, 0.0
      %v1911 = vmax.f32 %v1783, 0.0
      %v1912 = vmax.f32 %v1784, 0.0
      %v1913 = vmax.f32 %v1785, 0.0
      %v1914 = vmax.f32 %v1786, 0.0
      %v1915 = vmax.f32 %v1787, 0.0
      %v1916 = vmax.f32 %v1788, 0.0
      %v1917 = vmax.f32 %v1789, 0.0
      %v1918 = vmax.f32 %v1790, 0.0
      %v1919 = vmax.f32 %v1791, 0.0
      %v1920 = vmax.f32 %v1792, 0.0
      %v1921 = vmax.f32 %v1793, 0.0
      %v1922 = vmax.f32 %v1794, 0.0
      %v1923 = vmax.f32 %v1795, 0.0
      %v1924 = vmax.f32 %v1796, 0.0
      %v1925 = vmax.f32 %v1797, 0.0
      %v1926 = vmax.f32 %v1798, 0.0
      %v1927 = vmax.f32 %v1799, 0.0
      %v1928 = vmax.f32 %v1800, 0.0
      %v1929 = vmax.f32 %v1801, 0.0
      %v1930 = vmax.f32 %v1802, 0.0
      %v1931 = vmax.f32 %v1803, 0.0
      %v1932 = vmax.f32 %v1804, 0.0
      %v1933 = vmax.f32 %v1805, 0.0
      %v1934 = vmax.f32 %v1806, 0.0
      %v1935 = vmax.f32 %v1807, 0.0
      %v1936 = vmax.f32 %v1808, 0.0
      %v1937 = vmax.f32 %v1809, 0.0
      %v1938 = vmax.f32 %v1810, 0.0
      %v1939 = vmax.f32 %v1811, 0.0
      %v1940 = vmax.f32 %v1812, 0.0
      %v1941 = vmax.f32 %v1813, 0.0
      %v1942 = vmax.f32 %v1814, 0.0
      %v1943 = vmax.f32 %v1815, 0.0
      %v1944 = vmax.f32 %v1816, 0.0
      %v1945 = vmax.f32 %v1817, 0.0
      %v1946 = vmax.f32 %v1818, 0.0
      %v1947 = vmax.f32 %v1819, 0.0
      %v1948 = vmax.f32 %v1820, 0.0
      %v1949 = vmax.f32 %v1821, 0.0
      %v1950 = vmax.f32 %v1822, 0.0
      %v1951 = vmax.f32 %v1823, 0.0
      %v1952 = vmax.f32 %v1824, 0.0
      %v1953 = vmax.f32 %v1825, 0.0
      %v1954 = vmax.f32 %v1826, 0.0
      %v1955 = vmax.f32 %v1827, 0.0
      %v1956 = vmax.f32 %v1828, 0.0
      %v1957 = vmax.f32 %v1829, 0.0
      %v1958 = vmax.f32 %v1830, 0.0
      %v1959 = vmax.f32 %v1831, 0.0
      %v1960 = vmax.f32 %v1832, 0.0
      %v1961 = vmax.f32 %v1833, 0.0
      %v1962 = vmax.f32 %v1834, 0.0
      %v1963 = vmax.f32 %v1835, 0.0
      %v1964 = vmax.f32 %v1836, 0.0
      %v1965 = vmax.f32 %v1837, 0.0
      %v1966 = vmax.f32 %v1838, 0.0
      %v1967 = vmax.f32 %v1839, 0.0
      %v1968 = vmax.f32 %v1840, 0.0
      %v1969 = vmax.f32 %v1841, 0.0
      %v1970 = vmax.f32 %v1842, 0.0
      %v1971 = vmax.f32 %v1843, 0.0
      %v1972 = vmax.f32 %v1844, 0.0
      %v1973 = vmax.f32 %v1845, 0.0
      %v1974 = vmax.f32 %v1846, 0.0
      %v1975 = vmax.f32 %v1847, 0.0
      %v1976 = vmax.f32 %v1848, 0.0
      %v1977 = vmax.f32 %v1849, 0.0
      %v1978 = vmax.f32 %v1850, 0.0
      %v1979 = vmax.f32 %v1851, 0.0
      %v1980 = vmax.f32 %v1852, 0.0
      %v1981 = vmax.f32 %v1853, 0.0
      %v1982 = vmax.f32 %v1854, 0.0
      %v1983 = vmax.f32 %v1855, 0.0
      %v1984 = vmax.f32 %v1856, 0.0
      %v1985 = vmax.f32 %v1857, 0.0
      %v1986 = vmax.f32 %v1858, 0.0
      %v1987 = vmax.f32 %v1859, 0.0
      %v1988 = vmax.f32 %v1860, 0.0
      %v1989 = vmax.f32 %v1861, 0.0
      %v1990 = vmax.f32 %v1862, 0.0
      %v1991 = vmax.f32 %v1863, 0.0
      %v1992 = vmax.f32 %v1864, 0.0
      %v1993 = vmax.f32 %v1865, 0.0
      %v1994 = vmax.f32 %v1866, 0.0
      %v1995 = vmax.f32 %v1867, 0.0
      %v1996 = vmax.f32 %v1868, 0.0
      %v1997 = vmax.f32 %v1869, 0.0
      %v1998 = vmax.f32 %v1870, 0.0
      %v1999 = vmax.f32 %v1871, 0.0
      %v2000 = vmax.f32 %v1872, 0.0
      %v2001 = vmax.f32 %v1873, 0.0
      %v2002 = vmax.f32 %v1874, 0.0
      %v2003 = vmax.f32 %v1875, 0.0
      %v2004 = vmax.f32 %v1876, 0.0
      %v2005 = vmax.f32 %v1877, 0.0
      %v2006 = vmax.f32 %v1878, 0.0
      %v2007 = vpack.c.bf16 %v1136, %v1132
      %v2008 = vpack.c.bf16 %v1138, %v1134
      %v2009 = vpack.c.bf16 %v1146, %v1142
      %v2010 = vpack.c.bf16 %v1148, %v1144
      %v2011 = vpack.c.bf16 %v1156, %v1152
      %v2012 = vpack.c.bf16 %v1158, %v1154
      %v2013 = vpack.c.bf16 %v1166, %v1162
      %v2014 = vpack.c.bf16 %v1168, %v1164
      %v2015 = vpack.c.bf16 %v1176, %v1172
      %v2016 = vpack.c.bf16 %v1178, %v1174
      %v2017 = vpack.c.bf16 %v1186, %v1182
      %v2018 = vpack.c.bf16 %v1188, %v1184
      %v2019 = vpack.c.bf16 %v1196, %v1192
      %v2020 = vpack.c.bf16 %v1198, %v1194
      %v2021 = vpack.c.bf16 %v1206, %v1202
      %v2022 = vpack.c.bf16 %v1208, %v1204
      %v2023 = vpack.c.bf16 %v1216, %v1212
      %v2024 = vpack.c.bf16 %v1218, %v1214
      %v2025 = vpack.c.bf16 %v1226, %v1222
      %v2026 = vpack.c.bf16 %v1228, %v1224
      %v2027 = vpack.c.bf16 %v1236, %v1232
      %v2028 = vpack.c.bf16 %v1238, %v1234
      %v2029 = vpack.c.bf16 %v1246, %v1242
      %v2030 = vpack.c.bf16 %v1248, %v1244
      %v2031 = vpack.c.bf16 %v1256, %v1252
      %v2032 = vpack.c.bf16 %v1258, %v1254
      %v2033 = vpack.c.bf16 %v1266, %v1262
      %v2034 = vpack.c.bf16 %v1268, %v1264
      %v2035 = vpack.c.bf16 %v1276, %v1272
      %v2036 = vpack.c.bf16 %v1278, %v1274
      %v2037 = vpack.c.bf16 %v1286, %v1282
      %v2038 = vpack.c.bf16 %v1288, %v1284
      %v2039 = vpack.c.bf16 %v1296, %v1292
      %v2040 = vpack.c.bf16 %v1298, %v1294
      %v2041 = vpack.c.bf16 %v1306, %v1302
      %v2042 = vpack.c.bf16 %v1308, %v1304
      %v2043 = vpack.c.bf16 %v1316, %v1312
      %v2044 = vpack.c.bf16 %v1318, %v1314
      %v2045 = vpack.c.bf16 %v1326, %v1322
      %v2046 = vpack.c.bf16 %v1328, %v1324
      %v2047 = vpack.c.bf16 %v1336, %v1332
      %v2048 = vpack.c.bf16 %v1338, %v1334
      %v2049 = vpack.c.bf16 %v1346, %v1342
      %v2050 = vpack.c.bf16 %v1348, %v1344
      %v2051 = vpack.c.bf16 %v1356, %v1352
      %v2052 = vpack.c.bf16 %v1358, %v1354
      %v2053 = vpack.c.bf16 %v1366, %v1362
      %v2054 = vpack.c.bf16 %v1368, %v1364
      %v2055 = vpack.c.bf16 %v1376, %v1372
      %v2056 = vpack.c.bf16 %v1378, %v1374
      %v2057 = vpack.c.bf16 %v1386, %v1382
      %v2058 = vpack.c.bf16 %v1388, %v1384
      %v2059 = vpack.c.bf16 %v1396, %v1392
      %v2060 = vpack.c.bf16 %v1398, %v1394
      %v2061 = vpack.c.bf16 %v1406, %v1402
      %v2062 = vpack.c.bf16 %v1408, %v1404
      %v2063 = vpack.c.bf16 %v1416, %v1412
      %v2064 = vpack.c.bf16 %v1418, %v1414
      %v2065 = vpack.c.bf16 %v1426, %v1422
      %v2066 = vpack.c.bf16 %v1428, %v1424
      %v2067 = vpack.c.bf16 %v1436, %v1432
      %v2068 = vpack.c.bf16 %v1438, %v1434
      %v2069 = vpack.c.bf16 %v1446, %v1442
      %v2070 = vpack.c.bf16 %v1448, %v1444
      %v2071 = vpack.c.bf16 %v1488, %v1485
      %v2072 = vpack.c.bf16 %v1496, %v1493
      %v2073 = vpack.c.bf16 %v1504, %v1501
      %v2074 = vpack.c.bf16 %v1512, %v1509
      %v2075 = vpack.c.bf16 %v1520, %v1517
      %v2076 = vpack.c.bf16 %v1528, %v1525
      %v2077 = vpack.c.bf16 %v1536, %v1533
      %v2078 = vpack.c.bf16 %v1544, %v1541
      %v2079 = vpack.c.bf16 %v1552, %v1549
      %v2080 = vpack.c.bf16 %v1560, %v1557
      %v2081 = vpack.c.bf16 %v1568, %v1565
      %v2082 = vpack.c.bf16 %v1576, %v1573
      %v2083 = vpack.c.bf16 %v1584, %v1581
      %v2084 = vpack.c.bf16 %v1592, %v1589
      %v2085 = vpack.c.bf16 %v1600, %v1597
      %v2086 = vpack.c.bf16 %v1608, %v1605
      %v2087 = vpack.c.bf16 %v1616, %v1613
      %v2088 = vpack.c.bf16 %v1624, %v1621
      %v2089 = vpack.c.bf16 %v1632, %v1629
      %v2090 = vpack.c.bf16 %v1640, %v1637
      %v2091 = vpack.c.bf16 %v1648, %v1645
      %v2092 = vpack.c.bf16 %v1656, %v1653
      %v2093 = vpack.c.bf16 %v1664, %v1661
      %v2094 = vpack.c.bf16 %v1672, %v1669
      %v2095 = vpack.c.bf16 %v1680, %v1677
      %v2096 = vpack.c.bf16 %v1688, %v1685
      %v2097 = vpack.c.bf16 %v1696, %v1693
      %v2098 = vpack.c.bf16 %v1704, %v1701
      %v2099 = vpack.c.bf16 %v1712, %v1709
      %v2100 = vpack.c.bf16 %v1720, %v1717
      %v2101 = vpack.c.bf16 %v1728, %v1725
      %v2102 = vpack.c.bf16 %v1736, %v1733
      %v2103 = vpack.c.bf16 %v1881, %v1879
      %v2104 = vpack.c.bf16 %v1882, %v1880
      %v2105 = vpack.c.bf16 %v1885, %v1883
      %v2106 = vpack.c.bf16 %v1886, %v1884
      %v2107 = vpack.c.bf16 %v1889, %v1887
      %v2108 = vpack.c.bf16 %v1890, %v1888
      %v2109 = vpack.c.bf16 %v1893, %v1891
      %v2110 = vpack.c.bf16 %v1894, %v1892
      %v2111 = vpack.c.bf16 %v1897, %v1895
      %v2112 = vpack.c.bf16 %v1898, %v1896
      %v2113 = vpack.c.bf16 %v1901, %v1899
      %v2114 = vpack.c.bf16 %v1902, %v1900
      %v2115 = vpack.c.bf16 %v1905, %v1903
      %v2116 = vpack.c.bf16 %v1906, %v1904
      %v2117 = vpack.c.bf16 %v1909, %v1907
      %v2118 = vpack.c.bf16 %v1910, %v1908
      %v2119 = vpack.c.bf16 %v1913, %v1911
      %v2120 = vpack.c.bf16 %v1914, %v1912
      %v2121 = vpack.c.bf16 %v1917, %v1915
      %v2122 = vpack.c.bf16 %v1918, %v1916
      %v2123 = vpack.c.bf16 %v1921, %v1919
      %v2124 = vpack.c.bf16 %v1922, %v1920
      %v2125 = vpack.c.bf16 %v1925, %v1923
      %v2126 = vpack.c.bf16 %v1926, %v1924
      %v2127 = vpack.c.bf16 %v1929, %v1927
      %v2128 = vpack.c.bf16 %v1930, %v1928
      %v2129 = vpack.c.bf16 %v1933, %v1931
      %v2130 = vpack.c.bf16 %v1934, %v1932
      %v2131 = vpack.c.bf16 %v1937, %v1935
      %v2132 = vpack.c.bf16 %v1938, %v1936
      %v2133 = vpack.c.bf16 %v1941, %v1939
      %v2134 = vpack.c.bf16 %v1942, %v1940
      %v2135 = vpack.c.bf16 %v1945, %v1943
      %v2136 = vpack.c.bf16 %v1946, %v1944
      %v2137 = vpack.c.bf16 %v1949, %v1947
      %v2138 = vpack.c.bf16 %v1950, %v1948
      %v2139 = vpack.c.bf16 %v1953, %v1951
      %v2140 = vpack.c.bf16 %v1954, %v1952
      %v2141 = vpack.c.bf16 %v1957, %v1955
      %v2142 = vpack.c.bf16 %v1958, %v1956
      %v2143 = vpack.c.bf16 %v1961, %v1959
      %v2144 = vpack.c.bf16 %v1962, %v1960
      %v2145 = vpack.c.bf16 %v1965, %v1963
      %v2146 = vpack.c.bf16 %v1966, %v1964
      %v2147 = vpack.c.bf16 %v1969, %v1967
      %v2148 = vpack.c.bf16 %v1970, %v1968
      %v2149 = vpack.c.bf16 %v1973, %v1971
      %v2150 = vpack.c.bf16 %v1974, %v1972
      %v2151 = vpack.c.bf16 %v1977, %v1975
      %v2152 = vpack.c.bf16 %v1978, %v1976
      %v2153 = vpack.c.bf16 %v1981, %v1979
      %v2154 = vpack.c.bf16 %v1982, %v1980
      %v2155 = vpack.c.bf16 %v1985, %v1983
      %v2156 = vpack.c.bf16 %v1986, %v1984
      %v2157 = vpack.c.bf16 %v1989, %v1987
      %v2158 = vpack.c.bf16 %v1990, %v1988
      %v2159 = vpack.c.bf16 %v1993, %v1991
      %v2160 = vpack.c.bf16 %v1994, %v1992
      %v2161 = vpack.c.bf16 %v1997, %v1995
      %v2162 = vpack.c.bf16 %v1998, %v1996
      %v2163 = vpack.c.bf16 %v2001, %v1999
      %v2164 = vpack.c.bf16 %v2002, %v2000
      %v2165 = vpack.c.bf16 %v2005, %v2003
      %v2166 = vpack.c.bf16 %v2006, %v2004
      %v2167 = vld [vmem:[%s3] sm:$0xff]
      %v2168 = vld [vmem:[%s3 + $0x8] sm:$0xff]
      %v2169 = vld [vmem:[%s3 + $0x10] sm:$0xff]
      %v2170 = vld [vmem:[%s3 + $0x18] sm:$0xff]
      %v2171 = vld [vmem:[%s3 + $0x20] sm:$0xff]
      %v2172 = vld [vmem:[%s3 + $0x28] sm:$0xff]
      %v2173 = vld [vmem:[%s3 + $0x30] sm:$0xff]
      %v2174 = vld [vmem:[%s3 + $0x38] sm:$0xff]
      %v2175 = vld [vmem:[%s3 + $0x40] sm:$0xff]
      %v2176 = vld [vmem:[%s3 + $0x48] sm:$0xff]
      %v2177 = vld [vmem:[%s3 + $0x50] sm:$0xff]
      %v2178 = vld [vmem:[%s3 + $0x58] sm:$0xff]
      %v2179 = vld [vmem:[%s3 + $0x60] sm:$0xff]
      %v2180 = vld [vmem:[%s3 + $0x68] sm:$0xff]
      %v2181 = vld [vmem:[%s3 + $0x70] sm:$0xff]
      %v2182 = vld [vmem:[%s3 + $0x78] sm:$0xff]
      %v2183 = vld [vmem:[%s3 + $0x80] sm:$0xff]
      %v2184 = vld [vmem:[%s3 + $0x88] sm:$0xff]
      %v2185 = vld [vmem:[%s3 + $0x90] sm:$0xff]
      %v2186 = vld [vmem:[%s3 + $0x98] sm:$0xff]
      %v2187 = vld [vmem:[%s3 + $0xa0] sm:$0xff]
      %v2188 = vld [vmem:[%s3 + $0xa8] sm:$0xff]
      %v2189 = vld [vmem:[%s3 + $0xb0] sm:$0xff]
      %v2190 = vld [vmem:[%s3 + $0xb8] sm:$0xff]
      %v2191 = vld [vmem:[%s3 + $0xc0] sm:$0xff]
      %v2192 = vld [vmem:[%s3 + $0xc8] sm:$0xff]
      %v2193 = vld [vmem:[%s3 + $0xd0] sm:$0xff]
      %v2194 = vld [vmem:[%s3 + $0xd8] sm:$0xff]
      %v2195 = vld [vmem:[%s3 + $0xe0] sm:$0xff]
      %v2196 = vld [vmem:[%s3 + $0xe8] sm:$0xff]
      %v2197 = vld [vmem:[%s3 + $0xf0] sm:$0xff]
      %v2198 = vld [vmem:[%s3 + $0xf8] sm:$0xff]
      %v2199 = vld [vmem:[%s4] sm:$0x3]
      %v2201 = vlaneseq
      %v2202 = vshrl.u32 %v2201, 7
      %v2203 = vsub.s32 0, %v2202
      %v2204 = vrot.slane %v2199, %v2203
      %v2205 = vlaneseq
      %v2206 = vshrl.u32 %v2205, 7
      %v2207 = vsub.s32 1, %v2206
      %v2208 = vrot.slane %v2199, %v2207
      %v2243 = vunpack.c.l.b16 %v2167
      %v2244 = vunpack.c.h.b16 %v2167
      %v2245 = vunpack.c.l.b16 %v2168
      %v2246 = vunpack.c.h.b16 %v2168
      %v2247 = vunpack.c.l.b16 %v2169
      %v2248 = vunpack.c.h.b16 %v2169
      %v2249 = vunpack.c.l.b16 %v2170
      %v2250 = vunpack.c.h.b16 %v2170
      %v2251 = vunpack.c.l.b16 %v2171
      %v2252 = vunpack.c.h.b16 %v2171
      %v2253 = vunpack.c.l.b16 %v2172
      %v2254 = vunpack.c.h.b16 %v2172
      %v2255 = vunpack.c.l.b16 %v2173
      %v2256 = vunpack.c.h.b16 %v2173
      %v2257 = vunpack.c.l.b16 %v2174
      %v2258 = vunpack.c.h.b16 %v2174
      %v2259 = vunpack.c.l.b16 %v2175
      %v2260 = vunpack.c.h.b16 %v2175
      %v2261 = vunpack.c.l.b16 %v2176
      %v2262 = vunpack.c.h.b16 %v2176
      %v2263 = vunpack.c.l.b16 %v2177
      %v2264 = vunpack.c.h.b16 %v2177
      %v2265 = vunpack.c.l.b16 %v2178
      %v2266 = vunpack.c.h.b16 %v2178
      %v2267 = vunpack.c.l.b16 %v2179
      %v2268 = vunpack.c.h.b16 %v2179
      %v2269 = vunpack.c.l.b16 %v2180
      %v2270 = vunpack.c.h.b16 %v2180
      %v2271 = vunpack.c.l.b16 %v2181
      %v2272 = vunpack.c.h.b16 %v2181
      %v2273 = vunpack.c.l.b16 %v2182
      %v2274 = vunpack.c.h.b16 %v2182
      %v2275 = vunpack.c.l.b16 %v2183
      %v2276 = vunpack.c.h.b16 %v2183
      %v2277 = vunpack.c.l.b16 %v2184
      %v2278 = vunpack.c.h.b16 %v2184
      %v2279 = vunpack.c.l.b16 %v2185
      %v2280 = vunpack.c.h.b16 %v2185
      %v2281 = vunpack.c.l.b16 %v2186
      %v2282 = vunpack.c.h.b16 %v2186
      %v2283 = vunpack.c.l.b16 %v2187
      %v2284 = vunpack.c.h.b16 %v2187
      %v2285 = vunpack.c.l.b16 %v2188
      %v2286 = vunpack.c.h.b16 %v2188
      %v2287 = vunpack.c.l.b16 %v2189
      %v2288 = vunpack.c.h.b16 %v2189
      %v2289 = vunpack.c.l.b16 %v2190
      %v2290 = vunpack.c.h.b16 %v2190
      %v2291 = vunpack.c.l.b16 %v2191
      %v2292 = vunpack.c.h.b16 %v2191
      %v2293 = vunpack.c.l.b16 %v2192
      %v2294 = vunpack.c.h.b16 %v2192
      %v2295 = vunpack.c.l.b16 %v2193
      %v2296 = vunpack.c.h.b16 %v2193
      %v2297 = vunpack.c.l.b16 %v2194
      %v2298 = vunpack.c.h.b16 %v2194
      %v2299 = vunpack.c.l.b16 %v2195
      %v2300 = vunpack.c.h.b16 %v2195
      %v2301 = vunpack.c.l.b16 %v2196
      %v2302 = vunpack.c.h.b16 %v2196
      %v2303 = vunpack.c.l.b16 %v2197
      %v2304 = vunpack.c.h.b16 %v2197
      %v2305 = vunpack.c.l.b16 %v2198
      %v2306 = vunpack.c.h.b16 %v2198
      %v2307 = vpack.c.b16 %v2245, %v2243
      %v2308 = vpack.c.b16 %v2246, %v2244
      %v2309 = vpack.c.b16 %v2249, %v2247
      %v2310 = vpack.c.b16 %v2250, %v2248
      %v2311 = vpack.c.b16 %v2253, %v2251
      %v2312 = vpack.c.b16 %v2254, %v2252
      %v2313 = vpack.c.b16 %v2257, %v2255
      %v2314 = vpack.c.b16 %v2258, %v2256
      %v2315 = vpack.c.b16 %v2261, %v2259
      %v2316 = vpack.c.b16 %v2262, %v2260
      %v2317 = vpack.c.b16 %v2265, %v2263
      %v2318 = vpack.c.b16 %v2266, %v2264
      %v2319 = vpack.c.b16 %v2269, %v2267
      %v2320 = vpack.c.b16 %v2270, %v2268
      %v2321 = vpack.c.b16 %v2273, %v2271
      %v2322 = vpack.c.b16 %v2274, %v2272
      %v2323 = vpack.c.b16 %v2277, %v2275
      %v2324 = vpack.c.b16 %v2278, %v2276
      %v2325 = vpack.c.b16 %v2281, %v2279
      %v2326 = vpack.c.b16 %v2282, %v2280
      %v2327 = vpack.c.b16 %v2285, %v2283
      %v2328 = vpack.c.b16 %v2286, %v2284
      %v2329 = vpack.c.b16 %v2289, %v2287
      %v2330 = vpack.c.b16 %v2290, %v2288
      %v2331 = vpack.c.b16 %v2293, %v2291
      %v2332 = vpack.c.b16 %v2294, %v2292
      %v2333 = vpack.c.b16 %v2297, %v2295
      %v2334 = vpack.c.b16 %v2298, %v2296
      %v2335 = vpack.c.b16 %v2301, %v2299
      %v2336 = vpack.c.b16 %v2302, %v2300
      %v2337 = vpack.c.b16 %v2305, %v2303
      %v2338 = vpack.c.b16 %v2306, %v2304
      %2371 = vmatprep.subr.bf16.mxu0 %v2322
      %2372 = vmatpush1.bf16.msra.mxu0 %v2321
      %2373 = vmatprep.subr.bf16.mxu0 %v2320
      %2374 = vmatpush1.bf16.msra.mxu0 %v2319
      %2375 = vmatprep.subr.bf16.mxu0 %v2318
      %2376 = vmatpush1.bf16.msra.mxu0 %v2317
      %2377 = vmatprep.subr.bf16.mxu0 %v2316
      %2378 = vmatpush1.bf16.msra.mxu0 %v2315
      %2379 = vmatprep.subr.bf16.mxu0 %v2314
      %2380 = vmatpush1.bf16.msra.mxu0 %v2313
      %2381 = vmatprep.subr.bf16.mxu0 %v2312
      %2382 = vmatpush1.bf16.msra.mxu0 %v2311
      %2383 = vmatprep.subr.bf16.mxu0 %v2310
      %2384 = vmatpush1.bf16.msra.mxu0 %v2309
      %2385 = vmatprep.subr.bf16.mxu0 %v2308
      %2386 = vmatpush1.bf16.msra.mxu0 %v2307
      %2387 = vmatprep.subr.bf16.mxu0 %v2338
      %2388 = vmatpush2.bf16.msra.mxu0 %v2337
      %2389 = vmatprep.subr.bf16.mxu0 %v2336
      %2390 = vmatpush2.bf16.msra.mxu0 %v2335
      %2391 = vmatprep.subr.bf16.mxu0 %v2334
      %2392 = vmatpush2.bf16.msra.mxu0 %v2333
      %2393 = vmatprep.subr.bf16.mxu0 %v2332
      %2394 = vmatpush2.bf16.msra.mxu0 %v2331
      %2395 = vmatprep.subr.bf16.mxu0 %v2330
      %2396 = vmatpush2.bf16.msra.mxu0 %v2329
      %2397 = vmatprep.subr.bf16.mxu0 %v2328
      %2398 = vmatpush2.bf16.msra.mxu0 %v2327
      %2399 = vmatprep.subr.bf16.mxu0 %v2326
      %2400 = vmatpush2.bf16.msra.mxu0 %v2325
      %2401 = vmatprep.subr.bf16.mxu0 %v2324
      %2402 = vmatpush2.bf16.msra.mxu0 %v2323
      %2403 = vmatprep.mubr.bf16.mxu0 %v2104
      %2404 = vmatmul.mubr.bf16.gmra.mxu0 %v2103
      %v2405 = vpop.f32.mrf.mxu0
      %v2406 = vadd.f32 %v2204, %v2405
      %v2407 = vpop.f32.mrf.mxu0
      %v2408 = vadd.f32 %v2208, %v2407
      %v2409 = vpop.f32.mrf.mxu0
      %v2410 = vadd.f32 %v2204, %v2409
      %v2411 = vpop.f32.mrf.mxu0
      %v2412 = vadd.f32 %v2208, %v2411
      %2413 = vmatprep.mubr.bf16.mxu0 %v2106
      %2414 = vmatmul.mubr.bf16.gmra.mxu0 %v2105
      %v2415 = vpop.f32.mrf.mxu0
      %v2416 = vadd.f32 %v2204, %v2415
      %v2417 = vpop.f32.mrf.mxu0
      %v2418 = vadd.f32 %v2208, %v2417
      %v2419 = vpop.f32.mrf.mxu0
      %v2420 = vadd.f32 %v2204, %v2419
      %v2421 = vpop.f32.mrf.mxu0
      %v2422 = vadd.f32 %v2208, %v2421
      %2423 = vmatprep.mubr.bf16.mxu0 %v2108
      %2424 = vmatmul.mubr.bf16.gmra.mxu0 %v2107
      %v2425 = vpop.f32.mrf.mxu0
      %v2426 = vadd.f32 %v2204, %v2425
      %v2427 = vpop.f32.mrf.mxu0
      %v2428 = vadd.f32 %v2208, %v2427
      %v2429 = vpop.f32.mrf.mxu0
      %v2430 = vadd.f32 %v2204, %v2429
      %v2431 = vpop.f32.mrf.mxu0
      %v2432 = vadd.f32 %v2208, %v2431
      %2433 = vmatprep.mubr.bf16.mxu0 %v2110
      %2434 = vmatmul.mubr.bf16.gmra.mxu0 %v2109
      %v2435 = vpop.f32.mrf.mxu0
      %v2436 = vadd.f32 %v2204, %v2435
      %v2437 = vpop.f32.mrf.mxu0
      %v2438 = vadd.f32 %v2208, %v2437
      %v2439 = vpop.f32.mrf.mxu0
      %v2440 = vadd.f32 %v2204, %v2439
      %v2441 = vpop.f32.mrf.mxu0
      %v2442 = vadd.f32 %v2208, %v2441
      %2443 = vmatprep.mubr.bf16.mxu0 %v2112
      %2444 = vmatmul.mubr.bf16.gmra.mxu0 %v2111
      %v2445 = vpop.f32.mrf.mxu0
      %v2446 = vadd.f32 %v2204, %v2445
      %v2447 = vpop.f32.mrf.mxu0
      %v2448 = vadd.f32 %v2208, %v2447
      %v2449 = vpop.f32.mrf.mxu0
      %v2450 = vadd.f32 %v2204, %v2449
      %v2451 = vpop.f32.mrf.mxu0
      %v2452 = vadd.f32 %v2208, %v2451
      %2453 = vmatprep.mubr.bf16.mxu0 %v2114
      %2454 = vmatmul.mubr.bf16.gmra.mxu0 %v2113
      %v2455 = vpop.f32.mrf.mxu0
      %v2456 = vadd.f32 %v2204, %v2455
      %v2457 = vpop.f32.mrf.mxu0
      %v2458 = vadd.f32 %v2208, %v2457
      %v2459 = vpop.f32.mrf.mxu0
      %v2460 = vadd.f32 %v2204, %v2459
      %v2461 = vpop.f32.mrf.mxu0
      %v2462 = vadd.f32 %v2208, %v2461
      %2463 = vmatprep.mubr.bf16.mxu0 %v2116
      %2464 = vmatmul.mubr.bf16.gmra.mxu0 %v2115
      %v2465 = vpop.f32.mrf.mxu0
      %v2466 = vadd.f32 %v2204, %v2465
      %v2467 = vpop.f32.mrf.mxu0
      %v2468 = vadd.f32 %v2208, %v2467
      %v2469 = vpop.f32.mrf.mxu0
      %v2470 = vadd.f32 %v2204, %v2469
      %v2471 = vpop.f32.mrf.mxu0
      %v2472 = vadd.f32 %v2208, %v2471
      %2473 = vmatprep.mubr.bf16.mxu0 %v2118
      %2474 = vmatmul.mubr.bf16.gmra.mxu0 %v2117
      %v2475 = vpop.f32.mrf.mxu0
      %v2476 = vadd.f32 %v2204, %v2475
      %v2477 = vpop.f32.mrf.mxu0
      %v2478 = vadd.f32 %v2208, %v2477
      %v2479 = vpop.f32.mrf.mxu0
      %v2480 = vadd.f32 %v2204, %v2479
      %v2481 = vpop.f32.mrf.mxu0
      %v2482 = vadd.f32 %v2208, %v2481
      %2483 = vmatprep.mubr.bf16.mxu0 %v2120
      %2484 = vmatmul.mubr.bf16.gmra.mxu0 %v2119
      %v2485 = vpop.f32.mrf.mxu0
      %v2486 = vadd.f32 %v2204, %v2485
      %v2487 = vpop.f32.mrf.mxu0
      %v2488 = vadd.f32 %v2208, %v2487
      %v2489 = vpop.f32.mrf.mxu0
      %v2490 = vadd.f32 %v2204, %v2489
      %v2491 = vpop.f32.mrf.mxu0
      %v2492 = vadd.f32 %v2208, %v2491
      %2493 = vmatprep.mubr.bf16.mxu0 %v2122
      %2494 = vmatmul.mubr.bf16.gmra.mxu0 %v2121
      %v2495 = vpop.f32.mrf.mxu0
      %v2496 = vadd.f32 %v2204, %v2495
      %v2497 = vpop.f32.mrf.mxu0
      %v2498 = vadd.f32 %v2208, %v2497
      %v2499 = vpop.f32.mrf.mxu0
      %v2500 = vadd.f32 %v2204, %v2499
      %v2501 = vpop.f32.mrf.mxu0
      %v2502 = vadd.f32 %v2208, %v2501
      %2503 = vmatprep.mubr.bf16.mxu0 %v2124
      %2504 = vmatmul.mubr.bf16.gmra.mxu0 %v2123
      %v2505 = vpop.f32.mrf.mxu0
      %v2506 = vadd.f32 %v2204, %v2505
      %v2507 = vpop.f32.mrf.mxu0
      %v2508 = vadd.f32 %v2208, %v2507
      %v2509 = vpop.f32.mrf.mxu0
      %v2510 = vadd.f32 %v2204, %v2509
      %v2511 = vpop.f32.mrf.mxu0
      %v2512 = vadd.f32 %v2208, %v2511
      %2513 = vmatprep.mubr.bf16.mxu0 %v2126
      %2514 = vmatmul.mubr.bf16.gmra.mxu0 %v2125
      %v2515 = vpop.f32.mrf.mxu0
      %v2516 = vadd.f32 %v2204, %v2515
      %v2517 = vpop.f32.mrf.mxu0
      %v2518 = vadd.f32 %v2208, %v2517
      %v2519 = vpop.f32.mrf.mxu0
      %v2520 = vadd.f32 %v2204, %v2519
      %v2521 = vpop.f32.mrf.mxu0
      %v2522 = vadd.f32 %v2208, %v2521
      %2523 = vmatprep.mubr.bf16.mxu0 %v2128
      %2524 = vmatmul.mubr.bf16.gmra.mxu0 %v2127
      %v2525 = vpop.f32.mrf.mxu0
      %v2526 = vadd.f32 %v2204, %v2525
      %v2527 = vpop.f32.mrf.mxu0
      %v2528 = vadd.f32 %v2208, %v2527
      %v2529 = vpop.f32.mrf.mxu0
      %v2530 = vadd.f32 %v2204, %v2529
      %v2531 = vpop.f32.mrf.mxu0
      %v2532 = vadd.f32 %v2208, %v2531
      %2533 = vmatprep.mubr.bf16.mxu0 %v2130
      %2534 = vmatmul.mubr.bf16.gmra.mxu0 %v2129
      %v2535 = vpop.f32.mrf.mxu0
      %v2536 = vadd.f32 %v2204, %v2535
      %v2537 = vpop.f32.mrf.mxu0
      %v2538 = vadd.f32 %v2208, %v2537
      %v2539 = vpop.f32.mrf.mxu0
      %v2540 = vadd.f32 %v2204, %v2539
      %v2541 = vpop.f32.mrf.mxu0
      %v2542 = vadd.f32 %v2208, %v2541
      %2543 = vmatprep.mubr.bf16.mxu0 %v2132
      %2544 = vmatmul.mubr.bf16.gmra.mxu0 %v2131
      %v2545 = vpop.f32.mrf.mxu0
      %v2546 = vadd.f32 %v2204, %v2545
      %v2547 = vpop.f32.mrf.mxu0
      %v2548 = vadd.f32 %v2208, %v2547
      %v2549 = vpop.f32.mrf.mxu0
      %v2550 = vadd.f32 %v2204, %v2549
      %v2551 = vpop.f32.mrf.mxu0
      %v2552 = vadd.f32 %v2208, %v2551
      %2553 = vmatprep.mubr.bf16.mxu0 %v2134
      %2554 = vmatmul.mubr.bf16.gmra.mxu0 %v2133
      %v2555 = vpop.f32.mrf.mxu0
      %v2556 = vadd.f32 %v2204, %v2555
      %v2557 = vpop.f32.mrf.mxu0
      %v2558 = vadd.f32 %v2208, %v2557
      %v2559 = vpop.f32.mrf.mxu0
      %v2560 = vadd.f32 %v2204, %v2559
      %v2561 = vpop.f32.mrf.mxu0
      %v2562 = vadd.f32 %v2208, %v2561
      %2563 = vmatprep.mubr.bf16.mxu0 %v2136
      %2564 = vmatmul.mubr.bf16.gmra.mxu0 %v2135
      %v2565 = vpop.f32.mrf.mxu0
      %v2566 = vadd.f32 %v2204, %v2565
      %v2567 = vpop.f32.mrf.mxu0
      %v2568 = vadd.f32 %v2208, %v2567
      %v2569 = vpop.f32.mrf.mxu0
      %v2570 = vadd.f32 %v2204, %v2569
      %v2571 = vpop.f32.mrf.mxu0
      %v2572 = vadd.f32 %v2208, %v2571
      %2573 = vmatprep.mubr.bf16.mxu0 %v2138
      %2574 = vmatmul.mubr.bf16.gmra.mxu0 %v2137
      %v2575 = vpop.f32.mrf.mxu0
      %v2576 = vadd.f32 %v2204, %v2575
      %v2577 = vpop.f32.mrf.mxu0
      %v2578 = vadd.f32 %v2208, %v2577
      %v2579 = vpop.f32.mrf.mxu0
      %v2580 = vadd.f32 %v2204, %v2579
      %v2581 = vpop.f32.mrf.mxu0
      %v2582 = vadd.f32 %v2208, %v2581
      %2583 = vmatprep.mubr.bf16.mxu0 %v2140
      %2584 = vmatmul.mubr.bf16.gmra.mxu0 %v2139
      %v2585 = vpop.f32.mrf.mxu0
      %v2586 = vadd.f32 %v2204, %v2585
      %v2587 = vpop.f32.mrf.mxu0
      %v2588 = vadd.f32 %v2208, %v2587
      %v2589 = vpop.f32.mrf.mxu0
      %v2590 = vadd.f32 %v2204, %v2589
      %v2591 = vpop.f32.mrf.mxu0
      %v2592 = vadd.f32 %v2208, %v2591
      %2593 = vmatprep.mubr.bf16.mxu0 %v2142
      %2594 = vmatmul.mubr.bf16.gmra.mxu0 %v2141
      %v2595 = vpop.f32.mrf.mxu0
      %v2596 = vadd.f32 %v2204, %v2595
      %v2597 = vpop.f32.mrf.mxu0
      %v2598 = vadd.f32 %v2208, %v2597
      %v2599 = vpop.f32.mrf.mxu0
      %v2600 = vadd.f32 %v2204, %v2599
      %v2601 = vpop.f32.mrf.mxu0
      %v2602 = vadd.f32 %v2208, %v2601
      %2603 = vmatprep.mubr.bf16.mxu0 %v2144
      %2604 = vmatmul.mubr.bf16.gmra.mxu0 %v2143
      %v2605 = vpop.f32.mrf.mxu0
      %v2606 = vadd.f32 %v2204, %v2605
      %v2607 = vpop.f32.mrf.mxu0
      %v2608 = vadd.f32 %v2208, %v2607
      %v2609 = vpop.f32.mrf.mxu0
      %v2610 = vadd.f32 %v2204, %v2609
      %v2611 = vpop.f32.mrf.mxu0
      %v2612 = vadd.f32 %v2208, %v2611
      %2613 = vmatprep.mubr.bf16.mxu0 %v2146
      %2614 = vmatmul.mubr.bf16.gmra.mxu0 %v2145
      %v2615 = vpop.f32.mrf.mxu0
      %v2616 = vadd.f32 %v2204, %v2615
      %v2617 = vpop.f32.mrf.mxu0
      %v2618 = vadd.f32 %v2208, %v2617
      %v2619 = vpop.f32.mrf.mxu0
      %v2620 = vadd.f32 %v2204, %v2619
      %v2621 = vpop.f32.mrf.mxu0
      %v2622 = vadd.f32 %v2208, %v2621
      %2623 = vmatprep.mubr.bf16.mxu0 %v2148
      %2624 = vmatmul.mubr.bf16.gmra.mxu0 %v2147
      %v2625 = vpop.f32.mrf.mxu0
      %v2626 = vadd.f32 %v2204, %v2625
      %v2627 = vpop.f32.mrf.mxu0
      %v2628 = vadd.f32 %v2208, %v2627
      %v2629 = vpop.f32.mrf.mxu0
      %v2630 = vadd.f32 %v2204, %v2629
      %v2631 = vpop.f32.mrf.mxu0
      %v2632 = vadd.f32 %v2208, %v2631
      %2633 = vmatprep.mubr.bf16.mxu0 %v2150
      %2634 = vmatmul.mubr.bf16.gmra.mxu0 %v2149
      %v2635 = vpop.f32.mrf.mxu0
      %v2636 = vadd.f32 %v2204, %v2635
      %v2637 = vpop.f32.mrf.mxu0
      %v2638 = vadd.f32 %v2208, %v2637
      %v2639 = vpop.f32.mrf.mxu0
      %v2640 = vadd.f32 %v2204, %v2639
      %v2641 = vpop.f32.mrf.mxu0
      %v2642 = vadd.f32 %v2208, %v2641
      %2643 = vmatprep.mubr.bf16.mxu0 %v2152
      %2644 = vmatmul.mubr.bf16.gmra.mxu0 %v2151
      %v2645 = vpop.f32.mrf.mxu0
      %v2646 = vadd.f32 %v2204, %v2645
      %v2647 = vpop.f32.mrf.mxu0
      %v2648 = vadd.f32 %v2208, %v2647
      %v2649 = vpop.f32.mrf.mxu0
      %v2650 = vadd.f32 %v2204, %v2649
      %v2651 = vpop.f32.mrf.mxu0
      %v2652 = vadd.f32 %v2208, %v2651
      %2653 = vmatprep.mubr.bf16.mxu0 %v2154
      %2654 = vmatmul.mubr.bf16.gmra.mxu0 %v2153
      %v2655 = vpop.f32.mrf.mxu0
      %v2656 = vadd.f32 %v2204, %v2655
      %v2657 = vpop.f32.mrf.mxu0
      %v2658 = vadd.f32 %v2208, %v2657
      %v2659 = vpop.f32.mrf.mxu0
      %v2660 = vadd.f32 %v2204, %v2659
      %v2661 = vpop.f32.mrf.mxu0
      %v2662 = vadd.f32 %v2208, %v2661
      %2663 = vmatprep.mubr.bf16.mxu0 %v2156
      %2664 = vmatmul.mubr.bf16.gmra.mxu0 %v2155
      %v2665 = vpop.f32.mrf.mxu0
      %v2666 = vadd.f32 %v2204, %v2665
      %v2667 = vpop.f32.mrf.mxu0
      %v2668 = vadd.f32 %v2208, %v2667
      %v2669 = vpop.f32.mrf.mxu0
      %v2670 = vadd.f32 %v2204, %v2669
      %v2671 = vpop.f32.mrf.mxu0
      %v2672 = vadd.f32 %v2208, %v2671
      %2673 = vmatprep.mubr.bf16.mxu0 %v2158
      %2674 = vmatmul.mubr.bf16.gmra.mxu0 %v2157
      %v2675 = vpop.f32.mrf.mxu0
      %v2676 = vadd.f32 %v2204, %v2675
      %v2677 = vpop.f32.mrf.mxu0
      %v2678 = vadd.f32 %v2208, %v2677
      %v2679 = vpop.f32.mrf.mxu0
      %v2680 = vadd.f32 %v2204, %v2679
      %v2681 = vpop.f32.mrf.mxu0
      %v2682 = vadd.f32 %v2208, %v2681
      %2683 = vmatprep.mubr.bf16.mxu0 %v2160
      %2684 = vmatmul.mubr.bf16.gmra.mxu0 %v2159
      %v2685 = vpop.f32.mrf.mxu0
      %v2686 = vadd.f32 %v2204, %v2685
      %v2687 = vpop.f32.mrf.mxu0
      %v2688 = vadd.f32 %v2208, %v2687
      %v2689 = vpop.f32.mrf.mxu0
      %v2690 = vadd.f32 %v2204, %v2689
      %v2691 = vpop.f32.mrf.mxu0
      %v2692 = vadd.f32 %v2208, %v2691
      %2693 = vmatprep.mubr.bf16.mxu0 %v2162
      %2694 = vmatmul.mubr.bf16.gmra.mxu0 %v2161
      %v2695 = vpop.f32.mrf.mxu0
      %v2696 = vadd.f32 %v2204, %v2695
      %v2697 = vpop.f32.mrf.mxu0
      %v2698 = vadd.f32 %v2208, %v2697
      %v2699 = vpop.f32.mrf.mxu0
      %v2700 = vadd.f32 %v2204, %v2699
      %v2701 = vpop.f32.mrf.mxu0
      %v2702 = vadd.f32 %v2208, %v2701
      %2703 = vmatprep.mubr.bf16.mxu0 %v2164
      %2704 = vmatmul.mubr.bf16.gmra.mxu0 %v2163
      %v2705 = vpop.f32.mrf.mxu0
      %v2706 = vadd.f32 %v2204, %v2705
      %v2707 = vpop.f32.mrf.mxu0
      %v2708 = vadd.f32 %v2208, %v2707
      %v2709 = vpop.f32.mrf.mxu0
      %v2710 = vadd.f32 %v2204, %v2709
      %v2711 = vpop.f32.mrf.mxu0
      %v2712 = vadd.f32 %v2208, %v2711
      %2713 = vmatprep.mubr.bf16.mxu0 %v2166
      %2714 = vmatmul.mubr.bf16.gmra.mxu0 %v2165
      %v2715 = vpop.f32.mrf.mxu0
      %v2716 = vadd.f32 %v2204, %v2715
      %v2717 = vpop.f32.mrf.mxu0
      %v2718 = vadd.f32 %v2208, %v2717
      %v2719 = vpop.f32.mrf.mxu0
      %v2720 = vadd.f32 %v2204, %v2719
      %v2721 = vpop.f32.mrf.mxu0
      %v2722 = vadd.f32 %v2208, %v2721
      %2723 = vdwg.mxu0
      %v2724 = vmax.f32 %v2406, 0.0
      %v2725 = vmax.f32 %v2408, 0.0
      %v2726 = vmax.f32 %v2410, 0.0
      %v2727 = vmax.f32 %v2412, 0.0
      %v2728 = vmax.f32 %v2416, 0.0
      %v2729 = vmax.f32 %v2418, 0.0
      %v2730 = vmax.f32 %v2420, 0.0
      %v2731 = vmax.f32 %v2422, 0.0
      %v2732 = vmax.f32 %v2426, 0.0
      %v2733 = vmax.f32 %v2428, 0.0
      %v2734 = vmax.f32 %v2430, 0.0
      %v2735 = vmax.f32 %v2432, 0.0
      %v2736 = vmax.f32 %v2436, 0.0
      %v2737 = vmax.f32 %v2438, 0.0
      %v2738 = vmax.f32 %v2440, 0.0
      %v2739 = vmax.f32 %v2442, 0.0
      %v2740 = vmax.f32 %v2446, 0.0
      %v2741 = vmax.f32 %v2448, 0.0
      %v2742 = vmax.f32 %v2450, 0.0
      %v2743 = vmax.f32 %v2452, 0.0
      %v2744 = vmax.f32 %v2456, 0.0
      %v2745 = vmax.f32 %v2458, 0.0
      %v2746 = vmax.f32 %v2460, 0.0
      %v2747 = vmax.f32 %v2462, 0.0
      %v2748 = vmax.f32 %v2466, 0.0
      %v2749 = vmax.f32 %v2468, 0.0
      %v2750 = vmax.f32 %v2470, 0.0
      %v2751 = vmax.f32 %v2472, 0.0
      %v2752 = vmax.f32 %v2476, 0.0
      %v2753 = vmax.f32 %v2478, 0.0
      %v2754 = vmax.f32 %v2480, 0.0
      %v2755 = vmax.f32 %v2482, 0.0
      %v2756 = vmax.f32 %v2486, 0.0
      %v2757 = vmax.f32 %v2488, 0.0
      %v2758 = vmax.f32 %v2490, 0.0
      %v2759 = vmax.f32 %v2492, 0.0
      %v2760 = vmax.f32 %v2496, 0.0
      %v2761 = vmax.f32 %v2498, 0.0
      %v2762 = vmax.f32 %v2500, 0.0
      %v2763 = vmax.f32 %v2502, 0.0
      %v2764 = vmax.f32 %v2506, 0.0
      %v2765 = vmax.f32 %v2508, 0.0
      %v2766 = vmax.f32 %v2510, 0.0
      %v2767 = vmax.f32 %v2512, 0.0
      %v2768 = vmax.f32 %v2516, 0.0
      %v2769 = vmax.f32 %v2518, 0.0
      %v2770 = vmax.f32 %v2520, 0.0
      %v2771 = vmax.f32 %v2522, 0.0
      %v2772 = vmax.f32 %v2526, 0.0
      %v2773 = vmax.f32 %v2528, 0.0
      %v2774 = vmax.f32 %v2530, 0.0
      %v2775 = vmax.f32 %v2532, 0.0
      %v2776 = vmax.f32 %v2536, 0.0
      %v2777 = vmax.f32 %v2538, 0.0
      %v2778 = vmax.f32 %v2540, 0.0
      %v2779 = vmax.f32 %v2542, 0.0
      %v2780 = vmax.f32 %v2546, 0.0
      %v2781 = vmax.f32 %v2548, 0.0
      %v2782 = vmax.f32 %v2550, 0.0
      %v2783 = vmax.f32 %v2552, 0.0
      %v2784 = vmax.f32 %v2556, 0.0
      %v2785 = vmax.f32 %v2558, 0.0
      %v2786 = vmax.f32 %v2560, 0.0
      %v2787 = vmax.f32 %v2562, 0.0
      %v2788 = vmax.f32 %v2566, 0.0
      %v2789 = vmax.f32 %v2568, 0.0
      %v2790 = vmax.f32 %v2570, 0.0
      %v2791 = vmax.f32 %v2572, 0.0
      %v2792 = vmax.f32 %v2576, 0.0
      %v2793 = vmax.f32 %v2578, 0.0
      %v2794 = vmax.f32 %v2580, 0.0
      %v2795 = vmax.f32 %v2582, 0.0
      %v2796 = vmax.f32 %v2586, 0.0
      %v2797 = vmax.f32 %v2588, 0.0
      %v2798 = vmax.f32 %v2590, 0.0
      %v2799 = vmax.f32 %v2592, 0.0
      %v2800 = vmax.f32 %v2596, 0.0
      %v2801 = vmax.f32 %v2598, 0.0
      %v2802 = vmax.f32 %v2600, 0.0
      %v2803 = vmax.f32 %v2602, 0.0
      %v2804 = vmax.f32 %v2606, 0.0
      %v2805 = vmax.f32 %v2608, 0.0
      %v2806 = vmax.f32 %v2610, 0.0
      %v2807 = vmax.f32 %v2612, 0.0
      %v2808 = vmax.f32 %v2616, 0.0
      %v2809 = vmax.f32 %v2618, 0.0
      %v2810 = vmax.f32 %v2620, 0.0
      %v2811 = vmax.f32 %v2622, 0.0
      %v2812 = vmax.f32 %v2626, 0.0
      %v2813 = vmax.f32 %v2628, 0.0
      %v2814 = vmax.f32 %v2630, 0.0
      %v2815 = vmax.f32 %v2632, 0.0
      %v2816 = vmax.f32 %v2636, 0.0
      %v2817 = vmax.f32 %v2638, 0.0
      %v2818 = vmax.f32 %v2640, 0.0
      %v2819 = vmax.f32 %v2642, 0.0
      %v2820 = vmax.f32 %v2646, 0.0
      %v2821 = vmax.f32 %v2648, 0.0
      %v2822 = vmax.f32 %v2650, 0.0
      %v2823 = vmax.f32 %v2652, 0.0
      %v2824 = vmax.f32 %v2656, 0.0
      %v2825 = vmax.f32 %v2658, 0.0
      %v2826 = vmax.f32 %v2660, 0.0
      %v2827 = vmax.f32 %v2662, 0.0
      %v2828 = vmax.f32 %v2666, 0.0
      %v2829 = vmax.f32 %v2668, 0.0
      %v2830 = vmax.f32 %v2670, 0.0
      %v2831 = vmax.f32 %v2672, 0.0
      %v2832 = vmax.f32 %v2676, 0.0
      %v2833 = vmax.f32 %v2678, 0.0
      %v2834 = vmax.f32 %v2680, 0.0
      %v2835 = vmax.f32 %v2682, 0.0
      %v2836 = vmax.f32 %v2686, 0.0
      %v2837 = vmax.f32 %v2688, 0.0
      %v2838 = vmax.f32 %v2690, 0.0
      %v2839 = vmax.f32 %v2692, 0.0
      %v2840 = vmax.f32 %v2696, 0.0
      %v2841 = vmax.f32 %v2698, 0.0
      %v2842 = vmax.f32 %v2700, 0.0
      %v2843 = vmax.f32 %v2702, 0.0
      %v2844 = vmax.f32 %v2706, 0.0
      %v2845 = vmax.f32 %v2708, 0.0
      %v2846 = vmax.f32 %v2710, 0.0
      %v2847 = vmax.f32 %v2712, 0.0
      %v2848 = vmax.f32 %v2716, 0.0
      %v2849 = vmax.f32 %v2718, 0.0
      %v2850 = vmax.f32 %v2720, 0.0
      %v2851 = vmax.f32 %v2722, 0.0
      %v2852 = vpack.c.bf16 %v2726, %v2724
      %v2853 = vpack.c.bf16 %v2727, %v2725
      %v2854 = vpack.c.bf16 %v2730, %v2728
      %v2855 = vpack.c.bf16 %v2731, %v2729
      %v2856 = vpack.c.bf16 %v2734, %v2732
      %v2857 = vpack.c.bf16 %v2735, %v2733
      %v2858 = vpack.c.bf16 %v2738, %v2736
      %v2859 = vpack.c.bf16 %v2739, %v2737
      %v2860 = vpack.c.bf16 %v2742, %v2740
      %v2861 = vpack.c.bf16 %v2743, %v2741
      %v2862 = vpack.c.bf16 %v2746, %v2744
      %v2863 = vpack.c.bf16 %v2747, %v2745
      %v2864 = vpack.c.bf16 %v2750, %v2748
      %v2865 = vpack.c.bf16 %v2751, %v2749
      %v2866 = vpack.c.bf16 %v2754, %v2752
      %v2867 = vpack.c.bf16 %v2755, %v2753
      %v2868 = vpack.c.bf16 %v2758, %v2756
      %v2869 = vpack.c.bf16 %v2759, %v2757
      %v2870 = vpack.c.bf16 %v2762, %v2760
      %v2871 = vpack.c.bf16 %v2763, %v2761
      %v2872 = vpack.c.bf16 %v2766, %v2764
      %v2873 = vpack.c.bf16 %v2767, %v2765
      %v2874 = vpack.c.bf16 %v2770, %v2768
      %v2875 = vpack.c.bf16 %v2771, %v2769
      %v2876 = vpack.c.bf16 %v2774, %v2772
      %v2877 = vpack.c.bf16 %v2775, %v2773
      %v2878 = vpack.c.bf16 %v2778, %v2776
      %v2879 = vpack.c.bf16 %v2779, %v2777
      %v2880 = vpack.c.bf16 %v2782, %v2780
      %v2881 = vpack.c.bf16 %v2783, %v2781
      %v2882 = vpack.c.bf16 %v2786, %v2784
      %v2883 = vpack.c.bf16 %v2787, %v2785
      %v2884 = vpack.c.bf16 %v2790, %v2788
      %v2885 = vpack.c.bf16 %v2791, %v2789
      %v2886 = vpack.c.bf16 %v2794, %v2792
      %v2887 = vpack.c.bf16 %v2795, %v2793
      %v2888 = vpack.c.bf16 %v2798, %v2796
      %v2889 = vpack.c.bf16 %v2799, %v2797
      %v2890 = vpack.c.bf16 %v2802, %v2800
      %v2891 = vpack.c.bf16 %v2803, %v2801
      %v2892 = vpack.c.bf16 %v2806, %v2804
      %v2893 = vpack.c.bf16 %v2807, %v2805
      %v2894 = vpack.c.bf16 %v2810, %v2808
      %v2895 = vpack.c.bf16 %v2811, %v2809
      %v2896 = vpack.c.bf16 %v2814, %v2812
      %v2897 = vpack.c.bf16 %v2815, %v2813
      %v2898 = vpack.c.bf16 %v2818, %v2816
      %v2899 = vpack.c.bf16 %v2819, %v2817
      %v2900 = vpack.c.bf16 %v2822, %v2820
      %v2901 = vpack.c.bf16 %v2823, %v2821
      %v2902 = vpack.c.bf16 %v2826, %v2824
      %v2903 = vpack.c.bf16 %v2827, %v2825
      %v2904 = vpack.c.bf16 %v2830, %v2828
      %v2905 = vpack.c.bf16 %v2831, %v2829
      %v2906 = vpack.c.bf16 %v2834, %v2832
      %v2907 = vpack.c.bf16 %v2835, %v2833
      %v2908 = vpack.c.bf16 %v2838, %v2836
      %v2909 = vpack.c.bf16 %v2839, %v2837
      %v2910 = vpack.c.bf16 %v2842, %v2840
      %v2911 = vpack.c.bf16 %v2843, %v2841
      %v2912 = vpack.c.bf16 %v2846, %v2844
      %v2913 = vpack.c.bf16 %v2847, %v2845
      %v2914 = vpack.c.bf16 %v2850, %v2848
      %v2915 = vpack.c.bf16 %v2851, %v2849
      %s2916 = scalar_lea.vmem %s3, 256
      %v2917 = vld [vmem:[%s2916] sm:$0xff]
      %v2918 = vld [vmem:[%s2916 + $0x8] sm:$0xff]
      %v2919 = vld [vmem:[%s2916 + $0x10] sm:$0xff]
      %v2920 = vld [vmem:[%s2916 + $0x18] sm:$0xff]
      %v2921 = vld [vmem:[%s2916 + $0x20] sm:$0xff]
      %v2922 = vld [vmem:[%s2916 + $0x28] sm:$0xff]
      %v2923 = vld [vmem:[%s2916 + $0x30] sm:$0xff]
      %v2924 = vld [vmem:[%s2916 + $0x38] sm:$0xff]
      %v2925 = vld [vmem:[%s2916 + $0x40] sm:$0xff]
      %v2926 = vld [vmem:[%s2916 + $0x48] sm:$0xff]
      %v2927 = vld [vmem:[%s2916 + $0x50] sm:$0xff]
      %v2928 = vld [vmem:[%s2916 + $0x58] sm:$0xff]
      %v2929 = vld [vmem:[%s2916 + $0x60] sm:$0xff]
      %v2930 = vld [vmem:[%s2916 + $0x68] sm:$0xff]
      %v2931 = vld [vmem:[%s2916 + $0x70] sm:$0xff]
      %v2932 = vld [vmem:[%s2916 + $0x78] sm:$0xff]
      %v2933 = vld [vmem:[%s2916 + $0x80] sm:$0xff]
      %v2934 = vld [vmem:[%s2916 + $0x88] sm:$0xff]
      %v2935 = vld [vmem:[%s2916 + $0x90] sm:$0xff]
      %v2936 = vld [vmem:[%s2916 + $0x98] sm:$0xff]
      %v2937 = vld [vmem:[%s2916 + $0xa0] sm:$0xff]
      %v2938 = vld [vmem:[%s2916 + $0xa8] sm:$0xff]
      %v2939 = vld [vmem:[%s2916 + $0xb0] sm:$0xff]
      %v2940 = vld [vmem:[%s2916 + $0xb8] sm:$0xff]
      %v2941 = vld [vmem:[%s2916 + $0xc0] sm:$0xff]
      %v2942 = vld [vmem:[%s2916 + $0xc8] sm:$0xff]
      %v2943 = vld [vmem:[%s2916 + $0xd0] sm:$0xff]
      %v2944 = vld [vmem:[%s2916 + $0xd8] sm:$0xff]
      %v2945 = vld [vmem:[%s2916 + $0xe0] sm:$0xff]
      %v2946 = vld [vmem:[%s2916 + $0xe8] sm:$0xff]
      %v2947 = vld [vmem:[%s2916 + $0xf0] sm:$0xff]
      %v2948 = vld [vmem:[%s2916 + $0xf8] sm:$0xff]
      %s2949 = scalar_lea.vmem %s4, 2
      %v2950 = vld [vmem:[%s2949] sm:$0x3]
      %v2952 = vlaneseq
      %v2953 = vshrl.u32 %v2952, 7
      %v2954 = vsub.s32 0, %v2953
      %v2955 = vrot.slane %v2950, %v2954
      %v2956 = vlaneseq
      %v2957 = vshrl.u32 %v2956, 7
      %v2958 = vsub.s32 1, %v2957
      %v2959 = vrot.slane %v2950, %v2958
      %v2994 = vunpack.c.l.b16 %v2917
      %v2995 = vunpack.c.h.b16 %v2917
      %v2996 = vunpack.c.l.b16 %v2918
      %v2997 = vunpack.c.h.b16 %v2918
      %v2998 = vunpack.c.l.b16 %v2919
      %v2999 = vunpack.c.h.b16 %v2919
      %v3000 = vunpack.c.l.b16 %v2920
      %v3001 = vunpack.c.h.b16 %v2920
      %v3002 = vunpack.c.l.b16 %v2921
      %v3003 = vunpack.c.h.b16 %v2921
      %v3004 = vunpack.c.l.b16 %v2922
      %v3005 = vunpack.c.h.b16 %v2922
      %v3006 = vunpack.c.l.b16 %v2923
      %v3007 = vunpack.c.h.b16 %v2923
      %v3008 = vunpack.c.l.b16 %v2924
      %v3009 = vunpack.c.h.b16 %v2924
      %v3010 = vunpack.c.l.b16 %v2925
      %v3011 = vunpack.c.h.b16 %v2925
      %v3012 = vunpack.c.l.b16 %v2926
      %v3013 = vunpack.c.h.b16 %v2926
      %v3014 = vunpack.c.l.b16 %v2927
      %v3015 = vunpack.c.h.b16 %v2927
      %v3016 = vunpack.c.l.b16 %v2928
      %v3017 = vunpack.c.h.b16 %v2928
      %v3018 = vunpack.c.l.b16 %v2929
      %v3019 = vunpack.c.h.b16 %v2929
      %v3020 = vunpack.c.l.b16 %v2930
      %v3021 = vunpack.c.h.b16 %v2930
      %v3022 = vunpack.c.l.b16 %v2931
      %v3023 = vunpack.c.h.b16 %v2931
      %v3024 = vunpack.c.l.b16 %v2932
      %v3025 = vunpack.c.h.b16 %v2932
      %v3026 = vunpack.c.l.b16 %v2933
      %v3027 = vunpack.c.h.b16 %v2933
      %v3028 = vunpack.c.l.b16 %v2934
      %v3029 = vunpack.c.h.b16 %v2934
      %v3030 = vunpack.c.l.b16 %v2935
      %v3031 = vunpack.c.h.b16 %v2935
      %v3032 = vunpack.c.l.b16 %v2936
      %v3033 = vunpack.c.h.b16 %v2936
      %v3034 = vunpack.c.l.b16 %v2937
      %v3035 = vunpack.c.h.b16 %v2937
      %v3036 = vunpack.c.l.b16 %v2938
      %v3037 = vunpack.c.h.b16 %v2938
      %v3038 = vunpack.c.l.b16 %v2939
      %v3039 = vunpack.c.h.b16 %v2939
      %v3040 = vunpack.c.l.b16 %v2940
      %v3041 = vunpack.c.h.b16 %v2940
      %v3042 = vunpack.c.l.b16 %v2941
      %v3043 = vunpack.c.h.b16 %v2941
      %v3044 = vunpack.c.l.b16 %v2942
      %v3045 = vunpack.c.h.b16 %v2942
      %v3046 = vunpack.c.l.b16 %v2943
      %v3047 = vunpack.c.h.b16 %v2943
      %v3048 = vunpack.c.l.b16 %v2944
      %v3049 = vunpack.c.h.b16 %v2944
      %v3050 = vunpack.c.l.b16 %v2945
      %v3051 = vunpack.c.h.b16 %v2945
      %v3052 = vunpack.c.l.b16 %v2946
      %v3053 = vunpack.c.h.b16 %v2946
      %v3054 = vunpack.c.l.b16 %v2947
      %v3055 = vunpack.c.h.b16 %v2947
      %v3056 = vunpack.c.l.b16 %v2948
      %v3057 = vunpack.c.h.b16 %v2948
      %v3058 = vpack.c.b16 %v2996, %v2994
      %v3059 = vpack.c.b16 %v2997, %v2995
      %v3060 = vpack.c.b16 %v3000, %v2998
      %v3061 = vpack.c.b16 %v3001, %v2999
      %v3062 = vpack.c.b16 %v3004, %v3002
      %v3063 = vpack.c.b16 %v3005, %v3003
      %v3064 = vpack.c.b16 %v3008, %v3006
      %v3065 = vpack.c.b16 %v3009, %v3007
      %v3066 = vpack.c.b16 %v3012, %v3010
      %v3067 = vpack.c.b16 %v3013, %v3011
      %v3068 = vpack.c.b16 %v3016, %v3014
      %v3069 = vpack.c.b16 %v3017, %v3015
      %v3070 = vpack.c.b16 %v3020, %v3018
      %v3071 = vpack.c.b16 %v3021, %v3019
      %v3072 = vpack.c.b16 %v3024, %v3022
      %v3073 = vpack.c.b16 %v3025, %v3023
      %v3074 = vpack.c.b16 %v3028, %v3026
      %v3075 = vpack.c.b16 %v3029, %v3027
      %v3076 = vpack.c.b16 %v3032, %v3030
      %v3077 = vpack.c.b16 %v3033, %v3031
      %v3078 = vpack.c.b16 %v3036, %v3034
      %v3079 = vpack.c.b16 %v3037, %v3035
      %v3080 = vpack.c.b16 %v3040, %v3038
      %v3081 = vpack.c.b16 %v3041, %v3039
      %v3082 = vpack.c.b16 %v3044, %v3042
      %v3083 = vpack.c.b16 %v3045, %v3043
      %v3084 = vpack.c.b16 %v3048, %v3046
      %v3085 = vpack.c.b16 %v3049, %v3047
      %v3086 = vpack.c.b16 %v3052, %v3050
      %v3087 = vpack.c.b16 %v3053, %v3051
      %v3088 = vpack.c.b16 %v3056, %v3054
      %v3089 = vpack.c.b16 %v3057, %v3055
      %3122 = vmatprep.subr.bf16.mxu0 %v3073
      %3123 = vmatpush1.bf16.msra.mxu0 %v3072
      %3124 = vmatprep.subr.bf16.mxu0 %v3071
      %3125 = vmatpush1.bf16.msra.mxu0 %v3070
      %3126 = vmatprep.subr.bf16.mxu0 %v3069
      %3127 = vmatpush1.bf16.msra.mxu0 %v3068
      %3128 = vmatprep.subr.bf16.mxu0 %v3067
      %3129 = vmatpush1.bf16.msra.mxu0 %v3066
      %3130 = vmatprep.subr.bf16.mxu0 %v3065
      %3131 = vmatpush1.bf16.msra.mxu0 %v3064
      %3132 = vmatprep.subr.bf16.mxu0 %v3063
      %3133 = vmatpush1.bf16.msra.mxu0 %v3062
      %3134 = vmatprep.subr.bf16.mxu0 %v3061
      %3135 = vmatpush1.bf16.msra.mxu0 %v3060
      %3136 = vmatprep.subr.bf16.mxu0 %v3059
      %3137 = vmatpush1.bf16.msra.mxu0 %v3058
      %3138 = vmatprep.subr.bf16.mxu0 %v3089
      %3139 = vmatpush2.bf16.msra.mxu0 %v3088
      %3140 = vmatprep.subr.bf16.mxu0 %v3087
      %3141 = vmatpush2.bf16.msra.mxu0 %v3086
      %3142 = vmatprep.subr.bf16.mxu0 %v3085
      %3143 = vmatpush2.bf16.msra.mxu0 %v3084
      %3144 = vmatprep.subr.bf16.mxu0 %v3083
      %3145 = vmatpush2.bf16.msra.mxu0 %v3082
      %3146 = vmatprep.subr.bf16.mxu0 %v3081
      %3147 = vmatpush2.bf16.msra.mxu0 %v3080
      %3148 = vmatprep.subr.bf16.mxu0 %v3079
      %3149 = vmatpush2.bf16.msra.mxu0 %v3078
      %3150 = vmatprep.subr.bf16.mxu0 %v3077
      %3151 = vmatpush2.bf16.msra.mxu0 %v3076
      %3152 = vmatprep.subr.bf16.mxu0 %v3075
      %3153 = vmatpush2.bf16.msra.mxu0 %v3074
      %3154 = vmatprep.mubr.bf16.mxu0 %v2853
      %3155 = vmatmul.mubr.bf16.gmra.mxu0 %v2852
      %v3156 = vpop.f32.mrf.mxu0
      %v3157 = vadd.f32 %v2955, %v3156
      %v3158 = vpop.f32.mrf.mxu0
      %v3159 = vadd.f32 %v2959, %v3158
      %v3160 = vpop.f32.mrf.mxu0
      %v3161 = vadd.f32 %v2955, %v3160
      %v3162 = vpop.f32.mrf.mxu0
      %v3163 = vadd.f32 %v2959, %v3162
      %3164 = vmatprep.mubr.bf16.mxu0 %v2855
      %3165 = vmatmul.mubr.bf16.gmra.mxu0 %v2854
      %v3166 = vpop.f32.mrf.mxu0
      %v3167 = vadd.f32 %v2955, %v3166
      %v3168 = vpop.f32.mrf.mxu0
      %v3169 = vadd.f32 %v2959, %v3168
      %v3170 = vpop.f32.mrf.mxu0
      %v3171 = vadd.f32 %v2955, %v3170
      %v3172 = vpop.f32.mrf.mxu0
      %v3173 = vadd.f32 %v2959, %v3172
      %3174 = vmatprep.mubr.bf16.mxu0 %v2857
      %3175 = vmatmul.mubr.bf16.gmra.mxu0 %v2856
      %v3176 = vpop.f32.mrf.mxu0
      %v3177 = vadd.f32 %v2955, %v3176
      %v3178 = vpop.f32.mrf.mxu0
      %v3179 = vadd.f32 %v2959, %v3178
      %v3180 = vpop.f32.mrf.mxu0
      %v3181 = vadd.f32 %v2955, %v3180
      %v3182 = vpop.f32.mrf.mxu0
      %v3183 = vadd.f32 %v2959, %v3182
      %3184 = vmatprep.mubr.bf16.mxu0 %v2859
      %3185 = vmatmul.mubr.bf16.gmra.mxu0 %v2858
      %v3186 = vpop.f32.mrf.mxu0
      %v3187 = vadd.f32 %v2955, %v3186
      %v3188 = vpop.f32.mrf.mxu0
      %v3189 = vadd.f32 %v2959, %v3188
      %v3190 = vpop.f32.mrf.mxu0
      %v3191 = vadd.f32 %v2955, %v3190
      %v3192 = vpop.f32.mrf.mxu0
      %v3193 = vadd.f32 %v2959, %v3192
      %3194 = vmatprep.mubr.bf16.mxu0 %v2861
      %3195 = vmatmul.mubr.bf16.gmra.mxu0 %v2860
      %v3196 = vpop.f32.mrf.mxu0
      %v3197 = vadd.f32 %v2955, %v3196
      %v3198 = vpop.f32.mrf.mxu0
      %v3199 = vadd.f32 %v2959, %v3198
      %v3200 = vpop.f32.mrf.mxu0
      %v3201 = vadd.f32 %v2955, %v3200
      %v3202 = vpop.f32.mrf.mxu0
      %v3203 = vadd.f32 %v2959, %v3202
      %3204 = vmatprep.mubr.bf16.mxu0 %v2863
      %3205 = vmatmul.mubr.bf16.gmra.mxu0 %v2862
      %v3206 = vpop.f32.mrf.mxu0
      %v3207 = vadd.f32 %v2955, %v3206
      %v3208 = vpop.f32.mrf.mxu0
      %v3209 = vadd.f32 %v2959, %v3208
      %v3210 = vpop.f32.mrf.mxu0
      %v3211 = vadd.f32 %v2955, %v3210
      %v3212 = vpop.f32.mrf.mxu0
      %v3213 = vadd.f32 %v2959, %v3212
      %3214 = vmatprep.mubr.bf16.mxu0 %v2865
      %3215 = vmatmul.mubr.bf16.gmra.mxu0 %v2864
      %v3216 = vpop.f32.mrf.mxu0
      %v3217 = vadd.f32 %v2955, %v3216
      %v3218 = vpop.f32.mrf.mxu0
      %v3219 = vadd.f32 %v2959, %v3218
      %v3220 = vpop.f32.mrf.mxu0
      %v3221 = vadd.f32 %v2955, %v3220
      %v3222 = vpop.f32.mrf.mxu0
      %v3223 = vadd.f32 %v2959, %v3222
      %3224 = vmatprep.mubr.bf16.mxu0 %v2867
      %3225 = vmatmul.mubr.bf16.gmra.mxu0 %v2866
      %v3226 = vpop.f32.mrf.mxu0
      %v3227 = vadd.f32 %v2955, %v3226
      %v3228 = vpop.f32.mrf.mxu0
      %v3229 = vadd.f32 %v2959, %v3228
      %v3230 = vpop.f32.mrf.mxu0
      %v3231 = vadd.f32 %v2955, %v3230
      %v3232 = vpop.f32.mrf.mxu0
      %v3233 = vadd.f32 %v2959, %v3232
      %3234 = vmatprep.mubr.bf16.mxu0 %v2869
      %3235 = vmatmul.mubr.bf16.gmra.mxu0 %v2868
      %v3236 = vpop.f32.mrf.mxu0
      %v3237 = vadd.f32 %v2955, %v3236
      %v3238 = vpop.f32.mrf.mxu0
      %v3239 = vadd.f32 %v2959, %v3238
      %v3240 = vpop.f32.mrf.mxu0
      %v3241 = vadd.f32 %v2955, %v3240
      %v3242 = vpop.f32.mrf.mxu0
      %v3243 = vadd.f32 %v2959, %v3242
      %3244 = vmatprep.mubr.bf16.mxu0 %v2871
      %3245 = vmatmul.mubr.bf16.gmra.mxu0 %v2870
      %v3246 = vpop.f32.mrf.mxu0
      %v3247 = vadd.f32 %v2955, %v3246
      %v3248 = vpop.f32.mrf.mxu0
      %v3249 = vadd.f32 %v2959, %v3248
      %v3250 = vpop.f32.mrf.mxu0
      %v3251 = vadd.f32 %v2955, %v3250
      %v3252 = vpop.f32.mrf.mxu0
      %v3253 = vadd.f32 %v2959, %v3252
      %3254 = vmatprep.mubr.bf16.mxu0 %v2873
      %3255 = vmatmul.mubr.bf16.gmra.mxu0 %v2872
      %v3256 = vpop.f32.mrf.mxu0
      %v3257 = vadd.f32 %v2955, %v3256
      %v3258 = vpop.f32.mrf.mxu0
      %v3259 = vadd.f32 %v2959, %v3258
      %v3260 = vpop.f32.mrf.mxu0
      %v3261 = vadd.f32 %v2955, %v3260
      %v3262 = vpop.f32.mrf.mxu0
      %v3263 = vadd.f32 %v2959, %v3262
      %3264 = vmatprep.mubr.bf16.mxu0 %v2875
      %3265 = vmatmul.mubr.bf16.gmra.mxu0 %v2874
      %v3266 = vpop.f32.mrf.mxu0
      %v3267 = vadd.f32 %v2955, %v3266
      %v3268 = vpop.f32.mrf.mxu0
      %v3269 = vadd.f32 %v2959, %v3268
      %v3270 = vpop.f32.mrf.mxu0
      %v3271 = vadd.f32 %v2955, %v3270
      %v3272 = vpop.f32.mrf.mxu0
      %v3273 = vadd.f32 %v2959, %v3272
      %3274 = vmatprep.mubr.bf16.mxu0 %v2877
      %3275 = vmatmul.mubr.bf16.gmra.mxu0 %v2876
      %v3276 = vpop.f32.mrf.mxu0
      %v3277 = vadd.f32 %v2955, %v3276
      %v3278 = vpop.f32.mrf.mxu0
      %v3279 = vadd.f32 %v2959, %v3278
      %v3280 = vpop.f32.mrf.mxu0
      %v3281 = vadd.f32 %v2955, %v3280
      %v3282 = vpop.f32.mrf.mxu0
      %v3283 = vadd.f32 %v2959, %v3282
      %3284 = vmatprep.mubr.bf16.mxu0 %v2879
      %3285 = vmatmul.mubr.bf16.gmra.mxu0 %v2878
      %v3286 = vpop.f32.mrf.mxu0
      %v3287 = vadd.f32 %v2955, %v3286
      %v3288 = vpop.f32.mrf.mxu0
      %v3289 = vadd.f32 %v2959, %v3288
      %v3290 = vpop.f32.mrf.mxu0
      %v3291 = vadd.f32 %v2955, %v3290
      %v3292 = vpop.f32.mrf.mxu0
      %v3293 = vadd.f32 %v2959, %v3292
      %3294 = vmatprep.mubr.bf16.mxu0 %v2881
      %3295 = vmatmul.mubr.bf16.gmra.mxu0 %v2880
      %v3296 = vpop.f32.mrf.mxu0
      %v3297 = vadd.f32 %v2955, %v3296
      %v3298 = vpop.f32.mrf.mxu0
      %v3299 = vadd.f32 %v2959, %v3298
      %v3300 = vpop.f32.mrf.mxu0
      %v3301 = vadd.f32 %v2955, %v3300
      %v3302 = vpop.f32.mrf.mxu0
      %v3303 = vadd.f32 %v2959, %v3302
      %3304 = vmatprep.mubr.bf16.mxu0 %v2883
      %3305 = vmatmul.mubr.bf16.gmra.mxu0 %v2882
      %v3306 = vpop.f32.mrf.mxu0
      %v3307 = vadd.f32 %v2955, %v3306
      %v3308 = vpop.f32.mrf.mxu0
      %v3309 = vadd.f32 %v2959, %v3308
      %v3310 = vpop.f32.mrf.mxu0
      %v3311 = vadd.f32 %v2955, %v3310
      %v3312 = vpop.f32.mrf.mxu0
      %v3313 = vadd.f32 %v2959, %v3312
      %3314 = vmatprep.mubr.bf16.mxu0 %v2885
      %3315 = vmatmul.mubr.bf16.gmra.mxu0 %v2884
      %v3316 = vpop.f32.mrf.mxu0
      %v3317 = vadd.f32 %v2955, %v3316
      %v3318 = vpop.f32.mrf.mxu0
      %v3319 = vadd.f32 %v2959, %v3318
      %v3320 = vpop.f32.mrf.mxu0
      %v3321 = vadd.f32 %v2955, %v3320
      %v3322 = vpop.f32.mrf.mxu0
      %v3323 = vadd.f32 %v2959, %v3322
      %3324 = vmatprep.mubr.bf16.mxu0 %v2887
      %3325 = vmatmul.mubr.bf16.gmra.mxu0 %v2886
      %v3326 = vpop.f32.mrf.mxu0
      %v3327 = vadd.f32 %v2955, %v3326
      %v3328 = vpop.f32.mrf.mxu0
      %v3329 = vadd.f32 %v2959, %v3328
      %v3330 = vpop.f32.mrf.mxu0
      %v3331 = vadd.f32 %v2955, %v3330
      %v3332 = vpop.f32.mrf.mxu0
      %v3333 = vadd.f32 %v2959, %v3332
      %3334 = vmatprep.mubr.bf16.mxu0 %v2889
      %3335 = vmatmul.mubr.bf16.gmra.mxu0 %v2888
      %v3336 = vpop.f32.mrf.mxu0
      %v3337 = vadd.f32 %v2955, %v3336
      %v3338 = vpop.f32.mrf.mxu0
      %v3339 = vadd.f32 %v2959, %v3338
      %v3340 = vpop.f32.mrf.mxu0
      %v3341 = vadd.f32 %v2955, %v3340
      %v3342 = vpop.f32.mrf.mxu0
      %v3343 = vadd.f32 %v2959, %v3342
      %3344 = vmatprep.mubr.bf16.mxu0 %v2891
      %3345 = vmatmul.mubr.bf16.gmra.mxu0 %v2890
      %v3346 = vpop.f32.mrf.mxu0
      %v3347 = vadd.f32 %v2955, %v3346
      %v3348 = vpop.f32.mrf.mxu0
      %v3349 = vadd.f32 %v2959, %v3348
      %v3350 = vpop.f32.mrf.mxu0
      %v3351 = vadd.f32 %v2955, %v3350
      %v3352 = vpop.f32.mrf.mxu0
      %v3353 = vadd.f32 %v2959, %v3352
      %3354 = vmatprep.mubr.bf16.mxu0 %v2893
      %3355 = vmatmul.mubr.bf16.gmra.mxu0 %v2892
      %v3356 = vpop.f32.mrf.mxu0
      %v3357 = vadd.f32 %v2955, %v3356
      %v3358 = vpop.f32.mrf.mxu0
      %v3359 = vadd.f32 %v2959, %v3358
      %v3360 = vpop.f32.mrf.mxu0
      %v3361 = vadd.f32 %v2955, %v3360
      %v3362 = vpop.f32.mrf.mxu0
      %v3363 = vadd.f32 %v2959, %v3362
      %3364 = vmatprep.mubr.bf16.mxu0 %v2895
      %3365 = vmatmul.mubr.bf16.gmra.mxu0 %v2894
      %v3366 = vpop.f32.mrf.mxu0
      %v3367 = vadd.f32 %v2955, %v3366
      %v3368 = vpop.f32.mrf.mxu0
      %v3369 = vadd.f32 %v2959, %v3368
      %v3370 = vpop.f32.mrf.mxu0
      %v3371 = vadd.f32 %v2955, %v3370
      %v3372 = vpop.f32.mrf.mxu0
      %v3373 = vadd.f32 %v2959, %v3372
      %3374 = vmatprep.mubr.bf16.mxu0 %v2897
      %3375 = vmatmul.mubr.bf16.gmra.mxu0 %v2896
      %v3376 = vpop.f32.mrf.mxu0
      %v3377 = vadd.f32 %v2955, %v3376
      %v3378 = vpop.f32.mrf.mxu0
      %v3379 = vadd.f32 %v2959, %v3378
      %v3380 = vpop.f32.mrf.mxu0
      %v3381 = vadd.f32 %v2955, %v3380
      %v3382 = vpop.f32.mrf.mxu0
      %v3383 = vadd.f32 %v2959, %v3382
      %3384 = vmatprep.mubr.bf16.mxu0 %v2899
      %3385 = vmatmul.mubr.bf16.gmra.mxu0 %v2898
      %v3386 = vpop.f32.mrf.mxu0
      %v3387 = vadd.f32 %v2955, %v3386
      %v3388 = vpop.f32.mrf.mxu0
      %v3389 = vadd.f32 %v2959, %v3388
      %v3390 = vpop.f32.mrf.mxu0
      %v3391 = vadd.f32 %v2955, %v3390
      %v3392 = vpop.f32.mrf.mxu0
      %v3393 = vadd.f32 %v2959, %v3392
      %3394 = vmatprep.mubr.bf16.mxu0 %v2901
      %3395 = vmatmul.mubr.bf16.gmra.mxu0 %v2900
      %v3396 = vpop.f32.mrf.mxu0
      %v3397 = vadd.f32 %v2955, %v3396
      %v3398 = vpop.f32.mrf.mxu0
      %v3399 = vadd.f32 %v2959, %v3398
      %v3400 = vpop.f32.mrf.mxu0
      %v3401 = vadd.f32 %v2955, %v3400
      %v3402 = vpop.f32.mrf.mxu0
      %v3403 = vadd.f32 %v2959, %v3402
      %3404 = vmatprep.mubr.bf16.mxu0 %v2903
      %3405 = vmatmul.mubr.bf16.gmra.mxu0 %v2902
      %v3406 = vpop.f32.mrf.mxu0
      %v3407 = vadd.f32 %v2955, %v3406
      %v3408 = vpop.f32.mrf.mxu0
      %v3409 = vadd.f32 %v2959, %v3408
      %v3410 = vpop.f32.mrf.mxu0
      %v3411 = vadd.f32 %v2955, %v3410
      %v3412 = vpop.f32.mrf.mxu0
      %v3413 = vadd.f32 %v2959, %v3412
      %3414 = vmatprep.mubr.bf16.mxu0 %v2905
      %3415 = vmatmul.mubr.bf16.gmra.mxu0 %v2904
      %v3416 = vpop.f32.mrf.mxu0
      %v3417 = vadd.f32 %v2955, %v3416
      %v3418 = vpop.f32.mrf.mxu0
      %v3419 = vadd.f32 %v2959, %v3418
      %v3420 = vpop.f32.mrf.mxu0
      %v3421 = vadd.f32 %v2955, %v3420
      %v3422 = vpop.f32.mrf.mxu0
      %v3423 = vadd.f32 %v2959, %v3422
      %3424 = vmatprep.mubr.bf16.mxu0 %v2907
      %3425 = vmatmul.mubr.bf16.gmra.mxu0 %v2906
      %v3426 = vpop.f32.mrf.mxu0
      %v3427 = vadd.f32 %v2955, %v3426
      %v3428 = vpop.f32.mrf.mxu0
      %v3429 = vadd.f32 %v2959, %v3428
      %v3430 = vpop.f32.mrf.mxu0
      %v3431 = vadd.f32 %v2955, %v3430
      %v3432 = vpop.f32.mrf.mxu0
      %v3433 = vadd.f32 %v2959, %v3432
      %3434 = vmatprep.mubr.bf16.mxu0 %v2909
      %3435 = vmatmul.mubr.bf16.gmra.mxu0 %v2908
      %v3436 = vpop.f32.mrf.mxu0
      %v3437 = vadd.f32 %v2955, %v3436
      %v3438 = vpop.f32.mrf.mxu0
      %v3439 = vadd.f32 %v2959, %v3438
      %v3440 = vpop.f32.mrf.mxu0
      %v3441 = vadd.f32 %v2955, %v3440
      %v3442 = vpop.f32.mrf.mxu0
      %v3443 = vadd.f32 %v2959, %v3442
      %3444 = vmatprep.mubr.bf16.mxu0 %v2911
      %3445 = vmatmul.mubr.bf16.gmra.mxu0 %v2910
      %v3446 = vpop.f32.mrf.mxu0
      %v3447 = vadd.f32 %v2955, %v3446
      %v3448 = vpop.f32.mrf.mxu0
      %v3449 = vadd.f32 %v2959, %v3448
      %v3450 = vpop.f32.mrf.mxu0
      %v3451 = vadd.f32 %v2955, %v3450
      %v3452 = vpop.f32.mrf.mxu0
      %v3453 = vadd.f32 %v2959, %v3452
      %3454 = vmatprep.mubr.bf16.mxu0 %v2913
      %3455 = vmatmul.mubr.bf16.gmra.mxu0 %v2912
      %v3456 = vpop.f32.mrf.mxu0
      %v3457 = vadd.f32 %v2955, %v3456
      %v3458 = vpop.f32.mrf.mxu0
      %v3459 = vadd.f32 %v2959, %v3458
      %v3460 = vpop.f32.mrf.mxu0
      %v3461 = vadd.f32 %v2955, %v3460
      %v3462 = vpop.f32.mrf.mxu0
      %v3463 = vadd.f32 %v2959, %v3462
      %3464 = vmatprep.mubr.bf16.mxu0 %v2915
      %3465 = vmatmul.mubr.bf16.gmra.mxu0 %v2914
      %v3466 = vpop.f32.mrf.mxu0
      %v3467 = vadd.f32 %v2955, %v3466
      %v3468 = vpop.f32.mrf.mxu0
      %v3469 = vadd.f32 %v2959, %v3468
      %v3470 = vpop.f32.mrf.mxu0
      %v3471 = vadd.f32 %v2955, %v3470
      %v3472 = vpop.f32.mrf.mxu0
      %v3473 = vadd.f32 %v2959, %v3472
      %3474 = vdwg.mxu0
      %v3475 = vmax.f32 %v3157, 0.0
      %v3476 = vmax.f32 %v3159, 0.0
      %v3477 = vmax.f32 %v3161, 0.0
      %v3478 = vmax.f32 %v3163, 0.0
      %v3479 = vmax.f32 %v3167, 0.0
      %v3480 = vmax.f32 %v3169, 0.0
      %v3481 = vmax.f32 %v3171, 0.0
      %v3482 = vmax.f32 %v3173, 0.0
      %v3483 = vmax.f32 %v3177, 0.0
      %v3484 = vmax.f32 %v3179, 0.0
      %v3485 = vmax.f32 %v3181, 0.0
      %v3486 = vmax.f32 %v3183, 0.0
      %v3487 = vmax.f32 %v3187, 0.0
      %v3488 = vmax.f32 %v3189, 0.0
      %v3489 = vmax.f32 %v3191, 0.0
      %v3490 = vmax.f32 %v3193, 0.0
      %v3491 = vmax.f32 %v3197, 0.0
      %v3492 = vmax.f32 %v3199, 0.0
      %v3493 = vmax.f32 %v3201, 0.0
      %v3494 = vmax.f32 %v3203, 0.0
      %v3495 = vmax.f32 %v3207, 0.0
      %v3496 = vmax.f32 %v3209, 0.0
      %v3497 = vmax.f32 %v3211, 0.0
      %v3498 = vmax.f32 %v3213, 0.0
      %v3499 = vmax.f32 %v3217, 0.0
      %v3500 = vmax.f32 %v3219, 0.0
      %v3501 = vmax.f32 %v3221, 0.0
      %v3502 = vmax.f32 %v3223, 0.0
      %v3503 = vmax.f32 %v3227, 0.0
      %v3504 = vmax.f32 %v3229, 0.0
      %v3505 = vmax.f32 %v3231, 0.0
      %v3506 = vmax.f32 %v3233, 0.0
      %v3507 = vmax.f32 %v3237, 0.0
      %v3508 = vmax.f32 %v3239, 0.0
      %v3509 = vmax.f32 %v3241, 0.0
      %v3510 = vmax.f32 %v3243, 0.0
      %v3511 = vmax.f32 %v3247, 0.0
      %v3512 = vmax.f32 %v3249, 0.0
      %v3513 = vmax.f32 %v3251, 0.0
      %v3514 = vmax.f32 %v3253, 0.0
      %v3515 = vmax.f32 %v3257, 0.0
      %v3516 = vmax.f32 %v3259, 0.0
      %v3517 = vmax.f32 %v3261, 0.0
      %v3518 = vmax.f32 %v3263, 0.0
      %v3519 = vmax.f32 %v3267, 0.0
      %v3520 = vmax.f32 %v3269, 0.0
      %v3521 = vmax.f32 %v3271, 0.0
      %v3522 = vmax.f32 %v3273, 0.0
      %v3523 = vmax.f32 %v3277, 0.0
      %v3524 = vmax.f32 %v3279, 0.0
      %v3525 = vmax.f32 %v3281, 0.0
      %v3526 = vmax.f32 %v3283, 0.0
      %v3527 = vmax.f32 %v3287, 0.0
      %v3528 = vmax.f32 %v3289, 0.0
      %v3529 = vmax.f32 %v3291, 0.0
      %v3530 = vmax.f32 %v3293, 0.0
      %v3531 = vmax.f32 %v3297, 0.0
      %v3532 = vmax.f32 %v3299, 0.0
      %v3533 = vmax.f32 %v3301, 0.0
      %v3534 = vmax.f32 %v3303, 0.0
      %v3535 = vmax.f32 %v3307, 0.0
      %v3536 = vmax.f32 %v3309, 0.0
      %v3537 = vmax.f32 %v3311, 0.0
      %v3538 = vmax.f32 %v3313, 0.0
      %v3539 = vmax.f32 %v3317, 0.0
      %v3540 = vmax.f32 %v3319, 0.0
      %v3541 = vmax.f32 %v3321, 0.0
      %v3542 = vmax.f32 %v3323, 0.0
      %v3543 = vmax.f32 %v3327, 0.0
      %v3544 = vmax.f32 %v3329, 0.0
      %v3545 = vmax.f32 %v3331, 0.0
      %v3546 = vmax.f32 %v3333, 0.0
      %v3547 = vmax.f32 %v3337, 0.0
      %v3548 = vmax.f32 %v3339, 0.0
      %v3549 = vmax.f32 %v3341, 0.0
      %v3550 = vmax.f32 %v3343, 0.0
      %v3551 = vmax.f32 %v3347, 0.0
      %v3552 = vmax.f32 %v3349, 0.0
      %v3553 = vmax.f32 %v3351, 0.0
      %v3554 = vmax.f32 %v3353, 0.0
      %v3555 = vmax.f32 %v3357, 0.0
      %v3556 = vmax.f32 %v3359, 0.0
      %v3557 = vmax.f32 %v3361, 0.0
      %v3558 = vmax.f32 %v3363, 0.0
      %v3559 = vmax.f32 %v3367, 0.0
      %v3560 = vmax.f32 %v3369, 0.0
      %v3561 = vmax.f32 %v3371, 0.0
      %v3562 = vmax.f32 %v3373, 0.0
      %v3563 = vmax.f32 %v3377, 0.0
      %v3564 = vmax.f32 %v3379, 0.0
      %v3565 = vmax.f32 %v3381, 0.0
      %v3566 = vmax.f32 %v3383, 0.0
      %v3567 = vmax.f32 %v3387, 0.0
      %v3568 = vmax.f32 %v3389, 0.0
      %v3569 = vmax.f32 %v3391, 0.0
      %v3570 = vmax.f32 %v3393, 0.0
      %v3571 = vmax.f32 %v3397, 0.0
      %v3572 = vmax.f32 %v3399, 0.0
      %v3573 = vmax.f32 %v3401, 0.0
      %v3574 = vmax.f32 %v3403, 0.0
      %v3575 = vmax.f32 %v3407, 0.0
      %v3576 = vmax.f32 %v3409, 0.0
      %v3577 = vmax.f32 %v3411, 0.0
      %v3578 = vmax.f32 %v3413, 0.0
      %v3579 = vmax.f32 %v3417, 0.0
      %v3580 = vmax.f32 %v3419, 0.0
      %v3581 = vmax.f32 %v3421, 0.0
      %v3582 = vmax.f32 %v3423, 0.0
      %v3583 = vmax.f32 %v3427, 0.0
      %v3584 = vmax.f32 %v3429, 0.0
      %v3585 = vmax.f32 %v3431, 0.0
      %v3586 = vmax.f32 %v3433, 0.0
      %v3587 = vmax.f32 %v3437, 0.0
      %v3588 = vmax.f32 %v3439, 0.0
      %v3589 = vmax.f32 %v3441, 0.0
      %v3590 = vmax.f32 %v3443, 0.0
      %v3591 = vmax.f32 %v3447, 0.0
      %v3592 = vmax.f32 %v3449, 0.0
      %v3593 = vmax.f32 %v3451, 0.0
      %v3594 = vmax.f32 %v3453, 0.0
      %v3595 = vmax.f32 %v3457, 0.0
      %v3596 = vmax.f32 %v3459, 0.0
      %v3597 = vmax.f32 %v3461, 0.0
      %v3598 = vmax.f32 %v3463, 0.0
      %v3599 = vmax.f32 %v3467, 0.0
      %v3600 = vmax.f32 %v3469, 0.0
      %v3601 = vmax.f32 %v3471, 0.0
      %v3602 = vmax.f32 %v3473, 0.0
      %v3603 = vpack.c.bf16 %v3477, %v3475
      %v3604 = vpack.c.bf16 %v3478, %v3476
      %v3605 = vpack.c.bf16 %v3481, %v3479
      %v3606 = vpack.c.bf16 %v3482, %v3480
      %v3607 = vpack.c.bf16 %v3485, %v3483
      %v3608 = vpack.c.bf16 %v3486, %v3484
      %v3609 = vpack.c.bf16 %v3489, %v3487
      %v3610 = vpack.c.bf16 %v3490, %v3488
      %v3611 = vpack.c.bf16 %v3493, %v3491
      %v3612 = vpack.c.bf16 %v3494, %v3492
      %v3613 = vpack.c.bf16 %v3497, %v3495
      %v3614 = vpack.c.bf16 %v3498, %v3496
      %v3615 = vpack.c.bf16 %v3501, %v3499
      %v3616 = vpack.c.bf16 %v3502, %v3500
      %v3617 = vpack.c.bf16 %v3505, %v3503
      %v3618 = vpack.c.bf16 %v3506, %v3504
      %v3619 = vpack.c.bf16 %v3509, %v3507
      %v3620 = vpack.c.bf16 %v3510, %v3508
      %v3621 = vpack.c.bf16 %v3513, %v3511
      %v3622 = vpack.c.bf16 %v3514, %v3512
      %v3623 = vpack.c.bf16 %v3517, %v3515
      %v3624 = vpack.c.bf16 %v3518, %v3516
      %v3625 = vpack.c.bf16 %v3521, %v3519
      %v3626 = vpack.c.bf16 %v3522, %v3520
      %v3627 = vpack.c.bf16 %v3525, %v3523
      %v3628 = vpack.c.bf16 %v3526, %v3524
      %v3629 = vpack.c.bf16 %v3529, %v3527
      %v3630 = vpack.c.bf16 %v3530, %v3528
      %v3631 = vpack.c.bf16 %v3533, %v3531
      %v3632 = vpack.c.bf16 %v3534, %v3532
      %v3633 = vpack.c.bf16 %v3537, %v3535
      %v3634 = vpack.c.bf16 %v3538, %v3536
      %v3635 = vpack.c.bf16 %v3541, %v3539
      %v3636 = vpack.c.bf16 %v3542, %v3540
      %v3637 = vpack.c.bf16 %v3545, %v3543
      %v3638 = vpack.c.bf16 %v3546, %v3544
      %v3639 = vpack.c.bf16 %v3549, %v3547
      %v3640 = vpack.c.bf16 %v3550, %v3548
      %v3641 = vpack.c.bf16 %v3553, %v3551
      %v3642 = vpack.c.bf16 %v3554, %v3552
      %v3643 = vpack.c.bf16 %v3557, %v3555
      %v3644 = vpack.c.bf16 %v3558, %v3556
      %v3645 = vpack.c.bf16 %v3561, %v3559
      %v3646 = vpack.c.bf16 %v3562, %v3560
      %v3647 = vpack.c.bf16 %v3565, %v3563
      %v3648 = vpack.c.bf16 %v3566, %v3564
      %v3649 = vpack.c.bf16 %v3569, %v3567
      %v3650 = vpack.c.bf16 %v3570, %v3568
      %v3651 = vpack.c.bf16 %v3573, %v3571
      %v3652 = vpack.c.bf16 %v3574, %v3572
      %v3653 = vpack.c.bf16 %v3577, %v3575
      %v3654 = vpack.c.bf16 %v3578, %v3576
      %v3655 = vpack.c.bf16 %v3581, %v3579
      %v3656 = vpack.c.bf16 %v3582, %v3580
      %v3657 = vpack.c.bf16 %v3585, %v3583
      %v3658 = vpack.c.bf16 %v3586, %v3584
      %v3659 = vpack.c.bf16 %v3589, %v3587
      %v3660 = vpack.c.bf16 %v3590, %v3588
      %v3661 = vpack.c.bf16 %v3593, %v3591
      %v3662 = vpack.c.bf16 %v3594, %v3592
      %v3663 = vpack.c.bf16 %v3597, %v3595
      %v3664 = vpack.c.bf16 %v3598, %v3596
      %v3665 = vpack.c.bf16 %v3601, %v3599
      %v3666 = vpack.c.bf16 %v3602, %v3600
      %s3667 = scalar_lea.vmem %s3, 512
      %v3668 = vld [vmem:[%s3667] sm:$0xff]
      %v3669 = vld [vmem:[%s3667 + $0x8] sm:$0xff]
      %v3670 = vld [vmem:[%s3667 + $0x10] sm:$0xff]
      %v3671 = vld [vmem:[%s3667 + $0x18] sm:$0xff]
      %v3672 = vld [vmem:[%s3667 + $0x20] sm:$0xff]
      %v3673 = vld [vmem:[%s3667 + $0x28] sm:$0xff]
      %v3674 = vld [vmem:[%s3667 + $0x30] sm:$0xff]
      %v3675 = vld [vmem:[%s3667 + $0x38] sm:$0xff]
      %v3676 = vld [vmem:[%s3667 + $0x40] sm:$0xff]
      %v3677 = vld [vmem:[%s3667 + $0x48] sm:$0xff]
      %v3678 = vld [vmem:[%s3667 + $0x50] sm:$0xff]
      %v3679 = vld [vmem:[%s3667 + $0x58] sm:$0xff]
      %v3680 = vld [vmem:[%s3667 + $0x60] sm:$0xff]
      %v3681 = vld [vmem:[%s3667 + $0x68] sm:$0xff]
      %v3682 = vld [vmem:[%s3667 + $0x70] sm:$0xff]
      %v3683 = vld [vmem:[%s3667 + $0x78] sm:$0xff]
      %v3684 = vld [vmem:[%s3667 + $0x80] sm:$0xff]
      %v3685 = vld [vmem:[%s3667 + $0x88] sm:$0xff]
      %v3686 = vld [vmem:[%s3667 + $0x90] sm:$0xff]
      %v3687 = vld [vmem:[%s3667 + $0x98] sm:$0xff]
      %v3688 = vld [vmem:[%s3667 + $0xa0] sm:$0xff]
      %v3689 = vld [vmem:[%s3667 + $0xa8] sm:$0xff]
      %v3690 = vld [vmem:[%s3667 + $0xb0] sm:$0xff]
      %v3691 = vld [vmem:[%s3667 + $0xb8] sm:$0xff]
      %v3692 = vld [vmem:[%s3667 + $0xc0] sm:$0xff]
      %v3693 = vld [vmem:[%s3667 + $0xc8] sm:$0xff]
      %v3694 = vld [vmem:[%s3667 + $0xd0] sm:$0xff]
      %v3695 = vld [vmem:[%s3667 + $0xd8] sm:$0xff]
      %v3696 = vld [vmem:[%s3667 + $0xe0] sm:$0xff]
      %v3697 = vld [vmem:[%s3667 + $0xe8] sm:$0xff]
      %v3698 = vld [vmem:[%s3667 + $0xf0] sm:$0xff]
      %v3699 = vld [vmem:[%s3667 + $0xf8] sm:$0xff]
      %s3700 = scalar_lea.vmem %s4, 4
      %v3701 = vld [vmem:[%s3700] sm:$0x3]
      %v3703 = vlaneseq
      %v3704 = vshrl.u32 %v3703, 7
      %v3705 = vsub.s32 0, %v3704
      %v3706 = vrot.slane %v3701, %v3705
      %v3707 = vlaneseq
      %v3708 = vshrl.u32 %v3707, 7
      %v3709 = vsub.s32 1, %v3708
      %v3710 = vrot.slane %v3701, %v3709
      %v3745 = vunpack.c.l.b16 %v3668
      %v3746 = vunpack.c.h.b16 %v3668
      %v3747 = vunpack.c.l.b16 %v3669
      %v3748 = vunpack.c.h.b16 %v3669
      %v3749 = vunpack.c.l.b16 %v3670
      %v3750 = vunpack.c.h.b16 %v3670
      %v3751 = vunpack.c.l.b16 %v3671
      %v3752 = vunpack.c.h.b16 %v3671
      %v3753 = vunpack.c.l.b16 %v3672
      %v3754 = vunpack.c.h.b16 %v3672
      %v3755 = vunpack.c.l.b16 %v3673
      %v3756 = vunpack.c.h.b16 %v3673
      %v3757 = vunpack.c.l.b16 %v3674
      %v3758 = vunpack.c.h.b16 %v3674
      %v3759 = vunpack.c.l.b16 %v3675
      %v3760 = vunpack.c.h.b16 %v3675
      %v3761 = vunpack.c.l.b16 %v3676
      %v3762 = vunpack.c.h.b16 %v3676
      %v3763 = vunpack.c.l.b16 %v3677
      %v3764 = vunpack.c.h.b16 %v3677
      %v3765 = vunpack.c.l.b16 %v3678
      %v3766 = vunpack.c.h.b16 %v3678
      %v3767 = vunpack.c.l.b16 %v3679
      %v3768 = vunpack.c.h.b16 %v3679
      %v3769 = vunpack.c.l.b16 %v3680
      %v3770 = vunpack.c.h.b16 %v3680
      %v3771 = vunpack.c.l.b16 %v3681
      %v3772 = vunpack.c.h.b16 %v3681
      %v3773 = vunpack.c.l.b16 %v3682
      %v3774 = vunpack.c.h.b16 %v3682
      %v3775 = vunpack.c.l.b16 %v3683
      %v3776 = vunpack.c.h.b16 %v3683
      %v3777 = vunpack.c.l.b16 %v3684
      %v3778 = vunpack.c.h.b16 %v3684
      %v3779 = vunpack.c.l.b16 %v3685
      %v3780 = vunpack.c.h.b16 %v3685
      %v3781 = vunpack.c.l.b16 %v3686
      %v3782 = vunpack.c.h.b16 %v3686
      %v3783 = vunpack.c.l.b16 %v3687
      %v3784 = vunpack.c.h.b16 %v3687
      %v3785 = vunpack.c.l.b16 %v3688
      %v3786 = vunpack.c.h.b16 %v3688
      %v3787 = vunpack.c.l.b16 %v3689
      %v3788 = vunpack.c.h.b16 %v3689
      %v3789 = vunpack.c.l.b16 %v3690
      %v3790 = vunpack.c.h.b16 %v3690
      %v3791 = vunpack.c.l.b16 %v3691
      %v3792 = vunpack.c.h.b16 %v3691
      %v3793 = vunpack.c.l.b16 %v3692
      %v3794 = vunpack.c.h.b16 %v3692
      %v3795 = vunpack.c.l.b16 %v3693
      %v3796 = vunpack.c.h.b16 %v3693
      %v3797 = vunpack.c.l.b16 %v3694
      %v3798 = vunpack.c.h.b16 %v3694
      %v3799 = vunpack.c.l.b16 %v3695
      %v3800 = vunpack.c.h.b16 %v3695
      %v3801 = vunpack.c.l.b16 %v3696
      %v3802 = vunpack.c.h.b16 %v3696
      %v3803 = vunpack.c.l.b16 %v3697
      %v3804 = vunpack.c.h.b16 %v3697
      %v3805 = vunpack.c.l.b16 %v3698
      %v3806 = vunpack.c.h.b16 %v3698
      %v3807 = vunpack.c.l.b16 %v3699
      %v3808 = vunpack.c.h.b16 %v3699
      %v3809 = vpack.c.b16 %v3747, %v3745
      %v3810 = vpack.c.b16 %v3748, %v3746
      %v3811 = vpack.c.b16 %v3751, %v3749
      %v3812 = vpack.c.b16 %v3752, %v3750
      %v3813 = vpack.c.b16 %v3755, %v3753
      %v3814 = vpack.c.b16 %v3756, %v3754
      %v3815 = vpack.c.b16 %v3759, %v3757
      %v3816 = vpack.c.b16 %v3760, %v3758
      %v3817 = vpack.c.b16 %v3763, %v3761
      %v3818 = vpack.c.b16 %v3764, %v3762
      %v3819 = vpack.c.b16 %v3767, %v3765
      %v3820 = vpack.c.b16 %v3768, %v3766
      %v3821 = vpack.c.b16 %v3771, %v3769
      %v3822 = vpack.c.b16 %v3772, %v3770
      %v3823 = vpack.c.b16 %v3775, %v3773
      %v3824 = vpack.c.b16 %v3776, %v3774
      %v3825 = vpack.c.b16 %v3779, %v3777
      %v3826 = vpack.c.b16 %v3780, %v3778
      %v3827 = vpack.c.b16 %v3783, %v3781
      %v3828 = vpack.c.b16 %v3784, %v3782
      %v3829 = vpack.c.b16 %v3787, %v3785
      %v3830 = vpack.c.b16 %v3788, %v3786
      %v3831 = vpack.c.b16 %v3791, %v3789
      %v3832 = vpack.c.b16 %v3792, %v3790
      %v3833 = vpack.c.b16 %v3795, %v3793
      %v3834 = vpack.c.b16 %v3796, %v3794
      %v3835 = vpack.c.b16 %v3799, %v3797
      %v3836 = vpack.c.b16 %v3800, %v3798
      %v3837 = vpack.c.b16 %v3803, %v3801
      %v3838 = vpack.c.b16 %v3804, %v3802
      %v3839 = vpack.c.b16 %v3807, %v3805
      %v3840 = vpack.c.b16 %v3808, %v3806
      %3873 = vmatprep.subr.bf16.mxu0 %v3824
      %3874 = vmatpush1.bf16.msra.mxu0 %v3823
      %3875 = vmatprep.subr.bf16.mxu0 %v3822
      %3876 = vmatpush1.bf16.msra.mxu0 %v3821
      %3877 = vmatprep.subr.bf16.mxu0 %v3820
      %3878 = vmatpush1.bf16.msra.mxu0 %v3819
      %3879 = vmatprep.subr.bf16.mxu0 %v3818
      %3880 = vmatpush1.bf16.msra.mxu0 %v3817
      %3881 = vmatprep.subr.bf16.mxu0 %v3816
      %3882 = vmatpush1.bf16.msra.mxu0 %v3815
      %3883 = vmatprep.subr.bf16.mxu0 %v3814
      %3884 = vmatpush1.bf16.msra.mxu0 %v3813
      %3885 = vmatprep.subr.bf16.mxu0 %v3812
      %3886 = vmatpush1.bf16.msra.mxu0 %v3811
      %3887 = vmatprep.subr.bf16.mxu0 %v3810
      %3888 = vmatpush1.bf16.msra.mxu0 %v3809
      %3889 = vmatprep.subr.bf16.mxu0 %v3840
      %3890 = vmatpush2.bf16.msra.mxu0 %v3839
      %3891 = vmatprep.subr.bf16.mxu0 %v3838
      %3892 = vmatpush2.bf16.msra.mxu0 %v3837
      %3893 = vmatprep.subr.bf16.mxu0 %v3836
      %3894 = vmatpush2.bf16.msra.mxu0 %v3835
      %3895 = vmatprep.subr.bf16.mxu0 %v3834
      %3896 = vmatpush2.bf16.msra.mxu0 %v3833
      %3897 = vmatprep.subr.bf16.mxu0 %v3832
      %3898 = vmatpush2.bf16.msra.mxu0 %v3831
      %3899 = vmatprep.subr.bf16.mxu0 %v3830
      %3900 = vmatpush2.bf16.msra.mxu0 %v3829
      %3901 = vmatprep.subr.bf16.mxu0 %v3828
      %3902 = vmatpush2.bf16.msra.mxu0 %v3827
      %3903 = vmatprep.subr.bf16.mxu0 %v3826
      %3904 = vmatpush2.bf16.msra.mxu0 %v3825
      %3905 = vmatprep.mubr.bf16.mxu0 %v3604
      %3906 = vmatmul.mubr.bf16.gmra.mxu0 %v3603
      %v3907 = vpop.f32.mrf.mxu0
      %v3908 = vadd.f32 %v3706, %v3907
      %v3909 = vpop.f32.mrf.mxu0
      %v3910 = vadd.f32 %v3710, %v3909
      %v3911 = vpop.f32.mrf.mxu0
      %v3912 = vadd.f32 %v3706, %v3911
      %v3913 = vpop.f32.mrf.mxu0
      %v3914 = vadd.f32 %v3710, %v3913
      %3915 = vmatprep.mubr.bf16.mxu0 %v3606
      %3916 = vmatmul.mubr.bf16.gmra.mxu0 %v3605
      %v3917 = vpop.f32.mrf.mxu0
      %v3918 = vadd.f32 %v3706, %v3917
      %v3919 = vpop.f32.mrf.mxu0
      %v3920 = vadd.f32 %v3710, %v3919
      %v3921 = vpop.f32.mrf.mxu0
      %v3922 = vadd.f32 %v3706, %v3921
      %v3923 = vpop.f32.mrf.mxu0
      %v3924 = vadd.f32 %v3710, %v3923
      %3925 = vmatprep.mubr.bf16.mxu0 %v3608
      %3926 = vmatmul.mubr.bf16.gmra.mxu0 %v3607
      %v3927 = vpop.f32.mrf.mxu0
      %v3928 = vadd.f32 %v3706, %v3927
      %v3929 = vpop.f32.mrf.mxu0
      %v3930 = vadd.f32 %v3710, %v3929
      %v3931 = vpop.f32.mrf.mxu0
      %v3932 = vadd.f32 %v3706, %v3931
      %v3933 = vpop.f32.mrf.mxu0
      %v3934 = vadd.f32 %v3710, %v3933
      %3935 = vmatprep.mubr.bf16.mxu0 %v3610
      %3936 = vmatmul.mubr.bf16.gmra.mxu0 %v3609
      %v3937 = vpop.f32.mrf.mxu0
      %v3938 = vadd.f32 %v3706, %v3937
      %v3939 = vpop.f32.mrf.mxu0
      %v3940 = vadd.f32 %v3710, %v3939
      %v3941 = vpop.f32.mrf.mxu0
      %v3942 = vadd.f32 %v3706, %v3941
      %v3943 = vpop.f32.mrf.mxu0
      %v3944 = vadd.f32 %v3710, %v3943
      %3945 = vmatprep.mubr.bf16.mxu0 %v3612
      %3946 = vmatmul.mubr.bf16.gmra.mxu0 %v3611
      %v3947 = vpop.f32.mrf.mxu0
      %v3948 = vadd.f32 %v3706, %v3947
      %v3949 = vpop.f32.mrf.mxu0
      %v3950 = vadd.f32 %v3710, %v3949
      %v3951 = vpop.f32.mrf.mxu0
      %v3952 = vadd.f32 %v3706, %v3951
      %v3953 = vpop.f32.mrf.mxu0
      %v3954 = vadd.f32 %v3710, %v3953
      %3955 = vmatprep.mubr.bf16.mxu0 %v3614
      %3956 = vmatmul.mubr.bf16.gmra.mxu0 %v3613
      %v3957 = vpop.f32.mrf.mxu0
      %v3958 = vadd.f32 %v3706, %v3957
      %v3959 = vpop.f32.mrf.mxu0
      %v3960 = vadd.f32 %v3710, %v3959
      %v3961 = vpop.f32.mrf.mxu0
      %v3962 = vadd.f32 %v3706, %v3961
      %v3963 = vpop.f32.mrf.mxu0
      %v3964 = vadd.f32 %v3710, %v3963
      %3965 = vmatprep.mubr.bf16.mxu0 %v3616
      %3966 = vmatmul.mubr.bf16.gmra.mxu0 %v3615
      %v3967 = vpop.f32.mrf.mxu0
      %v3968 = vadd.f32 %v3706, %v3967
      %v3969 = vpop.f32.mrf.mxu0
      %v3970 = vadd.f32 %v3710, %v3969
      %v3971 = vpop.f32.mrf.mxu0
      %v3972 = vadd.f32 %v3706, %v3971
      %v3973 = vpop.f32.mrf.mxu0
      %v3974 = vadd.f32 %v3710, %v3973
      %3975 = vmatprep.mubr.bf16.mxu0 %v3618
      %3976 = vmatmul.mubr.bf16.gmra.mxu0 %v3617
      %v3977 = vpop.f32.mrf.mxu0
      %v3978 = vadd.f32 %v3706, %v3977
      %v3979 = vpop.f32.mrf.mxu0
      %v3980 = vadd.f32 %v3710, %v3979
      %v3981 = vpop.f32.mrf.mxu0
      %v3982 = vadd.f32 %v3706, %v3981
      %v3983 = vpop.f32.mrf.mxu0
      %v3984 = vadd.f32 %v3710, %v3983
      %3985 = vmatprep.mubr.bf16.mxu0 %v3620
      %3986 = vmatmul.mubr.bf16.gmra.mxu0 %v3619
      %v3987 = vpop.f32.mrf.mxu0
      %v3988 = vadd.f32 %v3706, %v3987
      %v3989 = vpop.f32.mrf.mxu0
      %v3990 = vadd.f32 %v3710, %v3989
      %v3991 = vpop.f32.mrf.mxu0
      %v3992 = vadd.f32 %v3706, %v3991
      %v3993 = vpop.f32.mrf.mxu0
      %v3994 = vadd.f32 %v3710, %v3993
      %3995 = vmatprep.mubr.bf16.mxu0 %v3622
      %3996 = vmatmul.mubr.bf16.gmra.mxu0 %v3621
      %v3997 = vpop.f32.mrf.mxu0
      %v3998 = vadd.f32 %v3706, %v3997
      %v3999 = vpop.f32.mrf.mxu0
      %v4000 = vadd.f32 %v3710, %v3999
      %v4001 = vpop.f32.mrf.mxu0
      %v4002 = vadd.f32 %v3706, %v4001
      %v4003 = vpop.f32.mrf.mxu0
      %v4004 = vadd.f32 %v3710, %v4003
      %4005 = vmatprep.mubr.bf16.mxu0 %v3624
      %4006 = vmatmul.mubr.bf16.gmra.mxu0 %v3623
      %v4007 = vpop.f32.mrf.mxu0
      %v4008 = vadd.f32 %v3706, %v4007
      %v4009 = vpop.f32.mrf.mxu0
      %v4010 = vadd.f32 %v3710, %v4009
      %v4011 = vpop.f32.mrf.mxu0
      %v4012 = vadd.f32 %v3706, %v4011
      %v4013 = vpop.f32.mrf.mxu0
      %v4014 = vadd.f32 %v3710, %v4013
      %4015 = vmatprep.mubr.bf16.mxu0 %v3626
      %4016 = vmatmul.mubr.bf16.gmra.mxu0 %v3625
      %v4017 = vpop.f32.mrf.mxu0
      %v4018 = vadd.f32 %v3706, %v4017
      %v4019 = vpop.f32.mrf.mxu0
      %v4020 = vadd.f32 %v3710, %v4019
      %v4021 = vpop.f32.mrf.mxu0
      %v4022 = vadd.f32 %v3706, %v4021
      %v4023 = vpop.f32.mrf.mxu0
      %v4024 = vadd.f32 %v3710, %v4023
      %4025 = vmatprep.mubr.bf16.mxu0 %v3628
      %4026 = vmatmul.mubr.bf16.gmra.mxu0 %v3627
      %v4027 = vpop.f32.mrf.mxu0
      %v4028 = vadd.f32 %v3706, %v4027
      %v4029 = vpop.f32.mrf.mxu0
      %v4030 = vadd.f32 %v3710, %v4029
      %v4031 = vpop.f32.mrf.mxu0
      %v4032 = vadd.f32 %v3706, %v4031
      %v4033 = vpop.f32.mrf.mxu0
      %v4034 = vadd.f32 %v3710, %v4033
      %4035 = vmatprep.mubr.bf16.mxu0 %v3630
      %4036 = vmatmul.mubr.bf16.gmra.mxu0 %v3629
      %v4037 = vpop.f32.mrf.mxu0
      %v4038 = vadd.f32 %v3706, %v4037
      %v4039 = vpop.f32.mrf.mxu0
      %v4040 = vadd.f32 %v3710, %v4039
      %v4041 = vpop.f32.mrf.mxu0
      %v4042 = vadd.f32 %v3706, %v4041
      %v4043 = vpop.f32.mrf.mxu0
      %v4044 = vadd.f32 %v3710, %v4043
      %4045 = vmatprep.mubr.bf16.mxu0 %v3632
      %4046 = vmatmul.mubr.bf16.gmra.mxu0 %v3631
      %v4047 = vpop.f32.mrf.mxu0
      %v4048 = vadd.f32 %v3706, %v4047
      %v4049 = vpop.f32.mrf.mxu0
      %v4050 = vadd.f32 %v3710, %v4049
      %v4051 = vpop.f32.mrf.mxu0
      %v4052 = vadd.f32 %v3706, %v4051
      %v4053 = vpop.f32.mrf.mxu0
      %v4054 = vadd.f32 %v3710, %v4053
      %4055 = vmatprep.mubr.bf16.mxu0 %v3634
      %4056 = vmatmul.mubr.bf16.gmra.mxu0 %v3633
      %v4057 = vpop.f32.mrf.mxu0
      %v4058 = vadd.f32 %v3706, %v4057
      %v4059 = vpop.f32.mrf.mxu0
      %v4060 = vadd.f32 %v3710, %v4059
      %v4061 = vpop.f32.mrf.mxu0
      %v4062 = vadd.f32 %v3706, %v4061
      %v4063 = vpop.f32.mrf.mxu0
      %v4064 = vadd.f32 %v3710, %v4063
      %4065 = vmatprep.mubr.bf16.mxu0 %v3636
      %4066 = vmatmul.mubr.bf16.gmra.mxu0 %v3635
      %v4067 = vpop.f32.mrf.mxu0
      %v4068 = vadd.f32 %v3706, %v4067
      %v4069 = vpop.f32.mrf.mxu0
      %v4070 = vadd.f32 %v3710, %v4069
      %v4071 = vpop.f32.mrf.mxu0
      %v4072 = vadd.f32 %v3706, %v4071
      %v4073 = vpop.f32.mrf.mxu0
      %v4074 = vadd.f32 %v3710, %v4073
      %4075 = vmatprep.mubr.bf16.mxu0 %v3638
      %4076 = vmatmul.mubr.bf16.gmra.mxu0 %v3637
      %v4077 = vpop.f32.mrf.mxu0
      %v4078 = vadd.f32 %v3706, %v4077
      %v4079 = vpop.f32.mrf.mxu0
      %v4080 = vadd.f32 %v3710, %v4079
      %v4081 = vpop.f32.mrf.mxu0
      %v4082 = vadd.f32 %v3706, %v4081
      %v4083 = vpop.f32.mrf.mxu0
      %v4084 = vadd.f32 %v3710, %v4083
      %4085 = vmatprep.mubr.bf16.mxu0 %v3640
      %4086 = vmatmul.mubr.bf16.gmra.mxu0 %v3639
      %v4087 = vpop.f32.mrf.mxu0
      %v4088 = vadd.f32 %v3706, %v4087
      %v4089 = vpop.f32.mrf.mxu0
      %v4090 = vadd.f32 %v3710, %v4089
      %v4091 = vpop.f32.mrf.mxu0
      %v4092 = vadd.f32 %v3706, %v4091
      %v4093 = vpop.f32.mrf.mxu0
      %v4094 = vadd.f32 %v3710, %v4093
      %4095 = vmatprep.mubr.bf16.mxu0 %v3642
      %4096 = vmatmul.mubr.bf16.gmra.mxu0 %v3641
      %v4097 = vpop.f32.mrf.mxu0
      %v4098 = vadd.f32 %v3706, %v4097
      %v4099 = vpop.f32.mrf.mxu0
      %v4100 = vadd.f32 %v3710, %v4099
      %v4101 = vpop.f32.mrf.mxu0
      %v4102 = vadd.f32 %v3706, %v4101
      %v4103 = vpop.f32.mrf.mxu0
      %v4104 = vadd.f32 %v3710, %v4103
      %4105 = vmatprep.mubr.bf16.mxu0 %v3644
      %4106 = vmatmul.mubr.bf16.gmra.mxu0 %v3643
      %v4107 = vpop.f32.mrf.mxu0
      %v4108 = vadd.f32 %v3706, %v4107
      %v4109 = vpop.f32.mrf.mxu0
      %v4110 = vadd.f32 %v3710, %v4109
      %v4111 = vpop.f32.mrf.mxu0
      %v4112 = vadd.f32 %v3706, %v4111
      %v4113 = vpop.f32.mrf.mxu0
      %v4114 = vadd.f32 %v3710, %v4113
      %4115 = vmatprep.mubr.bf16.mxu0 %v3646
      %4116 = vmatmul.mubr.bf16.gmra.mxu0 %v3645
      %v4117 = vpop.f32.mrf.mxu0
      %v4118 = vadd.f32 %v3706, %v4117
      %v4119 = vpop.f32.mrf.mxu0
      %v4120 = vadd.f32 %v3710, %v4119
      %v4121 = vpop.f32.mrf.mxu0
      %v4122 = vadd.f32 %v3706, %v4121
      %v4123 = vpop.f32.mrf.mxu0
      %v4124 = vadd.f32 %v3710, %v4123
      %4125 = vmatprep.mubr.bf16.mxu0 %v3648
      %4126 = vmatmul.mubr.bf16.gmra.mxu0 %v3647
      %v4127 = vpop.f32.mrf.mxu0
      %v4128 = vadd.f32 %v3706, %v4127
      %v4129 = vpop.f32.mrf.mxu0
      %v4130 = vadd.f32 %v3710, %v4129
      %v4131 = vpop.f32.mrf.mxu0
      %v4132 = vadd.f32 %v3706, %v4131
      %v4133 = vpop.f32.mrf.mxu0
      %v4134 = vadd.f32 %v3710, %v4133
      %4135 = vmatprep.mubr.bf16.mxu0 %v3650
      %4136 = vmatmul.mubr.bf16.gmra.mxu0 %v3649
      %v4137 = vpop.f32.mrf.mxu0
      %v4138 = vadd.f32 %v3706, %v4137
      %v4139 = vpop.f32.mrf.mxu0
      %v4140 = vadd.f32 %v3710, %v4139
      %v4141 = vpop.f32.mrf.mxu0
      %v4142 = vadd.f32 %v3706, %v4141
      %v4143 = vpop.f32.mrf.mxu0
      %v4144 = vadd.f32 %v3710, %v4143
      %4145 = vmatprep.mubr.bf16.mxu0 %v3652
      %4146 = vmatmul.mubr.bf16.gmra.mxu0 %v3651
      %v4147 = vpop.f32.mrf.mxu0
      %v4148 = vadd.f32 %v3706, %v4147
      %v4149 = vpop.f32.mrf.mxu0
      %v4150 = vadd.f32 %v3710, %v4149
      %v4151 = vpop.f32.mrf.mxu0
      %v4152 = vadd.f32 %v3706, %v4151
      %v4153 = vpop.f32.mrf.mxu0
      %v4154 = vadd.f32 %v3710, %v4153
      %4155 = vmatprep.mubr.bf16.mxu0 %v3654
      %4156 = vmatmul.mubr.bf16.gmra.mxu0 %v3653
      %v4157 = vpop.f32.mrf.mxu0
      %v4158 = vadd.f32 %v3706, %v4157
      %v4159 = vpop.f32.mrf.mxu0
      %v4160 = vadd.f32 %v3710, %v4159
      %v4161 = vpop.f32.mrf.mxu0
      %v4162 = vadd.f32 %v3706, %v4161
      %v4163 = vpop.f32.mrf.mxu0
      %v4164 = vadd.f32 %v3710, %v4163
      %4165 = vmatprep.mubr.bf16.mxu0 %v3656
      %4166 = vmatmul.mubr.bf16.gmra.mxu0 %v3655
      %v4167 = vpop.f32.mrf.mxu0
      %v4168 = vadd.f32 %v3706, %v4167
      %v4169 = vpop.f32.mrf.mxu0
      %v4170 = vadd.f32 %v3710, %v4169
      %v4171 = vpop.f32.mrf.mxu0
      %v4172 = vadd.f32 %v3706, %v4171
      %v4173 = vpop.f32.mrf.mxu0
      %v4174 = vadd.f32 %v3710, %v4173
      %4175 = vmatprep.mubr.bf16.mxu0 %v3658
      %4176 = vmatmul.mubr.bf16.gmra.mxu0 %v3657
      %v4177 = vpop.f32.mrf.mxu0
      %v4178 = vadd.f32 %v3706, %v4177
      %v4179 = vpop.f32.mrf.mxu0
      %v4180 = vadd.f32 %v3710, %v4179
      %v4181 = vpop.f32.mrf.mxu0
      %v4182 = vadd.f32 %v3706, %v4181
      %v4183 = vpop.f32.mrf.mxu0
      %v4184 = vadd.f32 %v3710, %v4183
      %4185 = vmatprep.mubr.bf16.mxu0 %v3660
      %4186 = vmatmul.mubr.bf16.gmra.mxu0 %v3659
      %v4187 = vpop.f32.mrf.mxu0
      %v4188 = vadd.f32 %v3706, %v4187
      %v4189 = vpop.f32.mrf.mxu0
      %v4190 = vadd.f32 %v3710, %v4189
      %v4191 = vpop.f32.mrf.mxu0
      %v4192 = vadd.f32 %v3706, %v4191
      %v4193 = vpop.f32.mrf.mxu0
      %v4194 = vadd.f32 %v3710, %v4193
      %4195 = vmatprep.mubr.bf16.mxu0 %v3662
      %4196 = vmatmul.mubr.bf16.gmra.mxu0 %v3661
      %v4197 = vpop.f32.mrf.mxu0
      %v4198 = vadd.f32 %v3706, %v4197
      %v4199 = vpop.f32.mrf.mxu0
      %v4200 = vadd.f32 %v3710, %v4199
      %v4201 = vpop.f32.mrf.mxu0
      %v4202 = vadd.f32 %v3706, %v4201
      %v4203 = vpop.f32.mrf.mxu0
      %v4204 = vadd.f32 %v3710, %v4203
      %4205 = vmatprep.mubr.bf16.mxu0 %v3664
      %4206 = vmatmul.mubr.bf16.gmra.mxu0 %v3663
      %v4207 = vpop.f32.mrf.mxu0
      %v4208 = vadd.f32 %v3706, %v4207
      %v4209 = vpop.f32.mrf.mxu0
      %v4210 = vadd.f32 %v3710, %v4209
      %v4211 = vpop.f32.mrf.mxu0
      %v4212 = vadd.f32 %v3706, %v4211
      %v4213 = vpop.f32.mrf.mxu0
      %v4214 = vadd.f32 %v3710, %v4213
      %4215 = vmatprep.mubr.bf16.mxu0 %v3666
      %4216 = vmatmul.mubr.bf16.gmra.mxu0 %v3665
      %v4217 = vpop.f32.mrf.mxu0
      %v4218 = vadd.f32 %v3706, %v4217
      %v4219 = vpop.f32.mrf.mxu0
      %v4220 = vadd.f32 %v3710, %v4219
      %v4221 = vpop.f32.mrf.mxu0
      %v4222 = vadd.f32 %v3706, %v4221
      %v4223 = vpop.f32.mrf.mxu0
      %v4224 = vadd.f32 %v3710, %v4223
      %4225 = vdwg.mxu0
      %v4226 = vmax.f32 %v3908, 0.0
      %v4227 = vmax.f32 %v3910, 0.0
      %v4228 = vmax.f32 %v3912, 0.0
      %v4229 = vmax.f32 %v3914, 0.0
      %v4230 = vmax.f32 %v3918, 0.0
      %v4231 = vmax.f32 %v3920, 0.0
      %v4232 = vmax.f32 %v3922, 0.0
      %v4233 = vmax.f32 %v3924, 0.0
      %v4234 = vmax.f32 %v3928, 0.0
      %v4235 = vmax.f32 %v3930, 0.0
      %v4236 = vmax.f32 %v3932, 0.0
      %v4237 = vmax.f32 %v3934, 0.0
      %v4238 = vmax.f32 %v3938, 0.0
      %v4239 = vmax.f32 %v3940, 0.0
      %v4240 = vmax.f32 %v3942, 0.0
      %v4241 = vmax.f32 %v3944, 0.0
      %v4242 = vmax.f32 %v3948, 0.0
      %v4243 = vmax.f32 %v3950, 0.0
      %v4244 = vmax.f32 %v3952, 0.0
      %v4245 = vmax.f32 %v3954, 0.0
      %v4246 = vmax.f32 %v3958, 0.0
      %v4247 = vmax.f32 %v3960, 0.0
      %v4248 = vmax.f32 %v3962, 0.0
      %v4249 = vmax.f32 %v3964, 0.0
      %v4250 = vmax.f32 %v3968, 0.0
      %v4251 = vmax.f32 %v3970, 0.0
      %v4252 = vmax.f32 %v3972, 0.0
      %v4253 = vmax.f32 %v3974, 0.0
      %v4254 = vmax.f32 %v3978, 0.0
      %v4255 = vmax.f32 %v3980, 0.0
      %v4256 = vmax.f32 %v3982, 0.0
      %v4257 = vmax.f32 %v3984, 0.0
      %v4258 = vmax.f32 %v3988, 0.0
      %v4259 = vmax.f32 %v3990, 0.0
      %v4260 = vmax.f32 %v3992, 0.0
      %v4261 = vmax.f32 %v3994, 0.0
      %v4262 = vmax.f32 %v3998, 0.0
      %v4263 = vmax.f32 %v4000, 0.0
      %v4264 = vmax.f32 %v4002, 0.0
      %v4265 = vmax.f32 %v4004, 0.0
      %v4266 = vmax.f32 %v4008, 0.0
      %v4267 = vmax.f32 %v4010, 0.0
      %v4268 = vmax.f32 %v4012, 0.0
      %v4269 = vmax.f32 %v4014, 0.0
      %v4270 = vmax.f32 %v4018, 0.0
      %v4271 = vmax.f32 %v4020, 0.0
      %v4272 = vmax.f32 %v4022, 0.0
      %v4273 = vmax.f32 %v4024, 0.0
      %v4274 = vmax.f32 %v4028, 0.0
      %v4275 = vmax.f32 %v4030, 0.0
      %v4276 = vmax.f32 %v4032, 0.0
      %v4277 = vmax.f32 %v4034, 0.0
      %v4278 = vmax.f32 %v4038, 0.0
      %v4279 = vmax.f32 %v4040, 0.0
      %v4280 = vmax.f32 %v4042, 0.0
      %v4281 = vmax.f32 %v4044, 0.0
      %v4282 = vmax.f32 %v4048, 0.0
      %v4283 = vmax.f32 %v4050, 0.0
      %v4284 = vmax.f32 %v4052, 0.0
      %v4285 = vmax.f32 %v4054, 0.0
      %v4286 = vmax.f32 %v4058, 0.0
      %v4287 = vmax.f32 %v4060, 0.0
      %v4288 = vmax.f32 %v4062, 0.0
      %v4289 = vmax.f32 %v4064, 0.0
      %v4290 = vmax.f32 %v4068, 0.0
      %v4291 = vmax.f32 %v4070, 0.0
      %v4292 = vmax.f32 %v4072, 0.0
      %v4293 = vmax.f32 %v4074, 0.0
      %v4294 = vmax.f32 %v4078, 0.0
      %v4295 = vmax.f32 %v4080, 0.0
      %v4296 = vmax.f32 %v4082, 0.0
      %v4297 = vmax.f32 %v4084, 0.0
      %v4298 = vmax.f32 %v4088, 0.0
      %v4299 = vmax.f32 %v4090, 0.0
      %v4300 = vmax.f32 %v4092, 0.0
      %v4301 = vmax.f32 %v4094, 0.0
      %v4302 = vmax.f32 %v4098, 0.0
      %v4303 = vmax.f32 %v4100, 0.0
      %v4304 = vmax.f32 %v4102, 0.0
      %v4305 = vmax.f32 %v4104, 0.0
      %v4306 = vmax.f32 %v4108, 0.0
      %v4307 = vmax.f32 %v4110, 0.0
      %v4308 = vmax.f32 %v4112, 0.0
      %v4309 = vmax.f32 %v4114, 0.0
      %v4310 = vmax.f32 %v4118, 0.0
      %v4311 = vmax.f32 %v4120, 0.0
      %v4312 = vmax.f32 %v4122, 0.0
      %v4313 = vmax.f32 %v4124, 0.0
      %v4314 = vmax.f32 %v4128, 0.0
      %v4315 = vmax.f32 %v4130, 0.0
      %v4316 = vmax.f32 %v4132, 0.0
      %v4317 = vmax.f32 %v4134, 0.0
      %v4318 = vmax.f32 %v4138, 0.0
      %v4319 = vmax.f32 %v4140, 0.0
      %v4320 = vmax.f32 %v4142, 0.0
      %v4321 = vmax.f32 %v4144, 0.0
      %v4322 = vmax.f32 %v4148, 0.0
      %v4323 = vmax.f32 %v4150, 0.0
      %v4324 = vmax.f32 %v4152, 0.0
      %v4325 = vmax.f32 %v4154, 0.0
      %v4326 = vmax.f32 %v4158, 0.0
      %v4327 = vmax.f32 %v4160, 0.0
      %v4328 = vmax.f32 %v4162, 0.0
      %v4329 = vmax.f32 %v4164, 0.0
      %v4330 = vmax.f32 %v4168, 0.0
      %v4331 = vmax.f32 %v4170, 0.0
      %v4332 = vmax.f32 %v4172, 0.0
      %v4333 = vmax.f32 %v4174, 0.0
      %v4334 = vmax.f32 %v4178, 0.0
      %v4335 = vmax.f32 %v4180, 0.0
      %v4336 = vmax.f32 %v4182, 0.0
      %v4337 = vmax.f32 %v4184, 0.0
      %v4338 = vmax.f32 %v4188, 0.0
      %v4339 = vmax.f32 %v4190, 0.0
      %v4340 = vmax.f32 %v4192, 0.0
      %v4341 = vmax.f32 %v4194, 0.0
      %v4342 = vmax.f32 %v4198, 0.0
      %v4343 = vmax.f32 %v4200, 0.0
      %v4344 = vmax.f32 %v4202, 0.0
      %v4345 = vmax.f32 %v4204, 0.0
      %v4346 = vmax.f32 %v4208, 0.0
      %v4347 = vmax.f32 %v4210, 0.0
      %v4348 = vmax.f32 %v4212, 0.0
      %v4349 = vmax.f32 %v4214, 0.0
      %v4350 = vmax.f32 %v4218, 0.0
      %v4351 = vmax.f32 %v4220, 0.0
      %v4352 = vmax.f32 %v4222, 0.0
      %v4353 = vmax.f32 %v4224, 0.0
      %v4354 = vpack.c.bf16 %v4228, %v4226
      %v4355 = vpack.c.bf16 %v4229, %v4227
      %v4356 = vpack.c.bf16 %v4232, %v4230
      %v4357 = vpack.c.bf16 %v4233, %v4231
      %v4358 = vpack.c.bf16 %v4236, %v4234
      %v4359 = vpack.c.bf16 %v4237, %v4235
      %v4360 = vpack.c.bf16 %v4240, %v4238
      %v4361 = vpack.c.bf16 %v4241, %v4239
      %v4362 = vpack.c.bf16 %v4244, %v4242
      %v4363 = vpack.c.bf16 %v4245, %v4243
      %v4364 = vpack.c.bf16 %v4248, %v4246
      %v4365 = vpack.c.bf16 %v4249, %v4247
      %v4366 = vpack.c.bf16 %v4252, %v4250
      %v4367 = vpack.c.bf16 %v4253, %v4251
      %v4368 = vpack.c.bf16 %v4256, %v4254
      %v4369 = vpack.c.bf16 %v4257, %v4255
      %v4370 = vpack.c.bf16 %v4260, %v4258
      %v4371 = vpack.c.bf16 %v4261, %v4259
      %v4372 = vpack.c.bf16 %v4264, %v4262
      %v4373 = vpack.c.bf16 %v4265, %v4263
      %v4374 = vpack.c.bf16 %v4268, %v4266
      %v4375 = vpack.c.bf16 %v4269, %v4267
      %v4376 = vpack.c.bf16 %v4272, %v4270
      %v4377 = vpack.c.bf16 %v4273, %v4271
      %v4378 = vpack.c.bf16 %v4276, %v4274
      %v4379 = vpack.c.bf16 %v4277, %v4275
      %v4380 = vpack.c.bf16 %v4280, %v4278
      %v4381 = vpack.c.bf16 %v4281, %v4279
      %v4382 = vpack.c.bf16 %v4284, %v4282
      %v4383 = vpack.c.bf16 %v4285, %v4283
      %v4384 = vpack.c.bf16 %v4288, %v4286
      %v4385 = vpack.c.bf16 %v4289, %v4287
      %v4386 = vpack.c.bf16 %v4292, %v4290
      %v4387 = vpack.c.bf16 %v4293, %v4291
      %v4388 = vpack.c.bf16 %v4296, %v4294
      %v4389 = vpack.c.bf16 %v4297, %v4295
      %v4390 = vpack.c.bf16 %v4300, %v4298
      %v4391 = vpack.c.bf16 %v4301, %v4299
      %v4392 = vpack.c.bf16 %v4304, %v4302
      %v4393 = vpack.c.bf16 %v4305, %v4303
      %v4394 = vpack.c.bf16 %v4308, %v4306
      %v4395 = vpack.c.bf16 %v4309, %v4307
      %v4396 = vpack.c.bf16 %v4312, %v4310
      %v4397 = vpack.c.bf16 %v4313, %v4311
      %v4398 = vpack.c.bf16 %v4316, %v4314
      %v4399 = vpack.c.bf16 %v4317, %v4315
      %v4400 = vpack.c.bf16 %v4320, %v4318
      %v4401 = vpack.c.bf16 %v4321, %v4319
      %v4402 = vpack.c.bf16 %v4324, %v4322
      %v4403 = vpack.c.bf16 %v4325, %v4323
      %v4404 = vpack.c.bf16 %v4328, %v4326
      %v4405 = vpack.c.bf16 %v4329, %v4327
      %v4406 = vpack.c.bf16 %v4332, %v4330
      %v4407 = vpack.c.bf16 %v4333, %v4331
      %v4408 = vpack.c.bf16 %v4336, %v4334
      %v4409 = vpack.c.bf16 %v4337, %v4335
      %v4410 = vpack.c.bf16 %v4340, %v4338
      %v4411 = vpack.c.bf16 %v4341, %v4339
      %v4412 = vpack.c.bf16 %v4344, %v4342
      %v4413 = vpack.c.bf16 %v4345, %v4343
      %v4414 = vpack.c.bf16 %v4348, %v4346
      %v4415 = vpack.c.bf16 %v4349, %v4347
      %v4416 = vpack.c.bf16 %v4352, %v4350
      %v4417 = vpack.c.bf16 %v4353, %v4351
      %s4418 = scalar_lea.vmem %s3, 768
      %v4419 = vld [vmem:[%s4418] sm:$0xff]
      %v4420 = vld [vmem:[%s4418 + $0x8] sm:$0xff]
      %v4421 = vld [vmem:[%s4418 + $0x10] sm:$0xff]
      %v4422 = vld [vmem:[%s4418 + $0x18] sm:$0xff]
      %v4423 = vld [vmem:[%s4418 + $0x20] sm:$0xff]
      %v4424 = vld [vmem:[%s4418 + $0x28] sm:$0xff]
      %v4425 = vld [vmem:[%s4418 + $0x30] sm:$0xff]
      %v4426 = vld [vmem:[%s4418 + $0x38] sm:$0xff]
      %v4427 = vld [vmem:[%s4418 + $0x40] sm:$0xff]
      %v4428 = vld [vmem:[%s4418 + $0x48] sm:$0xff]
      %v4429 = vld [vmem:[%s4418 + $0x50] sm:$0xff]
      %v4430 = vld [vmem:[%s4418 + $0x58] sm:$0xff]
      %v4431 = vld [vmem:[%s4418 + $0x60] sm:$0xff]
      %v4432 = vld [vmem:[%s4418 + $0x68] sm:$0xff]
      %v4433 = vld [vmem:[%s4418 + $0x70] sm:$0xff]
      %v4434 = vld [vmem:[%s4418 + $0x78] sm:$0xff]
      %v4435 = vld [vmem:[%s4418 + $0x80] sm:$0xff]
      %v4436 = vld [vmem:[%s4418 + $0x88] sm:$0xff]
      %v4437 = vld [vmem:[%s4418 + $0x90] sm:$0xff]
      %v4438 = vld [vmem:[%s4418 + $0x98] sm:$0xff]
      %v4439 = vld [vmem:[%s4418 + $0xa0] sm:$0xff]
      %v4440 = vld [vmem:[%s4418 + $0xa8] sm:$0xff]
      %v4441 = vld [vmem:[%s4418 + $0xb0] sm:$0xff]
      %v4442 = vld [vmem:[%s4418 + $0xb8] sm:$0xff]
      %v4443 = vld [vmem:[%s4418 + $0xc0] sm:$0xff]
      %v4444 = vld [vmem:[%s4418 + $0xc8] sm:$0xff]
      %v4445 = vld [vmem:[%s4418 + $0xd0] sm:$0xff]
      %v4446 = vld [vmem:[%s4418 + $0xd8] sm:$0xff]
      %v4447 = vld [vmem:[%s4418 + $0xe0] sm:$0xff]
      %v4448 = vld [vmem:[%s4418 + $0xe8] sm:$0xff]
      %v4449 = vld [vmem:[%s4418 + $0xf0] sm:$0xff]
      %v4450 = vld [vmem:[%s4418 + $0xf8] sm:$0xff]
      %s4451 = scalar_lea.vmem %s4, 6
      %v4452 = vld [vmem:[%s4451] sm:$0x3]
      %v4454 = vlaneseq
      %v4455 = vshrl.u32 %v4454, 7
      %v4456 = vsub.s32 0, %v4455
      %v4457 = vrot.slane %v4452, %v4456
      %v4458 = vlaneseq
      %v4459 = vshrl.u32 %v4458, 7
      %v4460 = vsub.s32 1, %v4459
      %v4461 = vrot.slane %v4452, %v4460
      %v4496 = vunpack.c.l.b16 %v4419
      %v4497 = vunpack.c.h.b16 %v4419
      %v4498 = vunpack.c.l.b16 %v4420
      %v4499 = vunpack.c.h.b16 %v4420
      %v4500 = vunpack.c.l.b16 %v4421
      %v4501 = vunpack.c.h.b16 %v4421
      %v4502 = vunpack.c.l.b16 %v4422
      %v4503 = vunpack.c.h.b16 %v4422
      %v4504 = vunpack.c.l.b16 %v4423
      %v4505 = vunpack.c.h.b16 %v4423
      %v4506 = vunpack.c.l.b16 %v4424
      %v4507 = vunpack.c.h.b16 %v4424
      %v4508 = vunpack.c.l.b16 %v4425
      %v4509 = vunpack.c.h.b16 %v4425
      %v4510 = vunpack.c.l.b16 %v4426
      %v4511 = vunpack.c.h.b16 %v4426
      %v4512 = vunpack.c.l.b16 %v4427
      %v4513 = vunpack.c.h.b16 %v4427
      %v4514 = vunpack.c.l.b16 %v4428
      %v4515 = vunpack.c.h.b16 %v4428
      %v4516 = vunpack.c.l.b16 %v4429
      %v4517 = vunpack.c.h.b16 %v4429
      %v4518 = vunpack.c.l.b16 %v4430
      %v4519 = vunpack.c.h.b16 %v4430
      %v4520 = vunpack.c.l.b16 %v4431
      %v4521 = vunpack.c.h.b16 %v4431
      %v4522 = vunpack.c.l.b16 %v4432
      %v4523 = vunpack.c.h.b16 %v4432
      %v4524 = vunpack.c.l.b16 %v4433
      %v4525 = vunpack.c.h.b16 %v4433
      %v4526 = vunpack.c.l.b16 %v4434
      %v4527 = vunpack.c.h.b16 %v4434
      %v4528 = vunpack.c.l.b16 %v4435
      %v4529 = vunpack.c.h.b16 %v4435
      %v4530 = vunpack.c.l.b16 %v4436
      %v4531 = vunpack.c.h.b16 %v4436
      %v4532 = vunpack.c.l.b16 %v4437
      %v4533 = vunpack.c.h.b16 %v4437
      %v4534 = vunpack.c.l.b16 %v4438
      %v4535 = vunpack.c.h.b16 %v4438
      %v4536 = vunpack.c.l.b16 %v4439
      %v4537 = vunpack.c.h.b16 %v4439
      %v4538 = vunpack.c.l.b16 %v4440
      %v4539 = vunpack.c.h.b16 %v4440
      %v4540 = vunpack.c.l.b16 %v4441
      %v4541 = vunpack.c.h.b16 %v4441
      %v4542 = vunpack.c.l.b16 %v4442
      %v4543 = vunpack.c.h.b16 %v4442
      %v4544 = vunpack.c.l.b16 %v4443
      %v4545 = vunpack.c.h.b16 %v4443
      %v4546 = vunpack.c.l.b16 %v4444
      %v4547 = vunpack.c.h.b16 %v4444
      %v4548 = vunpack.c.l.b16 %v4445
      %v4549 = vunpack.c.h.b16 %v4445
      %v4550 = vunpack.c.l.b16 %v4446
      %v4551 = vunpack.c.h.b16 %v4446
      %v4552 = vunpack.c.l.b16 %v4447
      %v4553 = vunpack.c.h.b16 %v4447
      %v4554 = vunpack.c.l.b16 %v4448
      %v4555 = vunpack.c.h.b16 %v4448
      %v4556 = vunpack.c.l.b16 %v4449
      %v4557 = vunpack.c.h.b16 %v4449
      %v4558 = vunpack.c.l.b16 %v4450
      %v4559 = vunpack.c.h.b16 %v4450
      %v4560 = vpack.c.b16 %v4498, %v4496
      %v4561 = vpack.c.b16 %v4499, %v4497
      %v4562 = vpack.c.b16 %v4502, %v4500
      %v4563 = vpack.c.b16 %v4503, %v4501
      %v4564 = vpack.c.b16 %v4506, %v4504
      %v4565 = vpack.c.b16 %v4507, %v4505
      %v4566 = vpack.c.b16 %v4510, %v4508
      %v4567 = vpack.c.b16 %v4511, %v4509
      %v4568 = vpack.c.b16 %v4514, %v4512
      %v4569 = vpack.c.b16 %v4515, %v4513
      %v4570 = vpack.c.b16 %v4518, %v4516
      %v4571 = vpack.c.b16 %v4519, %v4517
      %v4572 = vpack.c.b16 %v4522, %v4520
      %v4573 = vpack.c.b16 %v4523, %v4521
      %v4574 = vpack.c.b16 %v4526, %v4524
      %v4575 = vpack.c.b16 %v4527, %v4525
      %v4576 = vpack.c.b16 %v4530, %v4528
      %v4577 = vpack.c.b16 %v4531, %v4529
      %v4578 = vpack.c.b16 %v4534, %v4532
      %v4579 = vpack.c.b16 %v4535, %v4533
      %v4580 = vpack.c.b16 %v4538, %v4536
      %v4581 = vpack.c.b16 %v4539, %v4537
      %v4582 = vpack.c.b16 %v4542, %v4540
      %v4583 = vpack.c.b16 %v4543, %v4541
      %v4584 = vpack.c.b16 %v4546, %v4544
      %v4585 = vpack.c.b16 %v4547, %v4545
      %v4586 = vpack.c.b16 %v4550, %v4548
      %v4587 = vpack.c.b16 %v4551, %v4549
      %v4588 = vpack.c.b16 %v4554, %v4552
      %v4589 = vpack.c.b16 %v4555, %v4553
      %v4590 = vpack.c.b16 %v4558, %v4556
      %v4591 = vpack.c.b16 %v4559, %v4557
      %4624 = vmatprep.subr.bf16.mxu0 %v4575
      %4625 = vmatpush1.bf16.msra.mxu0 %v4574
      %4626 = vmatprep.subr.bf16.mxu0 %v4573
      %4627 = vmatpush1.bf16.msra.mxu0 %v4572
      %4628 = vmatprep.subr.bf16.mxu0 %v4571
      %4629 = vmatpush1.bf16.msra.mxu0 %v4570
      %4630 = vmatprep.subr.bf16.mxu0 %v4569
      %4631 = vmatpush1.bf16.msra.mxu0 %v4568
      %4632 = vmatprep.subr.bf16.mxu0 %v4567
      %4633 = vmatpush1.bf16.msra.mxu0 %v4566
      %4634 = vmatprep.subr.bf16.mxu0 %v4565
      %4635 = vmatpush1.bf16.msra.mxu0 %v4564
      %4636 = vmatprep.subr.bf16.mxu0 %v4563
      %4637 = vmatpush1.bf16.msra.mxu0 %v4562
      %4638 = vmatprep.subr.bf16.mxu0 %v4561
      %4639 = vmatpush1.bf16.msra.mxu0 %v4560
      %4640 = vmatprep.subr.bf16.mxu0 %v4591
      %4641 = vmatpush2.bf16.msra.mxu0 %v4590
      %4642 = vmatprep.subr.bf16.mxu0 %v4589
      %4643 = vmatpush2.bf16.msra.mxu0 %v4588
      %4644 = vmatprep.subr.bf16.mxu0 %v4587
      %4645 = vmatpush2.bf16.msra.mxu0 %v4586
      %4646 = vmatprep.subr.bf16.mxu0 %v4585
      %4647 = vmatpush2.bf16.msra.mxu0 %v4584
      %4648 = vmatprep.subr.bf16.mxu0 %v4583
      %4649 = vmatpush2.bf16.msra.mxu0 %v4582
      %4650 = vmatprep.subr.bf16.mxu0 %v4581
      %4651 = vmatpush2.bf16.msra.mxu0 %v4580
      %4652 = vmatprep.subr.bf16.mxu0 %v4579
      %4653 = vmatpush2.bf16.msra.mxu0 %v4578
      %4654 = vmatprep.subr.bf16.mxu0 %v4577
      %4655 = vmatpush2.bf16.msra.mxu0 %v4576
      %4656 = vmatprep.mubr.bf16.mxu0 %v4355
      %4657 = vmatmul.mubr.bf16.gmra.mxu0 %v4354
      %v4658 = vpop.f32.mrf.mxu0
      %v4659 = vadd.f32 %v4457, %v4658
      %v4660 = vpop.f32.mrf.mxu0
      %v4661 = vadd.f32 %v4461, %v4660
      %v4662 = vpop.f32.mrf.mxu0
      %v4663 = vadd.f32 %v4457, %v4662
      %v4664 = vpop.f32.mrf.mxu0
      %v4665 = vadd.f32 %v4461, %v4664
      %4666 = vmatprep.mubr.bf16.mxu0 %v4357
      %4667 = vmatmul.mubr.bf16.gmra.mxu0 %v4356
      %v4668 = vpop.f32.mrf.mxu0
      %v4669 = vadd.f32 %v4457, %v4668
      %v4670 = vpop.f32.mrf.mxu0
      %v4671 = vadd.f32 %v4461, %v4670
      %v4672 = vpop.f32.mrf.mxu0
      %v4673 = vadd.f32 %v4457, %v4672
      %v4674 = vpop.f32.mrf.mxu0
      %v4675 = vadd.f32 %v4461, %v4674
      %4676 = vmatprep.mubr.bf16.mxu0 %v4359
      %4677 = vmatmul.mubr.bf16.gmra.mxu0 %v4358
      %v4678 = vpop.f32.mrf.mxu0
      %v4679 = vadd.f32 %v4457, %v4678
      %v4680 = vpop.f32.mrf.mxu0
      %v4681 = vadd.f32 %v4461, %v4680
      %v4682 = vpop.f32.mrf.mxu0
      %v4683 = vadd.f32 %v4457, %v4682
      %v4684 = vpop.f32.mrf.mxu0
      %v4685 = vadd.f32 %v4461, %v4684
      %4686 = vmatprep.mubr.bf16.mxu0 %v4361
      %4687 = vmatmul.mubr.bf16.gmra.mxu0 %v4360
      %v4688 = vpop.f32.mrf.mxu0
      %v4689 = vadd.f32 %v4457, %v4688
      %v4690 = vpop.f32.mrf.mxu0
      %v4691 = vadd.f32 %v4461, %v4690
      %v4692 = vpop.f32.mrf.mxu0
      %v4693 = vadd.f32 %v4457, %v4692
      %v4694 = vpop.f32.mrf.mxu0
      %v4695 = vadd.f32 %v4461, %v4694
      %4696 = vmatprep.mubr.bf16.mxu0 %v4363
      %4697 = vmatmul.mubr.bf16.gmra.mxu0 %v4362
      %v4698 = vpop.f32.mrf.mxu0
      %v4699 = vadd.f32 %v4457, %v4698
      %v4700 = vpop.f32.mrf.mxu0
      %v4701 = vadd.f32 %v4461, %v4700
      %v4702 = vpop.f32.mrf.mxu0
      %v4703 = vadd.f32 %v4457, %v4702
      %v4704 = vpop.f32.mrf.mxu0
      %v4705 = vadd.f32 %v4461, %v4704
      %4706 = vmatprep.mubr.bf16.mxu0 %v4365
      %4707 = vmatmul.mubr.bf16.gmra.mxu0 %v4364
      %v4708 = vpop.f32.mrf.mxu0
      %v4709 = vadd.f32 %v4457, %v4708
      %v4710 = vpop.f32.mrf.mxu0
      %v4711 = vadd.f32 %v4461, %v4710
      %v4712 = vpop.f32.mrf.mxu0
      %v4713 = vadd.f32 %v4457, %v4712
      %v4714 = vpop.f32.mrf.mxu0
      %v4715 = vadd.f32 %v4461, %v4714
      %4716 = vmatprep.mubr.bf16.mxu0 %v4367
      %4717 = vmatmul.mubr.bf16.gmra.mxu0 %v4366
      %v4718 = vpop.f32.mrf.mxu0
      %v4719 = vadd.f32 %v4457, %v4718
      %v4720 = vpop.f32.mrf.mxu0
      %v4721 = vadd.f32 %v4461, %v4720
      %v4722 = vpop.f32.mrf.mxu0
      %v4723 = vadd.f32 %v4457, %v4722
      %v4724 = vpop.f32.mrf.mxu0
      %v4725 = vadd.f32 %v4461, %v4724
      %4726 = vmatprep.mubr.bf16.mxu0 %v4369
      %4727 = vmatmul.mubr.bf16.gmra.mxu0 %v4368
      %v4728 = vpop.f32.mrf.mxu0
      %v4729 = vadd.f32 %v4457, %v4728
      %v4730 = vpop.f32.mrf.mxu0
      %v4731 = vadd.f32 %v4461, %v4730
      %v4732 = vpop.f32.mrf.mxu0
      %v4733 = vadd.f32 %v4457, %v4732
      %v4734 = vpop.f32.mrf.mxu0
      %v4735 = vadd.f32 %v4461, %v4734
      %4736 = vmatprep.mubr.bf16.mxu0 %v4371
      %4737 = vmatmul.mubr.bf16.gmra.mxu0 %v4370
      %v4738 = vpop.f32.mrf.mxu0
      %v4739 = vadd.f32 %v4457, %v4738
      %v4740 = vpop.f32.mrf.mxu0
      %v4741 = vadd.f32 %v4461, %v4740
      %v4742 = vpop.f32.mrf.mxu0
      %v4743 = vadd.f32 %v4457, %v4742
      %v4744 = vpop.f32.mrf.mxu0
      %v4745 = vadd.f32 %v4461, %v4744
      %4746 = vmatprep.mubr.bf16.mxu0 %v4373
      %4747 = vmatmul.mubr.bf16.gmra.mxu0 %v4372
      %v4748 = vpop.f32.mrf.mxu0
      %v4749 = vadd.f32 %v4457, %v4748
      %v4750 = vpop.f32.mrf.mxu0
      %v4751 = vadd.f32 %v4461, %v4750
      %v4752 = vpop.f32.mrf.mxu0
      %v4753 = vadd.f32 %v4457, %v4752
      %v4754 = vpop.f32.mrf.mxu0
      %v4755 = vadd.f32 %v4461, %v4754
      %4756 = vmatprep.mubr.bf16.mxu0 %v4375
      %4757 = vmatmul.mubr.bf16.gmra.mxu0 %v4374
      %v4758 = vpop.f32.mrf.mxu0
      %v4759 = vadd.f32 %v4457, %v4758
      %v4760 = vpop.f32.mrf.mxu0
      %v4761 = vadd.f32 %v4461, %v4760
      %v4762 = vpop.f32.mrf.mxu0
      %v4763 = vadd.f32 %v4457, %v4762
      %v4764 = vpop.f32.mrf.mxu0
      %v4765 = vadd.f32 %v4461, %v4764
      %4766 = vmatprep.mubr.bf16.mxu0 %v4377
      %4767 = vmatmul.mubr.bf16.gmra.mxu0 %v4376
      %v4768 = vpop.f32.mrf.mxu0
      %v4769 = vadd.f32 %v4457, %v4768
      %v4770 = vpop.f32.mrf.mxu0
      %v4771 = vadd.f32 %v4461, %v4770
      %v4772 = vpop.f32.mrf.mxu0
      %v4773 = vadd.f32 %v4457, %v4772
      %v4774 = vpop.f32.mrf.mxu0
      %v4775 = vadd.f32 %v4461, %v4774
      %4776 = vmatprep.mubr.bf16.mxu0 %v4379
      %4777 = vmatmul.mubr.bf16.gmra.mxu0 %v4378
      %v4778 = vpop.f32.mrf.mxu0
      %v4779 = vadd.f32 %v4457, %v4778
      %v4780 = vpop.f32.mrf.mxu0
      %v4781 = vadd.f32 %v4461, %v4780
      %v4782 = vpop.f32.mrf.mxu0
      %v4783 = vadd.f32 %v4457, %v4782
      %v4784 = vpop.f32.mrf.mxu0
      %v4785 = vadd.f32 %v4461, %v4784
      %4786 = vmatprep.mubr.bf16.mxu0 %v4381
      %4787 = vmatmul.mubr.bf16.gmra.mxu0 %v4380
      %v4788 = vpop.f32.mrf.mxu0
      %v4789 = vadd.f32 %v4457, %v4788
      %v4790 = vpop.f32.mrf.mxu0
      %v4791 = vadd.f32 %v4461, %v4790
      %v4792 = vpop.f32.mrf.mxu0
      %v4793 = vadd.f32 %v4457, %v4792
      %v4794 = vpop.f32.mrf.mxu0
      %v4795 = vadd.f32 %v4461, %v4794
      %4796 = vmatprep.mubr.bf16.mxu0 %v4383
      %4797 = vmatmul.mubr.bf16.gmra.mxu0 %v4382
      %v4798 = vpop.f32.mrf.mxu0
      %v4799 = vadd.f32 %v4457, %v4798
      %v4800 = vpop.f32.mrf.mxu0
      %v4801 = vadd.f32 %v4461, %v4800
      %v4802 = vpop.f32.mrf.mxu0
      %v4803 = vadd.f32 %v4457, %v4802
      %v4804 = vpop.f32.mrf.mxu0
      %v4805 = vadd.f32 %v4461, %v4804
      %4806 = vmatprep.mubr.bf16.mxu0 %v4385
      %4807 = vmatmul.mubr.bf16.gmra.mxu0 %v4384
      %v4808 = vpop.f32.mrf.mxu0
      %v4809 = vadd.f32 %v4457, %v4808
      %v4810 = vpop.f32.mrf.mxu0
      %v4811 = vadd.f32 %v4461, %v4810
      %v4812 = vpop.f32.mrf.mxu0
      %v4813 = vadd.f32 %v4457, %v4812
      %v4814 = vpop.f32.mrf.mxu0
      %v4815 = vadd.f32 %v4461, %v4814
      %4816 = vmatprep.mubr.bf16.mxu0 %v4387
      %4817 = vmatmul.mubr.bf16.gmra.mxu0 %v4386
      %v4818 = vpop.f32.mrf.mxu0
      %v4819 = vadd.f32 %v4457, %v4818
      %v4820 = vpop.f32.mrf.mxu0
      %v4821 = vadd.f32 %v4461, %v4820
      %v4822 = vpop.f32.mrf.mxu0
      %v4823 = vadd.f32 %v4457, %v4822
      %v4824 = vpop.f32.mrf.mxu0
      %v4825 = vadd.f32 %v4461, %v4824
      %4826 = vmatprep.mubr.bf16.mxu0 %v4389
      %4827 = vmatmul.mubr.bf16.gmra.mxu0 %v4388
      %v4828 = vpop.f32.mrf.mxu0
      %v4829 = vadd.f32 %v4457, %v4828
      %v4830 = vpop.f32.mrf.mxu0
      %v4831 = vadd.f32 %v4461, %v4830
      %v4832 = vpop.f32.mrf.mxu0
      %v4833 = vadd.f32 %v4457, %v4832
      %v4834 = vpop.f32.mrf.mxu0
      %v4835 = vadd.f32 %v4461, %v4834
      %4836 = vmatprep.mubr.bf16.mxu0 %v4391
      %4837 = vmatmul.mubr.bf16.gmra.mxu0 %v4390
      %v4838 = vpop.f32.mrf.mxu0
      %v4839 = vadd.f32 %v4457, %v4838
      %v4840 = vpop.f32.mrf.mxu0
      %v4841 = vadd.f32 %v4461, %v4840
      %v4842 = vpop.f32.mrf.mxu0
      %v4843 = vadd.f32 %v4457, %v4842
      %v4844 = vpop.f32.mrf.mxu0
      %v4845 = vadd.f32 %v4461, %v4844
      %4846 = vmatprep.mubr.bf16.mxu0 %v4393
      %4847 = vmatmul.mubr.bf16.gmra.mxu0 %v4392
      %v4848 = vpop.f32.mrf.mxu0
      %v4849 = vadd.f32 %v4457, %v4848
      %v4850 = vpop.f32.mrf.mxu0
      %v4851 = vadd.f32 %v4461, %v4850
      %v4852 = vpop.f32.mrf.mxu0
      %v4853 = vadd.f32 %v4457, %v4852
      %v4854 = vpop.f32.mrf.mxu0
      %v4855 = vadd.f32 %v4461, %v4854
      %4856 = vmatprep.mubr.bf16.mxu0 %v4395
      %4857 = vmatmul.mubr.bf16.gmra.mxu0 %v4394
      %v4858 = vpop.f32.mrf.mxu0
      %v4859 = vadd.f32 %v4457, %v4858
      %v4860 = vpop.f32.mrf.mxu0
      %v4861 = vadd.f32 %v4461, %v4860
      %v4862 = vpop.f32.mrf.mxu0
      %v4863 = vadd.f32 %v4457, %v4862
      %v4864 = vpop.f32.mrf.mxu0
      %v4865 = vadd.f32 %v4461, %v4864
      %4866 = vmatprep.mubr.bf16.mxu0 %v4397
      %4867 = vmatmul.mubr.bf16.gmra.mxu0 %v4396
      %v4868 = vpop.f32.mrf.mxu0
      %v4869 = vadd.f32 %v4457, %v4868
      %v4870 = vpop.f32.mrf.mxu0
      %v4871 = vadd.f32 %v4461, %v4870
      %v4872 = vpop.f32.mrf.mxu0
      %v4873 = vadd.f32 %v4457, %v4872
      %v4874 = vpop.f32.mrf.mxu0
      %v4875 = vadd.f32 %v4461, %v4874
      %4876 = vmatprep.mubr.bf16.mxu0 %v4399
      %4877 = vmatmul.mubr.bf16.gmra.mxu0 %v4398
      %v4878 = vpop.f32.mrf.mxu0
      %v4879 = vadd.f32 %v4457, %v4878
      %v4880 = vpop.f32.mrf.mxu0
      %v4881 = vadd.f32 %v4461, %v4880
      %v4882 = vpop.f32.mrf.mxu0
      %v4883 = vadd.f32 %v4457, %v4882
      %v4884 = vpop.f32.mrf.mxu0
      %v4885 = vadd.f32 %v4461, %v4884
      %4886 = vmatprep.mubr.bf16.mxu0 %v4401
      %4887 = vmatmul.mubr.bf16.gmra.mxu0 %v4400
      %v4888 = vpop.f32.mrf.mxu0
      %v4889 = vadd.f32 %v4457, %v4888
      %v4890 = vpop.f32.mrf.mxu0
      %v4891 = vadd.f32 %v4461, %v4890
      %v4892 = vpop.f32.mrf.mxu0
      %v4893 = vadd.f32 %v4457, %v4892
      %v4894 = vpop.f32.mrf.mxu0
      %v4895 = vadd.f32 %v4461, %v4894
      %4896 = vmatprep.mubr.bf16.mxu0 %v4403
      %4897 = vmatmul.mubr.bf16.gmra.mxu0 %v4402
      %v4898 = vpop.f32.mrf.mxu0
      %v4899 = vadd.f32 %v4457, %v4898
      %v4900 = vpop.f32.mrf.mxu0
      %v4901 = vadd.f32 %v4461, %v4900
      %v4902 = vpop.f32.mrf.mxu0
      %v4903 = vadd.f32 %v4457, %v4902
      %v4904 = vpop.f32.mrf.mxu0
      %v4905 = vadd.f32 %v4461, %v4904
      %4906 = vmatprep.mubr.bf16.mxu0 %v4405
      %4907 = vmatmul.mubr.bf16.gmra.mxu0 %v4404
      %v4908 = vpop.f32.mrf.mxu0
      %v4909 = vadd.f32 %v4457, %v4908
      %v4910 = vpop.f32.mrf.mxu0
      %v4911 = vadd.f32 %v4461, %v4910
      %v4912 = vpop.f32.mrf.mxu0
      %v4913 = vadd.f32 %v4457, %v4912
      %v4914 = vpop.f32.mrf.mxu0
      %v4915 = vadd.f32 %v4461, %v4914
      %4916 = vmatprep.mubr.bf16.mxu0 %v4407
      %4917 = vmatmul.mubr.bf16.gmra.mxu0 %v4406
      %v4918 = vpop.f32.mrf.mxu0
      %v4919 = vadd.f32 %v4457, %v4918
      %v4920 = vpop.f32.mrf.mxu0
      %v4921 = vadd.f32 %v4461, %v4920
      %v4922 = vpop.f32.mrf.mxu0
      %v4923 = vadd.f32 %v4457, %v4922
      %v4924 = vpop.f32.mrf.mxu0
      %v4925 = vadd.f32 %v4461, %v4924
      %4926 = vmatprep.mubr.bf16.mxu0 %v4409
      %4927 = vmatmul.mubr.bf16.gmra.mxu0 %v4408
      %v4928 = vpop.f32.mrf.mxu0
      %v4929 = vadd.f32 %v4457, %v4928
      %v4930 = vpop.f32.mrf.mxu0
      %v4931 = vadd.f32 %v4461, %v4930
      %v4932 = vpop.f32.mrf.mxu0
      %v4933 = vadd.f32 %v4457, %v4932
      %v4934 = vpop.f32.mrf.mxu0
      %v4935 = vadd.f32 %v4461, %v4934
      %4936 = vmatprep.mubr.bf16.mxu0 %v4411
      %4937 = vmatmul.mubr.bf16.gmra.mxu0 %v4410
      %v4938 = vpop.f32.mrf.mxu0
      %v4939 = vadd.f32 %v4457, %v4938
      %v4940 = vpop.f32.mrf.mxu0
      %v4941 = vadd.f32 %v4461, %v4940
      %v4942 = vpop.f32.mrf.mxu0
      %v4943 = vadd.f32 %v4457, %v4942
      %v4944 = vpop.f32.mrf.mxu0
      %v4945 = vadd.f32 %v4461, %v4944
      %4946 = vmatprep.mubr.bf16.mxu0 %v4413
      %4947 = vmatmul.mubr.bf16.gmra.mxu0 %v4412
      %v4948 = vpop.f32.mrf.mxu0
      %v4949 = vadd.f32 %v4457, %v4948
      %v4950 = vpop.f32.mrf.mxu0
      %v4951 = vadd.f32 %v4461, %v4950
      %v4952 = vpop.f32.mrf.mxu0
      %v4953 = vadd.f32 %v4457, %v4952
      %v4954 = vpop.f32.mrf.mxu0
      %v4955 = vadd.f32 %v4461, %v4954
      %4956 = vmatprep.mubr.bf16.mxu0 %v4415
      %4957 = vmatmul.mubr.bf16.gmra.mxu0 %v4414
      %v4958 = vpop.f32.mrf.mxu0
      %v4959 = vadd.f32 %v4457, %v4958
      %v4960 = vpop.f32.mrf.mxu0
      %v4961 = vadd.f32 %v4461, %v4960
      %v4962 = vpop.f32.mrf.mxu0
      %v4963 = vadd.f32 %v4457, %v4962
      %v4964 = vpop.f32.mrf.mxu0
      %v4965 = vadd.f32 %v4461, %v4964
      %4966 = vmatprep.mubr.bf16.mxu0 %v4417
      %4967 = vmatmul.mubr.bf16.gmra.mxu0 %v4416
      %v4968 = vpop.f32.mrf.mxu0
      %v4969 = vadd.f32 %v4457, %v4968
      %v4970 = vpop.f32.mrf.mxu0
      %v4971 = vadd.f32 %v4461, %v4970
      %v4972 = vpop.f32.mrf.mxu0
      %v4973 = vadd.f32 %v4457, %v4972
      %v4974 = vpop.f32.mrf.mxu0
      %v4975 = vadd.f32 %v4461, %v4974
      %4976 = vdwg.mxu0
      %v4977 = vmax.f32 %v4659, 0.0
      %v4978 = vmax.f32 %v4661, 0.0
      %v4979 = vmax.f32 %v4663, 0.0
      %v4980 = vmax.f32 %v4665, 0.0
      %v4981 = vmax.f32 %v4669, 0.0
      %v4982 = vmax.f32 %v4671, 0.0
      %v4983 = vmax.f32 %v4673, 0.0
      %v4984 = vmax.f32 %v4675, 0.0
      %v4985 = vmax.f32 %v4679, 0.0
      %v4986 = vmax.f32 %v4681, 0.0
      %v4987 = vmax.f32 %v4683, 0.0
      %v4988 = vmax.f32 %v4685, 0.0
      %v4989 = vmax.f32 %v4689, 0.0
      %v4990 = vmax.f32 %v4691, 0.0
      %v4991 = vmax.f32 %v4693, 0.0
      %v4992 = vmax.f32 %v4695, 0.0
      %v4993 = vmax.f32 %v4699, 0.0
      %v4994 = vmax.f32 %v4701, 0.0
      %v4995 = vmax.f32 %v4703, 0.0
      %v4996 = vmax.f32 %v4705, 0.0
      %v4997 = vmax.f32 %v4709, 0.0
      %v4998 = vmax.f32 %v4711, 0.0
      %v4999 = vmax.f32 %v4713, 0.0
      %v5000 = vmax.f32 %v4715, 0.0
      %v5001 = vmax.f32 %v4719, 0.0
      %v5002 = vmax.f32 %v4721, 0.0
      %v5003 = vmax.f32 %v4723, 0.0
      %v5004 = vmax.f32 %v4725, 0.0
      %v5005 = vmax.f32 %v4729, 0.0
      %v5006 = vmax.f32 %v4731, 0.0
      %v5007 = vmax.f32 %v4733, 0.0
      %v5008 = vmax.f32 %v4735, 0.0
      %v5009 = vmax.f32 %v4739, 0.0
      %v5010 = vmax.f32 %v4741, 0.0
      %v5011 = vmax.f32 %v4743, 0.0
      %v5012 = vmax.f32 %v4745, 0.0
      %v5013 = vmax.f32 %v4749, 0.0
      %v5014 = vmax.f32 %v4751, 0.0
      %v5015 = vmax.f32 %v4753, 0.0
      %v5016 = vmax.f32 %v4755, 0.0
      %v5017 = vmax.f32 %v4759, 0.0
      %v5018 = vmax.f32 %v4761, 0.0
      %v5019 = vmax.f32 %v4763, 0.0
      %v5020 = vmax.f32 %v4765, 0.0
      %v5021 = vmax.f32 %v4769, 0.0
      %v5022 = vmax.f32 %v4771, 0.0
      %v5023 = vmax.f32 %v4773, 0.0
      %v5024 = vmax.f32 %v4775, 0.0
      %v5025 = vmax.f32 %v4779, 0.0
      %v5026 = vmax.f32 %v4781, 0.0
      %v5027 = vmax.f32 %v4783, 0.0
      %v5028 = vmax.f32 %v4785, 0.0
      %v5029 = vmax.f32 %v4789, 0.0
      %v5030 = vmax.f32 %v4791, 0.0
      %v5031 = vmax.f32 %v4793, 0.0
      %v5032 = vmax.f32 %v4795, 0.0
      %v5033 = vmax.f32 %v4799, 0.0
      %v5034 = vmax.f32 %v4801, 0.0
      %v5035 = vmax.f32 %v4803, 0.0
      %v5036 = vmax.f32 %v4805, 0.0
      %v5037 = vmax.f32 %v4809, 0.0
      %v5038 = vmax.f32 %v4811, 0.0
      %v5039 = vmax.f32 %v4813, 0.0
      %v5040 = vmax.f32 %v4815, 0.0
      %v5041 = vmax.f32 %v4819, 0.0
      %v5042 = vmax.f32 %v4821, 0.0
      %v5043 = vmax.f32 %v4823, 0.0
      %v5044 = vmax.f32 %v4825, 0.0
      %v5045 = vmax.f32 %v4829, 0.0
      %v5046 = vmax.f32 %v4831, 0.0
      %v5047 = vmax.f32 %v4833, 0.0
      %v5048 = vmax.f32 %v4835, 0.0
      %v5049 = vmax.f32 %v4839, 0.0
      %v5050 = vmax.f32 %v4841, 0.0
      %v5051 = vmax.f32 %v4843, 0.0
      %v5052 = vmax.f32 %v4845, 0.0
      %v5053 = vmax.f32 %v4849, 0.0
      %v5054 = vmax.f32 %v4851, 0.0
      %v5055 = vmax.f32 %v4853, 0.0
      %v5056 = vmax.f32 %v4855, 0.0
      %v5057 = vmax.f32 %v4859, 0.0
      %v5058 = vmax.f32 %v4861, 0.0
      %v5059 = vmax.f32 %v4863, 0.0
      %v5060 = vmax.f32 %v4865, 0.0
      %v5061 = vmax.f32 %v4869, 0.0
      %v5062 = vmax.f32 %v4871, 0.0
      %v5063 = vmax.f32 %v4873, 0.0
      %v5064 = vmax.f32 %v4875, 0.0
      %v5065 = vmax.f32 %v4879, 0.0
      %v5066 = vmax.f32 %v4881, 0.0
      %v5067 = vmax.f32 %v4883, 0.0
      %v5068 = vmax.f32 %v4885, 0.0
      %v5069 = vmax.f32 %v4889, 0.0
      %v5070 = vmax.f32 %v4891, 0.0
      %v5071 = vmax.f32 %v4893, 0.0
      %v5072 = vmax.f32 %v4895, 0.0
      %v5073 = vmax.f32 %v4899, 0.0
      %v5074 = vmax.f32 %v4901, 0.0
      %v5075 = vmax.f32 %v4903, 0.0
      %v5076 = vmax.f32 %v4905, 0.0
      %v5077 = vmax.f32 %v4909, 0.0
      %v5078 = vmax.f32 %v4911, 0.0
      %v5079 = vmax.f32 %v4913, 0.0
      %v5080 = vmax.f32 %v4915, 0.0
      %v5081 = vmax.f32 %v4919, 0.0
      %v5082 = vmax.f32 %v4921, 0.0
      %v5083 = vmax.f32 %v4923, 0.0
      %v5084 = vmax.f32 %v4925, 0.0
      %v5085 = vmax.f32 %v4929, 0.0
      %v5086 = vmax.f32 %v4931, 0.0
      %v5087 = vmax.f32 %v4933, 0.0
      %v5088 = vmax.f32 %v4935, 0.0
      %v5089 = vmax.f32 %v4939, 0.0
      %v5090 = vmax.f32 %v4941, 0.0
      %v5091 = vmax.f32 %v4943, 0.0
      %v5092 = vmax.f32 %v4945, 0.0
      %v5093 = vmax.f32 %v4949, 0.0
      %v5094 = vmax.f32 %v4951, 0.0
      %v5095 = vmax.f32 %v4953, 0.0
      %v5096 = vmax.f32 %v4955, 0.0
      %v5097 = vmax.f32 %v4959, 0.0
      %v5098 = vmax.f32 %v4961, 0.0
      %v5099 = vmax.f32 %v4963, 0.0
      %v5100 = vmax.f32 %v4965, 0.0
      %v5101 = vmax.f32 %v4969, 0.0
      %v5102 = vmax.f32 %v4971, 0.0
      %v5103 = vmax.f32 %v4973, 0.0
      %v5104 = vmax.f32 %v4975, 0.0
      %v5105 = vpack.c.bf16 %v4979, %v4977
      %v5106 = vpack.c.bf16 %v4980, %v4978
      %v5107 = vpack.c.bf16 %v4983, %v4981
      %v5108 = vpack.c.bf16 %v4984, %v4982
      %v5109 = vpack.c.bf16 %v4987, %v4985
      %v5110 = vpack.c.bf16 %v4988, %v4986
      %v5111 = vpack.c.bf16 %v4991, %v4989
      %v5112 = vpack.c.bf16 %v4992, %v4990
      %v5113 = vpack.c.bf16 %v4995, %v4993
      %v5114 = vpack.c.bf16 %v4996, %v4994
      %v5115 = vpack.c.bf16 %v4999, %v4997
      %v5116 = vpack.c.bf16 %v5000, %v4998
      %v5117 = vpack.c.bf16 %v5003, %v5001
      %v5118 = vpack.c.bf16 %v5004, %v5002
      %v5119 = vpack.c.bf16 %v5007, %v5005
      %v5120 = vpack.c.bf16 %v5008, %v5006
      %v5121 = vpack.c.bf16 %v5011, %v5009
      %v5122 = vpack.c.bf16 %v5012, %v5010
      %v5123 = vpack.c.bf16 %v5015, %v5013
      %v5124 = vpack.c.bf16 %v5016, %v5014
      %v5125 = vpack.c.bf16 %v5019, %v5017
      %v5126 = vpack.c.bf16 %v5020, %v5018
      %v5127 = vpack.c.bf16 %v5023, %v5021
      %v5128 = vpack.c.bf16 %v5024, %v5022
      %v5129 = vpack.c.bf16 %v5027, %v5025
      %v5130 = vpack.c.bf16 %v5028, %v5026
      %v5131 = vpack.c.bf16 %v5031, %v5029
      %v5132 = vpack.c.bf16 %v5032, %v5030
      %v5133 = vpack.c.bf16 %v5035, %v5033
      %v5134 = vpack.c.bf16 %v5036, %v5034
      %v5135 = vpack.c.bf16 %v5039, %v5037
      %v5136 = vpack.c.bf16 %v5040, %v5038
      %v5137 = vpack.c.bf16 %v5043, %v5041
      %v5138 = vpack.c.bf16 %v5044, %v5042
      %v5139 = vpack.c.bf16 %v5047, %v5045
      %v5140 = vpack.c.bf16 %v5048, %v5046
      %v5141 = vpack.c.bf16 %v5051, %v5049
      %v5142 = vpack.c.bf16 %v5052, %v5050
      %v5143 = vpack.c.bf16 %v5055, %v5053
      %v5144 = vpack.c.bf16 %v5056, %v5054
      %v5145 = vpack.c.bf16 %v5059, %v5057
      %v5146 = vpack.c.bf16 %v5060, %v5058
      %v5147 = vpack.c.bf16 %v5063, %v5061
      %v5148 = vpack.c.bf16 %v5064, %v5062
      %v5149 = vpack.c.bf16 %v5067, %v5065
      %v5150 = vpack.c.bf16 %v5068, %v5066
      %v5151 = vpack.c.bf16 %v5071, %v5069
      %v5152 = vpack.c.bf16 %v5072, %v5070
      %v5153 = vpack.c.bf16 %v5075, %v5073
      %v5154 = vpack.c.bf16 %v5076, %v5074
      %v5155 = vpack.c.bf16 %v5079, %v5077
      %v5156 = vpack.c.bf16 %v5080, %v5078
      %v5157 = vpack.c.bf16 %v5083, %v5081
      %v5158 = vpack.c.bf16 %v5084, %v5082
      %v5159 = vpack.c.bf16 %v5087, %v5085
      %v5160 = vpack.c.bf16 %v5088, %v5086
      %v5161 = vpack.c.bf16 %v5091, %v5089
      %v5162 = vpack.c.bf16 %v5092, %v5090
      %v5163 = vpack.c.bf16 %v5095, %v5093
      %v5164 = vpack.c.bf16 %v5096, %v5094
      %v5165 = vpack.c.bf16 %v5099, %v5097
      %v5166 = vpack.c.bf16 %v5100, %v5098
      %v5167 = vpack.c.bf16 %v5103, %v5101
      %v5168 = vpack.c.bf16 %v5104, %v5102
      %s5169 = scalar_lea.vmem %s3, 1024
      %v5170 = vld [vmem:[%s5169] sm:$0xff]
      %v5171 = vld [vmem:[%s5169 + $0x8] sm:$0xff]
      %v5172 = vld [vmem:[%s5169 + $0x10] sm:$0xff]
      %v5173 = vld [vmem:[%s5169 + $0x18] sm:$0xff]
      %v5174 = vld [vmem:[%s5169 + $0x20] sm:$0xff]
      %v5175 = vld [vmem:[%s5169 + $0x28] sm:$0xff]
      %v5176 = vld [vmem:[%s5169 + $0x30] sm:$0xff]
      %v5177 = vld [vmem:[%s5169 + $0x38] sm:$0xff]
      %v5178 = vld [vmem:[%s5169 + $0x40] sm:$0xff]
      %v5179 = vld [vmem:[%s5169 + $0x48] sm:$0xff]
      %v5180 = vld [vmem:[%s5169 + $0x50] sm:$0xff]
      %v5181 = vld [vmem:[%s5169 + $0x58] sm:$0xff]
      %v5182 = vld [vmem:[%s5169 + $0x60] sm:$0xff]
      %v5183 = vld [vmem:[%s5169 + $0x68] sm:$0xff]
      %v5184 = vld [vmem:[%s5169 + $0x70] sm:$0xff]
      %v5185 = vld [vmem:[%s5169 + $0x78] sm:$0xff]
      %v5186 = vld [vmem:[%s5169 + $0x80] sm:$0xff]
      %v5187 = vld [vmem:[%s5169 + $0x88] sm:$0xff]
      %v5188 = vld [vmem:[%s5169 + $0x90] sm:$0xff]
      %v5189 = vld [vmem:[%s5169 + $0x98] sm:$0xff]
      %v5190 = vld [vmem:[%s5169 + $0xa0] sm:$0xff]
      %v5191 = vld [vmem:[%s5169 + $0xa8] sm:$0xff]
      %v5192 = vld [vmem:[%s5169 + $0xb0] sm:$0xff]
      %v5193 = vld [vmem:[%s5169 + $0xb8] sm:$0xff]
      %v5194 = vld [vmem:[%s5169 + $0xc0] sm:$0xff]
      %v5195 = vld [vmem:[%s5169 + $0xc8] sm:$0xff]
      %v5196 = vld [vmem:[%s5169 + $0xd0] sm:$0xff]
      %v5197 = vld [vmem:[%s5169 + $0xd8] sm:$0xff]
      %v5198 = vld [vmem:[%s5169 + $0xe0] sm:$0xff]
      %v5199 = vld [vmem:[%s5169 + $0xe8] sm:$0xff]
      %v5200 = vld [vmem:[%s5169 + $0xf0] sm:$0xff]
      %v5201 = vld [vmem:[%s5169 + $0xf8] sm:$0xff]
      %s5202 = scalar_lea.vmem %s4, 8
      %v5203 = vld [vmem:[%s5202] sm:$0x3]
      %v5205 = vlaneseq
      %v5206 = vshrl.u32 %v5205, 7
      %v5207 = vsub.s32 0, %v5206
      %v5208 = vrot.slane %v5203, %v5207
      %v5209 = vlaneseq
      %v5210 = vshrl.u32 %v5209, 7
      %v5211 = vsub.s32 1, %v5210
      %v5212 = vrot.slane %v5203, %v5211
      %v5247 = vunpack.c.l.b16 %v5170
      %v5248 = vunpack.c.h.b16 %v5170
      %v5249 = vunpack.c.l.b16 %v5171
      %v5250 = vunpack.c.h.b16 %v5171
      %v5251 = vunpack.c.l.b16 %v5172
      %v5252 = vunpack.c.h.b16 %v5172
      %v5253 = vunpack.c.l.b16 %v5173
      %v5254 = vunpack.c.h.b16 %v5173
      %v5255 = vunpack.c.l.b16 %v5174
      %v5256 = vunpack.c.h.b16 %v5174
      %v5257 = vunpack.c.l.b16 %v5175
      %v5258 = vunpack.c.h.b16 %v5175
      %v5259 = vunpack.c.l.b16 %v5176
      %v5260 = vunpack.c.h.b16 %v5176
      %v5261 = vunpack.c.l.b16 %v5177
      %v5262 = vunpack.c.h.b16 %v5177
      %v5263 = vunpack.c.l.b16 %v5178
      %v5264 = vunpack.c.h.b16 %v5178
      %v5265 = vunpack.c.l.b16 %v5179
      %v5266 = vunpack.c.h.b16 %v5179
      %v5267 = vunpack.c.l.b16 %v5180
      %v5268 = vunpack.c.h.b16 %v5180
      %v5269 = vunpack.c.l.b16 %v5181
      %v5270 = vunpack.c.h.b16 %v5181
      %v5271 = vunpack.c.l.b16 %v5182
      %v5272 = vunpack.c.h.b16 %v5182
      %v5273 = vunpack.c.l.b16 %v5183
      %v5274 = vunpack.c.h.b16 %v5183
      %v5275 = vunpack.c.l.b16 %v5184
      %v5276 = vunpack.c.h.b16 %v5184
      %v5277 = vunpack.c.l.b16 %v5185
      %v5278 = vunpack.c.h.b16 %v5185
      %v5279 = vunpack.c.l.b16 %v5186
      %v5280 = vunpack.c.h.b16 %v5186
      %v5281 = vunpack.c.l.b16 %v5187
      %v5282 = vunpack.c.h.b16 %v5187
      %v5283 = vunpack.c.l.b16 %v5188
      %v5284 = vunpack.c.h.b16 %v5188
      %v5285 = vunpack.c.l.b16 %v5189
      %v5286 = vunpack.c.h.b16 %v5189
      %v5287 = vunpack.c.l.b16 %v5190
      %v5288 = vunpack.c.h.b16 %v5190
      %v5289 = vunpack.c.l.b16 %v5191
      %v5290 = vunpack.c.h.b16 %v5191
      %v5291 = vunpack.c.l.b16 %v5192
      %v5292 = vunpack.c.h.b16 %v5192
      %v5293 = vunpack.c.l.b16 %v5193
      %v5294 = vunpack.c.h.b16 %v5193
      %v5295 = vunpack.c.l.b16 %v5194
      %v5296 = vunpack.c.h.b16 %v5194
      %v5297 = vunpack.c.l.b16 %v5195
      %v5298 = vunpack.c.h.b16 %v5195
      %v5299 = vunpack.c.l.b16 %v5196
      %v5300 = vunpack.c.h.b16 %v5196
      %v5301 = vunpack.c.l.b16 %v5197
      %v5302 = vunpack.c.h.b16 %v5197
      %v5303 = vunpack.c.l.b16 %v5198
      %v5304 = vunpack.c.h.b16 %v5198
      %v5305 = vunpack.c.l.b16 %v5199
      %v5306 = vunpack.c.h.b16 %v5199
      %v5307 = vunpack.c.l.b16 %v5200
      %v5308 = vunpack.c.h.b16 %v5200
      %v5309 = vunpack.c.l.b16 %v5201
      %v5310 = vunpack.c.h.b16 %v5201
      %v5311 = vpack.c.b16 %v5249, %v5247
      %v5312 = vpack.c.b16 %v5250, %v5248
      %v5313 = vpack.c.b16 %v5253, %v5251
      %v5314 = vpack.c.b16 %v5254, %v5252
      %v5315 = vpack.c.b16 %v5257, %v5255
      %v5316 = vpack.c.b16 %v5258, %v5256
      %v5317 = vpack.c.b16 %v5261, %v5259
      %v5318 = vpack.c.b16 %v5262, %v5260
      %v5319 = vpack.c.b16 %v5265, %v5263
      %v5320 = vpack.c.b16 %v5266, %v5264
      %v5321 = vpack.c.b16 %v5269, %v5267
      %v5322 = vpack.c.b16 %v5270, %v5268
      %v5323 = vpack.c.b16 %v5273, %v5271
      %v5324 = vpack.c.b16 %v5274, %v5272
      %v5325 = vpack.c.b16 %v5277, %v5275
      %v5326 = vpack.c.b16 %v5278, %v5276
      %v5327 = vpack.c.b16 %v5281, %v5279
      %v5328 = vpack.c.b16 %v5282, %v5280
      %v5329 = vpack.c.b16 %v5285, %v5283
      %v5330 = vpack.c.b16 %v5286, %v5284
      %v5331 = vpack.c.b16 %v5289, %v5287
      %v5332 = vpack.c.b16 %v5290, %v5288
      %v5333 = vpack.c.b16 %v5293, %v5291
      %v5334 = vpack.c.b16 %v5294, %v5292
      %v5335 = vpack.c.b16 %v5297, %v5295
      %v5336 = vpack.c.b16 %v5298, %v5296
      %v5337 = vpack.c.b16 %v5301, %v5299
      %v5338 = vpack.c.b16 %v5302, %v5300
      %v5339 = vpack.c.b16 %v5305, %v5303
      %v5340 = vpack.c.b16 %v5306, %v5304
      %v5341 = vpack.c.b16 %v5309, %v5307
      %v5342 = vpack.c.b16 %v5310, %v5308
      %5375 = vmatprep.subr.bf16.mxu0 %v5326
      %5376 = vmatpush1.bf16.msra.mxu0 %v5325
      %5377 = vmatprep.subr.bf16.mxu0 %v5324
      %5378 = vmatpush1.bf16.msra.mxu0 %v5323
      %5379 = vmatprep.subr.bf16.mxu0 %v5322
      %5380 = vmatpush1.bf16.msra.mxu0 %v5321
      %5381 = vmatprep.subr.bf16.mxu0 %v5320
      %5382 = vmatpush1.bf16.msra.mxu0 %v5319
      %5383 = vmatprep.subr.bf16.mxu0 %v5318
      %5384 = vmatpush1.bf16.msra.mxu0 %v5317
      %5385 = vmatprep.subr.bf16.mxu0 %v5316
      %5386 = vmatpush1.bf16.msra.mxu0 %v5315
      %5387 = vmatprep.subr.bf16.mxu0 %v5314
      %5388 = vmatpush1.bf16.msra.mxu0 %v5313
      %5389 = vmatprep.subr.bf16.mxu0 %v5312
      %5390 = vmatpush1.bf16.msra.mxu0 %v5311
      %5391 = vmatprep.subr.bf16.mxu0 %v5342
      %5392 = vmatpush2.bf16.msra.mxu0 %v5341
      %5393 = vmatprep.subr.bf16.mxu0 %v5340
      %5394 = vmatpush2.bf16.msra.mxu0 %v5339
      %5395 = vmatprep.subr.bf16.mxu0 %v5338
      %5396 = vmatpush2.bf16.msra.mxu0 %v5337
      %5397 = vmatprep.subr.bf16.mxu0 %v5336
      %5398 = vmatpush2.bf16.msra.mxu0 %v5335
      %5399 = vmatprep.subr.bf16.mxu0 %v5334
      %5400 = vmatpush2.bf16.msra.mxu0 %v5333
      %5401 = vmatprep.subr.bf16.mxu0 %v5332
      %5402 = vmatpush2.bf16.msra.mxu0 %v5331
      %5403 = vmatprep.subr.bf16.mxu0 %v5330
      %5404 = vmatpush2.bf16.msra.mxu0 %v5329
      %5405 = vmatprep.subr.bf16.mxu0 %v5328
      %5406 = vmatpush2.bf16.msra.mxu0 %v5327
      %5407 = vmatprep.mubr.bf16.mxu0 %v5106
      %5408 = vmatmul.mubr.bf16.gmra.mxu0 %v5105
      %v5409 = vpop.f32.mrf.mxu0
      %v5410 = vadd.f32 %v5208, %v5409
      %v5411 = vpop.f32.mrf.mxu0
      %v5412 = vadd.f32 %v5212, %v5411
      %v5413 = vpop.f32.mrf.mxu0
      %v5414 = vadd.f32 %v5208, %v5413
      %v5415 = vpop.f32.mrf.mxu0
      %v5416 = vadd.f32 %v5212, %v5415
      %5417 = vmatprep.mubr.bf16.mxu0 %v5108
      %5418 = vmatmul.mubr.bf16.gmra.mxu0 %v5107
      %v5419 = vpop.f32.mrf.mxu0
      %v5420 = vadd.f32 %v5208, %v5419
      %v5421 = vpop.f32.mrf.mxu0
      %v5422 = vadd.f32 %v5212, %v5421
      %v5423 = vpop.f32.mrf.mxu0
      %v5424 = vadd.f32 %v5208, %v5423
      %v5425 = vpop.f32.mrf.mxu0
      %v5426 = vadd.f32 %v5212, %v5425
      %5427 = vmatprep.mubr.bf16.mxu0 %v5110
      %5428 = vmatmul.mubr.bf16.gmra.mxu0 %v5109
      %v5429 = vpop.f32.mrf.mxu0
      %v5430 = vadd.f32 %v5208, %v5429
      %v5431 = vpop.f32.mrf.mxu0
      %v5432 = vadd.f32 %v5212, %v5431
      %v5433 = vpop.f32.mrf.mxu0
      %v5434 = vadd.f32 %v5208, %v5433
      %v5435 = vpop.f32.mrf.mxu0
      %v5436 = vadd.f32 %v5212, %v5435
      %5437 = vmatprep.mubr.bf16.mxu0 %v5112
      %5438 = vmatmul.mubr.bf16.gmra.mxu0 %v5111
      %v5439 = vpop.f32.mrf.mxu0
      %v5440 = vadd.f32 %v5208, %v5439
      %v5441 = vpop.f32.mrf.mxu0
      %v5442 = vadd.f32 %v5212, %v5441
      %v5443 = vpop.f32.mrf.mxu0
      %v5444 = vadd.f32 %v5208, %v5443
      %v5445 = vpop.f32.mrf.mxu0
      %v5446 = vadd.f32 %v5212, %v5445
      %5447 = vmatprep.mubr.bf16.mxu0 %v5114
      %5448 = vmatmul.mubr.bf16.gmra.mxu0 %v5113
      %v5449 = vpop.f32.mrf.mxu0
      %v5450 = vadd.f32 %v5208, %v5449
      %v5451 = vpop.f32.mrf.mxu0
      %v5452 = vadd.f32 %v5212, %v5451
      %v5453 = vpop.f32.mrf.mxu0
      %v5454 = vadd.f32 %v5208, %v5453
      %v5455 = vpop.f32.mrf.mxu0
      %v5456 = vadd.f32 %v5212, %v5455
      %5457 = vmatprep.mubr.bf16.mxu0 %v5116
      %5458 = vmatmul.mubr.bf16.gmra.mxu0 %v5115
      %v5459 = vpop.f32.mrf.mxu0
      %v5460 = vadd.f32 %v5208, %v5459
      %v5461 = vpop.f32.mrf.mxu0
      %v5462 = vadd.f32 %v5212, %v5461
      %v5463 = vpop.f32.mrf.mxu0
      %v5464 = vadd.f32 %v5208, %v5463
      %v5465 = vpop.f32.mrf.mxu0
      %v5466 = vadd.f32 %v5212, %v5465
      %5467 = vmatprep.mubr.bf16.mxu0 %v5118
      %5468 = vmatmul.mubr.bf16.gmra.mxu0 %v5117
      %v5469 = vpop.f32.mrf.mxu0
      %v5470 = vadd.f32 %v5208, %v5469
      %v5471 = vpop.f32.mrf.mxu0
      %v5472 = vadd.f32 %v5212, %v5471
      %v5473 = vpop.f32.mrf.mxu0
      %v5474 = vadd.f32 %v5208, %v5473
      %v5475 = vpop.f32.mrf.mxu0
      %v5476 = vadd.f32 %v5212, %v5475
      %5477 = vmatprep.mubr.bf16.mxu0 %v5120
      %5478 = vmatmul.mubr.bf16.gmra.mxu0 %v5119
      %v5479 = vpop.f32.mrf.mxu0
      %v5480 = vadd.f32 %v5208, %v5479
      %v5481 = vpop.f32.mrf.mxu0
      %v5482 = vadd.f32 %v5212, %v5481
      %v5483 = vpop.f32.mrf.mxu0
      %v5484 = vadd.f32 %v5208, %v5483
      %v5485 = vpop.f32.mrf.mxu0
      %v5486 = vadd.f32 %v5212, %v5485
      %5487 = vmatprep.mubr.bf16.mxu0 %v5122
      %5488 = vmatmul.mubr.bf16.gmra.mxu0 %v5121
      %v5489 = vpop.f32.mrf.mxu0
      %v5490 = vadd.f32 %v5208, %v5489
      %v5491 = vpop.f32.mrf.mxu0
      %v5492 = vadd.f32 %v5212, %v5491
      %v5493 = vpop.f32.mrf.mxu0
      %v5494 = vadd.f32 %v5208, %v5493
      %v5495 = vpop.f32.mrf.mxu0
      %v5496 = vadd.f32 %v5212, %v5495
      %5497 = vmatprep.mubr.bf16.mxu0 %v5124
      %5498 = vmatmul.mubr.bf16.gmra.mxu0 %v5123
      %v5499 = vpop.f32.mrf.mxu0
      %v5500 = vadd.f32 %v5208, %v5499
      %v5501 = vpop.f32.mrf.mxu0
      %v5502 = vadd.f32 %v5212, %v5501
      %v5503 = vpop.f32.mrf.mxu0
      %v5504 = vadd.f32 %v5208, %v5503
      %v5505 = vpop.f32.mrf.mxu0
      %v5506 = vadd.f32 %v5212, %v5505
      %5507 = vmatprep.mubr.bf16.mxu0 %v5126
      %5508 = vmatmul.mubr.bf16.gmra.mxu0 %v5125
      %v5509 = vpop.f32.mrf.mxu0
      %v5510 = vadd.f32 %v5208, %v5509
      %v5511 = vpop.f32.mrf.mxu0
      %v5512 = vadd.f32 %v5212, %v5511
      %v5513 = vpop.f32.mrf.mxu0
      %v5514 = vadd.f32 %v5208, %v5513
      %v5515 = vpop.f32.mrf.mxu0
      %v5516 = vadd.f32 %v5212, %v5515
      %5517 = vmatprep.mubr.bf16.mxu0 %v5128
      %5518 = vmatmul.mubr.bf16.gmra.mxu0 %v5127
      %v5519 = vpop.f32.mrf.mxu0
      %v5520 = vadd.f32 %v5208, %v5519
      %v5521 = vpop.f32.mrf.mxu0
      %v5522 = vadd.f32 %v5212, %v5521
      %v5523 = vpop.f32.mrf.mxu0
      %v5524 = vadd.f32 %v5208, %v5523
      %v5525 = vpop.f32.mrf.mxu0
      %v5526 = vadd.f32 %v5212, %v5525
      %5527 = vmatprep.mubr.bf16.mxu0 %v5130
      %5528 = vmatmul.mubr.bf16.gmra.mxu0 %v5129
      %v5529 = vpop.f32.mrf.mxu0
      %v5530 = vadd.f32 %v5208, %v5529
      %v5531 = vpop.f32.mrf.mxu0
      %v5532 = vadd.f32 %v5212, %v5531
      %v5533 = vpop.f32.mrf.mxu0
      %v5534 = vadd.f32 %v5208, %v5533
      %v5535 = vpop.f32.mrf.mxu0
      %v5536 = vadd.f32 %v5212, %v5535
      %5537 = vmatprep.mubr.bf16.mxu0 %v5132
      %5538 = vmatmul.mubr.bf16.gmra.mxu0 %v5131
      %v5539 = vpop.f32.mrf.mxu0
      %v5540 = vadd.f32 %v5208, %v5539
      %v5541 = vpop.f32.mrf.mxu0
      %v5542 = vadd.f32 %v5212, %v5541
      %v5543 = vpop.f32.mrf.mxu0
      %v5544 = vadd.f32 %v5208, %v5543
      %v5545 = vpop.f32.mrf.mxu0
      %v5546 = vadd.f32 %v5212, %v5545
      %5547 = vmatprep.mubr.bf16.mxu0 %v5134
      %5548 = vmatmul.mubr.bf16.gmra.mxu0 %v5133
      %v5549 = vpop.f32.mrf.mxu0
      %v5550 = vadd.f32 %v5208, %v5549
      %v5551 = vpop.f32.mrf.mxu0
      %v5552 = vadd.f32 %v5212, %v5551
      %v5553 = vpop.f32.mrf.mxu0
      %v5554 = vadd.f32 %v5208, %v5553
      %v5555 = vpop.f32.mrf.mxu0
      %v5556 = vadd.f32 %v5212, %v5555
      %5557 = vmatprep.mubr.bf16.mxu0 %v5136
      %5558 = vmatmul.mubr.bf16.gmra.mxu0 %v5135
      %v5559 = vpop.f32.mrf.mxu0
      %v5560 = vadd.f32 %v5208, %v5559
      %v5561 = vpop.f32.mrf.mxu0
      %v5562 = vadd.f32 %v5212, %v5561
      %v5563 = vpop.f32.mrf.mxu0
      %v5564 = vadd.f32 %v5208, %v5563
      %v5565 = vpop.f32.mrf.mxu0
      %v5566 = vadd.f32 %v5212, %v5565
      %5567 = vmatprep.mubr.bf16.mxu0 %v5138
      %5568 = vmatmul.mubr.bf16.gmra.mxu0 %v5137
      %v5569 = vpop.f32.mrf.mxu0
      %v5570 = vadd.f32 %v5208, %v5569
      %v5571 = vpop.f32.mrf.mxu0
      %v5572 = vadd.f32 %v5212, %v5571
      %v5573 = vpop.f32.mrf.mxu0
      %v5574 = vadd.f32 %v5208, %v5573
      %v5575 = vpop.f32.mrf.mxu0
      %v5576 = vadd.f32 %v5212, %v5575
      %5577 = vmatprep.mubr.bf16.mxu0 %v5140
      %5578 = vmatmul.mubr.bf16.gmra.mxu0 %v5139
      %v5579 = vpop.f32.mrf.mxu0
      %v5580 = vadd.f32 %v5208, %v5579
      %v5581 = vpop.f32.mrf.mxu0
      %v5582 = vadd.f32 %v5212, %v5581
      %v5583 = vpop.f32.mrf.mxu0
      %v5584 = vadd.f32 %v5208, %v5583
      %v5585 = vpop.f32.mrf.mxu0
      %v5586 = vadd.f32 %v5212, %v5585
      %5587 = vmatprep.mubr.bf16.mxu0 %v5142
      %5588 = vmatmul.mubr.bf16.gmra.mxu0 %v5141
      %v5589 = vpop.f32.mrf.mxu0
      %v5590 = vadd.f32 %v5208, %v5589
      %v5591 = vpop.f32.mrf.mxu0
      %v5592 = vadd.f32 %v5212, %v5591
      %v5593 = vpop.f32.mrf.mxu0
      %v5594 = vadd.f32 %v5208, %v5593
      %v5595 = vpop.f32.mrf.mxu0
      %v5596 = vadd.f32 %v5212, %v5595
      %5597 = vmatprep.mubr.bf16.mxu0 %v5144
      %5598 = vmatmul.mubr.bf16.gmra.mxu0 %v5143
      %v5599 = vpop.f32.mrf.mxu0
      %v5600 = vadd.f32 %v5208, %v5599
      %v5601 = vpop.f32.mrf.mxu0
      %v5602 = vadd.f32 %v5212, %v5601
      %v5603 = vpop.f32.mrf.mxu0
      %v5604 = vadd.f32 %v5208, %v5603
      %v5605 = vpop.f32.mrf.mxu0
      %v5606 = vadd.f32 %v5212, %v5605
      %5607 = vmatprep.mubr.bf16.mxu0 %v5146
      %5608 = vmatmul.mubr.bf16.gmra.mxu0 %v5145
      %v5609 = vpop.f32.mrf.mxu0
      %v5610 = vadd.f32 %v5208, %v5609
      %v5611 = vpop.f32.mrf.mxu0
      %v5612 = vadd.f32 %v5212, %v5611
      %v5613 = vpop.f32.mrf.mxu0
      %v5614 = vadd.f32 %v5208, %v5613
      %v5615 = vpop.f32.mrf.mxu0
      %v5616 = vadd.f32 %v5212, %v5615
      %5617 = vmatprep.mubr.bf16.mxu0 %v5148
      %5618 = vmatmul.mubr.bf16.gmra.mxu0 %v5147
      %v5619 = vpop.f32.mrf.mxu0
      %v5620 = vadd.f32 %v5208, %v5619
      %v5621 = vpop.f32.mrf.mxu0
      %v5622 = vadd.f32 %v5212, %v5621
      %v5623 = vpop.f32.mrf.mxu0
      %v5624 = vadd.f32 %v5208, %v5623
      %v5625 = vpop.f32.mrf.mxu0
      %v5626 = vadd.f32 %v5212, %v5625
      %5627 = vmatprep.mubr.bf16.mxu0 %v5150
      %5628 = vmatmul.mubr.bf16.gmra.mxu0 %v5149
      %v5629 = vpop.f32.mrf.mxu0
      %v5630 = vadd.f32 %v5208, %v5629
      %v5631 = vpop.f32.mrf.mxu0
      %v5632 = vadd.f32 %v5212, %v5631
      %v5633 = vpop.f32.mrf.mxu0
      %v5634 = vadd.f32 %v5208, %v5633
      %v5635 = vpop.f32.mrf.mxu0
      %v5636 = vadd.f32 %v5212, %v5635
      %5637 = vmatprep.mubr.bf16.mxu0 %v5152
      %5638 = vmatmul.mubr.bf16.gmra.mxu0 %v5151
      %v5639 = vpop.f32.mrf.mxu0
      %v5640 = vadd.f32 %v5208, %v5639
      %v5641 = vpop.f32.mrf.mxu0
      %v5642 = vadd.f32 %v5212, %v5641
      %v5643 = vpop.f32.mrf.mxu0
      %v5644 = vadd.f32 %v5208, %v5643
      %v5645 = vpop.f32.mrf.mxu0
      %v5646 = vadd.f32 %v5212, %v5645
      %5647 = vmatprep.mubr.bf16.mxu0 %v5154
      %5648 = vmatmul.mubr.bf16.gmra.mxu0 %v5153
      %v5649 = vpop.f32.mrf.mxu0
      %v5650 = vadd.f32 %v5208, %v5649
      %v5651 = vpop.f32.mrf.mxu0
      %v5652 = vadd.f32 %v5212, %v5651
      %v5653 = vpop.f32.mrf.mxu0
      %v5654 = vadd.f32 %v5208, %v5653
      %v5655 = vpop.f32.mrf.mxu0
      %v5656 = vadd.f32 %v5212, %v5655
      %5657 = vmatprep.mubr.bf16.mxu0 %v5156
      %5658 = vmatmul.mubr.bf16.gmra.mxu0 %v5155
      %v5659 = vpop.f32.mrf.mxu0
      %v5660 = vadd.f32 %v5208, %v5659
      %v5661 = vpop.f32.mrf.mxu0
      %v5662 = vadd.f32 %v5212, %v5661
      %v5663 = vpop.f32.mrf.mxu0
      %v5664 = vadd.f32 %v5208, %v5663
      %v5665 = vpop.f32.mrf.mxu0
      %v5666 = vadd.f32 %v5212, %v5665
      %5667 = vmatprep.mubr.bf16.mxu0 %v5158
      %5668 = vmatmul.mubr.bf16.gmra.mxu0 %v5157
      %v5669 = vpop.f32.mrf.mxu0
      %v5670 = vadd.f32 %v5208, %v5669
      %v5671 = vpop.f32.mrf.mxu0
      %v5672 = vadd.f32 %v5212, %v5671
      %v5673 = vpop.f32.mrf.mxu0
      %v5674 = vadd.f32 %v5208, %v5673
      %v5675 = vpop.f32.mrf.mxu0
      %v5676 = vadd.f32 %v5212, %v5675
      %5677 = vmatprep.mubr.bf16.mxu0 %v5160
      %5678 = vmatmul.mubr.bf16.gmra.mxu0 %v5159
      %v5679 = vpop.f32.mrf.mxu0
      %v5680 = vadd.f32 %v5208, %v5679
      %v5681 = vpop.f32.mrf.mxu0
      %v5682 = vadd.f32 %v5212, %v5681
      %v5683 = vpop.f32.mrf.mxu0
      %v5684 = vadd.f32 %v5208, %v5683
      %v5685 = vpop.f32.mrf.mxu0
      %v5686 = vadd.f32 %v5212, %v5685
      %5687 = vmatprep.mubr.bf16.mxu0 %v5162
      %5688 = vmatmul.mubr.bf16.gmra.mxu0 %v5161
      %v5689 = vpop.f32.mrf.mxu0
      %v5690 = vadd.f32 %v5208, %v5689
      %v5691 = vpop.f32.mrf.mxu0
      %v5692 = vadd.f32 %v5212, %v5691
      %v5693 = vpop.f32.mrf.mxu0
      %v5694 = vadd.f32 %v5208, %v5693
      %v5695 = vpop.f32.mrf.mxu0
      %v5696 = vadd.f32 %v5212, %v5695
      %5697 = vmatprep.mubr.bf16.mxu0 %v5164
      %5698 = vmatmul.mubr.bf16.gmra.mxu0 %v5163
      %v5699 = vpop.f32.mrf.mxu0
      %v5700 = vadd.f32 %v5208, %v5699
      %v5701 = vpop.f32.mrf.mxu0
      %v5702 = vadd.f32 %v5212, %v5701
      %v5703 = vpop.f32.mrf.mxu0
      %v5704 = vadd.f32 %v5208, %v5703
      %v5705 = vpop.f32.mrf.mxu0
      %v5706 = vadd.f32 %v5212, %v5705
      %5707 = vmatprep.mubr.bf16.mxu0 %v5166
      %5708 = vmatmul.mubr.bf16.gmra.mxu0 %v5165
      %v5709 = vpop.f32.mrf.mxu0
      %v5710 = vadd.f32 %v5208, %v5709
      %v5711 = vpop.f32.mrf.mxu0
      %v5712 = vadd.f32 %v5212, %v5711
      %v5713 = vpop.f32.mrf.mxu0
      %v5714 = vadd.f32 %v5208, %v5713
      %v5715 = vpop.f32.mrf.mxu0
      %v5716 = vadd.f32 %v5212, %v5715
      %5717 = vmatprep.mubr.bf16.mxu0 %v5168
      %5718 = vmatmul.mubr.bf16.gmra.mxu0 %v5167
      %v5719 = vpop.f32.mrf.mxu0
      %v5720 = vadd.f32 %v5208, %v5719
      %v5721 = vpop.f32.mrf.mxu0
      %v5722 = vadd.f32 %v5212, %v5721
      %v5723 = vpop.f32.mrf.mxu0
      %v5724 = vadd.f32 %v5208, %v5723
      %v5725 = vpop.f32.mrf.mxu0
      %v5726 = vadd.f32 %v5212, %v5725
      %5727 = vdwg.mxu0
      %v5728 = vunpack.c.l.bf16 %v2007
      %v5729 = vunpack.c.l.bf16 %v2008
      %v5730 = vunpack.c.h.bf16 %v2007
      %v5731 = vunpack.c.h.bf16 %v2008
      %v5732 = vunpack.c.l.bf16 %v2009
      %v5733 = vunpack.c.l.bf16 %v2010
      %v5734 = vunpack.c.h.bf16 %v2009
      %v5735 = vunpack.c.h.bf16 %v2010
      %v5736 = vunpack.c.l.bf16 %v2011
      %v5737 = vunpack.c.l.bf16 %v2012
      %v5738 = vunpack.c.h.bf16 %v2011
      %v5739 = vunpack.c.h.bf16 %v2012
      %v5740 = vunpack.c.l.bf16 %v2013
      %v5741 = vunpack.c.l.bf16 %v2014
      %v5742 = vunpack.c.h.bf16 %v2013
      %v5743 = vunpack.c.h.bf16 %v2014
      %v5744 = vunpack.c.l.bf16 %v2015
      %v5745 = vunpack.c.l.bf16 %v2016
      %v5746 = vunpack.c.h.bf16 %v2015
      %v5747 = vunpack.c.h.bf16 %v2016
      %v5748 = vunpack.c.l.bf16 %v2017
      %v5749 = vunpack.c.l.bf16 %v2018
      %v5750 = vunpack.c.h.bf16 %v2017
      %v5751 = vunpack.c.h.bf16 %v2018
      %v5752 = vunpack.c.l.bf16 %v2019
      %v5753 = vunpack.c.l.bf16 %v2020
      %v5754 = vunpack.c.h.bf16 %v2019
      %v5755 = vunpack.c.h.bf16 %v2020
      %v5756 = vunpack.c.l.bf16 %v2021
      %v5757 = vunpack.c.l.bf16 %v2022
      %v5758 = vunpack.c.h.bf16 %v2021
      %v5759 = vunpack.c.h.bf16 %v2022
      %v5760 = vunpack.c.l.bf16 %v2023
      %v5761 = vunpack.c.l.bf16 %v2024
      %v5762 = vunpack.c.h.bf16 %v2023
      %v5763 = vunpack.c.h.bf16 %v2024
      %v5764 = vunpack.c.l.bf16 %v2025
      %v5765 = vunpack.c.l.bf16 %v2026
      %v5766 = vunpack.c.h.bf16 %v2025
      %v5767 = vunpack.c.h.bf16 %v2026
      %v5768 = vunpack.c.l.bf16 %v2027
      %v5769 = vunpack.c.l.bf16 %v2028
      %v5770 = vunpack.c.h.bf16 %v2027
      %v5771 = vunpack.c.h.bf16 %v2028
      %v5772 = vunpack.c.l.bf16 %v2029
      %v5773 = vunpack.c.l.bf16 %v2030
      %v5774 = vunpack.c.h.bf16 %v2029
      %v5775 = vunpack.c.h.bf16 %v2030
      %v5776 = vunpack.c.l.bf16 %v2031
      %v5777 = vunpack.c.l.bf16 %v2032
      %v5778 = vunpack.c.h.bf16 %v2031
      %v5779 = vunpack.c.h.bf16 %v2032
      %v5780 = vunpack.c.l.bf16 %v2033
      %v5781 = vunpack.c.l.bf16 %v2034
      %v5782 = vunpack.c.h.bf16 %v2033
      %v5783 = vunpack.c.h.bf16 %v2034
      %v5784 = vunpack.c.l.bf16 %v2035
      %v5785 = vunpack.c.l.bf16 %v2036
      %v5786 = vunpack.c.h.bf16 %v2035
      %v5787 = vunpack.c.h.bf16 %v2036
      %v5788 = vunpack.c.l.bf16 %v2037
      %v5789 = vunpack.c.l.bf16 %v2038
      %v5790 = vunpack.c.h.bf16 %v2037
      %v5791 = vunpack.c.h.bf16 %v2038
      %v5792 = vunpack.c.l.bf16 %v2039
      %v5793 = vunpack.c.l.bf16 %v2040
      %v5794 = vunpack.c.h.bf16 %v2039
      %v5795 = vunpack.c.h.bf16 %v2040
      %v5796 = vunpack.c.l.bf16 %v2041
      %v5797 = vunpack.c.l.bf16 %v2042
      %v5798 = vunpack.c.h.bf16 %v2041
      %v5799 = vunpack.c.h.bf16 %v2042
      %v5800 = vunpack.c.l.bf16 %v2043
      %v5801 = vunpack.c.l.bf16 %v2044
      %v5802 = vunpack.c.h.bf16 %v2043
      %v5803 = vunpack.c.h.bf16 %v2044
      %v5804 = vunpack.c.l.bf16 %v2045
      %v5805 = vunpack.c.l.bf16 %v2046
      %v5806 = vunpack.c.h.bf16 %v2045
      %v5807 = vunpack.c.h.bf16 %v2046
      %v5808 = vunpack.c.l.bf16 %v2047
      %v5809 = vunpack.c.l.bf16 %v2048
      %v5810 = vunpack.c.h.bf16 %v2047
      %v5811 = vunpack.c.h.bf16 %v2048
      %v5812 = vunpack.c.l.bf16 %v2049
      %v5813 = vunpack.c.l.bf16 %v2050
      %v5814 = vunpack.c.h.bf16 %v2049
      %v5815 = vunpack.c.h.bf16 %v2050
      %v5816 = vunpack.c.l.bf16 %v2051
      %v5817 = vunpack.c.l.bf16 %v2052
      %v5818 = vunpack.c.h.bf16 %v2051
      %v5819 = vunpack.c.h.bf16 %v2052
      %v5820 = vunpack.c.l.bf16 %v2053
      %v5821 = vunpack.c.l.bf16 %v2054
      %v5822 = vunpack.c.h.bf16 %v2053
      %v5823 = vunpack.c.h.bf16 %v2054
      %v5824 = vunpack.c.l.bf16 %v2055
      %v5825 = vunpack.c.l.bf16 %v2056
      %v5826 = vunpack.c.h.bf16 %v2055
      %v5827 = vunpack.c.h.bf16 %v2056
      %v5828 = vunpack.c.l.bf16 %v2057
      %v5829 = vunpack.c.l.bf16 %v2058
      %v5830 = vunpack.c.h.bf16 %v2057
      %v5831 = vunpack.c.h.bf16 %v2058
      %v5832 = vunpack.c.l.bf16 %v2059
      %v5833 = vunpack.c.l.bf16 %v2060
      %v5834 = vunpack.c.h.bf16 %v2059
      %v5835 = vunpack.c.h.bf16 %v2060
      %v5836 = vunpack.c.l.bf16 %v2061
      %v5837 = vunpack.c.l.bf16 %v2062
      %v5838 = vunpack.c.h.bf16 %v2061
      %v5839 = vunpack.c.h.bf16 %v2062
      %v5840 = vunpack.c.l.bf16 %v2063
      %v5841 = vunpack.c.l.bf16 %v2064
      %v5842 = vunpack.c.h.bf16 %v2063
      %v5843 = vunpack.c.h.bf16 %v2064
      %v5844 = vunpack.c.l.bf16 %v2065
      %v5845 = vunpack.c.l.bf16 %v2066
      %v5846 = vunpack.c.h.bf16 %v2065
      %v5847 = vunpack.c.h.bf16 %v2066
      %v5848 = vunpack.c.l.bf16 %v2067
      %v5849 = vunpack.c.l.bf16 %v2068
      %v5850 = vunpack.c.h.bf16 %v2067
      %v5851 = vunpack.c.h.bf16 %v2068
      %v5852 = vunpack.c.l.bf16 %v2069
      %v5853 = vunpack.c.l.bf16 %v2070
      %v5854 = vunpack.c.h.bf16 %v2069
      %v5855 = vunpack.c.h.bf16 %v2070
      %v5856 = vadd.f32 %v5410, %v5728
      %v5857 = vadd.f32 %v5412, %v5729
      %v5858 = vadd.f32 %v5414, %v5730
      %v5859 = vadd.f32 %v5416, %v5731
      %v5860 = vadd.f32 %v5420, %v5732
      %v5861 = vadd.f32 %v5422, %v5733
      %v5862 = vadd.f32 %v5424, %v5734
      %v5863 = vadd.f32 %v5426, %v5735
      %v5864 = vadd.f32 %v5430, %v5736
      %v5865 = vadd.f32 %v5432, %v5737
      %v5866 = vadd.f32 %v5434, %v5738
      %v5867 = vadd.f32 %v5436, %v5739
      %v5868 = vadd.f32 %v5440, %v5740
      %v5869 = vadd.f32 %v5442, %v5741
      %v5870 = vadd.f32 %v5444, %v5742
      %v5871 = vadd.f32 %v5446, %v5743
      %v5872 = vadd.f32 %v5450, %v5744
      %v5873 = vadd.f32 %v5452, %v5745
      %v5874 = vadd.f32 %v5454, %v5746
      %v5875 = vadd.f32 %v5456, %v5747
      %v5876 = vadd.f32 %v5460, %v5748
      %v5877 = vadd.f32 %v5462, %v5749
      %v5878 = vadd.f32 %v5464, %v5750
      %v5879 = vadd.f32 %v5466, %v5751
      %v5880 = vadd.f32 %v5470, %v5752
      %v5881 = vadd.f32 %v5472, %v5753
      %v5882 = vadd.f32 %v5474, %v5754
      %v5883 = vadd.f32 %v5476, %v5755
      %v5884 = vadd.f32 %v5480, %v5756
      %v5885 = vadd.f32 %v5482, %v5757
      %v5886 = vadd.f32 %v5484, %v5758
      %v5887 = vadd.f32 %v5486, %v5759
      %v5888 = vadd.f32 %v5490, %v5760
      %v5889 = vadd.f32 %v5492, %v5761
      %v5890 = vadd.f32 %v5494, %v5762
      %v5891 = vadd.f32 %v5496, %v5763
      %v5892 = vadd.f32 %v5500, %v5764
      %v5893 = vadd.f32 %v5502, %v5765
      %v5894 = vadd.f32 %v5504, %v5766
      %v5895 = vadd.f32 %v5506, %v5767
      %v5896 = vadd.f32 %v5510, %v5768
      %v5897 = vadd.f32 %v5512, %v5769
      %v5898 = vadd.f32 %v5514, %v5770
      %v5899 = vadd.f32 %v5516, %v5771
      %v5900 = vadd.f32 %v5520, %v5772
      %v5901 = vadd.f32 %v5522, %v5773
      %v5902 = vadd.f32 %v5524, %v5774
      %v5903 = vadd.f32 %v5526, %v5775
      %v5904 = vadd.f32 %v5530, %v5776
      %v5905 = vadd.f32 %v5532, %v5777
      %v5906 = vadd.f32 %v5534, %v5778
      %v5907 = vadd.f32 %v5536, %v5779
      %v5908 = vadd.f32 %v5540, %v5780
      %v5909 = vadd.f32 %v5542, %v5781
      %v5910 = vadd.f32 %v5544, %v5782
      %v5911 = vadd.f32 %v5546, %v5783
      %v5912 = vadd.f32 %v5550, %v5784
      %v5913 = vadd.f32 %v5552, %v5785
      %v5914 = vadd.f32 %v5554, %v5786
      %v5915 = vadd.f32 %v5556, %v5787
      %v5916 = vadd.f32 %v5560, %v5788
      %v5917 = vadd.f32 %v5562, %v5789
      %v5918 = vadd.f32 %v5564, %v5790
      %v5919 = vadd.f32 %v5566, %v5791
      %v5920 = vadd.f32 %v5570, %v5792
      %v5921 = vadd.f32 %v5572, %v5793
      %v5922 = vadd.f32 %v5574, %v5794
      %v5923 = vadd.f32 %v5576, %v5795
      %v5924 = vadd.f32 %v5580, %v5796
      %v5925 = vadd.f32 %v5582, %v5797
      %v5926 = vadd.f32 %v5584, %v5798
      %v5927 = vadd.f32 %v5586, %v5799
      %v5928 = vadd.f32 %v5590, %v5800
      %v5929 = vadd.f32 %v5592, %v5801
      %v5930 = vadd.f32 %v5594, %v5802
      %v5931 = vadd.f32 %v5596, %v5803
      %v5932 = vadd.f32 %v5600, %v5804
      %v5933 = vadd.f32 %v5602, %v5805
      %v5934 = vadd.f32 %v5604, %v5806
      %v5935 = vadd.f32 %v5606, %v5807
      %v5936 = vadd.f32 %v5610, %v5808
      %v5937 = vadd.f32 %v5612, %v5809
      %v5938 = vadd.f32 %v5614, %v5810
      %v5939 = vadd.f32 %v5616, %v5811
      %v5940 = vadd.f32 %v5620, %v5812
      %v5941 = vadd.f32 %v5622, %v5813
      %v5942 = vadd.f32 %v5624, %v5814
      %v5943 = vadd.f32 %v5626, %v5815
      %v5944 = vadd.f32 %v5630, %v5816
      %v5945 = vadd.f32 %v5632, %v5817
      %v5946 = vadd.f32 %v5634, %v5818
      %v5947 = vadd.f32 %v5636, %v5819
      %v5948 = vadd.f32 %v5640, %v5820
      %v5949 = vadd.f32 %v5642, %v5821
      %v5950 = vadd.f32 %v5644, %v5822
      %v5951 = vadd.f32 %v5646, %v5823
      %v5952 = vadd.f32 %v5650, %v5824
      %v5953 = vadd.f32 %v5652, %v5825
      %v5954 = vadd.f32 %v5654, %v5826
      %v5955 = vadd.f32 %v5656, %v5827
      %v5956 = vadd.f32 %v5660, %v5828
      %v5957 = vadd.f32 %v5662, %v5829
      %v5958 = vadd.f32 %v5664, %v5830
      %v5959 = vadd.f32 %v5666, %v5831
      %v5960 = vadd.f32 %v5670, %v5832
      %v5961 = vadd.f32 %v5672, %v5833
      %v5962 = vadd.f32 %v5674, %v5834
      %v5963 = vadd.f32 %v5676, %v5835
      %v5964 = vadd.f32 %v5680, %v5836
      %v5965 = vadd.f32 %v5682, %v5837
      %v5966 = vadd.f32 %v5684, %v5838
      %v5967 = vadd.f32 %v5686, %v5839
      %v5968 = vadd.f32 %v5690, %v5840
      %v5969 = vadd.f32 %v5692, %v5841
      %v5970 = vadd.f32 %v5694, %v5842
      %v5971 = vadd.f32 %v5696, %v5843
      %v5972 = vadd.f32 %v5700, %v5844
      %v5973 = vadd.f32 %v5702, %v5845
      %v5974 = vadd.f32 %v5704, %v5846
      %v5975 = vadd.f32 %v5706, %v5847
      %v5976 = vadd.f32 %v5710, %v5848
      %v5977 = vadd.f32 %v5712, %v5849
      %v5978 = vadd.f32 %v5714, %v5850
      %v5979 = vadd.f32 %v5716, %v5851
      %v5980 = vadd.f32 %v5720, %v5852
      %v5981 = vadd.f32 %v5722, %v5853
      %v5982 = vadd.f32 %v5724, %v5854
      %v5983 = vadd.f32 %v5726, %v5855
      %v5984 = vmax.f32 %v5856, 0.0
      %v5985 = vmax.f32 %v5857, 0.0
      %v5986 = vmax.f32 %v5858, 0.0
      %v5987 = vmax.f32 %v5859, 0.0
      %v5988 = vmax.f32 %v5860, 0.0
      %v5989 = vmax.f32 %v5861, 0.0
      %v5990 = vmax.f32 %v5862, 0.0
      %v5991 = vmax.f32 %v5863, 0.0
      %v5992 = vmax.f32 %v5864, 0.0
      %v5993 = vmax.f32 %v5865, 0.0
      %v5994 = vmax.f32 %v5866, 0.0
      %v5995 = vmax.f32 %v5867, 0.0
      %v5996 = vmax.f32 %v5868, 0.0
      %v5997 = vmax.f32 %v5869, 0.0
      %v5998 = vmax.f32 %v5870, 0.0
      %v5999 = vmax.f32 %v5871, 0.0
      %v6000 = vmax.f32 %v5872, 0.0
      %v6001 = vmax.f32 %v5873, 0.0
      %v6002 = vmax.f32 %v5874, 0.0
      %v6003 = vmax.f32 %v5875, 0.0
      %v6004 = vmax.f32 %v5876, 0.0
      %v6005 = vmax.f32 %v5877, 0.0
      %v6006 = vmax.f32 %v5878, 0.0
      %v6007 = vmax.f32 %v5879, 0.0
      %v6008 = vmax.f32 %v5880, 0.0
      %v6009 = vmax.f32 %v5881, 0.0
      %v6010 = vmax.f32 %v5882, 0.0
      %v6011 = vmax.f32 %v5883, 0.0
      %v6012 = vmax.f32 %v5884, 0.0
      %v6013 = vmax.f32 %v5885, 0.0
      %v6014 = vmax.f32 %v5886, 0.0
      %v6015 = vmax.f32 %v5887, 0.0
      %v6016 = vmax.f32 %v5888, 0.0
      %v6017 = vmax.f32 %v5889, 0.0
      %v6018 = vmax.f32 %v5890, 0.0
      %v6019 = vmax.f32 %v5891, 0.0
      %v6020 = vmax.f32 %v5892, 0.0
      %v6021 = vmax.f32 %v5893, 0.0
      %v6022 = vmax.f32 %v5894, 0.0
      %v6023 = vmax.f32 %v5895, 0.0
      %v6024 = vmax.f32 %v5896, 0.0
      %v6025 = vmax.f32 %v5897, 0.0
      %v6026 = vmax.f32 %v5898, 0.0
      %v6027 = vmax.f32 %v5899, 0.0
      %v6028 = vmax.f32 %v5900, 0.0
      %v6029 = vmax.f32 %v5901, 0.0
      %v6030 = vmax.f32 %v5902, 0.0
      %v6031 = vmax.f32 %v5903, 0.0
      %v6032 = vmax.f32 %v5904, 0.0
      %v6033 = vmax.f32 %v5905, 0.0
      %v6034 = vmax.f32 %v5906, 0.0
      %v6035 = vmax.f32 %v5907, 0.0
      %v6036 = vmax.f32 %v5908, 0.0
      %v6037 = vmax.f32 %v5909, 0.0
      %v6038 = vmax.f32 %v5910, 0.0
      %v6039 = vmax.f32 %v5911, 0.0
      %v6040 = vmax.f32 %v5912, 0.0
      %v6041 = vmax.f32 %v5913, 0.0
      %v6042 = vmax.f32 %v5914, 0.0
      %v6043 = vmax.f32 %v5915, 0.0
      %v6044 = vmax.f32 %v5916, 0.0
      %v6045 = vmax.f32 %v5917, 0.0
      %v6046 = vmax.f32 %v5918, 0.0
      %v6047 = vmax.f32 %v5919, 0.0
      %v6048 = vmax.f32 %v5920, 0.0
      %v6049 = vmax.f32 %v5921, 0.0
      %v6050 = vmax.f32 %v5922, 0.0
      %v6051 = vmax.f32 %v5923, 0.0
      %v6052 = vmax.f32 %v5924, 0.0
      %v6053 = vmax.f32 %v5925, 0.0
      %v6054 = vmax.f32 %v5926, 0.0
      %v6055 = vmax.f32 %v5927, 0.0
      %v6056 = vmax.f32 %v5928, 0.0
      %v6057 = vmax.f32 %v5929, 0.0
      %v6058 = vmax.f32 %v5930, 0.0
      %v6059 = vmax.f32 %v5931, 0.0
      %v6060 = vmax.f32 %v5932, 0.0
      %v6061 = vmax.f32 %v5933, 0.0
      %v6062 = vmax.f32 %v5934, 0.0
      %v6063 = vmax.f32 %v5935, 0.0
      %v6064 = vmax.f32 %v5936, 0.0
      %v6065 = vmax.f32 %v5937, 0.0
      %v6066 = vmax.f32 %v5938, 0.0
      %v6067 = vmax.f32 %v5939, 0.0
      %v6068 = vmax.f32 %v5940, 0.0
      %v6069 = vmax.f32 %v5941, 0.0
      %v6070 = vmax.f32 %v5942, 0.0
      %v6071 = vmax.f32 %v5943, 0.0
      %v6072 = vmax.f32 %v5944, 0.0
      %v6073 = vmax.f32 %v5945, 0.0
      %v6074 = vmax.f32 %v5946, 0.0
      %v6075 = vmax.f32 %v5947, 0.0
      %v6076 = vmax.f32 %v5948, 0.0
      %v6077 = vmax.f32 %v5949, 0.0
      %v6078 = vmax.f32 %v5950, 0.0
      %v6079 = vmax.f32 %v5951, 0.0
      %v6080 = vmax.f32 %v5952, 0.0
      %v6081 = vmax.f32 %v5953, 0.0
      %v6082 = vmax.f32 %v5954, 0.0
      %v6083 = vmax.f32 %v5955, 0.0
      %v6084 = vmax.f32 %v5956, 0.0
      %v6085 = vmax.f32 %v5957, 0.0
      %v6086 = vmax.f32 %v5958, 0.0
      %v6087 = vmax.f32 %v5959, 0.0
      %v6088 = vmax.f32 %v5960, 0.0
      %v6089 = vmax.f32 %v5961, 0.0
      %v6090 = vmax.f32 %v5962, 0.0
      %v6091 = vmax.f32 %v5963, 0.0
      %v6092 = vmax.f32 %v5964, 0.0
      %v6093 = vmax.f32 %v5965, 0.0
      %v6094 = vmax.f32 %v5966, 0.0
      %v6095 = vmax.f32 %v5967, 0.0
      %v6096 = vmax.f32 %v5968, 0.0
      %v6097 = vmax.f32 %v5969, 0.0
      %v6098 = vmax.f32 %v5970, 0.0
      %v6099 = vmax.f32 %v5971, 0.0
      %v6100 = vmax.f32 %v5972, 0.0
      %v6101 = vmax.f32 %v5973, 0.0
      %v6102 = vmax.f32 %v5974, 0.0
      %v6103 = vmax.f32 %v5975, 0.0
      %v6104 = vmax.f32 %v5976, 0.0
      %v6105 = vmax.f32 %v5977, 0.0
      %v6106 = vmax.f32 %v5978, 0.0
      %v6107 = vmax.f32 %v5979, 0.0
      %v6108 = vmax.f32 %v5980, 0.0
      %v6109 = vmax.f32 %v5981, 0.0
      %v6110 = vmax.f32 %v5982, 0.0
      %v6111 = vmax.f32 %v5983, 0.0
      %v6112 = vpack.c.bf16 %v5986, %v5984
      %v6113 = vpack.c.bf16 %v5987, %v5985
      %v6114 = vpack.c.bf16 %v5990, %v5988
      %v6115 = vpack.c.bf16 %v5991, %v5989
      %v6116 = vpack.c.bf16 %v5994, %v5992
      %v6117 = vpack.c.bf16 %v5995, %v5993
      %v6118 = vpack.c.bf16 %v5998, %v5996
      %v6119 = vpack.c.bf16 %v5999, %v5997
      %v6120 = vpack.c.bf16 %v6002, %v6000
      %v6121 = vpack.c.bf16 %v6003, %v6001
      %v6122 = vpack.c.bf16 %v6006, %v6004
      %v6123 = vpack.c.bf16 %v6007, %v6005
      %v6124 = vpack.c.bf16 %v6010, %v6008
      %v6125 = vpack.c.bf16 %v6011, %v6009
      %v6126 = vpack.c.bf16 %v6014, %v6012
      %v6127 = vpack.c.bf16 %v6015, %v6013
      %v6128 = vpack.c.bf16 %v6018, %v6016
      %v6129 = vpack.c.bf16 %v6019, %v6017
      %v6130 = vpack.c.bf16 %v6022, %v6020
      %v6131 = vpack.c.bf16 %v6023, %v6021
      %v6132 = vpack.c.bf16 %v6026, %v6024
      %v6133 = vpack.c.bf16 %v6027, %v6025
      %v6134 = vpack.c.bf16 %v6030, %v6028
      %v6135 = vpack.c.bf16 %v6031, %v6029
      %v6136 = vpack.c.bf16 %v6034, %v6032
      %v6137 = vpack.c.bf16 %v6035, %v6033
      %v6138 = vpack.c.bf16 %v6038, %v6036
      %v6139 = vpack.c.bf16 %v6039, %v6037
      %v6140 = vpack.c.bf16 %v6042, %v6040
      %v6141 = vpack.c.bf16 %v6043, %v6041
      %v6142 = vpack.c.bf16 %v6046, %v6044
      %v6143 = vpack.c.bf16 %v6047, %v6045
      %v6144 = vpack.c.bf16 %v6050, %v6048
      %v6145 = vpack.c.bf16 %v6051, %v6049
      %v6146 = vpack.c.bf16 %v6054, %v6052
      %v6147 = vpack.c.bf16 %v6055, %v6053
      %v6148 = vpack.c.bf16 %v6058, %v6056
      %v6149 = vpack.c.bf16 %v6059, %v6057
      %v6150 = vpack.c.bf16 %v6062, %v6060
      %v6151 = vpack.c.bf16 %v6063, %v6061
      %v6152 = vpack.c.bf16 %v6066, %v6064
      %v6153 = vpack.c.bf16 %v6067, %v6065
      %v6154 = vpack.c.bf16 %v6070, %v6068
      %v6155 = vpack.c.bf16 %v6071, %v6069
      %v6156 = vpack.c.bf16 %v6074, %v6072
      %v6157 = vpack.c.bf16 %v6075, %v6073
      %v6158 = vpack.c.bf16 %v6078, %v6076
      %v6159 = vpack.c.bf16 %v6079, %v6077
      %v6160 = vpack.c.bf16 %v6082, %v6080
      %v6161 = vpack.c.bf16 %v6083, %v6081
      %v6162 = vpack.c.bf16 %v6086, %v6084
      %v6163 = vpack.c.bf16 %v6087, %v6085
      %v6164 = vpack.c.bf16 %v6090, %v6088
      %v6165 = vpack.c.bf16 %v6091, %v6089
      %v6166 = vpack.c.bf16 %v6094, %v6092
      %v6167 = vpack.c.bf16 %v6095, %v6093
      %v6168 = vpack.c.bf16 %v6098, %v6096
      %v6169 = vpack.c.bf16 %v6099, %v6097
      %v6170 = vpack.c.bf16 %v6102, %v6100
      %v6171 = vpack.c.bf16 %v6103, %v6101
      %v6172 = vpack.c.bf16 %v6106, %v6104
      %v6173 = vpack.c.bf16 %v6107, %v6105
      %v6174 = vpack.c.bf16 %v6110, %v6108
      %v6175 = vpack.c.bf16 %v6111, %v6109
      %s6176 = scalar_lea.vmem %s3, 1280
      %v6177 = vld [vmem:[%s6176] sm:$0xff]
      %v6178 = vld [vmem:[%s6176 + $0x8] sm:$0xff]
      %v6179 = vld [vmem:[%s6176 + $0x10] sm:$0xff]
      %v6180 = vld [vmem:[%s6176 + $0x18] sm:$0xff]
      %v6181 = vld [vmem:[%s6176 + $0x20] sm:$0xff]
      %v6182 = vld [vmem:[%s6176 + $0x28] sm:$0xff]
      %v6183 = vld [vmem:[%s6176 + $0x30] sm:$0xff]
      %v6184 = vld [vmem:[%s6176 + $0x38] sm:$0xff]
      %v6185 = vld [vmem:[%s6176 + $0x40] sm:$0xff]
      %v6186 = vld [vmem:[%s6176 + $0x48] sm:$0xff]
      %v6187 = vld [vmem:[%s6176 + $0x50] sm:$0xff]
      %v6188 = vld [vmem:[%s6176 + $0x58] sm:$0xff]
      %v6189 = vld [vmem:[%s6176 + $0x60] sm:$0xff]
      %v6190 = vld [vmem:[%s6176 + $0x68] sm:$0xff]
      %v6191 = vld [vmem:[%s6176 + $0x70] sm:$0xff]
      %v6192 = vld [vmem:[%s6176 + $0x78] sm:$0xff]
      %v6193 = vld [vmem:[%s6176 + $0x80] sm:$0xff]
      %v6194 = vld [vmem:[%s6176 + $0x88] sm:$0xff]
      %v6195 = vld [vmem:[%s6176 + $0x90] sm:$0xff]
      %v6196 = vld [vmem:[%s6176 + $0x98] sm:$0xff]
      %v6197 = vld [vmem:[%s6176 + $0xa0] sm:$0xff]
      %v6198 = vld [vmem:[%s6176 + $0xa8] sm:$0xff]
      %v6199 = vld [vmem:[%s6176 + $0xb0] sm:$0xff]
      %v6200 = vld [vmem:[%s6176 + $0xb8] sm:$0xff]
      %v6201 = vld [vmem:[%s6176 + $0xc0] sm:$0xff]
      %v6202 = vld [vmem:[%s6176 + $0xc8] sm:$0xff]
      %v6203 = vld [vmem:[%s6176 + $0xd0] sm:$0xff]
      %v6204 = vld [vmem:[%s6176 + $0xd8] sm:$0xff]
      %v6205 = vld [vmem:[%s6176 + $0xe0] sm:$0xff]
      %v6206 = vld [vmem:[%s6176 + $0xe8] sm:$0xff]
      %v6207 = vld [vmem:[%s6176 + $0xf0] sm:$0xff]
      %v6208 = vld [vmem:[%s6176 + $0xf8] sm:$0xff]
      %s6209 = scalar_lea.vmem %s4, 10
      %v6210 = vld [vmem:[%s6209] sm:$0x3]
      %v6212 = vlaneseq
      %v6213 = vshrl.u32 %v6212, 7
      %v6214 = vsub.s32 0, %v6213
      %v6215 = vrot.slane %v6210, %v6214
      %v6216 = vlaneseq
      %v6217 = vshrl.u32 %v6216, 7
      %v6218 = vsub.s32 1, %v6217
      %v6219 = vrot.slane %v6210, %v6218
      %v6254 = vunpack.c.l.b16 %v6177
      %v6255 = vunpack.c.h.b16 %v6177
      %v6256 = vunpack.c.l.b16 %v6178
      %v6257 = vunpack.c.h.b16 %v6178
      %v6258 = vunpack.c.l.b16 %v6179
      %v6259 = vunpack.c.h.b16 %v6179
      %v6260 = vunpack.c.l.b16 %v6180
      %v6261 = vunpack.c.h.b16 %v6180
      %v6262 = vunpack.c.l.b16 %v6181
      %v6263 = vunpack.c.h.b16 %v6181
      %v6264 = vunpack.c.l.b16 %v6182
      %v6265 = vunpack.c.h.b16 %v6182
      %v6266 = vunpack.c.l.b16 %v6183
      %v6267 = vunpack.c.h.b16 %v6183
      %v6268 = vunpack.c.l.b16 %v6184
      %v6269 = vunpack.c.h.b16 %v6184
      %v6270 = vunpack.c.l.b16 %v6185
      %v6271 = vunpack.c.h.b16 %v6185
      %v6272 = vunpack.c.l.b16 %v6186
      %v6273 = vunpack.c.h.b16 %v6186
      %v6274 = vunpack.c.l.b16 %v6187
      %v6275 = vunpack.c.h.b16 %v6187
      %v6276 = vunpack.c.l.b16 %v6188
      %v6277 = vunpack.c.h.b16 %v6188
      %v6278 = vunpack.c.l.b16 %v6189
      %v6279 = vunpack.c.h.b16 %v6189
      %v6280 = vunpack.c.l.b16 %v6190
      %v6281 = vunpack.c.h.b16 %v6190
      %v6282 = vunpack.c.l.b16 %v6191
      %v6283 = vunpack.c.h.b16 %v6191
      %v6284 = vunpack.c.l.b16 %v6192
      %v6285 = vunpack.c.h.b16 %v6192
      %v6286 = vunpack.c.l.b16 %v6193
      %v6287 = vunpack.c.h.b16 %v6193
      %v6288 = vunpack.c.l.b16 %v6194
      %v6289 = vunpack.c.h.b16 %v6194
      %v6290 = vunpack.c.l.b16 %v6195
      %v6291 = vunpack.c.h.b16 %v6195
      %v6292 = vunpack.c.l.b16 %v6196
      %v6293 = vunpack.c.h.b16 %v6196
      %v6294 = vunpack.c.l.b16 %v6197
      %v6295 = vunpack.c.h.b16 %v6197
      %v6296 = vunpack.c.l.b16 %v6198
      %v6297 = vunpack.c.h.b16 %v6198
      %v6298 = vunpack.c.l.b16 %v6199
      %v6299 = vunpack.c.h.b16 %v6199
      %v6300 = vunpack.c.l.b16 %v6200
      %v6301 = vunpack.c.h.b16 %v6200
      %v6302 = vunpack.c.l.b16 %v6201
      %v6303 = vunpack.c.h.b16 %v6201
      %v6304 = vunpack.c.l.b16 %v6202
      %v6305 = vunpack.c.h.b16 %v6202
      %v6306 = vunpack.c.l.b16 %v6203
      %v6307 = vunpack.c.h.b16 %v6203
      %v6308 = vunpack.c.l.b16 %v6204
      %v6309 = vunpack.c.h.b16 %v6204
      %v6310 = vunpack.c.l.b16 %v6205
      %v6311 = vunpack.c.h.b16 %v6205
      %v6312 = vunpack.c.l.b16 %v6206
      %v6313 = vunpack.c.h.b16 %v6206
      %v6314 = vunpack.c.l.b16 %v6207
      %v6315 = vunpack.c.h.b16 %v6207
      %v6316 = vunpack.c.l.b16 %v6208
      %v6317 = vunpack.c.h.b16 %v6208
      %v6318 = vpack.c.b16 %v6256, %v6254
      %v6319 = vpack.c.b16 %v6257, %v6255
      %v6320 = vpack.c.b16 %v6260, %v6258
      %v6321 = vpack.c.b16 %v6261, %v6259
      %v6322 = vpack.c.b16 %v6264, %v6262
      %v6323 = vpack.c.b16 %v6265, %v6263
      %v6324 = vpack.c.b16 %v6268, %v6266
      %v6325 = vpack.c.b16 %v6269, %v6267
      %v6326 = vpack.c.b16 %v6272, %v6270
      %v6327 = vpack.c.b16 %v6273, %v6271
      %v6328 = vpack.c.b16 %v6276, %v6274
      %v6329 = vpack.c.b16 %v6277, %v6275
      %v6330 = vpack.c.b16 %v6280, %v6278
      %v6331 = vpack.c.b16 %v6281, %v6279
      %v6332 = vpack.c.b16 %v6284, %v6282
      %v6333 = vpack.c.b16 %v6285, %v6283
      %v6334 = vpack.c.b16 %v6288, %v6286
      %v6335 = vpack.c.b16 %v6289, %v6287
      %v6336 = vpack.c.b16 %v6292, %v6290
      %v6337 = vpack.c.b16 %v6293, %v6291
      %v6338 = vpack.c.b16 %v6296, %v6294
      %v6339 = vpack.c.b16 %v6297, %v6295
      %v6340 = vpack.c.b16 %v6300, %v6298
      %v6341 = vpack.c.b16 %v6301, %v6299
      %v6342 = vpack.c.b16 %v6304, %v6302
      %v6343 = vpack.c.b16 %v6305, %v6303
      %v6344 = vpack.c.b16 %v6308, %v6306
      %v6345 = vpack.c.b16 %v6309, %v6307
      %v6346 = vpack.c.b16 %v6312, %v6310
      %v6347 = vpack.c.b16 %v6313, %v6311
      %v6348 = vpack.c.b16 %v6316, %v6314
      %v6349 = vpack.c.b16 %v6317, %v6315
      %6382 = vmatprep.subr.bf16.mxu0 %v6333
      %6383 = vmatpush1.bf16.msra.mxu0 %v6332
      %6384 = vmatprep.subr.bf16.mxu0 %v6331
      %6385 = vmatpush1.bf16.msra.mxu0 %v6330
      %6386 = vmatprep.subr.bf16.mxu0 %v6329
      %6387 = vmatpush1.bf16.msra.mxu0 %v6328
      %6388 = vmatprep.subr.bf16.mxu0 %v6327
      %6389 = vmatpush1.bf16.msra.mxu0 %v6326
      %6390 = vmatprep.subr.bf16.mxu0 %v6325
      %6391 = vmatpush1.bf16.msra.mxu0 %v6324
      %6392 = vmatprep.subr.bf16.mxu0 %v6323
      %6393 = vmatpush1.bf16.msra.mxu0 %v6322
      %6394 = vmatprep.subr.bf16.mxu0 %v6321
      %6395 = vmatpush1.bf16.msra.mxu0 %v6320
      %6396 = vmatprep.subr.bf16.mxu0 %v6319
      %6397 = vmatpush1.bf16.msra.mxu0 %v6318
      %6398 = vmatprep.subr.bf16.mxu0 %v6349
      %6399 = vmatpush2.bf16.msra.mxu0 %v6348
      %6400 = vmatprep.subr.bf16.mxu0 %v6347
      %6401 = vmatpush2.bf16.msra.mxu0 %v6346
      %6402 = vmatprep.subr.bf16.mxu0 %v6345
      %6403 = vmatpush2.bf16.msra.mxu0 %v6344
      %6404 = vmatprep.subr.bf16.mxu0 %v6343
      %6405 = vmatpush2.bf16.msra.mxu0 %v6342
      %6406 = vmatprep.subr.bf16.mxu0 %v6341
      %6407 = vmatpush2.bf16.msra.mxu0 %v6340
      %6408 = vmatprep.subr.bf16.mxu0 %v6339
      %6409 = vmatpush2.bf16.msra.mxu0 %v6338
      %6410 = vmatprep.subr.bf16.mxu0 %v6337
      %6411 = vmatpush2.bf16.msra.mxu0 %v6336
      %6412 = vmatprep.subr.bf16.mxu0 %v6335
      %6413 = vmatpush2.bf16.msra.mxu0 %v6334
      %6414 = vmatprep.mubr.bf16.mxu0 %v6113
      %6415 = vmatmul.mubr.bf16.gmra.mxu0 %v6112
      %v6416 = vpop.f32.mrf.mxu0
      %v6417 = vadd.f32 %v6215, %v6416
      %v6418 = vpop.f32.mrf.mxu0
      %v6419 = vadd.f32 %v6219, %v6418
      %v6420 = vpop.f32.mrf.mxu0
      %v6421 = vadd.f32 %v6215, %v6420
      %v6422 = vpop.f32.mrf.mxu0
      %v6423 = vadd.f32 %v6219, %v6422
      %6424 = vmatprep.mubr.bf16.mxu0 %v6115
      %6425 = vmatmul.mubr.bf16.gmra.mxu0 %v6114
      %v6426 = vpop.f32.mrf.mxu0
      %v6427 = vadd.f32 %v6215, %v6426
      %v6428 = vpop.f32.mrf.mxu0
      %v6429 = vadd.f32 %v6219, %v6428
      %v6430 = vpop.f32.mrf.mxu0
      %v6431 = vadd.f32 %v6215, %v6430
      %v6432 = vpop.f32.mrf.mxu0
      %v6433 = vadd.f32 %v6219, %v6432
      %6434 = vmatprep.mubr.bf16.mxu0 %v6117
      %6435 = vmatmul.mubr.bf16.gmra.mxu0 %v6116
      %v6436 = vpop.f32.mrf.mxu0
      %v6437 = vadd.f32 %v6215, %v6436
      %v6438 = vpop.f32.mrf.mxu0
      %v6439 = vadd.f32 %v6219, %v6438
      %v6440 = vpop.f32.mrf.mxu0
      %v6441 = vadd.f32 %v6215, %v6440
      %v6442 = vpop.f32.mrf.mxu0
      %v6443 = vadd.f32 %v6219, %v6442
      %6444 = vmatprep.mubr.bf16.mxu0 %v6119
      %6445 = vmatmul.mubr.bf16.gmra.mxu0 %v6118
      %v6446 = vpop.f32.mrf.mxu0
      %v6447 = vadd.f32 %v6215, %v6446
      %v6448 = vpop.f32.mrf.mxu0
      %v6449 = vadd.f32 %v6219, %v6448
      %v6450 = vpop.f32.mrf.mxu0
      %v6451 = vadd.f32 %v6215, %v6450
      %v6452 = vpop.f32.mrf.mxu0
      %v6453 = vadd.f32 %v6219, %v6452
      %6454 = vmatprep.mubr.bf16.mxu0 %v6121
      %6455 = vmatmul.mubr.bf16.gmra.mxu0 %v6120
      %v6456 = vpop.f32.mrf.mxu0
      %v6457 = vadd.f32 %v6215, %v6456
      %v6458 = vpop.f32.mrf.mxu0
      %v6459 = vadd.f32 %v6219, %v6458
      %v6460 = vpop.f32.mrf.mxu0
      %v6461 = vadd.f32 %v6215, %v6460
      %v6462 = vpop.f32.mrf.mxu0
      %v6463 = vadd.f32 %v6219, %v6462
      %6464 = vmatprep.mubr.bf16.mxu0 %v6123
      %6465 = vmatmul.mubr.bf16.gmra.mxu0 %v6122
      %v6466 = vpop.f32.mrf.mxu0
      %v6467 = vadd.f32 %v6215, %v6466
      %v6468 = vpop.f32.mrf.mxu0
      %v6469 = vadd.f32 %v6219, %v6468
      %v6470 = vpop.f32.mrf.mxu0
      %v6471 = vadd.f32 %v6215, %v6470
      %v6472 = vpop.f32.mrf.mxu0
      %v6473 = vadd.f32 %v6219, %v6472
      %6474 = vmatprep.mubr.bf16.mxu0 %v6125
      %6475 = vmatmul.mubr.bf16.gmra.mxu0 %v6124
      %v6476 = vpop.f32.mrf.mxu0
      %v6477 = vadd.f32 %v6215, %v6476
      %v6478 = vpop.f32.mrf.mxu0
      %v6479 = vadd.f32 %v6219, %v6478
      %v6480 = vpop.f32.mrf.mxu0
      %v6481 = vadd.f32 %v6215, %v6480
      %v6482 = vpop.f32.mrf.mxu0
      %v6483 = vadd.f32 %v6219, %v6482
      %6484 = vmatprep.mubr.bf16.mxu0 %v6127
      %6485 = vmatmul.mubr.bf16.gmra.mxu0 %v6126
      %v6486 = vpop.f32.mrf.mxu0
      %v6487 = vadd.f32 %v6215, %v6486
      %v6488 = vpop.f32.mrf.mxu0
      %v6489 = vadd.f32 %v6219, %v6488
      %v6490 = vpop.f32.mrf.mxu0
      %v6491 = vadd.f32 %v6215, %v6490
      %v6492 = vpop.f32.mrf.mxu0
      %v6493 = vadd.f32 %v6219, %v6492
      %6494 = vmatprep.mubr.bf16.mxu0 %v6129
      %6495 = vmatmul.mubr.bf16.gmra.mxu0 %v6128
      %v6496 = vpop.f32.mrf.mxu0
      %v6497 = vadd.f32 %v6215, %v6496
      %v6498 = vpop.f32.mrf.mxu0
      %v6499 = vadd.f32 %v6219, %v6498
      %v6500 = vpop.f32.mrf.mxu0
      %v6501 = vadd.f32 %v6215, %v6500
      %v6502 = vpop.f32.mrf.mxu0
      %v6503 = vadd.f32 %v6219, %v6502
      %6504 = vmatprep.mubr.bf16.mxu0 %v6131
      %6505 = vmatmul.mubr.bf16.gmra.mxu0 %v6130
      %v6506 = vpop.f32.mrf.mxu0
      %v6507 = vadd.f32 %v6215, %v6506
      %v6508 = vpop.f32.mrf.mxu0
      %v6509 = vadd.f32 %v6219, %v6508
      %v6510 = vpop.f32.mrf.mxu0
      %v6511 = vadd.f32 %v6215, %v6510
      %v6512 = vpop.f32.mrf.mxu0
      %v6513 = vadd.f32 %v6219, %v6512
      %6514 = vmatprep.mubr.bf16.mxu0 %v6133
      %6515 = vmatmul.mubr.bf16.gmra.mxu0 %v6132
      %v6516 = vpop.f32.mrf.mxu0
      %v6517 = vadd.f32 %v6215, %v6516
      %v6518 = vpop.f32.mrf.mxu0
      %v6519 = vadd.f32 %v6219, %v6518
      %v6520 = vpop.f32.mrf.mxu0
      %v6521 = vadd.f32 %v6215, %v6520
      %v6522 = vpop.f32.mrf.mxu0
      %v6523 = vadd.f32 %v6219, %v6522
      %6524 = vmatprep.mubr.bf16.mxu0 %v6135
      %6525 = vmatmul.mubr.bf16.gmra.mxu0 %v6134
      %v6526 = vpop.f32.mrf.mxu0
      %v6527 = vadd.f32 %v6215, %v6526
      %v6528 = vpop.f32.mrf.mxu0
      %v6529 = vadd.f32 %v6219, %v6528
      %v6530 = vpop.f32.mrf.mxu0
      %v6531 = vadd.f32 %v6215, %v6530
      %v6532 = vpop.f32.mrf.mxu0
      %v6533 = vadd.f32 %v6219, %v6532
      %6534 = vmatprep.mubr.bf16.mxu0 %v6137
      %6535 = vmatmul.mubr.bf16.gmra.mxu0 %v6136
      %v6536 = vpop.f32.mrf.mxu0
      %v6537 = vadd.f32 %v6215, %v6536
      %v6538 = vpop.f32.mrf.mxu0
      %v6539 = vadd.f32 %v6219, %v6538
      %v6540 = vpop.f32.mrf.mxu0
      %v6541 = vadd.f32 %v6215, %v6540
      %v6542 = vpop.f32.mrf.mxu0
      %v6543 = vadd.f32 %v6219, %v6542
      %6544 = vmatprep.mubr.bf16.mxu0 %v6139
      %6545 = vmatmul.mubr.bf16.gmra.mxu0 %v6138
      %v6546 = vpop.f32.mrf.mxu0
      %v6547 = vadd.f32 %v6215, %v6546
      %v6548 = vpop.f32.mrf.mxu0
      %v6549 = vadd.f32 %v6219, %v6548
      %v6550 = vpop.f32.mrf.mxu0
      %v6551 = vadd.f32 %v6215, %v6550
      %v6552 = vpop.f32.mrf.mxu0
      %v6553 = vadd.f32 %v6219, %v6552
      %6554 = vmatprep.mubr.bf16.mxu0 %v6141
      %6555 = vmatmul.mubr.bf16.gmra.mxu0 %v6140
      %v6556 = vpop.f32.mrf.mxu0
      %v6557 = vadd.f32 %v6215, %v6556
      %v6558 = vpop.f32.mrf.mxu0
      %v6559 = vadd.f32 %v6219, %v6558
      %v6560 = vpop.f32.mrf.mxu0
      %v6561 = vadd.f32 %v6215, %v6560
      %v6562 = vpop.f32.mrf.mxu0
      %v6563 = vadd.f32 %v6219, %v6562
      %6564 = vmatprep.mubr.bf16.mxu0 %v6143
      %6565 = vmatmul.mubr.bf16.gmra.mxu0 %v6142
      %v6566 = vpop.f32.mrf.mxu0
      %v6567 = vadd.f32 %v6215, %v6566
      %v6568 = vpop.f32.mrf.mxu0
      %v6569 = vadd.f32 %v6219, %v6568
      %v6570 = vpop.f32.mrf.mxu0
      %v6571 = vadd.f32 %v6215, %v6570
      %v6572 = vpop.f32.mrf.mxu0
      %v6573 = vadd.f32 %v6219, %v6572
      %6574 = vmatprep.mubr.bf16.mxu0 %v6145
      %6575 = vmatmul.mubr.bf16.gmra.mxu0 %v6144
      %v6576 = vpop.f32.mrf.mxu0
      %v6577 = vadd.f32 %v6215, %v6576
      %v6578 = vpop.f32.mrf.mxu0
      %v6579 = vadd.f32 %v6219, %v6578
      %v6580 = vpop.f32.mrf.mxu0
      %v6581 = vadd.f32 %v6215, %v6580
      %v6582 = vpop.f32.mrf.mxu0
      %v6583 = vadd.f32 %v6219, %v6582
      %6584 = vmatprep.mubr.bf16.mxu0 %v6147
      %6585 = vmatmul.mubr.bf16.gmra.mxu0 %v6146
      %v6586 = vpop.f32.mrf.mxu0
      %v6587 = vadd.f32 %v6215, %v6586
      %v6588 = vpop.f32.mrf.mxu0
      %v6589 = vadd.f32 %v6219, %v6588
      %v6590 = vpop.f32.mrf.mxu0
      %v6591 = vadd.f32 %v6215, %v6590
      %v6592 = vpop.f32.mrf.mxu0
      %v6593 = vadd.f32 %v6219, %v6592
      %6594 = vmatprep.mubr.bf16.mxu0 %v6149
      %6595 = vmatmul.mubr.bf16.gmra.mxu0 %v6148
      %v6596 = vpop.f32.mrf.mxu0
      %v6597 = vadd.f32 %v6215, %v6596
      %v6598 = vpop.f32.mrf.mxu0
      %v6599 = vadd.f32 %v6219, %v6598
      %v6600 = vpop.f32.mrf.mxu0
      %v6601 = vadd.f32 %v6215, %v6600
      %v6602 = vpop.f32.mrf.mxu0
      %v6603 = vadd.f32 %v6219, %v6602
      %6604 = vmatprep.mubr.bf16.mxu0 %v6151
      %6605 = vmatmul.mubr.bf16.gmra.mxu0 %v6150
      %v6606 = vpop.f32.mrf.mxu0
      %v6607 = vadd.f32 %v6215, %v6606
      %v6608 = vpop.f32.mrf.mxu0
      %v6609 = vadd.f32 %v6219, %v6608
      %v6610 = vpop.f32.mrf.mxu0
      %v6611 = vadd.f32 %v6215, %v6610
      %v6612 = vpop.f32.mrf.mxu0
      %v6613 = vadd.f32 %v6219, %v6612
      %6614 = vmatprep.mubr.bf16.mxu0 %v6153
      %6615 = vmatmul.mubr.bf16.gmra.mxu0 %v6152
      %v6616 = vpop.f32.mrf.mxu0
      %v6617 = vadd.f32 %v6215, %v6616
      %v6618 = vpop.f32.mrf.mxu0
      %v6619 = vadd.f32 %v6219, %v6618
      %v6620 = vpop.f32.mrf.mxu0
      %v6621 = vadd.f32 %v6215, %v6620
      %v6622 = vpop.f32.mrf.mxu0
      %v6623 = vadd.f32 %v6219, %v6622
      %6624 = vmatprep.mubr.bf16.mxu0 %v6155
      %6625 = vmatmul.mubr.bf16.gmra.mxu0 %v6154
      %v6626 = vpop.f32.mrf.mxu0
      %v6627 = vadd.f32 %v6215, %v6626
      %v6628 = vpop.f32.mrf.mxu0
      %v6629 = vadd.f32 %v6219, %v6628
      %v6630 = vpop.f32.mrf.mxu0
      %v6631 = vadd.f32 %v6215, %v6630
      %v6632 = vpop.f32.mrf.mxu0
      %v6633 = vadd.f32 %v6219, %v6632
      %6634 = vmatprep.mubr.bf16.mxu0 %v6157
      %6635 = vmatmul.mubr.bf16.gmra.mxu0 %v6156
      %v6636 = vpop.f32.mrf.mxu0
      %v6637 = vadd.f32 %v6215, %v6636
      %v6638 = vpop.f32.mrf.mxu0
      %v6639 = vadd.f32 %v6219, %v6638
      %v6640 = vpop.f32.mrf.mxu0
      %v6641 = vadd.f32 %v6215, %v6640
      %v6642 = vpop.f32.mrf.mxu0
      %v6643 = vadd.f32 %v6219, %v6642
      %6644 = vmatprep.mubr.bf16.mxu0 %v6159
      %6645 = vmatmul.mubr.bf16.gmra.mxu0 %v6158
      %v6646 = vpop.f32.mrf.mxu0
      %v6647 = vadd.f32 %v6215, %v6646
      %v6648 = vpop.f32.mrf.mxu0
      %v6649 = vadd.f32 %v6219, %v6648
      %v6650 = vpop.f32.mrf.mxu0
      %v6651 = vadd.f32 %v6215, %v6650
      %v6652 = vpop.f32.mrf.mxu0
      %v6653 = vadd.f32 %v6219, %v6652
      %6654 = vmatprep.mubr.bf16.mxu0 %v6161
      %6655 = vmatmul.mubr.bf16.gmra.mxu0 %v6160
      %v6656 = vpop.f32.mrf.mxu0
      %v6657 = vadd.f32 %v6215, %v6656
      %v6658 = vpop.f32.mrf.mxu0
      %v6659 = vadd.f32 %v6219, %v6658
      %v6660 = vpop.f32.mrf.mxu0
      %v6661 = vadd.f32 %v6215, %v6660
      %v6662 = vpop.f32.mrf.mxu0
      %v6663 = vadd.f32 %v6219, %v6662
      %6664 = vmatprep.mubr.bf16.mxu0 %v6163
      %6665 = vmatmul.mubr.bf16.gmra.mxu0 %v6162
      %v6666 = vpop.f32.mrf.mxu0
      %v6667 = vadd.f32 %v6215, %v6666
      %v6668 = vpop.f32.mrf.mxu0
      %v6669 = vadd.f32 %v6219, %v6668
      %v6670 = vpop.f32.mrf.mxu0
      %v6671 = vadd.f32 %v6215, %v6670
      %v6672 = vpop.f32.mrf.mxu0
      %v6673 = vadd.f32 %v6219, %v6672
      %6674 = vmatprep.mubr.bf16.mxu0 %v6165
      %6675 = vmatmul.mubr.bf16.gmra.mxu0 %v6164
      %v6676 = vpop.f32.mrf.mxu0
      %v6677 = vadd.f32 %v6215, %v6676
      %v6678 = vpop.f32.mrf.mxu0
      %v6679 = vadd.f32 %v6219, %v6678
      %v6680 = vpop.f32.mrf.mxu0
      %v6681 = vadd.f32 %v6215, %v6680
      %v6682 = vpop.f32.mrf.mxu0
      %v6683 = vadd.f32 %v6219, %v6682
      %6684 = vmatprep.mubr.bf16.mxu0 %v6167
      %6685 = vmatmul.mubr.bf16.gmra.mxu0 %v6166
      %v6686 = vpop.f32.mrf.mxu0
      %v6687 = vadd.f32 %v6215, %v6686
      %v6688 = vpop.f32.mrf.mxu0
      %v6689 = vadd.f32 %v6219, %v6688
      %v6690 = vpop.f32.mrf.mxu0
      %v6691 = vadd.f32 %v6215, %v6690
      %v6692 = vpop.f32.mrf.mxu0
      %v6693 = vadd.f32 %v6219, %v6692
      %6694 = vmatprep.mubr.bf16.mxu0 %v6169
      %6695 = vmatmul.mubr.bf16.gmra.mxu0 %v6168
      %v6696 = vpop.f32.mrf.mxu0
      %v6697 = vadd.f32 %v6215, %v6696
      %v6698 = vpop.f32.mrf.mxu0
      %v6699 = vadd.f32 %v6219, %v6698
      %v6700 = vpop.f32.mrf.mxu0
      %v6701 = vadd.f32 %v6215, %v6700
      %v6702 = vpop.f32.mrf.mxu0
      %v6703 = vadd.f32 %v6219, %v6702
      %6704 = vmatprep.mubr.bf16.mxu0 %v6171
      %6705 = vmatmul.mubr.bf16.gmra.mxu0 %v6170
      %v6706 = vpop.f32.mrf.mxu0
      %v6707 = vadd.f32 %v6215, %v6706
      %v6708 = vpop.f32.mrf.mxu0
      %v6709 = vadd.f32 %v6219, %v6708
      %v6710 = vpop.f32.mrf.mxu0
      %v6711 = vadd.f32 %v6215, %v6710
      %v6712 = vpop.f32.mrf.mxu0
      %v6713 = vadd.f32 %v6219, %v6712
      %6714 = vmatprep.mubr.bf16.mxu0 %v6173
      %6715 = vmatmul.mubr.bf16.gmra.mxu0 %v6172
      %v6716 = vpop.f32.mrf.mxu0
      %v6717 = vadd.f32 %v6215, %v6716
      %v6718 = vpop.f32.mrf.mxu0
      %v6719 = vadd.f32 %v6219, %v6718
      %v6720 = vpop.f32.mrf.mxu0
      %v6721 = vadd.f32 %v6215, %v6720
      %v6722 = vpop.f32.mrf.mxu0
      %v6723 = vadd.f32 %v6219, %v6722
      %6724 = vmatprep.mubr.bf16.mxu0 %v6175
      %6725 = vmatmul.mubr.bf16.gmra.mxu0 %v6174
      %v6726 = vpop.f32.mrf.mxu0
      %v6727 = vadd.f32 %v6215, %v6726
      %v6728 = vpop.f32.mrf.mxu0
      %v6729 = vadd.f32 %v6219, %v6728
      %v6730 = vpop.f32.mrf.mxu0
      %v6731 = vadd.f32 %v6215, %v6730
      %v6732 = vpop.f32.mrf.mxu0
      %v6733 = vadd.f32 %v6219, %v6732
      %6734 = vdwg.mxu0
      %v6735 = vmax.f32 %v6417, 0.0
      %v6736 = vmax.f32 %v6419, 0.0
      %v6737 = vmax.f32 %v6421, 0.0
      %v6738 = vmax.f32 %v6423, 0.0
      %v6739 = vmax.f32 %v6427, 0.0
      %v6740 = vmax.f32 %v6429, 0.0
      %v6741 = vmax.f32 %v6431, 0.0
      %v6742 = vmax.f32 %v6433, 0.0
      %v6743 = vmax.f32 %v6437, 0.0
      %v6744 = vmax.f32 %v6439, 0.0
      %v6745 = vmax.f32 %v6441, 0.0
      %v6746 = vmax.f32 %v6443, 0.0
      %v6747 = vmax.f32 %v6447, 0.0
      %v6748 = vmax.f32 %v6449, 0.0
      %v6749 = vmax.f32 %v6451, 0.0
      %v6750 = vmax.f32 %v6453, 0.0
      %v6751 = vmax.f32 %v6457, 0.0
      %v6752 = vmax.f32 %v6459, 0.0
      %v6753 = vmax.f32 %v6461, 0.0
      %v6754 = vmax.f32 %v6463, 0.0
      %v6755 = vmax.f32 %v6467, 0.0
      %v6756 = vmax.f32 %v6469, 0.0
      %v6757 = vmax.f32 %v6471, 0.0
      %v6758 = vmax.f32 %v6473, 0.0
      %v6759 = vmax.f32 %v6477, 0.0
      %v6760 = vmax.f32 %v6479, 0.0
      %v6761 = vmax.f32 %v6481, 0.0
      %v6762 = vmax.f32 %v6483, 0.0
      %v6763 = vmax.f32 %v6487, 0.0
      %v6764 = vmax.f32 %v6489, 0.0
      %v6765 = vmax.f32 %v6491, 0.0
      %v6766 = vmax.f32 %v6493, 0.0
      %v6767 = vmax.f32 %v6497, 0.0
      %v6768 = vmax.f32 %v6499, 0.0
      %v6769 = vmax.f32 %v6501, 0.0
      %v6770 = vmax.f32 %v6503, 0.0
      %v6771 = vmax.f32 %v6507, 0.0
      %v6772 = vmax.f32 %v6509, 0.0
      %v6773 = vmax.f32 %v6511, 0.0
      %v6774 = vmax.f32 %v6513, 0.0
      %v6775 = vmax.f32 %v6517, 0.0
      %v6776 = vmax.f32 %v6519, 0.0
      %v6777 = vmax.f32 %v6521, 0.0
      %v6778 = vmax.f32 %v6523, 0.0
      %v6779 = vmax.f32 %v6527, 0.0
      %v6780 = vmax.f32 %v6529, 0.0
      %v6781 = vmax.f32 %v6531, 0.0
      %v6782 = vmax.f32 %v6533, 0.0
      %v6783 = vmax.f32 %v6537, 0.0
      %v6784 = vmax.f32 %v6539, 0.0
      %v6785 = vmax.f32 %v6541, 0.0
      %v6786 = vmax.f32 %v6543, 0.0
      %v6787 = vmax.f32 %v6547, 0.0
      %v6788 = vmax.f32 %v6549, 0.0
      %v6789 = vmax.f32 %v6551, 0.0
      %v6790 = vmax.f32 %v6553, 0.0
      %v6791 = vmax.f32 %v6557, 0.0
      %v6792 = vmax.f32 %v6559, 0.0
      %v6793 = vmax.f32 %v6561, 0.0
      %v6794 = vmax.f32 %v6563, 0.0
      %v6795 = vmax.f32 %v6567, 0.0
      %v6796 = vmax.f32 %v6569, 0.0
      %v6797 = vmax.f32 %v6571, 0.0
      %v6798 = vmax.f32 %v6573, 0.0
      %v6799 = vmax.f32 %v6577, 0.0
      %v6800 = vmax.f32 %v6579, 0.0
      %v6801 = vmax.f32 %v6581, 0.0
      %v6802 = vmax.f32 %v6583, 0.0
      %v6803 = vmax.f32 %v6587, 0.0
      %v6804 = vmax.f32 %v6589, 0.0
      %v6805 = vmax.f32 %v6591, 0.0
      %v6806 = vmax.f32 %v6593, 0.0
      %v6807 = vmax.f32 %v6597, 0.0
      %v6808 = vmax.f32 %v6599, 0.0
      %v6809 = vmax.f32 %v6601, 0.0
      %v6810 = vmax.f32 %v6603, 0.0
      %v6811 = vmax.f32 %v6607, 0.0
      %v6812 = vmax.f32 %v6609, 0.0
      %v6813 = vmax.f32 %v6611, 0.0
      %v6814 = vmax.f32 %v6613, 0.0
      %v6815 = vmax.f32 %v6617, 0.0
      %v6816 = vmax.f32 %v6619, 0.0
      %v6817 = vmax.f32 %v6621, 0.0
      %v6818 = vmax.f32 %v6623, 0.0
      %v6819 = vmax.f32 %v6627, 0.0
      %v6820 = vmax.f32 %v6629, 0.0
      %v6821 = vmax.f32 %v6631, 0.0
      %v6822 = vmax.f32 %v6633, 0.0
      %v6823 = vmax.f32 %v6637, 0.0
      %v6824 = vmax.f32 %v6639, 0.0
      %v6825 = vmax.f32 %v6641, 0.0
      %v6826 = vmax.f32 %v6643, 0.0
      %v6827 = vmax.f32 %v6647, 0.0
      %v6828 = vmax.f32 %v6649, 0.0
      %v6829 = vmax.f32 %v6651, 0.0
      %v6830 = vmax.f32 %v6653, 0.0
      %v6831 = vmax.f32 %v6657, 0.0
      %v6832 = vmax.f32 %v6659, 0.0
      %v6833 = vmax.f32 %v6661, 0.0
      %v6834 = vmax.f32 %v6663, 0.0
      %v6835 = vmax.f32 %v6667, 0.0
      %v6836 = vmax.f32 %v6669, 0.0
      %v6837 = vmax.f32 %v6671, 0.0
      %v6838 = vmax.f32 %v6673, 0.0
      %v6839 = vmax.f32 %v6677, 0.0
      %v6840 = vmax.f32 %v6679, 0.0
      %v6841 = vmax.f32 %v6681, 0.0
      %v6842 = vmax.f32 %v6683, 0.0
      %v6843 = vmax.f32 %v6687, 0.0
      %v6844 = vmax.f32 %v6689, 0.0
      %v6845 = vmax.f32 %v6691, 0.0
      %v6846 = vmax.f32 %v6693, 0.0
      %v6847 = vmax.f32 %v6697, 0.0
      %v6848 = vmax.f32 %v6699, 0.0
      %v6849 = vmax.f32 %v6701, 0.0
      %v6850 = vmax.f32 %v6703, 0.0
      %v6851 = vmax.f32 %v6707, 0.0
      %v6852 = vmax.f32 %v6709, 0.0
      %v6853 = vmax.f32 %v6711, 0.0
      %v6854 = vmax.f32 %v6713, 0.0
      %v6855 = vmax.f32 %v6717, 0.0
      %v6856 = vmax.f32 %v6719, 0.0
      %v6857 = vmax.f32 %v6721, 0.0
      %v6858 = vmax.f32 %v6723, 0.0
      %v6859 = vmax.f32 %v6727, 0.0
      %v6860 = vmax.f32 %v6729, 0.0
      %v6861 = vmax.f32 %v6731, 0.0
      %v6862 = vmax.f32 %v6733, 0.0
      %v6863 = vpack.c.bf16 %v6737, %v6735
      %v6864 = vpack.c.bf16 %v6738, %v6736
      %v6865 = vpack.c.bf16 %v6741, %v6739
      %v6866 = vpack.c.bf16 %v6742, %v6740
      %v6867 = vpack.c.bf16 %v6745, %v6743
      %v6868 = vpack.c.bf16 %v6746, %v6744
      %v6869 = vpack.c.bf16 %v6749, %v6747
      %v6870 = vpack.c.bf16 %v6750, %v6748
      %v6871 = vpack.c.bf16 %v6753, %v6751
      %v6872 = vpack.c.bf16 %v6754, %v6752
      %v6873 = vpack.c.bf16 %v6757, %v6755
      %v6874 = vpack.c.bf16 %v6758, %v6756
      %v6875 = vpack.c.bf16 %v6761, %v6759
      %v6876 = vpack.c.bf16 %v6762, %v6760
      %v6877 = vpack.c.bf16 %v6765, %v6763
      %v6878 = vpack.c.bf16 %v6766, %v6764
      %v6879 = vpack.c.bf16 %v6769, %v6767
      %v6880 = vpack.c.bf16 %v6770, %v6768
      %v6881 = vpack.c.bf16 %v6773, %v6771
      %v6882 = vpack.c.bf16 %v6774, %v6772
      %v6883 = vpack.c.bf16 %v6777, %v6775
      %v6884 = vpack.c.bf16 %v6778, %v6776
      %v6885 = vpack.c.bf16 %v6781, %v6779
      %v6886 = vpack.c.bf16 %v6782, %v6780
      %v6887 = vpack.c.bf16 %v6785, %v6783
      %v6888 = vpack.c.bf16 %v6786, %v6784
      %v6889 = vpack.c.bf16 %v6789, %v6787
      %v6890 = vpack.c.bf16 %v6790, %v6788
      %v6891 = vpack.c.bf16 %v6793, %v6791
      %v6892 = vpack.c.bf16 %v6794, %v6792
      %v6893 = vpack.c.bf16 %v6797, %v6795
      %v6894 = vpack.c.bf16 %v6798, %v6796
      %v6895 = vpack.c.bf16 %v6801, %v6799
      %v6896 = vpack.c.bf16 %v6802, %v6800
      %v6897 = vpack.c.bf16 %v6805, %v6803
      %v6898 = vpack.c.bf16 %v6806, %v6804
      %v6899 = vpack.c.bf16 %v6809, %v6807
      %v6900 = vpack.c.bf16 %v6810, %v6808
      %v6901 = vpack.c.bf16 %v6813, %v6811
      %v6902 = vpack.c.bf16 %v6814, %v6812
      %v6903 = vpack.c.bf16 %v6817, %v6815
      %v6904 = vpack.c.bf16 %v6818, %v6816
      %v6905 = vpack.c.bf16 %v6821, %v6819
      %v6906 = vpack.c.bf16 %v6822, %v6820
      %v6907 = vpack.c.bf16 %v6825, %v6823
      %v6908 = vpack.c.bf16 %v6826, %v6824
      %v6909 = vpack.c.bf16 %v6829, %v6827
      %v6910 = vpack.c.bf16 %v6830, %v6828
      %v6911 = vpack.c.bf16 %v6833, %v6831
      %v6912 = vpack.c.bf16 %v6834, %v6832
      %v6913 = vpack.c.bf16 %v6837, %v6835
      %v6914 = vpack.c.bf16 %v6838, %v6836
      %v6915 = vpack.c.bf16 %v6841, %v6839
      %v6916 = vpack.c.bf16 %v6842, %v6840
      %v6917 = vpack.c.bf16 %v6845, %v6843
      %v6918 = vpack.c.bf16 %v6846, %v6844
      %v6919 = vpack.c.bf16 %v6849, %v6847
      %v6920 = vpack.c.bf16 %v6850, %v6848
      %v6921 = vpack.c.bf16 %v6853, %v6851
      %v6922 = vpack.c.bf16 %v6854, %v6852
      %v6923 = vpack.c.bf16 %v6857, %v6855
      %v6924 = vpack.c.bf16 %v6858, %v6856
      %v6925 = vpack.c.bf16 %v6861, %v6859
      %v6926 = vpack.c.bf16 %v6862, %v6860
      %s6927 = scalar_lea.vmem %s3, 1536
      %v6928 = vld [vmem:[%s6927] sm:$0xff]
      %v6929 = vld [vmem:[%s6927 + $0x8] sm:$0xff]
      %v6930 = vld [vmem:[%s6927 + $0x10] sm:$0xff]
      %v6931 = vld [vmem:[%s6927 + $0x18] sm:$0xff]
      %v6932 = vld [vmem:[%s6927 + $0x20] sm:$0xff]
      %v6933 = vld [vmem:[%s6927 + $0x28] sm:$0xff]
      %v6934 = vld [vmem:[%s6927 + $0x30] sm:$0xff]
      %v6935 = vld [vmem:[%s6927 + $0x38] sm:$0xff]
      %v6936 = vld [vmem:[%s6927 + $0x40] sm:$0xff]
      %v6937 = vld [vmem:[%s6927 + $0x48] sm:$0xff]
      %v6938 = vld [vmem:[%s6927 + $0x50] sm:$0xff]
      %v6939 = vld [vmem:[%s6927 + $0x58] sm:$0xff]
      %v6940 = vld [vmem:[%s6927 + $0x60] sm:$0xff]
      %v6941 = vld [vmem:[%s6927 + $0x68] sm:$0xff]
      %v6942 = vld [vmem:[%s6927 + $0x70] sm:$0xff]
      %v6943 = vld [vmem:[%s6927 + $0x78] sm:$0xff]
      %v6944 = vld [vmem:[%s6927 + $0x80] sm:$0xff]
      %v6945 = vld [vmem:[%s6927 + $0x88] sm:$0xff]
      %v6946 = vld [vmem:[%s6927 + $0x90] sm:$0xff]
      %v6947 = vld [vmem:[%s6927 + $0x98] sm:$0xff]
      %v6948 = vld [vmem:[%s6927 + $0xa0] sm:$0xff]
      %v6949 = vld [vmem:[%s6927 + $0xa8] sm:$0xff]
      %v6950 = vld [vmem:[%s6927 + $0xb0] sm:$0xff]
      %v6951 = vld [vmem:[%s6927 + $0xb8] sm:$0xff]
      %v6952 = vld [vmem:[%s6927 + $0xc0] sm:$0xff]
      %v6953 = vld [vmem:[%s6927 + $0xc8] sm:$0xff]
      %v6954 = vld [vmem:[%s6927 + $0xd0] sm:$0xff]
      %v6955 = vld [vmem:[%s6927 + $0xd8] sm:$0xff]
      %v6956 = vld [vmem:[%s6927 + $0xe0] sm:$0xff]
      %v6957 = vld [vmem:[%s6927 + $0xe8] sm:$0xff]
      %v6958 = vld [vmem:[%s6927 + $0xf0] sm:$0xff]
      %v6959 = vld [vmem:[%s6927 + $0xf8] sm:$0xff]
      %s6960 = scalar_lea.vmem %s4, 12
      %v6961 = vld [vmem:[%s6960] sm:$0x3]
      %v6963 = vlaneseq
      %v6964 = vshrl.u32 %v6963, 7
      %v6965 = vsub.s32 0, %v6964
      %v6966 = vrot.slane %v6961, %v6965
      %v6967 = vlaneseq
      %v6968 = vshrl.u32 %v6967, 7
      %v6969 = vsub.s32 1, %v6968
      %v6970 = vrot.slane %v6961, %v6969
      %v7005 = vunpack.c.l.b16 %v6928
      %v7006 = vunpack.c.h.b16 %v6928
      %v7007 = vunpack.c.l.b16 %v6929
      %v7008 = vunpack.c.h.b16 %v6929
      %v7009 = vunpack.c.l.b16 %v6930
      %v7010 = vunpack.c.h.b16 %v6930
      %v7011 = vunpack.c.l.b16 %v6931
      %v7012 = vunpack.c.h.b16 %v6931
      %v7013 = vunpack.c.l.b16 %v6932
      %v7014 = vunpack.c.h.b16 %v6932
      %v7015 = vunpack.c.l.b16 %v6933
      %v7016 = vunpack.c.h.b16 %v6933
      %v7017 = vunpack.c.l.b16 %v6934
      %v7018 = vunpack.c.h.b16 %v6934
      %v7019 = vunpack.c.l.b16 %v6935
      %v7020 = vunpack.c.h.b16 %v6935
      %v7021 = vunpack.c.l.b16 %v6936
      %v7022 = vunpack.c.h.b16 %v6936
      %v7023 = vunpack.c.l.b16 %v6937
      %v7024 = vunpack.c.h.b16 %v6937
      %v7025 = vunpack.c.l.b16 %v6938
      %v7026 = vunpack.c.h.b16 %v6938
      %v7027 = vunpack.c.l.b16 %v6939
      %v7028 = vunpack.c.h.b16 %v6939
      %v7029 = vunpack.c.l.b16 %v6940
      %v7030 = vunpack.c.h.b16 %v6940
      %v7031 = vunpack.c.l.b16 %v6941
      %v7032 = vunpack.c.h.b16 %v6941
      %v7033 = vunpack.c.l.b16 %v6942
      %v7034 = vunpack.c.h.b16 %v6942
      %v7035 = vunpack.c.l.b16 %v6943
      %v7036 = vunpack.c.h.b16 %v6943
      %v7037 = vunpack.c.l.b16 %v6944
      %v7038 = vunpack.c.h.b16 %v6944
      %v7039 = vunpack.c.l.b16 %v6945
      %v7040 = vunpack.c.h.b16 %v6945
      %v7041 = vunpack.c.l.b16 %v6946
      %v7042 = vunpack.c.h.b16 %v6946
      %v7043 = vunpack.c.l.b16 %v6947
      %v7044 = vunpack.c.h.b16 %v6947
      %v7045 = vunpack.c.l.b16 %v6948
      %v7046 = vunpack.c.h.b16 %v6948
      %v7047 = vunpack.c.l.b16 %v6949
      %v7048 = vunpack.c.h.b16 %v6949
      %v7049 = vunpack.c.l.b16 %v6950
      %v7050 = vunpack.c.h.b16 %v6950
      %v7051 = vunpack.c.l.b16 %v6951
      %v7052 = vunpack.c.h.b16 %v6951
      %v7053 = vunpack.c.l.b16 %v6952
      %v7054 = vunpack.c.h.b16 %v6952
      %v7055 = vunpack.c.l.b16 %v6953
      %v7056 = vunpack.c.h.b16 %v6953
      %v7057 = vunpack.c.l.b16 %v6954
      %v7058 = vunpack.c.h.b16 %v6954
      %v7059 = vunpack.c.l.b16 %v6955
      %v7060 = vunpack.c.h.b16 %v6955
      %v7061 = vunpack.c.l.b16 %v6956
      %v7062 = vunpack.c.h.b16 %v6956
      %v7063 = vunpack.c.l.b16 %v6957
      %v7064 = vunpack.c.h.b16 %v6957
      %v7065 = vunpack.c.l.b16 %v6958
      %v7066 = vunpack.c.h.b16 %v6958
      %v7067 = vunpack.c.l.b16 %v6959
      %v7068 = vunpack.c.h.b16 %v6959
      %v7069 = vpack.c.b16 %v7007, %v7005
      %v7070 = vpack.c.b16 %v7008, %v7006
      %v7071 = vpack.c.b16 %v7011, %v7009
      %v7072 = vpack.c.b16 %v7012, %v7010
      %v7073 = vpack.c.b16 %v7015, %v7013
      %v7074 = vpack.c.b16 %v7016, %v7014
      %v7075 = vpack.c.b16 %v7019, %v7017
      %v7076 = vpack.c.b16 %v7020, %v7018
      %v7077 = vpack.c.b16 %v7023, %v7021
      %v7078 = vpack.c.b16 %v7024, %v7022
      %v7079 = vpack.c.b16 %v7027, %v7025
      %v7080 = vpack.c.b16 %v7028, %v7026
      %v7081 = vpack.c.b16 %v7031, %v7029
      %v7082 = vpack.c.b16 %v7032, %v7030
      %v7083 = vpack.c.b16 %v7035, %v7033
      %v7084 = vpack.c.b16 %v7036, %v7034
      %v7085 = vpack.c.b16 %v7039, %v7037
      %v7086 = vpack.c.b16 %v7040, %v7038
      %v7087 = vpack.c.b16 %v7043, %v7041
      %v7088 = vpack.c.b16 %v7044, %v7042
      %v7089 = vpack.c.b16 %v7047, %v7045
      %v7090 = vpack.c.b16 %v7048, %v7046
      %v7091 = vpack.c.b16 %v7051, %v7049
      %v7092 = vpack.c.b16 %v7052, %v7050
      %v7093 = vpack.c.b16 %v7055, %v7053
      %v7094 = vpack.c.b16 %v7056, %v7054
      %v7095 = vpack.c.b16 %v7059, %v7057
      %v7096 = vpack.c.b16 %v7060, %v7058
      %v7097 = vpack.c.b16 %v7063, %v7061
      %v7098 = vpack.c.b16 %v7064, %v7062
      %v7099 = vpack.c.b16 %v7067, %v7065
      %v7100 = vpack.c.b16 %v7068, %v7066
      %7133 = vmatprep.subr.bf16.mxu0 %v7084
      %7134 = vmatpush1.bf16.msra.mxu0 %v7083
      %7135 = vmatprep.subr.bf16.mxu0 %v7082
      %7136 = vmatpush1.bf16.msra.mxu0 %v7081
      %7137 = vmatprep.subr.bf16.mxu0 %v7080
      %7138 = vmatpush1.bf16.msra.mxu0 %v7079
      %7139 = vmatprep.subr.bf16.mxu0 %v7078
      %7140 = vmatpush1.bf16.msra.mxu0 %v7077
      %7141 = vmatprep.subr.bf16.mxu0 %v7076
      %7142 = vmatpush1.bf16.msra.mxu0 %v7075
      %7143 = vmatprep.subr.bf16.mxu0 %v7074
      %7144 = vmatpush1.bf16.msra.mxu0 %v7073
      %7145 = vmatprep.subr.bf16.mxu0 %v7072
      %7146 = vmatpush1.bf16.msra.mxu0 %v7071
      %7147 = vmatprep.subr.bf16.mxu0 %v7070
      %7148 = vmatpush1.bf16.msra.mxu0 %v7069
      %7149 = vmatprep.subr.bf16.mxu0 %v7100
      %7150 = vmatpush2.bf16.msra.mxu0 %v7099
      %7151 = vmatprep.subr.bf16.mxu0 %v7098
      %7152 = vmatpush2.bf16.msra.mxu0 %v7097
      %7153 = vmatprep.subr.bf16.mxu0 %v7096
      %7154 = vmatpush2.bf16.msra.mxu0 %v7095
      %7155 = vmatprep.subr.bf16.mxu0 %v7094
      %7156 = vmatpush2.bf16.msra.mxu0 %v7093
      %7157 = vmatprep.subr.bf16.mxu0 %v7092
      %7158 = vmatpush2.bf16.msra.mxu0 %v7091
      %7159 = vmatprep.subr.bf16.mxu0 %v7090
      %7160 = vmatpush2.bf16.msra.mxu0 %v7089
      %7161 = vmatprep.subr.bf16.mxu0 %v7088
      %7162 = vmatpush2.bf16.msra.mxu0 %v7087
      %7163 = vmatprep.subr.bf16.mxu0 %v7086
      %7164 = vmatpush2.bf16.msra.mxu0 %v7085
      %7165 = vmatprep.mubr.bf16.mxu0 %v6864
      %7166 = vmatmul.mubr.bf16.gmra.mxu0 %v6863
      %v7167 = vpop.f32.mrf.mxu0
      %v7168 = vadd.f32 %v6966, %v7167
      %v7169 = vpop.f32.mrf.mxu0
      %v7170 = vadd.f32 %v6970, %v7169
      %v7171 = vpop.f32.mrf.mxu0
      %v7172 = vadd.f32 %v6966, %v7171
      %v7173 = vpop.f32.mrf.mxu0
      %v7174 = vadd.f32 %v6970, %v7173
      %7175 = vmatprep.mubr.bf16.mxu0 %v6866
      %7176 = vmatmul.mubr.bf16.gmra.mxu0 %v6865
      %v7177 = vpop.f32.mrf.mxu0
      %v7178 = vadd.f32 %v6966, %v7177
      %v7179 = vpop.f32.mrf.mxu0
      %v7180 = vadd.f32 %v6970, %v7179
      %v7181 = vpop.f32.mrf.mxu0
      %v7182 = vadd.f32 %v6966, %v7181
      %v7183 = vpop.f32.mrf.mxu0
      %v7184 = vadd.f32 %v6970, %v7183
      %7185 = vmatprep.mubr.bf16.mxu0 %v6868
      %7186 = vmatmul.mubr.bf16.gmra.mxu0 %v6867
      %v7187 = vpop.f32.mrf.mxu0
      %v7188 = vadd.f32 %v6966, %v7187
      %v7189 = vpop.f32.mrf.mxu0
      %v7190 = vadd.f32 %v6970, %v7189
      %v7191 = vpop.f32.mrf.mxu0
      %v7192 = vadd.f32 %v6966, %v7191
      %v7193 = vpop.f32.mrf.mxu0
      %v7194 = vadd.f32 %v6970, %v7193
      %7195 = vmatprep.mubr.bf16.mxu0 %v6870
      %7196 = vmatmul.mubr.bf16.gmra.mxu0 %v6869
      %v7197 = vpop.f32.mrf.mxu0
      %v7198 = vadd.f32 %v6966, %v7197
      %v7199 = vpop.f32.mrf.mxu0
      %v7200 = vadd.f32 %v6970, %v7199
      %v7201 = vpop.f32.mrf.mxu0
      %v7202 = vadd.f32 %v6966, %v7201
      %v7203 = vpop.f32.mrf.mxu0
      %v7204 = vadd.f32 %v6970, %v7203
      %7205 = vmatprep.mubr.bf16.mxu0 %v6872
      %7206 = vmatmul.mubr.bf16.gmra.mxu0 %v6871
      %v7207 = vpop.f32.mrf.mxu0
      %v7208 = vadd.f32 %v6966, %v7207
      %v7209 = vpop.f32.mrf.mxu0
      %v7210 = vadd.f32 %v6970, %v7209
      %v7211 = vpop.f32.mrf.mxu0
      %v7212 = vadd.f32 %v6966, %v7211
      %v7213 = vpop.f32.mrf.mxu0
      %v7214 = vadd.f32 %v6970, %v7213
      %7215 = vmatprep.mubr.bf16.mxu0 %v6874
      %7216 = vmatmul.mubr.bf16.gmra.mxu0 %v6873
      %v7217 = vpop.f32.mrf.mxu0
      %v7218 = vadd.f32 %v6966, %v7217
      %v7219 = vpop.f32.mrf.mxu0
      %v7220 = vadd.f32 %v6970, %v7219
      %v7221 = vpop.f32.mrf.mxu0
      %v7222 = vadd.f32 %v6966, %v7221
      %v7223 = vpop.f32.mrf.mxu0
      %v7224 = vadd.f32 %v6970, %v7223
      %7225 = vmatprep.mubr.bf16.mxu0 %v6876
      %7226 = vmatmul.mubr.bf16.gmra.mxu0 %v6875
      %v7227 = vpop.f32.mrf.mxu0
      %v7228 = vadd.f32 %v6966, %v7227
      %v7229 = vpop.f32.mrf.mxu0
      %v7230 = vadd.f32 %v6970, %v7229
      %v7231 = vpop.f32.mrf.mxu0
      %v7232 = vadd.f32 %v6966, %v7231
      %v7233 = vpop.f32.mrf.mxu0
      %v7234 = vadd.f32 %v6970, %v7233
      %7235 = vmatprep.mubr.bf16.mxu0 %v6878
      %7236 = vmatmul.mubr.bf16.gmra.mxu0 %v6877
      %v7237 = vpop.f32.mrf.mxu0
      %v7238 = vadd.f32 %v6966, %v7237
      %v7239 = vpop.f32.mrf.mxu0
      %v7240 = vadd.f32 %v6970, %v7239
      %v7241 = vpop.f32.mrf.mxu0
      %v7242 = vadd.f32 %v6966, %v7241
      %v7243 = vpop.f32.mrf.mxu0
      %v7244 = vadd.f32 %v6970, %v7243
      %7245 = vmatprep.mubr.bf16.mxu0 %v6880
      %7246 = vmatmul.mubr.bf16.gmra.mxu0 %v6879
      %v7247 = vpop.f32.mrf.mxu0
      %v7248 = vadd.f32 %v6966, %v7247
      %v7249 = vpop.f32.mrf.mxu0
      %v7250 = vadd.f32 %v6970, %v7249
      %v7251 = vpop.f32.mrf.mxu0
      %v7252 = vadd.f32 %v6966, %v7251
      %v7253 = vpop.f32.mrf.mxu0
      %v7254 = vadd.f32 %v6970, %v7253
      %7255 = vmatprep.mubr.bf16.mxu0 %v6882
      %7256 = vmatmul.mubr.bf16.gmra.mxu0 %v6881
      %v7257 = vpop.f32.mrf.mxu0
      %v7258 = vadd.f32 %v6966, %v7257
      %v7259 = vpop.f32.mrf.mxu0
      %v7260 = vadd.f32 %v6970, %v7259
      %v7261 = vpop.f32.mrf.mxu0
      %v7262 = vadd.f32 %v6966, %v7261
      %v7263 = vpop.f32.mrf.mxu0
      %v7264 = vadd.f32 %v6970, %v7263
      %7265 = vmatprep.mubr.bf16.mxu0 %v6884
      %7266 = vmatmul.mubr.bf16.gmra.mxu0 %v6883
      %v7267 = vpop.f32.mrf.mxu0
      %v7268 = vadd.f32 %v6966, %v7267
      %v7269 = vpop.f32.mrf.mxu0
      %v7270 = vadd.f32 %v6970, %v7269
      %v7271 = vpop.f32.mrf.mxu0
      %v7272 = vadd.f32 %v6966, %v7271
      %v7273 = vpop.f32.mrf.mxu0
      %v7274 = vadd.f32 %v6970, %v7273
      %7275 = vmatprep.mubr.bf16.mxu0 %v6886
      %7276 = vmatmul.mubr.bf16.gmra.mxu0 %v6885
      %v7277 = vpop.f32.mrf.mxu0
      %v7278 = vadd.f32 %v6966, %v7277
      %v7279 = vpop.f32.mrf.mxu0
      %v7280 = vadd.f32 %v6970, %v7279
      %v7281 = vpop.f32.mrf.mxu0
      %v7282 = vadd.f32 %v6966, %v7281
      %v7283 = vpop.f32.mrf.mxu0
      %v7284 = vadd.f32 %v6970, %v7283
      %7285 = vmatprep.mubr.bf16.mxu0 %v6888
      %7286 = vmatmul.mubr.bf16.gmra.mxu0 %v6887
      %v7287 = vpop.f32.mrf.mxu0
      %v7288 = vadd.f32 %v6966, %v7287
      %v7289 = vpop.f32.mrf.mxu0
      %v7290 = vadd.f32 %v6970, %v7289
      %v7291 = vpop.f32.mrf.mxu0
      %v7292 = vadd.f32 %v6966, %v7291
      %v7293 = vpop.f32.mrf.mxu0
      %v7294 = vadd.f32 %v6970, %v7293
      %7295 = vmatprep.mubr.bf16.mxu0 %v6890
      %7296 = vmatmul.mubr.bf16.gmra.mxu0 %v6889
      %v7297 = vpop.f32.mrf.mxu0
      %v7298 = vadd.f32 %v6966, %v7297
      %v7299 = vpop.f32.mrf.mxu0
      %v7300 = vadd.f32 %v6970, %v7299
      %v7301 = vpop.f32.mrf.mxu0
      %v7302 = vadd.f32 %v6966, %v7301
      %v7303 = vpop.f32.mrf.mxu0
      %v7304 = vadd.f32 %v6970, %v7303
      %7305 = vmatprep.mubr.bf16.mxu0 %v6892
      %7306 = vmatmul.mubr.bf16.gmra.mxu0 %v6891
      %v7307 = vpop.f32.mrf.mxu0
      %v7308 = vadd.f32 %v6966, %v7307
      %v7309 = vpop.f32.mrf.mxu0
      %v7310 = vadd.f32 %v6970, %v7309
      %v7311 = vpop.f32.mrf.mxu0
      %v7312 = vadd.f32 %v6966, %v7311
      %v7313 = vpop.f32.mrf.mxu0
      %v7314 = vadd.f32 %v6970, %v7313
      %7315 = vmatprep.mubr.bf16.mxu0 %v6894
      %7316 = vmatmul.mubr.bf16.gmra.mxu0 %v6893
      %v7317 = vpop.f32.mrf.mxu0
      %v7318 = vadd.f32 %v6966, %v7317
      %v7319 = vpop.f32.mrf.mxu0
      %v7320 = vadd.f32 %v6970, %v7319
      %v7321 = vpop.f32.mrf.mxu0
      %v7322 = vadd.f32 %v6966, %v7321
      %v7323 = vpop.f32.mrf.mxu0
      %v7324 = vadd.f32 %v6970, %v7323
      %7325 = vmatprep.mubr.bf16.mxu0 %v6896
      %7326 = vmatmul.mubr.bf16.gmra.mxu0 %v6895
      %v7327 = vpop.f32.mrf.mxu0
      %v7328 = vadd.f32 %v6966, %v7327
      %v7329 = vpop.f32.mrf.mxu0
      %v7330 = vadd.f32 %v6970, %v7329
      %v7331 = vpop.f32.mrf.mxu0
      %v7332 = vadd.f32 %v6966, %v7331
      %v7333 = vpop.f32.mrf.mxu0
      %v7334 = vadd.f32 %v6970, %v7333
      %7335 = vmatprep.mubr.bf16.mxu0 %v6898
      %7336 = vmatmul.mubr.bf16.gmra.mxu0 %v6897
      %v7337 = vpop.f32.mrf.mxu0
      %v7338 = vadd.f32 %v6966, %v7337
      %v7339 = vpop.f32.mrf.mxu0
      %v7340 = vadd.f32 %v6970, %v7339
      %v7341 = vpop.f32.mrf.mxu0
      %v7342 = vadd.f32 %v6966, %v7341
      %v7343 = vpop.f32.mrf.mxu0
      %v7344 = vadd.f32 %v6970, %v7343
      %7345 = vmatprep.mubr.bf16.mxu0 %v6900
      %7346 = vmatmul.mubr.bf16.gmra.mxu0 %v6899
      %v7347 = vpop.f32.mrf.mxu0
      %v7348 = vadd.f32 %v6966, %v7347
      %v7349 = vpop.f32.mrf.mxu0
      %v7350 = vadd.f32 %v6970, %v7349
      %v7351 = vpop.f32.mrf.mxu0
      %v7352 = vadd.f32 %v6966, %v7351
      %v7353 = vpop.f32.mrf.mxu0
      %v7354 = vadd.f32 %v6970, %v7353
      %7355 = vmatprep.mubr.bf16.mxu0 %v6902
      %7356 = vmatmul.mubr.bf16.gmra.mxu0 %v6901
      %v7357 = vpop.f32.mrf.mxu0
      %v7358 = vadd.f32 %v6966, %v7357
      %v7359 = vpop.f32.mrf.mxu0
      %v7360 = vadd.f32 %v6970, %v7359
      %v7361 = vpop.f32.mrf.mxu0
      %v7362 = vadd.f32 %v6966, %v7361
      %v7363 = vpop.f32.mrf.mxu0
      %v7364 = vadd.f32 %v6970, %v7363
      %7365 = vmatprep.mubr.bf16.mxu0 %v6904
      %7366 = vmatmul.mubr.bf16.gmra.mxu0 %v6903
      %v7367 = vpop.f32.mrf.mxu0
      %v7368 = vadd.f32 %v6966, %v7367
      %v7369 = vpop.f32.mrf.mxu0
      %v7370 = vadd.f32 %v6970, %v7369
      %v7371 = vpop.f32.mrf.mxu0
      %v7372 = vadd.f32 %v6966, %v7371
      %v7373 = vpop.f32.mrf.mxu0
      %v7374 = vadd.f32 %v6970, %v7373
      %7375 = vmatprep.mubr.bf16.mxu0 %v6906
      %7376 = vmatmul.mubr.bf16.gmra.mxu0 %v6905
      %v7377 = vpop.f32.mrf.mxu0
      %v7378 = vadd.f32 %v6966, %v7377
      %v7379 = vpop.f32.mrf.mxu0
      %v7380 = vadd.f32 %v6970, %v7379
      %v7381 = vpop.f32.mrf.mxu0
      %v7382 = vadd.f32 %v6966, %v7381
      %v7383 = vpop.f32.mrf.mxu0
      %v7384 = vadd.f32 %v6970, %v7383
      %7385 = vmatprep.mubr.bf16.mxu0 %v6908
      %7386 = vmatmul.mubr.bf16.gmra.mxu0 %v6907
      %v7387 = vpop.f32.mrf.mxu0
      %v7388 = vadd.f32 %v6966, %v7387
      %v7389 = vpop.f32.mrf.mxu0
      %v7390 = vadd.f32 %v6970, %v7389
      %v7391 = vpop.f32.mrf.mxu0
      %v7392 = vadd.f32 %v6966, %v7391
      %v7393 = vpop.f32.mrf.mxu0
      %v7394 = vadd.f32 %v6970, %v7393
      %7395 = vmatprep.mubr.bf16.mxu0 %v6910
      %7396 = vmatmul.mubr.bf16.gmra.mxu0 %v6909
      %v7397 = vpop.f32.mrf.mxu0
      %v7398 = vadd.f32 %v6966, %v7397
      %v7399 = vpop.f32.mrf.mxu0
      %v7400 = vadd.f32 %v6970, %v7399
      %v7401 = vpop.f32.mrf.mxu0
      %v7402 = vadd.f32 %v6966, %v7401
      %v7403 = vpop.f32.mrf.mxu0
      %v7404 = vadd.f32 %v6970, %v7403
      %7405 = vmatprep.mubr.bf16.mxu0 %v6912
      %7406 = vmatmul.mubr.bf16.gmra.mxu0 %v6911
      %v7407 = vpop.f32.mrf.mxu0
      %v7408 = vadd.f32 %v6966, %v7407
      %v7409 = vpop.f32.mrf.mxu0
      %v7410 = vadd.f32 %v6970, %v7409
      %v7411 = vpop.f32.mrf.mxu0
      %v7412 = vadd.f32 %v6966, %v7411
      %v7413 = vpop.f32.mrf.mxu0
      %v7414 = vadd.f32 %v6970, %v7413
      %7415 = vmatprep.mubr.bf16.mxu0 %v6914
      %7416 = vmatmul.mubr.bf16.gmra.mxu0 %v6913
      %v7417 = vpop.f32.mrf.mxu0
      %v7418 = vadd.f32 %v6966, %v7417
      %v7419 = vpop.f32.mrf.mxu0
      %v7420 = vadd.f32 %v6970, %v7419
      %v7421 = vpop.f32.mrf.mxu0
      %v7422 = vadd.f32 %v6966, %v7421
      %v7423 = vpop.f32.mrf.mxu0
      %v7424 = vadd.f32 %v6970, %v7423
      %7425 = vmatprep.mubr.bf16.mxu0 %v6916
      %7426 = vmatmul.mubr.bf16.gmra.mxu0 %v6915
      %v7427 = vpop.f32.mrf.mxu0
      %v7428 = vadd.f32 %v6966, %v7427
      %v7429 = vpop.f32.mrf.mxu0
      %v7430 = vadd.f32 %v6970, %v7429
      %v7431 = vpop.f32.mrf.mxu0
      %v7432 = vadd.f32 %v6966, %v7431
      %v7433 = vpop.f32.mrf.mxu0
      %v7434 = vadd.f32 %v6970, %v7433
      %7435 = vmatprep.mubr.bf16.mxu0 %v6918
      %7436 = vmatmul.mubr.bf16.gmra.mxu0 %v6917
      %v7437 = vpop.f32.mrf.mxu0
      %v7438 = vadd.f32 %v6966, %v7437
      %v7439 = vpop.f32.mrf.mxu0
      %v7440 = vadd.f32 %v6970, %v7439
      %v7441 = vpop.f32.mrf.mxu0
      %v7442 = vadd.f32 %v6966, %v7441
      %v7443 = vpop.f32.mrf.mxu0
      %v7444 = vadd.f32 %v6970, %v7443
      %7445 = vmatprep.mubr.bf16.mxu0 %v6920
      %7446 = vmatmul.mubr.bf16.gmra.mxu0 %v6919
      %v7447 = vpop.f32.mrf.mxu0
      %v7448 = vadd.f32 %v6966, %v7447
      %v7449 = vpop.f32.mrf.mxu0
      %v7450 = vadd.f32 %v6970, %v7449
      %v7451 = vpop.f32.mrf.mxu0
      %v7452 = vadd.f32 %v6966, %v7451
      %v7453 = vpop.f32.mrf.mxu0
      %v7454 = vadd.f32 %v6970, %v7453
      %7455 = vmatprep.mubr.bf16.mxu0 %v6922
      %7456 = vmatmul.mubr.bf16.gmra.mxu0 %v6921
      %v7457 = vpop.f32.mrf.mxu0
      %v7458 = vadd.f32 %v6966, %v7457
      %v7459 = vpop.f32.mrf.mxu0
      %v7460 = vadd.f32 %v6970, %v7459
      %v7461 = vpop.f32.mrf.mxu0
      %v7462 = vadd.f32 %v6966, %v7461
      %v7463 = vpop.f32.mrf.mxu0
      %v7464 = vadd.f32 %v6970, %v7463
      %7465 = vmatprep.mubr.bf16.mxu0 %v6924
      %7466 = vmatmul.mubr.bf16.gmra.mxu0 %v6923
      %v7467 = vpop.f32.mrf.mxu0
      %v7468 = vadd.f32 %v6966, %v7467
      %v7469 = vpop.f32.mrf.mxu0
      %v7470 = vadd.f32 %v6970, %v7469
      %v7471 = vpop.f32.mrf.mxu0
      %v7472 = vadd.f32 %v6966, %v7471
      %v7473 = vpop.f32.mrf.mxu0
      %v7474 = vadd.f32 %v6970, %v7473
      %7475 = vmatprep.mubr.bf16.mxu0 %v6926
      %7476 = vmatmul.mubr.bf16.gmra.mxu0 %v6925
      %v7477 = vpop.f32.mrf.mxu0
      %v7478 = vadd.f32 %v6966, %v7477
      %v7479 = vpop.f32.mrf.mxu0
      %v7480 = vadd.f32 %v6970, %v7479
      %v7481 = vpop.f32.mrf.mxu0
      %v7482 = vadd.f32 %v6966, %v7481
      %v7483 = vpop.f32.mrf.mxu0
      %v7484 = vadd.f32 %v6970, %v7483
      %7485 = vdwg.mxu0
      %v7486 = vmax.f32 %v7168, 0.0
      %v7487 = vmax.f32 %v7170, 0.0
      %v7488 = vmax.f32 %v7172, 0.0
      %v7489 = vmax.f32 %v7174, 0.0
      %v7490 = vmax.f32 %v7178, 0.0
      %v7491 = vmax.f32 %v7180, 0.0
      %v7492 = vmax.f32 %v7182, 0.0
      %v7493 = vmax.f32 %v7184, 0.0
      %v7494 = vmax.f32 %v7188, 0.0
      %v7495 = vmax.f32 %v7190, 0.0
      %v7496 = vmax.f32 %v7192, 0.0
      %v7497 = vmax.f32 %v7194, 0.0
      %v7498 = vmax.f32 %v7198, 0.0
      %v7499 = vmax.f32 %v7200, 0.0
      %v7500 = vmax.f32 %v7202, 0.0
      %v7501 = vmax.f32 %v7204, 0.0
      %v7502 = vmax.f32 %v7208, 0.0
      %v7503 = vmax.f32 %v7210, 0.0
      %v7504 = vmax.f32 %v7212, 0.0
      %v7505 = vmax.f32 %v7214, 0.0
      %v7506 = vmax.f32 %v7218, 0.0
      %v7507 = vmax.f32 %v7220, 0.0
      %v7508 = vmax.f32 %v7222, 0.0
      %v7509 = vmax.f32 %v7224, 0.0
      %v7510 = vmax.f32 %v7228, 0.0
      %v7511 = vmax.f32 %v7230, 0.0
      %v7512 = vmax.f32 %v7232, 0.0
      %v7513 = vmax.f32 %v7234, 0.0
      %v7514 = vmax.f32 %v7238, 0.0
      %v7515 = vmax.f32 %v7240, 0.0
      %v7516 = vmax.f32 %v7242, 0.0
      %v7517 = vmax.f32 %v7244, 0.0
      %v7518 = vmax.f32 %v7248, 0.0
      %v7519 = vmax.f32 %v7250, 0.0
      %v7520 = vmax.f32 %v7252, 0.0
      %v7521 = vmax.f32 %v7254, 0.0
      %v7522 = vmax.f32 %v7258, 0.0
      %v7523 = vmax.f32 %v7260, 0.0
      %v7524 = vmax.f32 %v7262, 0.0
      %v7525 = vmax.f32 %v7264, 0.0
      %v7526 = vmax.f32 %v7268, 0.0
      %v7527 = vmax.f32 %v7270, 0.0
      %v7528 = vmax.f32 %v7272, 0.0
      %v7529 = vmax.f32 %v7274, 0.0
      %v7530 = vmax.f32 %v7278, 0.0
      %v7531 = vmax.f32 %v7280, 0.0
      %v7532 = vmax.f32 %v7282, 0.0
      %v7533 = vmax.f32 %v7284, 0.0
      %v7534 = vmax.f32 %v7288, 0.0
      %v7535 = vmax.f32 %v7290, 0.0
      %v7536 = vmax.f32 %v7292, 0.0
      %v7537 = vmax.f32 %v7294, 0.0
      %v7538 = vmax.f32 %v7298, 0.0
      %v7539 = vmax.f32 %v7300, 0.0
      %v7540 = vmax.f32 %v7302, 0.0
      %v7541 = vmax.f32 %v7304, 0.0
      %v7542 = vmax.f32 %v7308, 0.0
      %v7543 = vmax.f32 %v7310, 0.0
      %v7544 = vmax.f32 %v7312, 0.0
      %v7545 = vmax.f32 %v7314, 0.0
      %v7546 = vmax.f32 %v7318, 0.0
      %v7547 = vmax.f32 %v7320, 0.0
      %v7548 = vmax.f32 %v7322, 0.0
      %v7549 = vmax.f32 %v7324, 0.0
      %v7550 = vmax.f32 %v7328, 0.0
      %v7551 = vmax.f32 %v7330, 0.0
      %v7552 = vmax.f32 %v7332, 0.0
      %v7553 = vmax.f32 %v7334, 0.0
      %v7554 = vmax.f32 %v7338, 0.0
      %v7555 = vmax.f32 %v7340, 0.0
      %v7556 = vmax.f32 %v7342, 0.0
      %v7557 = vmax.f32 %v7344, 0.0
      %v7558 = vmax.f32 %v7348, 0.0
      %v7559 = vmax.f32 %v7350, 0.0
      %v7560 = vmax.f32 %v7352, 0.0
      %v7561 = vmax.f32 %v7354, 0.0
      %v7562 = vmax.f32 %v7358, 0.0
      %v7563 = vmax.f32 %v7360, 0.0
      %v7564 = vmax.f32 %v7362, 0.0
      %v7565 = vmax.f32 %v7364, 0.0
      %v7566 = vmax.f32 %v7368, 0.0
      %v7567 = vmax.f32 %v7370, 0.0
      %v7568 = vmax.f32 %v7372, 0.0
      %v7569 = vmax.f32 %v7374, 0.0
      %v7570 = vmax.f32 %v7378, 0.0
      %v7571 = vmax.f32 %v7380, 0.0
      %v7572 = vmax.f32 %v7382, 0.0
      %v7573 = vmax.f32 %v7384, 0.0
      %v7574 = vmax.f32 %v7388, 0.0
      %v7575 = vmax.f32 %v7390, 0.0
      %v7576 = vmax.f32 %v7392, 0.0
      %v7577 = vmax.f32 %v7394, 0.0
      %v7578 = vmax.f32 %v7398, 0.0
      %v7579 = vmax.f32 %v7400, 0.0
      %v7580 = vmax.f32 %v7402, 0.0
      %v7581 = vmax.f32 %v7404, 0.0
      %v7582 = vmax.f32 %v7408, 0.0
      %v7583 = vmax.f32 %v7410, 0.0
      %v7584 = vmax.f32 %v7412, 0.0
      %v7585 = vmax.f32 %v7414, 0.0
      %v7586 = vmax.f32 %v7418, 0.0
      %v7587 = vmax.f32 %v7420, 0.0
      %v7588 = vmax.f32 %v7422, 0.0
      %v7589 = vmax.f32 %v7424, 0.0
      %v7590 = vmax.f32 %v7428, 0.0
      %v7591 = vmax.f32 %v7430, 0.0
      %v7592 = vmax.f32 %v7432, 0.0
      %v7593 = vmax.f32 %v7434, 0.0
      %v7594 = vmax.f32 %v7438, 0.0
      %v7595 = vmax.f32 %v7440, 0.0
      %v7596 = vmax.f32 %v7442, 0.0
      %v7597 = vmax.f32 %v7444, 0.0
      %v7598 = vmax.f32 %v7448, 0.0
      %v7599 = vmax.f32 %v7450, 0.0
      %v7600 = vmax.f32 %v7452, 0.0
      %v7601 = vmax.f32 %v7454, 0.0
      %v7602 = vmax.f32 %v7458, 0.0
      %v7603 = vmax.f32 %v7460, 0.0
      %v7604 = vmax.f32 %v7462, 0.0
      %v7605 = vmax.f32 %v7464, 0.0
      %v7606 = vmax.f32 %v7468, 0.0
      %v7607 = vmax.f32 %v7470, 0.0
      %v7608 = vmax.f32 %v7472, 0.0
      %v7609 = vmax.f32 %v7474, 0.0
      %v7610 = vmax.f32 %v7478, 0.0
      %v7611 = vmax.f32 %v7480, 0.0
      %v7612 = vmax.f32 %v7482, 0.0
      %v7613 = vmax.f32 %v7484, 0.0
      %v7614 = vpack.c.bf16 %v7488, %v7486
      %v7615 = vpack.c.bf16 %v7489, %v7487
      %v7616 = vpack.c.bf16 %v7492, %v7490
      %v7617 = vpack.c.bf16 %v7493, %v7491
      %v7618 = vpack.c.bf16 %v7496, %v7494
      %v7619 = vpack.c.bf16 %v7497, %v7495
      %v7620 = vpack.c.bf16 %v7500, %v7498
      %v7621 = vpack.c.bf16 %v7501, %v7499
      %v7622 = vpack.c.bf16 %v7504, %v7502
      %v7623 = vpack.c.bf16 %v7505, %v7503
      %v7624 = vpack.c.bf16 %v7508, %v7506
      %v7625 = vpack.c.bf16 %v7509, %v7507
      %v7626 = vpack.c.bf16 %v7512, %v7510
      %v7627 = vpack.c.bf16 %v7513, %v7511
      %v7628 = vpack.c.bf16 %v7516, %v7514
      %v7629 = vpack.c.bf16 %v7517, %v7515
      %v7630 = vpack.c.bf16 %v7520, %v7518
      %v7631 = vpack.c.bf16 %v7521, %v7519
      %v7632 = vpack.c.bf16 %v7524, %v7522
      %v7633 = vpack.c.bf16 %v7525, %v7523
      %v7634 = vpack.c.bf16 %v7528, %v7526
      %v7635 = vpack.c.bf16 %v7529, %v7527
      %v7636 = vpack.c.bf16 %v7532, %v7530
      %v7637 = vpack.c.bf16 %v7533, %v7531
      %v7638 = vpack.c.bf16 %v7536, %v7534
      %v7639 = vpack.c.bf16 %v7537, %v7535
      %v7640 = vpack.c.bf16 %v7540, %v7538
      %v7641 = vpack.c.bf16 %v7541, %v7539
      %v7642 = vpack.c.bf16 %v7544, %v7542
      %v7643 = vpack.c.bf16 %v7545, %v7543
      %v7644 = vpack.c.bf16 %v7548, %v7546
      %v7645 = vpack.c.bf16 %v7549, %v7547
      %v7646 = vpack.c.bf16 %v7552, %v7550
      %v7647 = vpack.c.bf16 %v7553, %v7551
      %v7648 = vpack.c.bf16 %v7556, %v7554
      %v7649 = vpack.c.bf16 %v7557, %v7555
      %v7650 = vpack.c.bf16 %v7560, %v7558
      %v7651 = vpack.c.bf16 %v7561, %v7559
      %v7652 = vpack.c.bf16 %v7564, %v7562
      %v7653 = vpack.c.bf16 %v7565, %v7563
      %v7654 = vpack.c.bf16 %v7568, %v7566
      %v7655 = vpack.c.bf16 %v7569, %v7567
      %v7656 = vpack.c.bf16 %v7572, %v7570
      %v7657 = vpack.c.bf16 %v7573, %v7571
      %v7658 = vpack.c.bf16 %v7576, %v7574
      %v7659 = vpack.c.bf16 %v7577, %v7575
      %v7660 = vpack.c.bf16 %v7580, %v7578
      %v7661 = vpack.c.bf16 %v7581, %v7579
      %v7662 = vpack.c.bf16 %v7584, %v7582
      %v7663 = vpack.c.bf16 %v7585, %v7583
      %v7664 = vpack.c.bf16 %v7588, %v7586
      %v7665 = vpack.c.bf16 %v7589, %v7587
      %v7666 = vpack.c.bf16 %v7592, %v7590
      %v7667 = vpack.c.bf16 %v7593, %v7591
      %v7668 = vpack.c.bf16 %v7596, %v7594
      %v7669 = vpack.c.bf16 %v7597, %v7595
      %v7670 = vpack.c.bf16 %v7600, %v7598
      %v7671 = vpack.c.bf16 %v7601, %v7599
      %v7672 = vpack.c.bf16 %v7604, %v7602
      %v7673 = vpack.c.bf16 %v7605, %v7603
      %v7674 = vpack.c.bf16 %v7608, %v7606
      %v7675 = vpack.c.bf16 %v7609, %v7607
      %v7676 = vpack.c.bf16 %v7612, %v7610
      %v7677 = vpack.c.bf16 %v7613, %v7611
      %v7678 = vld [vmem:[%s5] sm:$0xff]
      %v7679 = vld [vmem:[%s5 + $0x8] sm:$0xf]
      %v7680 = vld [vmem:[%s5 + $0xc] sm:$0xff]
      %v7681 = vld [vmem:[%s5 + $0x14] sm:$0xf]
      %v7682 = vld [vmem:[%s5 + $0x18] sm:$0xff]
      %v7683 = vld [vmem:[%s5 + $0x20] sm:$0xf]
      %v7684 = vld [vmem:[%s5 + $0x24] sm:$0xff]
      %v7685 = vld [vmem:[%s5 + $0x2c] sm:$0xf]
      %v7686 = vld [vmem:[%s5 + $0x30] sm:$0xff]
      %v7687 = vld [vmem:[%s5 + $0x38] sm:$0xf]
      %v7688 = vld [vmem:[%s5 + $0x3c] sm:$0xff]
      %v7689 = vld [vmem:[%s5 + $0x44] sm:$0xf]
      %v7690 = vld [vmem:[%s5 + $0x48] sm:$0xff]
      %v7691 = vld [vmem:[%s5 + $0x50] sm:$0xf]
      %v7692 = vld [vmem:[%s5 + $0x54] sm:$0xff]
      %v7693 = vld [vmem:[%s5 + $0x5c] sm:$0xf]
      %v7694 = vld [vmem:[%s5 + $0x60] sm:$0xff]
      %v7695 = vld [vmem:[%s5 + $0x68] sm:$0xf]
      %v7696 = vld [vmem:[%s5 + $0x6c] sm:$0xff]
      %v7697 = vld [vmem:[%s5 + $0x74] sm:$0xf]
      %v7698 = vld [vmem:[%s5 + $0x78] sm:$0xff]
      %v7699 = vld [vmem:[%s5 + $0x80] sm:$0xf]
      %v7700 = vld [vmem:[%s5 + $0x84] sm:$0xff]
      %v7701 = vld [vmem:[%s5 + $0x8c] sm:$0xf]
      %v7702 = vld [vmem:[%s5 + $0x90] sm:$0xff]
      %v7703 = vld [vmem:[%s5 + $0x98] sm:$0xf]
      %v7704 = vld [vmem:[%s5 + $0x9c] sm:$0xff]
      %v7705 = vld [vmem:[%s5 + $0xa4] sm:$0xf]
      %v7706 = vld [vmem:[%s5 + $0xa8] sm:$0xff]
      %v7707 = vld [vmem:[%s5 + $0xb0] sm:$0xf]
      %v7708 = vld [vmem:[%s5 + $0xb4] sm:$0xff]
      %v7709 = vld [vmem:[%s5 + $0xbc] sm:$0xf]
      %v7710 = vld [vmem:[%s5 + $0xc0] sm:$0xff]
      %v7711 = vld [vmem:[%s5 + $0xc8] sm:$0xf]
      %v7712 = vld [vmem:[%s5 + $0xcc] sm:$0xff]
      %v7713 = vld [vmem:[%s5 + $0xd4] sm:$0xf]
      %v7714 = vld [vmem:[%s5 + $0xd8] sm:$0xff]
      %v7715 = vld [vmem:[%s5 + $0xe0] sm:$0xf]
      %v7716 = vld [vmem:[%s5 + $0xe4] sm:$0xff]
      %v7717 = vld [vmem:[%s5 + $0xec] sm:$0xf]
      %v7718 = vld [vmem:[%s5 + $0xf0] sm:$0xff]
      %v7719 = vld [vmem:[%s5 + $0xf8] sm:$0xf]
      %v7720 = vld [vmem:[%s5 + $0xfc] sm:$0xff]
      %v7721 = vld [vmem:[%s5 + $0x104] sm:$0xf]
      %v7722 = vld [vmem:[%s5 + $0x108] sm:$0xff]
      %v7723 = vld [vmem:[%s5 + $0x110] sm:$0xf]
      %v7724 = vld [vmem:[%s5 + $0x114] sm:$0xff]
      %v7725 = vld [vmem:[%s5 + $0x11c] sm:$0xf]
      %v7726 = vld [vmem:[%s5 + $0x120] sm:$0xff]
      %v7727 = vld [vmem:[%s5 + $0x128] sm:$0xf]
      %v7728 = vld [vmem:[%s5 + $0x12c] sm:$0xff]
      %v7729 = vld [vmem:[%s5 + $0x134] sm:$0xf]
      %v7730 = vld [vmem:[%s5 + $0x138] sm:$0xff]
      %v7731 = vld [vmem:[%s5 + $0x140] sm:$0xf]
      %v7732 = vld [vmem:[%s5 + $0x144] sm:$0xff]
      %v7733 = vld [vmem:[%s5 + $0x14c] sm:$0xf]
      %v7734 = vld [vmem:[%s5 + $0x150] sm:$0xff]
      %v7735 = vld [vmem:[%s5 + $0x158] sm:$0xf]
      %v7736 = vld [vmem:[%s5 + $0x15c] sm:$0xff]
      %v7737 = vld [vmem:[%s5 + $0x164] sm:$0xf]
      %v7738 = vld [vmem:[%s5 + $0x168] sm:$0xff]
      %v7739 = vld [vmem:[%s5 + $0x170] sm:$0xf]
      %v7740 = vld [vmem:[%s5 + $0x174] sm:$0xff]
      %v7741 = vld [vmem:[%s5 + $0x17c] sm:$0xf]
      %v7742 = vld [vmem:[%s6] sm:$0x7]
      %v7744 = vlaneseq
      %v7745 = vshrl.u32 %v7744, 7
      %v7746 = vsub.s32 0, %v7745
      %v7747 = vrot.slane %v7742, %v7746
      %v7748 = vlaneseq
      %v7749 = vshrl.u32 %v7748, 7
      %v7750 = vsub.s32 1, %v7749
      %v7751 = vrot.slane %v7742, %v7750
      %v7752 = vlaneseq
      %v7753 = vshrl.u32 %v7752, 7
      %v7754 = vsub.s32 2, %v7753
      %v7755 = vrot.slane %v7742, %v7754
      %v7823 = vunpack.c.l.b16 %v7678
      %v7824 = vunpack.c.h.b16 %v7678
      %v7825 = vunpack.c.l.b16 %v7679
      %v7826 = vunpack.c.l.b16 %v7680
      %v7827 = vunpack.c.h.b16 %v7680
      %v7828 = vunpack.c.l.b16 %v7681
      %v7829 = vunpack.c.l.b16 %v7682
      %v7830 = vunpack.c.h.b16 %v7682
      %v7831 = vunpack.c.l.b16 %v7683
      %v7832 = vunpack.c.l.b16 %v7684
      %v7833 = vunpack.c.h.b16 %v7684
      %v7834 = vunpack.c.l.b16 %v7685
      %v7835 = vunpack.c.l.b16 %v7686
      %v7836 = vunpack.c.h.b16 %v7686
      %v7837 = vunpack.c.l.b16 %v7687
      %v7838 = vunpack.c.l.b16 %v7688
      %v7839 = vunpack.c.h.b16 %v7688
      %v7840 = vunpack.c.l.b16 %v7689
      %v7841 = vunpack.c.l.b16 %v7690
      %v7842 = vunpack.c.h.b16 %v7690
      %v7843 = vunpack.c.l.b16 %v7691
      %v7844 = vunpack.c.l.b16 %v7692
      %v7845 = vunpack.c.h.b16 %v7692
      %v7846 = vunpack.c.l.b16 %v7693
      %v7847 = vunpack.c.l.b16 %v7694
      %v7848 = vunpack.c.h.b16 %v7694
      %v7849 = vunpack.c.l.b16 %v7695
      %v7850 = vunpack.c.l.b16 %v7696
      %v7851 = vunpack.c.h.b16 %v7696
      %v7852 = vunpack.c.l.b16 %v7697
      %v7853 = vunpack.c.l.b16 %v7698
      %v7854 = vunpack.c.h.b16 %v7698
      %v7855 = vunpack.c.l.b16 %v7699
      %v7856 = vunpack.c.l.b16 %v7700
      %v7857 = vunpack.c.h.b16 %v7700
      %v7858 = vunpack.c.l.b16 %v7701
      %v7859 = vunpack.c.l.b16 %v7702
      %v7860 = vunpack.c.h.b16 %v7702
      %v7861 = vunpack.c.l.b16 %v7703
      %v7862 = vunpack.c.l.b16 %v7704
      %v7863 = vunpack.c.h.b16 %v7704
      %v7864 = vunpack.c.l.b16 %v7705
      %v7865 = vunpack.c.l.b16 %v7706
      %v7866 = vunpack.c.h.b16 %v7706
      %v7867 = vunpack.c.l.b16 %v7707
      %v7868 = vunpack.c.l.b16 %v7708
      %v7869 = vunpack.c.h.b16 %v7708
      %v7870 = vunpack.c.l.b16 %v7709
      %v7871 = vunpack.c.l.b16 %v7710
      %v7872 = vunpack.c.h.b16 %v7710
      %v7873 = vunpack.c.l.b16 %v7711
      %v7874 = vunpack.c.l.b16 %v7712
      %v7875 = vunpack.c.h.b16 %v7712
      %v7876 = vunpack.c.l.b16 %v7713
      %v7877 = vunpack.c.l.b16 %v7714
      %v7878 = vunpack.c.h.b16 %v7714
      %v7879 = vunpack.c.l.b16 %v7715
      %v7880 = vunpack.c.l.b16 %v7716
      %v7881 = vunpack.c.h.b16 %v7716
      %v7882 = vunpack.c.l.b16 %v7717
      %v7883 = vunpack.c.l.b16 %v7718
      %v7884 = vunpack.c.h.b16 %v7718
      %v7885 = vunpack.c.l.b16 %v7719
      %v7886 = vunpack.c.l.b16 %v7720
      %v7887 = vunpack.c.h.b16 %v7720
      %v7888 = vunpack.c.l.b16 %v7721
      %v7889 = vunpack.c.l.b16 %v7722
      %v7890 = vunpack.c.h.b16 %v7722
      %v7891 = vunpack.c.l.b16 %v7723
      %v7892 = vunpack.c.l.b16 %v7724
      %v7893 = vunpack.c.h.b16 %v7724
      %v7894 = vunpack.c.l.b16 %v7725
      %v7895 = vunpack.c.l.b16 %v7726
      %v7896 = vunpack.c.h.b16 %v7726
      %v7897 = vunpack.c.l.b16 %v7727
      %v7898 = vunpack.c.l.b16 %v7728
      %v7899 = vunpack.c.h.b16 %v7728
      %v7900 = vunpack.c.l.b16 %v7729
      %v7901 = vunpack.c.l.b16 %v7730
      %v7902 = vunpack.c.h.b16 %v7730
      %v7903 = vunpack.c.l.b16 %v7731
      %v7904 = vunpack.c.l.b16 %v7732
      %v7905 = vunpack.c.h.b16 %v7732
      %v7906 = vunpack.c.l.b16 %v7733
      %v7907 = vunpack.c.l.b16 %v7734
      %v7908 = vunpack.c.h.b16 %v7734
      %v7909 = vunpack.c.l.b16 %v7735
      %v7910 = vunpack.c.l.b16 %v7736
      %v7911 = vunpack.c.h.b16 %v7736
      %v7912 = vunpack.c.l.b16 %v7737
      %v7913 = vunpack.c.l.b16 %v7738
      %v7914 = vunpack.c.h.b16 %v7738
      %v7915 = vunpack.c.l.b16 %v7739
      %v7916 = vunpack.c.l.b16 %v7740
      %v7917 = vunpack.c.h.b16 %v7740
      %v7918 = vunpack.c.l.b16 %v7741
      %v7919 = vpack.c.b16 %v7826, %v7823
      %v7920 = vpack.c.b16 %v7827, %v7824
      %v7921 = vpack.c.b16 %v7828, %v7825
      %v7922 = vpack.c.b16 %v7832, %v7829
      %v7923 = vpack.c.b16 %v7833, %v7830
      %v7924 = vpack.c.b16 %v7834, %v7831
      %v7925 = vpack.c.b16 %v7838, %v7835
      %v7926 = vpack.c.b16 %v7839, %v7836
      %v7927 = vpack.c.b16 %v7840, %v7837
      %v7928 = vpack.c.b16 %v7844, %v7841
      %v7929 = vpack.c.b16 %v7845, %v7842
      %v7930 = vpack.c.b16 %v7846, %v7843
      %v7931 = vpack.c.b16 %v7850, %v7847
      %v7932 = vpack.c.b16 %v7851, %v7848
      %v7933 = vpack.c.b16 %v7852, %v7849
      %v7934 = vpack.c.b16 %v7856, %v7853
      %v7935 = vpack.c.b16 %v7857, %v7854
      %v7936 = vpack.c.b16 %v7858, %v7855
      %v7937 = vpack.c.b16 %v7862, %v7859
      %v7938 = vpack.c.b16 %v7863, %v7860
      %v7939 = vpack.c.b16 %v7864, %v7861
      %v7940 = vpack.c.b16 %v7868, %v7865
      %v7941 = vpack.c.b16 %v7869, %v7866
      %v7942 = vpack.c.b16 %v7870, %v7867
      %v7943 = vpack.c.b16 %v7874, %v7871
      %v7944 = vpack.c.b16 %v7875, %v7872
      %v7945 = vpack.c.b16 %v7876, %v7873
      %v7946 = vpack.c.b16 %v7880, %v7877
      %v7947 = vpack.c.b16 %v7881, %v7878
      %v7948 = vpack.c.b16 %v7882, %v7879
      %v7949 = vpack.c.b16 %v7886, %v7883
      %v7950 = vpack.c.b16 %v7887, %v7884
      %v7951 = vpack.c.b16 %v7888, %v7885
      %v7952 = vpack.c.b16 %v7892, %v7889
      %v7953 = vpack.c.b16 %v7893, %v7890
      %v7954 = vpack.c.b16 %v7894, %v7891
      %v7955 = vpack.c.b16 %v7898, %v7895
      %v7956 = vpack.c.b16 %v7899, %v7896
      %v7957 = vpack.c.b16 %v7900, %v7897
      %v7958 = vpack.c.b16 %v7904, %v7901
      %v7959 = vpack.c.b16 %v7905, %v7902
      %v7960 = vpack.c.b16 %v7906, %v7903
      %v7961 = vpack.c.b16 %v7910, %v7907
      %v7962 = vpack.c.b16 %v7911, %v7908
      %v7963 = vpack.c.b16 %v7912, %v7909
      %v7964 = vpack.c.b16 %v7916, %v7913
      %v7965 = vpack.c.b16 %v7917, %v7914
      %v7966 = vpack.c.b16 %v7918, %v7915
      %8015 = vmatprep.subr.bf16.mxu0 %v7941
      %8016 = vmatpush1.bf16.msra.mxu0 %v7940
      %8017 = vmatprep.subr.bf16.mxu0 %v7938
      %8018 = vmatpush1.bf16.msra.mxu0 %v7937
      %8019 = vmatprep.subr.bf16.mxu0 %v7935
      %8020 = vmatpush1.bf16.msra.mxu0 %v7934
      %8021 = vmatprep.subr.bf16.mxu0 %v7932
      %8022 = vmatpush1.bf16.msra.mxu0 %v7931
      %8023 = vmatprep.subr.bf16.mxu0 %v7929
      %8024 = vmatpush1.bf16.msra.mxu0 %v7928
      %8025 = vmatprep.subr.bf16.mxu0 %v7926
      %8026 = vmatpush1.bf16.msra.mxu0 %v7925
      %8027 = vmatprep.subr.bf16.mxu0 %v7923
      %8028 = vmatpush1.bf16.msra.mxu0 %v7922
      %8029 = vmatprep.subr.bf16.mxu0 %v7920
      %8030 = vmatpush1.bf16.msra.mxu0 %v7919
      %8031 = vmatprep.subr.bf16.mxu0 %v7965
      %8032 = vmatpush2.bf16.msra.mxu0 %v7964
      %8033 = vmatprep.subr.bf16.mxu0 %v7962
      %8034 = vmatpush2.bf16.msra.mxu0 %v7961
      %8035 = vmatprep.subr.bf16.mxu0 %v7959
      %8036 = vmatpush2.bf16.msra.mxu0 %v7958
      %8037 = vmatprep.subr.bf16.mxu0 %v7956
      %8038 = vmatpush2.bf16.msra.mxu0 %v7955
      %8039 = vmatprep.subr.bf16.mxu0 %v7953
      %8040 = vmatpush2.bf16.msra.mxu0 %v7952
      %8041 = vmatprep.subr.bf16.mxu0 %v7950
      %8042 = vmatpush2.bf16.msra.mxu0 %v7949
      %8043 = vmatprep.subr.bf16.mxu0 %v7947
      %8044 = vmatpush2.bf16.msra.mxu0 %v7946
      %8045 = vmatprep.subr.bf16.mxu0 %v7944
      %8046 = vmatpush2.bf16.msra.mxu0 %v7943
      %8047 = vmatprep.mubr.bf16.mxu0 %v7615
      %8048 = vmatmul.mubr.bf16.gmra.mxu0 %v7614
      %v8049 = vpop.f32.mrf.mxu0
      %v8050 = vadd.f32 %v7747, %v8049
      %v8051 = vpop.f32.mrf.mxu0
      %v8052 = vadd.f32 %v7751, %v8051
      %v8053 = vpop.f32.mrf.mxu0
      %v8054 = vadd.f32 %v7747, %v8053
      %v8055 = vpop.f32.mrf.mxu0
      %v8056 = vadd.f32 %v7751, %v8055
      %8057 = vmatprep.mubr.bf16.mxu0 %v7617
      %8058 = vmatmul.mubr.bf16.gmra.mxu0 %v7616
      %v8059 = vpop.f32.mrf.mxu0
      %v8060 = vadd.f32 %v7747, %v8059
      %v8061 = vpop.f32.mrf.mxu0
      %v8062 = vadd.f32 %v7751, %v8061
      %v8063 = vpop.f32.mrf.mxu0
      %v8064 = vadd.f32 %v7747, %v8063
      %v8065 = vpop.f32.mrf.mxu0
      %v8066 = vadd.f32 %v7751, %v8065
      %8067 = vmatprep.mubr.bf16.mxu0 %v7619
      %8068 = vmatmul.mubr.bf16.gmra.mxu0 %v7618
      %v8069 = vpop.f32.mrf.mxu0
      %v8070 = vadd.f32 %v7747, %v8069
      %v8071 = vpop.f32.mrf.mxu0
      %v8072 = vadd.f32 %v7751, %v8071
      %v8073 = vpop.f32.mrf.mxu0
      %v8074 = vadd.f32 %v7747, %v8073
      %v8075 = vpop.f32.mrf.mxu0
      %v8076 = vadd.f32 %v7751, %v8075
      %8077 = vmatprep.mubr.bf16.mxu0 %v7621
      %8078 = vmatmul.mubr.bf16.gmra.mxu0 %v7620
      %v8079 = vpop.f32.mrf.mxu0
      %v8080 = vadd.f32 %v7747, %v8079
      %v8081 = vpop.f32.mrf.mxu0
      %v8082 = vadd.f32 %v7751, %v8081
      %v8083 = vpop.f32.mrf.mxu0
      %v8084 = vadd.f32 %v7747, %v8083
      %v8085 = vpop.f32.mrf.mxu0
      %v8086 = vadd.f32 %v7751, %v8085
      %8087 = vmatprep.mubr.bf16.mxu0 %v7623
      %8088 = vmatmul.mubr.bf16.gmra.mxu0 %v7622
      %v8089 = vpop.f32.mrf.mxu0
      %v8090 = vadd.f32 %v7747, %v8089
      %v8091 = vpop.f32.mrf.mxu0
      %v8092 = vadd.f32 %v7751, %v8091
      %v8093 = vpop.f32.mrf.mxu0
      %v8094 = vadd.f32 %v7747, %v8093
      %v8095 = vpop.f32.mrf.mxu0
      %v8096 = vadd.f32 %v7751, %v8095
      %8097 = vmatprep.mubr.bf16.mxu0 %v7625
      %8098 = vmatmul.mubr.bf16.gmra.mxu0 %v7624
      %v8099 = vpop.f32.mrf.mxu0
      %v8100 = vadd.f32 %v7747, %v8099
      %v8101 = vpop.f32.mrf.mxu0
      %v8102 = vadd.f32 %v7751, %v8101
      %v8103 = vpop.f32.mrf.mxu0
      %v8104 = vadd.f32 %v7747, %v8103
      %v8105 = vpop.f32.mrf.mxu0
      %v8106 = vadd.f32 %v7751, %v8105
      %8107 = vmatprep.mubr.bf16.mxu0 %v7627
      %8108 = vmatmul.mubr.bf16.gmra.mxu0 %v7626
      %v8109 = vpop.f32.mrf.mxu0
      %v8110 = vadd.f32 %v7747, %v8109
      %v8111 = vpop.f32.mrf.mxu0
      %v8112 = vadd.f32 %v7751, %v8111
      %v8113 = vpop.f32.mrf.mxu0
      %v8114 = vadd.f32 %v7747, %v8113
      %v8115 = vpop.f32.mrf.mxu0
      %v8116 = vadd.f32 %v7751, %v8115
      %8117 = vmatprep.mubr.bf16.mxu0 %v7629
      %8118 = vmatmul.mubr.bf16.gmra.mxu0 %v7628
      %v8119 = vpop.f32.mrf.mxu0
      %v8120 = vadd.f32 %v7747, %v8119
      %v8121 = vpop.f32.mrf.mxu0
      %v8122 = vadd.f32 %v7751, %v8121
      %v8123 = vpop.f32.mrf.mxu0
      %v8124 = vadd.f32 %v7747, %v8123
      %v8125 = vpop.f32.mrf.mxu0
      %v8126 = vadd.f32 %v7751, %v8125
      %8127 = vmatprep.mubr.bf16.mxu0 %v7631
      %8128 = vmatmul.mubr.bf16.gmra.mxu0 %v7630
      %v8129 = vpop.f32.mrf.mxu0
      %v8130 = vadd.f32 %v7747, %v8129
      %v8131 = vpop.f32.mrf.mxu0
      %v8132 = vadd.f32 %v7751, %v8131
      %v8133 = vpop.f32.mrf.mxu0
      %v8134 = vadd.f32 %v7747, %v8133
      %v8135 = vpop.f32.mrf.mxu0
      %v8136 = vadd.f32 %v7751, %v8135
      %8137 = vmatprep.mubr.bf16.mxu0 %v7633
      %8138 = vmatmul.mubr.bf16.gmra.mxu0 %v7632
      %v8139 = vpop.f32.mrf.mxu0
      %v8140 = vadd.f32 %v7747, %v8139
      %v8141 = vpop.f32.mrf.mxu0
      %v8142 = vadd.f32 %v7751, %v8141
      %v8143 = vpop.f32.mrf.mxu0
      %v8144 = vadd.f32 %v7747, %v8143
      %v8145 = vpop.f32.mrf.mxu0
      %v8146 = vadd.f32 %v7751, %v8145
      %8147 = vmatprep.mubr.bf16.mxu0 %v7635
      %8148 = vmatmul.mubr.bf16.gmra.mxu0 %v7634
      %v8149 = vpop.f32.mrf.mxu0
      %v8150 = vadd.f32 %v7747, %v8149
      %v8151 = vpop.f32.mrf.mxu0
      %v8152 = vadd.f32 %v7751, %v8151
      %v8153 = vpop.f32.mrf.mxu0
      %v8154 = vadd.f32 %v7747, %v8153
      %v8155 = vpop.f32.mrf.mxu0
      %v8156 = vadd.f32 %v7751, %v8155
      %8157 = vmatprep.mubr.bf16.mxu0 %v7637
      %8158 = vmatmul.mubr.bf16.gmra.mxu0 %v7636
      %v8159 = vpop.f32.mrf.mxu0
      %v8160 = vadd.f32 %v7747, %v8159
      %v8161 = vpop.f32.mrf.mxu0
      %v8162 = vadd.f32 %v7751, %v8161
      %v8163 = vpop.f32.mrf.mxu0
      %v8164 = vadd.f32 %v7747, %v8163
      %v8165 = vpop.f32.mrf.mxu0
      %v8166 = vadd.f32 %v7751, %v8165
      %8167 = vmatprep.mubr.bf16.mxu0 %v7639
      %8168 = vmatmul.mubr.bf16.gmra.mxu0 %v7638
      %v8169 = vpop.f32.mrf.mxu0
      %v8170 = vadd.f32 %v7747, %v8169
      %v8171 = vpop.f32.mrf.mxu0
      %v8172 = vadd.f32 %v7751, %v8171
      %v8173 = vpop.f32.mrf.mxu0
      %v8174 = vadd.f32 %v7747, %v8173
      %v8175 = vpop.f32.mrf.mxu0
      %v8176 = vadd.f32 %v7751, %v8175
      %8177 = vmatprep.mubr.bf16.mxu0 %v7641
      %8178 = vmatmul.mubr.bf16.gmra.mxu0 %v7640
      %v8179 = vpop.f32.mrf.mxu0
      %v8180 = vadd.f32 %v7747, %v8179
      %v8181 = vpop.f32.mrf.mxu0
      %v8182 = vadd.f32 %v7751, %v8181
      %v8183 = vpop.f32.mrf.mxu0
      %v8184 = vadd.f32 %v7747, %v8183
      %v8185 = vpop.f32.mrf.mxu0
      %v8186 = vadd.f32 %v7751, %v8185
      %8187 = vmatprep.mubr.bf16.mxu0 %v7643
      %8188 = vmatmul.mubr.bf16.gmra.mxu0 %v7642
      %v8189 = vpop.f32.mrf.mxu0
      %v8190 = vadd.f32 %v7747, %v8189
      %v8191 = vpop.f32.mrf.mxu0
      %v8192 = vadd.f32 %v7751, %v8191
      %v8193 = vpop.f32.mrf.mxu0
      %v8194 = vadd.f32 %v7747, %v8193
      %v8195 = vpop.f32.mrf.mxu0
      %v8196 = vadd.f32 %v7751, %v8195
      %8197 = vmatprep.mubr.bf16.mxu0 %v7645
      %8198 = vmatmul.mubr.bf16.gmra.mxu0 %v7644
      %v8199 = vpop.f32.mrf.mxu0
      %v8200 = vadd.f32 %v7747, %v8199
      %v8201 = vpop.f32.mrf.mxu0
      %v8202 = vadd.f32 %v7751, %v8201
      %v8203 = vpop.f32.mrf.mxu0
      %v8204 = vadd.f32 %v7747, %v8203
      %v8205 = vpop.f32.mrf.mxu0
      %v8206 = vadd.f32 %v7751, %v8205
      %8207 = vmatprep.mubr.bf16.mxu0 %v7647
      %8208 = vmatmul.mubr.bf16.gmra.mxu0 %v7646
      %v8209 = vpop.f32.mrf.mxu0
      %v8210 = vadd.f32 %v7747, %v8209
      %v8211 = vpop.f32.mrf.mxu0
      %v8212 = vadd.f32 %v7751, %v8211
      %v8213 = vpop.f32.mrf.mxu0
      %v8214 = vadd.f32 %v7747, %v8213
      %v8215 = vpop.f32.mrf.mxu0
      %v8216 = vadd.f32 %v7751, %v8215
      %8217 = vmatprep.mubr.bf16.mxu0 %v7649
      %8218 = vmatmul.mubr.bf16.gmra.mxu0 %v7648
      %v8219 = vpop.f32.mrf.mxu0
      %v8220 = vadd.f32 %v7747, %v8219
      %v8221 = vpop.f32.mrf.mxu0
      %v8222 = vadd.f32 %v7751, %v8221
      %v8223 = vpop.f32.mrf.mxu0
      %v8224 = vadd.f32 %v7747, %v8223
      %v8225 = vpop.f32.mrf.mxu0
      %v8226 = vadd.f32 %v7751, %v8225
      %8227 = vmatprep.mubr.bf16.mxu0 %v7651
      %8228 = vmatmul.mubr.bf16.gmra.mxu0 %v7650
      %v8229 = vpop.f32.mrf.mxu0
      %v8230 = vadd.f32 %v7747, %v8229
      %v8231 = vpop.f32.mrf.mxu0
      %v8232 = vadd.f32 %v7751, %v8231
      %v8233 = vpop.f32.mrf.mxu0
      %v8234 = vadd.f32 %v7747, %v8233
      %v8235 = vpop.f32.mrf.mxu0
      %v8236 = vadd.f32 %v7751, %v8235
      %8237 = vmatprep.mubr.bf16.mxu0 %v7653
      %8238 = vmatmul.mubr.bf16.gmra.mxu0 %v7652
      %v8239 = vpop.f32.mrf.mxu0
      %v8240 = vadd.f32 %v7747, %v8239
      %v8241 = vpop.f32.mrf.mxu0
      %v8242 = vadd.f32 %v7751, %v8241
      %v8243 = vpop.f32.mrf.mxu0
      %v8244 = vadd.f32 %v7747, %v8243
      %v8245 = vpop.f32.mrf.mxu0
      %v8246 = vadd.f32 %v7751, %v8245
      %8247 = vmatprep.mubr.bf16.mxu0 %v7655
      %8248 = vmatmul.mubr.bf16.gmra.mxu0 %v7654
      %v8249 = vpop.f32.mrf.mxu0
      %v8250 = vadd.f32 %v7747, %v8249
      %v8251 = vpop.f32.mrf.mxu0
      %v8252 = vadd.f32 %v7751, %v8251
      %v8253 = vpop.f32.mrf.mxu0
      %v8254 = vadd.f32 %v7747, %v8253
      %v8255 = vpop.f32.mrf.mxu0
      %v8256 = vadd.f32 %v7751, %v8255
      %8257 = vmatprep.mubr.bf16.mxu0 %v7657
      %8258 = vmatmul.mubr.bf16.gmra.mxu0 %v7656
      %v8259 = vpop.f32.mrf.mxu0
      %v8260 = vadd.f32 %v7747, %v8259
      %v8261 = vpop.f32.mrf.mxu0
      %v8262 = vadd.f32 %v7751, %v8261
      %v8263 = vpop.f32.mrf.mxu0
      %v8264 = vadd.f32 %v7747, %v8263
      %v8265 = vpop.f32.mrf.mxu0
      %v8266 = vadd.f32 %v7751, %v8265
      %8267 = vmatprep.mubr.bf16.mxu0 %v7659
      %8268 = vmatmul.mubr.bf16.gmra.mxu0 %v7658
      %v8269 = vpop.f32.mrf.mxu0
      %v8270 = vadd.f32 %v7747, %v8269
      %v8271 = vpop.f32.mrf.mxu0
      %v8272 = vadd.f32 %v7751, %v8271
      %v8273 = vpop.f32.mrf.mxu0
      %v8274 = vadd.f32 %v7747, %v8273
      %v8275 = vpop.f32.mrf.mxu0
      %v8276 = vadd.f32 %v7751, %v8275
      %8277 = vmatprep.mubr.bf16.mxu0 %v7661
      %8278 = vmatmul.mubr.bf16.gmra.mxu0 %v7660
      %v8279 = vpop.f32.mrf.mxu0
      %v8280 = vadd.f32 %v7747, %v8279
      %v8281 = vpop.f32.mrf.mxu0
      %v8282 = vadd.f32 %v7751, %v8281
      %v8283 = vpop.f32.mrf.mxu0
      %v8284 = vadd.f32 %v7747, %v8283
      %v8285 = vpop.f32.mrf.mxu0
      %v8286 = vadd.f32 %v7751, %v8285
      %8287 = vmatprep.mubr.bf16.mxu0 %v7663
      %8288 = vmatmul.mubr.bf16.gmra.mxu0 %v7662
      %v8289 = vpop.f32.mrf.mxu0
      %v8290 = vadd.f32 %v7747, %v8289
      %v8291 = vpop.f32.mrf.mxu0
      %v8292 = vadd.f32 %v7751, %v8291
      %v8293 = vpop.f32.mrf.mxu0
      %v8294 = vadd.f32 %v7747, %v8293
      %v8295 = vpop.f32.mrf.mxu0
      %v8296 = vadd.f32 %v7751, %v8295
      %8297 = vmatprep.mubr.bf16.mxu0 %v7665
      %8298 = vmatmul.mubr.bf16.gmra.mxu0 %v7664
      %v8299 = vpop.f32.mrf.mxu0
      %v8300 = vadd.f32 %v7747, %v8299
      %v8301 = vpop.f32.mrf.mxu0
      %v8302 = vadd.f32 %v7751, %v8301
      %v8303 = vpop.f32.mrf.mxu0
      %v8304 = vadd.f32 %v7747, %v8303
      %v8305 = vpop.f32.mrf.mxu0
      %v8306 = vadd.f32 %v7751, %v8305
      %8307 = vmatprep.mubr.bf16.mxu0 %v7667
      %8308 = vmatmul.mubr.bf16.gmra.mxu0 %v7666
      %v8309 = vpop.f32.mrf.mxu0
      %v8310 = vadd.f32 %v7747, %v8309
      %v8311 = vpop.f32.mrf.mxu0
      %v8312 = vadd.f32 %v7751, %v8311
      %v8313 = vpop.f32.mrf.mxu0
      %v8314 = vadd.f32 %v7747, %v8313
      %v8315 = vpop.f32.mrf.mxu0
      %v8316 = vadd.f32 %v7751, %v8315
      %8317 = vmatprep.mubr.bf16.mxu0 %v7669
      %8318 = vmatmul.mubr.bf16.gmra.mxu0 %v7668
      %v8319 = vpop.f32.mrf.mxu0
      %v8320 = vadd.f32 %v7747, %v8319
      %v8321 = vpop.f32.mrf.mxu0
      %v8322 = vadd.f32 %v7751, %v8321
      %v8323 = vpop.f32.mrf.mxu0
      %v8324 = vadd.f32 %v7747, %v8323
      %v8325 = vpop.f32.mrf.mxu0
      %v8326 = vadd.f32 %v7751, %v8325
      %8327 = vmatprep.mubr.bf16.mxu0 %v7671
      %8328 = vmatmul.mubr.bf16.gmra.mxu0 %v7670
      %v8329 = vpop.f32.mrf.mxu0
      %v8330 = vadd.f32 %v7747, %v8329
      %v8331 = vpop.f32.mrf.mxu0
      %v8332 = vadd.f32 %v7751, %v8331
      %v8333 = vpop.f32.mrf.mxu0
      %v8334 = vadd.f32 %v7747, %v8333
      %v8335 = vpop.f32.mrf.mxu0
      %v8336 = vadd.f32 %v7751, %v8335
      %8337 = vmatprep.mubr.bf16.mxu0 %v7673
      %8338 = vmatmul.mubr.bf16.gmra.mxu0 %v7672
      %v8339 = vpop.f32.mrf.mxu0
      %v8340 = vadd.f32 %v7747, %v8339
      %v8341 = vpop.f32.mrf.mxu0
      %v8342 = vadd.f32 %v7751, %v8341
      %v8343 = vpop.f32.mrf.mxu0
      %v8344 = vadd.f32 %v7747, %v8343
      %v8345 = vpop.f32.mrf.mxu0
      %v8346 = vadd.f32 %v7751, %v8345
      %8347 = vmatprep.mubr.bf16.mxu0 %v7675
      %8348 = vmatmul.mubr.bf16.gmra.mxu0 %v7674
      %v8349 = vpop.f32.mrf.mxu0
      %v8350 = vadd.f32 %v7747, %v8349
      %v8351 = vpop.f32.mrf.mxu0
      %v8352 = vadd.f32 %v7751, %v8351
      %v8353 = vpop.f32.mrf.mxu0
      %v8354 = vadd.f32 %v7747, %v8353
      %v8355 = vpop.f32.mrf.mxu0
      %v8356 = vadd.f32 %v7751, %v8355
      %8357 = vmatprep.mubr.bf16.mxu0 %v7677
      %8358 = vmatmul.mubr.bf16.gmra.mxu0 %v7676
      %v8359 = vpop.f32.mrf.mxu0
      %v8360 = vadd.f32 %v7747, %v8359
      %v8361 = vpop.f32.mrf.mxu0
      %v8362 = vadd.f32 %v7751, %v8361
      %v8363 = vpop.f32.mrf.mxu0
      %v8364 = vadd.f32 %v7747, %v8363
      %v8365 = vpop.f32.mrf.mxu0
      %v8366 = vadd.f32 %v7751, %v8365
      %8367 = vdwg.mxu0
      %8368 = vmatprep.subr.bf16.mxu0 0
      %8369 = vmatpush1.bf16.msra.mxu0 %v7942
      %8370 = vmatprep.subr.bf16.mxu0 0
      %8371 = vmatpush1.bf16.msra.mxu0 %v7939
      %8372 = vmatprep.subr.bf16.mxu0 0
      %8373 = vmatpush1.bf16.msra.mxu0 %v7936
      %8374 = vmatprep.subr.bf16.mxu0 0
      %8375 = vmatpush1.bf16.msra.mxu0 %v7933
      %8376 = vmatprep.subr.bf16.mxu0 0
      %8377 = vmatpush1.bf16.msra.mxu0 %v7930
      %8378 = vmatprep.subr.bf16.mxu0 0
      %8379 = vmatpush1.bf16.msra.mxu0 %v7927
      %8380 = vmatprep.subr.bf16.mxu0 0
      %8381 = vmatpush1.bf16.msra.mxu0 %v7924
      %8382 = vmatprep.subr.bf16.mxu0 0
      %8383 = vmatpush1.bf16.msra.mxu0 %v7921
      %8384 = vmatprep.subr.bf16.mxu0 0
      %8385 = vmatpush2.bf16.msra.mxu0 %v7966
      %8386 = vmatprep.subr.bf16.mxu0 0
      %8387 = vmatpush2.bf16.msra.mxu0 %v7963
      %8388 = vmatprep.subr.bf16.mxu0 0
      %8389 = vmatpush2.bf16.msra.mxu0 %v7960
      %8390 = vmatprep.subr.bf16.mxu0 0
      %8391 = vmatpush2.bf16.msra.mxu0 %v7957
      %8392 = vmatprep.subr.bf16.mxu0 0
      %8393 = vmatpush2.bf16.msra.mxu0 %v7954
      %8394 = vmatprep.subr.bf16.mxu0 0
      %8395 = vmatpush2.bf16.msra.mxu0 %v7951
      %8396 = vmatprep.subr.bf16.mxu0 0
      %8397 = vmatpush2.bf16.msra.mxu0 %v7948
      %8398 = vmatprep.subr.bf16.mxu0 0
      %8399 = vmatpush2.bf16.msra.mxu0 %v7945
      %8400 = vmatprep.mubr.bf16.mxu0 %v7615
      %8401 = vmatmul.mubr.bf16.gmra.mxu0 %v7614
      %v8402 = vpop.f32.mrf.mxu0
      %v8403 = vadd.f32 %v7755, %v8402
      %v8404 = vpop.f32.mrf.mxu0
      %v8405 = vpop.f32.mrf.mxu0
      %v8406 = vadd.f32 %v7755, %v8405
      %v8407 = vpop.f32.mrf.mxu0
      %8408 = vmatprep.mubr.bf16.mxu0 %v7617
      %8409 = vmatmul.mubr.bf16.gmra.mxu0 %v7616
      %v8410 = vpop.f32.mrf.mxu0
      %v8411 = vadd.f32 %v7755, %v8410
      %v8412 = vpop.f32.mrf.mxu0
      %v8413 = vpop.f32.mrf.mxu0
      %v8414 = vadd.f32 %v7755, %v8413
      %v8415 = vpop.f32.mrf.mxu0
      %8416 = vmatprep.mubr.bf16.mxu0 %v7619
      %8417 = vmatmul.mubr.bf16.gmra.mxu0 %v7618
      %v8418 = vpop.f32.mrf.mxu0
      %v8419 = vadd.f32 %v7755, %v8418
      %v8420 = vpop.f32.mrf.mxu0
      %v8421 = vpop.f32.mrf.mxu0
      %v8422 = vadd.f32 %v7755, %v8421
      %v8423 = vpop.f32.mrf.mxu0
      %8424 = vmatprep.mubr.bf16.mxu0 %v7621
      %8425 = vmatmul.mubr.bf16.gmra.mxu0 %v7620
      %v8426 = vpop.f32.mrf.mxu0
      %v8427 = vadd.f32 %v7755, %v8426
      %v8428 = vpop.f32.mrf.mxu0
      %v8429 = vpop.f32.mrf.mxu0
      %v8430 = vadd.f32 %v7755, %v8429
      %v8431 = vpop.f32.mrf.mxu0
      %8432 = vmatprep.mubr.bf16.mxu0 %v7623
      %8433 = vmatmul.mubr.bf16.gmra.mxu0 %v7622
      %v8434 = vpop.f32.mrf.mxu0
      %v8435 = vadd.f32 %v7755, %v8434
      %v8436 = vpop.f32.mrf.mxu0
      %v8437 = vpop.f32.mrf.mxu0
      %v8438 = vadd.f32 %v7755, %v8437
      %v8439 = vpop.f32.mrf.mxu0
      %8440 = vmatprep.mubr.bf16.mxu0 %v7625
      %8441 = vmatmul.mubr.bf16.gmra.mxu0 %v7624
      %v8442 = vpop.f32.mrf.mxu0
      %v8443 = vadd.f32 %v7755, %v8442
      %v8444 = vpop.f32.mrf.mxu0
      %v8445 = vpop.f32.mrf.mxu0
      %v8446 = vadd.f32 %v7755, %v8445
      %v8447 = vpop.f32.mrf.mxu0
      %8448 = vmatprep.mubr.bf16.mxu0 %v7627
      %8449 = vmatmul.mubr.bf16.gmra.mxu0 %v7626
      %v8450 = vpop.f32.mrf.mxu0
      %v8451 = vadd.f32 %v7755, %v8450
      %v8452 = vpop.f32.mrf.mxu0
      %v8453 = vpop.f32.mrf.mxu0
      %v8454 = vadd.f32 %v7755, %v8453
      %v8455 = vpop.f32.mrf.mxu0
      %8456 = vmatprep.mubr.bf16.mxu0 %v7629
      %8457 = vmatmul.mubr.bf16.gmra.mxu0 %v7628
      %v8458 = vpop.f32.mrf.mxu0
      %v8459 = vadd.f32 %v7755, %v8458
      %v8460 = vpop.f32.mrf.mxu0
      %v8461 = vpop.f32.mrf.mxu0
      %v8462 = vadd.f32 %v7755, %v8461
      %v8463 = vpop.f32.mrf.mxu0
      %8464 = vmatprep.mubr.bf16.mxu0 %v7631
      %8465 = vmatmul.mubr.bf16.gmra.mxu0 %v7630
      %v8466 = vpop.f32.mrf.mxu0
      %v8467 = vadd.f32 %v7755, %v8466
      %v8468 = vpop.f32.mrf.mxu0
      %v8469 = vpop.f32.mrf.mxu0
      %v8470 = vadd.f32 %v7755, %v8469
      %v8471 = vpop.f32.mrf.mxu0
      %8472 = vmatprep.mubr.bf16.mxu0 %v7633
      %8473 = vmatmul.mubr.bf16.gmra.mxu0 %v7632
      %v8474 = vpop.f32.mrf.mxu0
      %v8475 = vadd.f32 %v7755, %v8474
      %v8476 = vpop.f32.mrf.mxu0
      %v8477 = vpop.f32.mrf.mxu0
      %v8478 = vadd.f32 %v7755, %v8477
      %v8479 = vpop.f32.mrf.mxu0
      %8480 = vmatprep.mubr.bf16.mxu0 %v7635
      %8481 = vmatmul.mubr.bf16.gmra.mxu0 %v7634
      %v8482 = vpop.f32.mrf.mxu0
      %v8483 = vadd.f32 %v7755, %v8482
      %v8484 = vpop.f32.mrf.mxu0
      %v8485 = vpop.f32.mrf.mxu0
      %v8486 = vadd.f32 %v7755, %v8485
      %v8487 = vpop.f32.mrf.mxu0
      %8488 = vmatprep.mubr.bf16.mxu0 %v7637
      %8489 = vmatmul.mubr.bf16.gmra.mxu0 %v7636
      %v8490 = vpop.f32.mrf.mxu0
      %v8491 = vadd.f32 %v7755, %v8490
      %v8492 = vpop.f32.mrf.mxu0
      %v8493 = vpop.f32.mrf.mxu0
      %v8494 = vadd.f32 %v7755, %v8493
      %v8495 = vpop.f32.mrf.mxu0
      %8496 = vmatprep.mubr.bf16.mxu0 %v7639
      %8497 = vmatmul.mubr.bf16.gmra.mxu0 %v7638
      %v8498 = vpop.f32.mrf.mxu0
      %v8499 = vadd.f32 %v7755, %v8498
      %v8500 = vpop.f32.mrf.mxu0
      %v8501 = vpop.f32.mrf.mxu0
      %v8502 = vadd.f32 %v7755, %v8501
      %v8503 = vpop.f32.mrf.mxu0
      %8504 = vmatprep.mubr.bf16.mxu0 %v7641
      %8505 = vmatmul.mubr.bf16.gmra.mxu0 %v7640
      %v8506 = vpop.f32.mrf.mxu0
      %v8507 = vadd.f32 %v7755, %v8506
      %v8508 = vpop.f32.mrf.mxu0
      %v8509 = vpop.f32.mrf.mxu0
      %v8510 = vadd.f32 %v7755, %v8509
      %v8511 = vpop.f32.mrf.mxu0
      %8512 = vmatprep.mubr.bf16.mxu0 %v7643
      %8513 = vmatmul.mubr.bf16.gmra.mxu0 %v7642
      %v8514 = vpop.f32.mrf.mxu0
      %v8515 = vadd.f32 %v7755, %v8514
      %v8516 = vpop.f32.mrf.mxu0
      %v8517 = vpop.f32.mrf.mxu0
      %v8518 = vadd.f32 %v7755, %v8517
      %v8519 = vpop.f32.mrf.mxu0
      %8520 = vmatprep.mubr.bf16.mxu0 %v7645
      %8521 = vmatmul.mubr.bf16.gmra.mxu0 %v7644
      %v8522 = vpop.f32.mrf.mxu0
      %v8523 = vadd.f32 %v7755, %v8522
      %v8524 = vpop.f32.mrf.mxu0
      %v8525 = vpop.f32.mrf.mxu0
      %v8526 = vadd.f32 %v7755, %v8525
      %v8527 = vpop.f32.mrf.mxu0
      %8528 = vmatprep.mubr.bf16.mxu0 %v7647
      %8529 = vmatmul.mubr.bf16.gmra.mxu0 %v7646
      %v8530 = vpop.f32.mrf.mxu0
      %v8531 = vadd.f32 %v7755, %v8530
      %v8532 = vpop.f32.mrf.mxu0
      %v8533 = vpop.f32.mrf.mxu0
      %v8534 = vadd.f32 %v7755, %v8533
      %v8535 = vpop.f32.mrf.mxu0
      %8536 = vmatprep.mubr.bf16.mxu0 %v7649
      %8537 = vmatmul.mubr.bf16.gmra.mxu0 %v7648
      %v8538 = vpop.f32.mrf.mxu0
      %v8539 = vadd.f32 %v7755, %v8538
      %v8540 = vpop.f32.mrf.mxu0
      %v8541 = vpop.f32.mrf.mxu0
      %v8542 = vadd.f32 %v7755, %v8541
      %v8543 = vpop.f32.mrf.mxu0
      %8544 = vmatprep.mubr.bf16.mxu0 %v7651
      %8545 = vmatmul.mubr.bf16.gmra.mxu0 %v7650
      %v8546 = vpop.f32.mrf.mxu0
      %v8547 = vadd.f32 %v7755, %v8546
      %v8548 = vpop.f32.mrf.mxu0
      %v8549 = vpop.f32.mrf.mxu0
      %v8550 = vadd.f32 %v7755, %v8549
      %v8551 = vpop.f32.mrf.mxu0
      %8552 = vmatprep.mubr.bf16.mxu0 %v7653
      %8553 = vmatmul.mubr.bf16.gmra.mxu0 %v7652
      %v8554 = vpop.f32.mrf.mxu0
      %v8555 = vadd.f32 %v7755, %v8554
      %v8556 = vpop.f32.mrf.mxu0
      %v8557 = vpop.f32.mrf.mxu0
      %v8558 = vadd.f32 %v7755, %v8557
      %v8559 = vpop.f32.mrf.mxu0
      %8560 = vmatprep.mubr.bf16.mxu0 %v7655
      %8561 = vmatmul.mubr.bf16.gmra.mxu0 %v7654
      %v8562 = vpop.f32.mrf.mxu0
      %v8563 = vadd.f32 %v7755, %v8562
      %v8564 = vpop.f32.mrf.mxu0
      %v8565 = vpop.f32.mrf.mxu0
      %v8566 = vadd.f32 %v7755, %v8565
      %v8567 = vpop.f32.mrf.mxu0
      %8568 = vmatprep.mubr.bf16.mxu0 %v7657
      %8569 = vmatmul.mubr.bf16.gmra.mxu0 %v7656
      %v8570 = vpop.f32.mrf.mxu0
      %v8571 = vadd.f32 %v7755, %v8570
      %v8572 = vpop.f32.mrf.mxu0
      %v8573 = vpop.f32.mrf.mxu0
      %v8574 = vadd.f32 %v7755, %v8573
      %v8575 = vpop.f32.mrf.mxu0
      %8576 = vmatprep.mubr.bf16.mxu0 %v7659
      %8577 = vmatmul.mubr.bf16.gmra.mxu0 %v7658
      %v8578 = vpop.f32.mrf.mxu0
      %v8579 = vadd.f32 %v7755, %v8578
      %v8580 = vpop.f32.mrf.mxu0
      %v8581 = vpop.f32.mrf.mxu0
      %v8582 = vadd.f32 %v7755, %v8581
      %v8583 = vpop.f32.mrf.mxu0
      %8584 = vmatprep.mubr.bf16.mxu0 %v7661
      %8585 = vmatmul.mubr.bf16.gmra.mxu0 %v7660
      %v8586 = vpop.f32.mrf.mxu0
      %v8587 = vadd.f32 %v7755, %v8586
      %v8588 = vpop.f32.mrf.mxu0
      %v8589 = vpop.f32.mrf.mxu0
      %v8590 = vadd.f32 %v7755, %v8589
      %v8591 = vpop.f32.mrf.mxu0
      %8592 = vmatprep.mubr.bf16.mxu0 %v7663
      %8593 = vmatmul.mubr.bf16.gmra.mxu0 %v7662
      %v8594 = vpop.f32.mrf.mxu0
      %v8595 = vadd.f32 %v7755, %v8594
      %v8596 = vpop.f32.mrf.mxu0
      %v8597 = vpop.f32.mrf.mxu0
      %v8598 = vadd.f32 %v7755, %v8597
      %v8599 = vpop.f32.mrf.mxu0
      %8600 = vmatprep.mubr.bf16.mxu0 %v7665
      %8601 = vmatmul.mubr.bf16.gmra.mxu0 %v7664
      %v8602 = vpop.f32.mrf.mxu0
      %v8603 = vadd.f32 %v7755, %v8602
      %v8604 = vpop.f32.mrf.mxu0
      %v8605 = vpop.f32.mrf.mxu0
      %v8606 = vadd.f32 %v7755, %v8605
      %v8607 = vpop.f32.mrf.mxu0
      %8608 = vmatprep.mubr.bf16.mxu0 %v7667
      %8609 = vmatmul.mubr.bf16.gmra.mxu0 %v7666
      %v8610 = vpop.f32.mrf.mxu0
      %v8611 = vadd.f32 %v7755, %v8610
      %v8612 = vpop.f32.mrf.mxu0
      %v8613 = vpop.f32.mrf.mxu0
      %v8614 = vadd.f32 %v7755, %v8613
      %v8615 = vpop.f32.mrf.mxu0
      %8616 = vmatprep.mubr.bf16.mxu0 %v7669
      %8617 = vmatmul.mubr.bf16.gmra.mxu0 %v7668
      %v8618 = vpop.f32.mrf.mxu0
      %v8619 = vadd.f32 %v7755, %v8618
      %v8620 = vpop.f32.mrf.mxu0
      %v8621 = vpop.f32.mrf.mxu0
      %v8622 = vadd.f32 %v7755, %v8621
      %v8623 = vpop.f32.mrf.mxu0
      %8624 = vmatprep.mubr.bf16.mxu0 %v7671
      %8625 = vmatmul.mubr.bf16.gmra.mxu0 %v7670
      %v8626 = vpop.f32.mrf.mxu0
      %v8627 = vadd.f32 %v7755, %v8626
      %v8628 = vpop.f32.mrf.mxu0
      %v8629 = vpop.f32.mrf.mxu0
      %v8630 = vadd.f32 %v7755, %v8629
      %v8631 = vpop.f32.mrf.mxu0
      %8632 = vmatprep.mubr.bf16.mxu0 %v7673
      %8633 = vmatmul.mubr.bf16.gmra.mxu0 %v7672
      %v8634 = vpop.f32.mrf.mxu0
      %v8635 = vadd.f32 %v7755, %v8634
      %v8636 = vpop.f32.mrf.mxu0
      %v8637 = vpop.f32.mrf.mxu0
      %v8638 = vadd.f32 %v7755, %v8637
      %v8639 = vpop.f32.mrf.mxu0
      %8640 = vmatprep.mubr.bf16.mxu0 %v7675
      %8641 = vmatmul.mubr.bf16.gmra.mxu0 %v7674
      %v8642 = vpop.f32.mrf.mxu0
      %v8643 = vadd.f32 %v7755, %v8642
      %v8644 = vpop.f32.mrf.mxu0
      %v8645 = vpop.f32.mrf.mxu0
      %v8646 = vadd.f32 %v7755, %v8645
      %v8647 = vpop.f32.mrf.mxu0
      %8648 = vmatprep.mubr.bf16.mxu0 %v7677
      %8649 = vmatmul.mubr.bf16.gmra.mxu0 %v7676
      %v8650 = vpop.f32.mrf.mxu0
      %v8651 = vadd.f32 %v7755, %v8650
      %v8652 = vpop.f32.mrf.mxu0
      %v8653 = vpop.f32.mrf.mxu0
      %v8654 = vadd.f32 %v7755, %v8653
      %v8655 = vpop.f32.mrf.mxu0
      %8656 = vdwg.mxu0
      %v8657 = vpack.c.bf16 %v8054, %v8050
      %v8658 = vpack.c.bf16 %v8056, %v8052
      %v8659 = vpack.c.bf16 %v8064, %v8060
      %v8660 = vpack.c.bf16 %v8066, %v8062
      %v8661 = vpack.c.bf16 %v8074, %v8070
      %v8662 = vpack.c.bf16 %v8076, %v8072
      %v8663 = vpack.c.bf16 %v8084, %v8080
      %v8664 = vpack.c.bf16 %v8086, %v8082
      %v8665 = vpack.c.bf16 %v8094, %v8090
      %v8666 = vpack.c.bf16 %v8096, %v8092
      %v8667 = vpack.c.bf16 %v8104, %v8100
      %v8668 = vpack.c.bf16 %v8106, %v8102
      %v8669 = vpack.c.bf16 %v8114, %v8110
      %v8670 = vpack.c.bf16 %v8116, %v8112
      %v8671 = vpack.c.bf16 %v8124, %v8120
      %v8672 = vpack.c.bf16 %v8126, %v8122
      %v8673 = vpack.c.bf16 %v8134, %v8130
      %v8674 = vpack.c.bf16 %v8136, %v8132
      %v8675 = vpack.c.bf16 %v8144, %v8140
      %v8676 = vpack.c.bf16 %v8146, %v8142
      %v8677 = vpack.c.bf16 %v8154, %v8150
      %v8678 = vpack.c.bf16 %v8156, %v8152
      %v8679 = vpack.c.bf16 %v8164, %v8160
      %v8680 = vpack.c.bf16 %v8166, %v8162
      %v8681 = vpack.c.bf16 %v8174, %v8170
      %v8682 = vpack.c.bf16 %v8176, %v8172
      %v8683 = vpack.c.bf16 %v8184, %v8180
      %v8684 = vpack.c.bf16 %v8186, %v8182
      %v8685 = vpack.c.bf16 %v8194, %v8190
      %v8686 = vpack.c.bf16 %v8196, %v8192
      %v8687 = vpack.c.bf16 %v8204, %v8200
      %v8688 = vpack.c.bf16 %v8206, %v8202
      %v8689 = vpack.c.bf16 %v8214, %v8210
      %v8690 = vpack.c.bf16 %v8216, %v8212
      %v8691 = vpack.c.bf16 %v8224, %v8220
      %v8692 = vpack.c.bf16 %v8226, %v8222
      %v8693 = vpack.c.bf16 %v8234, %v8230
      %v8694 = vpack.c.bf16 %v8236, %v8232
      %v8695 = vpack.c.bf16 %v8244, %v8240
      %v8696 = vpack.c.bf16 %v8246, %v8242
      %v8697 = vpack.c.bf16 %v8254, %v8250
      %v8698 = vpack.c.bf16 %v8256, %v8252
      %v8699 = vpack.c.bf16 %v8264, %v8260
      %v8700 = vpack.c.bf16 %v8266, %v8262
      %v8701 = vpack.c.bf16 %v8274, %v8270
      %v8702 = vpack.c.bf16 %v8276, %v8272
      %v8703 = vpack.c.bf16 %v8284, %v8280
      %v8704 = vpack.c.bf16 %v8286, %v8282
      %v8705 = vpack.c.bf16 %v8294, %v8290
      %v8706 = vpack.c.bf16 %v8296, %v8292
      %v8707 = vpack.c.bf16 %v8304, %v8300
      %v8708 = vpack.c.bf16 %v8306, %v8302
      %v8709 = vpack.c.bf16 %v8314, %v8310
      %v8710 = vpack.c.bf16 %v8316, %v8312
      %v8711 = vpack.c.bf16 %v8324, %v8320
      %v8712 = vpack.c.bf16 %v8326, %v8322
      %v8713 = vpack.c.bf16 %v8334, %v8330
      %v8714 = vpack.c.bf16 %v8336, %v8332
      %v8715 = vpack.c.bf16 %v8344, %v8340
      %v8716 = vpack.c.bf16 %v8346, %v8342
      %v8717 = vpack.c.bf16 %v8354, %v8350
      %v8718 = vpack.c.bf16 %v8356, %v8352
      %v8719 = vpack.c.bf16 %v8364, %v8360
      %v8720 = vpack.c.bf16 %v8366, %v8362
      %v8721 = vld [vmem:[%s7] sm:$0xf]
      %v8722 = vld [vmem:[%s7 + $0x4] sm:$0xf]
      %v8723 = vld [vmem:[%s7 + $0x8] sm:$0xf]
      %v8724 = vld [vmem:[%s7 + $0xc] sm:$0xf]
      %v8725 = vld [vmem:[%s7 + $0x10] sm:$0xf]
      %v8726 = vld [vmem:[%s7 + $0x14] sm:$0xf]
      %v8727 = vld [vmem:[%s7 + $0x18] sm:$0xf]
      %v8728 = vld [vmem:[%s7 + $0x1c] sm:$0xf]
      %v8729 = vld [vmem:[%s7 + $0x20] sm:$0xf]
      %v8730 = vld [vmem:[%s7 + $0x24] sm:$0xf]
      %v8731 = vld [vmem:[%s7 + $0x28] sm:$0xf]
      %v8732 = vld [vmem:[%s7 + $0x2c] sm:$0xf]
      %v8733 = vld [vmem:[%s7 + $0x30] sm:$0xf]
      %v8734 = vld [vmem:[%s7 + $0x34] sm:$0xf]
      %v8735 = vld [vmem:[%s7 + $0x38] sm:$0xf]
      %v8736 = vld [vmem:[%s7 + $0x3c] sm:$0xf]
      %v8737 = vld [vmem:[%s7 + $0x40] sm:$0xf]
      %v8738 = vld [vmem:[%s7 + $0x44] sm:$0xf]
      %v8739 = vld [vmem:[%s7 + $0x48] sm:$0xf]
      %v8740 = vld [vmem:[%s7 + $0x4c] sm:$0xf]
      %v8741 = vld [vmem:[%s7 + $0x50] sm:$0xf]
      %v8742 = vld [vmem:[%s7 + $0x54] sm:$0xf]
      %v8743 = vld [vmem:[%s7 + $0x58] sm:$0xf]
      %v8744 = vld [vmem:[%s7 + $0x5c] sm:$0xf]
      %v8745 = vld [vmem:[%s7 + $0x60] sm:$0xf]
      %v8746 = vld [vmem:[%s7 + $0x64] sm:$0xf]
      %v8747 = vld [vmem:[%s7 + $0x68] sm:$0xf]
      %v8748 = vld [vmem:[%s7 + $0x6c] sm:$0xf]
      %v8749 = vld [vmem:[%s7 + $0x70] sm:$0xf]
      %v8750 = vld [vmem:[%s7 + $0x74] sm:$0xf]
      %v8751 = vld [vmem:[%s7 + $0x78] sm:$0xf]
      %v8752 = vld [vmem:[%s7 + $0x7c] sm:$0xf]
      %v8753 = vunpack.c.l.bf16 %v2071
      %v8754 = vunpack.c.h.bf16 %v2071
      %v8755 = vunpack.c.l.bf16 %v2072
      %v8756 = vunpack.c.h.bf16 %v2072
      %v8757 = vunpack.c.l.bf16 %v2073
      %v8758 = vunpack.c.h.bf16 %v2073
      %v8759 = vunpack.c.l.bf16 %v2074
      %v8760 = vunpack.c.h.bf16 %v2074
      %v8761 = vunpack.c.l.bf16 %v2075
      %v8762 = vunpack.c.h.bf16 %v2075
      %v8763 = vunpack.c.l.bf16 %v2076
      %v8764 = vunpack.c.h.bf16 %v2076
      %v8765 = vunpack.c.l.bf16 %v2077
      %v8766 = vunpack.c.h.bf16 %v2077
      %v8767 = vunpack.c.l.bf16 %v2078
      %v8768 = vunpack.c.h.bf16 %v2078
      %v8769 = vunpack.c.l.bf16 %v2079
      %v8770 = vunpack.c.h.bf16 %v2079
      %v8771 = vunpack.c.l.bf16 %v2080
      %v8772 = vunpack.c.h.bf16 %v2080
      %v8773 = vunpack.c.l.bf16 %v2081
      %v8774 = vunpack.c.h.bf16 %v2081
      %v8775 = vunpack.c.l.bf16 %v2082
      %v8776 = vunpack.c.h.bf16 %v2082
      %v8777 = vunpack.c.l.bf16 %v2083
      %v8778 = vunpack.c.h.bf16 %v2083
      %v8779 = vunpack.c.l.bf16 %v2084
      %v8780 = vunpack.c.h.bf16 %v2084
      %v8781 = vunpack.c.l.bf16 %v2085
      %v8782 = vunpack.c.h.bf16 %v2085
      %v8783 = vunpack.c.l.bf16 %v2086
      %v8784 = vunpack.c.h.bf16 %v2086
      %v8785 = vunpack.c.l.bf16 %v2087
      %v8786 = vunpack.c.h.bf16 %v2087
      %v8787 = vunpack.c.l.bf16 %v2088
      %v8788 = vunpack.c.h.bf16 %v2088
      %v8789 = vunpack.c.l.bf16 %v2089
      %v8790 = vunpack.c.h.bf16 %v2089
      %v8791 = vunpack.c.l.bf16 %v2090
      %v8792 = vunpack.c.h.bf16 %v2090
      %v8793 = vunpack.c.l.bf16 %v2091
      %v8794 = vunpack.c.h.bf16 %v2091
      %v8795 = vunpack.c.l.bf16 %v2092
      %v8796 = vunpack.c.h.bf16 %v2092
      %v8797 = vunpack.c.l.bf16 %v2093
      %v8798 = vunpack.c.h.bf16 %v2093
      %v8799 = vunpack.c.l.bf16 %v2094
      %v8800 = vunpack.c.h.bf16 %v2094
      %v8801 = vunpack.c.l.bf16 %v2095
      %v8802 = vunpack.c.h.bf16 %v2095
      %v8803 = vunpack.c.l.bf16 %v2096
      %v8804 = vunpack.c.h.bf16 %v2096
      %v8805 = vunpack.c.l.bf16 %v2097
      %v8806 = vunpack.c.h.bf16 %v2097
      %v8807 = vunpack.c.l.bf16 %v2098
      %v8808 = vunpack.c.h.bf16 %v2098
      %v8809 = vunpack.c.l.bf16 %v2099
      %v8810 = vunpack.c.h.bf16 %v2099
      %v8811 = vunpack.c.l.bf16 %v2100
      %v8812 = vunpack.c.h.bf16 %v2100
      %v8813 = vunpack.c.l.bf16 %v2101
      %v8814 = vunpack.c.h.bf16 %v2101
      %v8815 = vunpack.c.l.bf16 %v2102
      %v8816 = vunpack.c.h.bf16 %v2102
      %v8849 = vunpack.c.l.b16 %v8721
      %v8850 = vunpack.c.l.b16 %v8722
      %v8851 = vunpack.c.l.b16 %v8723
      %v8852 = vunpack.c.l.b16 %v8724
      %v8853 = vunpack.c.l.b16 %v8725
      %v8854 = vunpack.c.l.b16 %v8726
      %v8855 = vunpack.c.l.b16 %v8727
      %v8856 = vunpack.c.l.b16 %v8728
      %v8857 = vunpack.c.l.b16 %v8729
      %v8858 = vunpack.c.l.b16 %v8730
      %v8859 = vunpack.c.l.b16 %v8731
      %v8860 = vunpack.c.l.b16 %v8732
      %v8861 = vunpack.c.l.b16 %v8733
      %v8862 = vunpack.c.l.b16 %v8734
      %v8863 = vunpack.c.l.b16 %v8735
      %v8864 = vunpack.c.l.b16 %v8736
      %v8865 = vunpack.c.l.b16 %v8737
      %v8866 = vunpack.c.l.b16 %v8738
      %v8867 = vunpack.c.l.b16 %v8739
      %v8868 = vunpack.c.l.b16 %v8740
      %v8869 = vunpack.c.l.b16 %v8741
      %v8870 = vunpack.c.l.b16 %v8742
      %v8871 = vunpack.c.l.b16 %v8743
      %v8872 = vunpack.c.l.b16 %v8744
      %v8873 = vunpack.c.l.b16 %v8745
      %v8874 = vunpack.c.l.b16 %v8746
      %v8875 = vunpack.c.l.b16 %v8747
      %v8876 = vunpack.c.l.b16 %v8748
      %v8877 = vunpack.c.l.b16 %v8749
      %v8878 = vunpack.c.l.b16 %v8750
      %v8879 = vunpack.c.l.b16 %v8751
      %v8880 = vunpack.c.l.b16 %v8752
      %v8881 = vpack.c.b16 %v8850, %v8849
      %v8882 = vpack.c.b16 %v8852, %v8851
      %v8883 = vpack.c.b16 %v8854, %v8853
      %v8884 = vpack.c.b16 %v8856, %v8855
      %v8885 = vpack.c.b16 %v8858, %v8857
      %v8886 = vpack.c.b16 %v8860, %v8859
      %v8887 = vpack.c.b16 %v8862, %v8861
      %v8888 = vpack.c.b16 %v8864, %v8863
      %v8889 = vpack.c.b16 %v8866, %v8865
      %v8890 = vpack.c.b16 %v8868, %v8867
      %v8891 = vpack.c.b16 %v8870, %v8869
      %v8892 = vpack.c.b16 %v8872, %v8871
      %v8893 = vpack.c.b16 %v8874, %v8873
      %v8894 = vpack.c.b16 %v8876, %v8875
      %v8895 = vpack.c.b16 %v8878, %v8877
      %v8896 = vpack.c.b16 %v8880, %v8879
      %8913 = vmatprep.subr.bf16.mxu0 0
      %8914 = vmatpush1.bf16.msra.mxu0 %v8888
      %8915 = vmatprep.subr.bf16.mxu0 0
      %8916 = vmatpush1.bf16.msra.mxu0 %v8887
      %8917 = vmatprep.subr.bf16.mxu0 0
      %8918 = vmatpush1.bf16.msra.mxu0 %v8886
      %8919 = vmatprep.subr.bf16.mxu0 0
      %8920 = vmatpush1.bf16.msra.mxu0 %v8885
      %8921 = vmatprep.subr.bf16.mxu0 0
      %8922 = vmatpush1.bf16.msra.mxu0 %v8884
      %8923 = vmatprep.subr.bf16.mxu0 0
      %8924 = vmatpush1.bf16.msra.mxu0 %v8883
      %8925 = vmatprep.subr.bf16.mxu0 0
      %8926 = vmatpush1.bf16.msra.mxu0 %v8882
      %8927 = vmatprep.subr.bf16.mxu0 0
      %8928 = vmatpush1.bf16.msra.mxu0 %v8881
      %8929 = vmatprep.subr.bf16.mxu0 0
      %8930 = vmatpush2.bf16.msra.mxu0 %v8896
      %8931 = vmatprep.subr.bf16.mxu0 0
      %8932 = vmatpush2.bf16.msra.mxu0 %v8895
      %8933 = vmatprep.subr.bf16.mxu0 0
      %8934 = vmatpush2.bf16.msra.mxu0 %v8894
      %8935 = vmatprep.subr.bf16.mxu0 0
      %8936 = vmatpush2.bf16.msra.mxu0 %v8893
      %8937 = vmatprep.subr.bf16.mxu0 0
      %8938 = vmatpush2.bf16.msra.mxu0 %v8892
      %8939 = vmatprep.subr.bf16.mxu0 0
      %8940 = vmatpush2.bf16.msra.mxu0 %v8891
      %8941 = vmatprep.subr.bf16.mxu0 0
      %8942 = vmatpush2.bf16.msra.mxu0 %v8890
      %8943 = vmatprep.subr.bf16.mxu0 0
      %8944 = vmatpush2.bf16.msra.mxu0 %v8889
      %8945 = vmatprep.mubr.bf16.mxu0 %v8658
      %8946 = vmatmul.mubr.bf16.gmra.mxu0 %v8657
      %v8947 = vpop.f32.mrf.mxu0
      %v8948 = vadd.f32 %v8753, %v8947
      %v8949 = vpop.f32.mrf.mxu0
      %v8950 = vpop.f32.mrf.mxu0
      %v8951 = vadd.f32 %v8754, %v8950
      %v8952 = vpop.f32.mrf.mxu0
      %8953 = vmatprep.mubr.bf16.mxu0 %v8660
      %8954 = vmatmul.mubr.bf16.gmra.mxu0 %v8659
      %v8955 = vpop.f32.mrf.mxu0
      %v8956 = vadd.f32 %v8755, %v8955
      %v8957 = vpop.f32.mrf.mxu0
      %v8958 = vpop.f32.mrf.mxu0
      %v8959 = vadd.f32 %v8756, %v8958
      %v8960 = vpop.f32.mrf.mxu0
      %8961 = vmatprep.mubr.bf16.mxu0 %v8662
      %8962 = vmatmul.mubr.bf16.gmra.mxu0 %v8661
      %v8963 = vpop.f32.mrf.mxu0
      %v8964 = vadd.f32 %v8757, %v8963
      %v8965 = vpop.f32.mrf.mxu0
      %v8966 = vpop.f32.mrf.mxu0
      %v8967 = vadd.f32 %v8758, %v8966
      %v8968 = vpop.f32.mrf.mxu0
      %8969 = vmatprep.mubr.bf16.mxu0 %v8664
      %8970 = vmatmul.mubr.bf16.gmra.mxu0 %v8663
      %v8971 = vpop.f32.mrf.mxu0
      %v8972 = vadd.f32 %v8759, %v8971
      %v8973 = vpop.f32.mrf.mxu0
      %v8974 = vpop.f32.mrf.mxu0
      %v8975 = vadd.f32 %v8760, %v8974
      %v8976 = vpop.f32.mrf.mxu0
      %8977 = vmatprep.mubr.bf16.mxu0 %v8666
      %8978 = vmatmul.mubr.bf16.gmra.mxu0 %v8665
      %v8979 = vpop.f32.mrf.mxu0
      %v8980 = vadd.f32 %v8761, %v8979
      %v8981 = vpop.f32.mrf.mxu0
      %v8982 = vpop.f32.mrf.mxu0
      %v8983 = vadd.f32 %v8762, %v8982
      %v8984 = vpop.f32.mrf.mxu0
      %8985 = vmatprep.mubr.bf16.mxu0 %v8668
      %8986 = vmatmul.mubr.bf16.gmra.mxu0 %v8667
      %v8987 = vpop.f32.mrf.mxu0
      %v8988 = vadd.f32 %v8763, %v8987
      %v8989 = vpop.f32.mrf.mxu0
      %v8990 = vpop.f32.mrf.mxu0
      %v8991 = vadd.f32 %v8764, %v8990
      %v8992 = vpop.f32.mrf.mxu0
      %8993 = vmatprep.mubr.bf16.mxu0 %v8670
      %8994 = vmatmul.mubr.bf16.gmra.mxu0 %v8669
      %v8995 = vpop.f32.mrf.mxu0
      %v8996 = vadd.f32 %v8765, %v8995
      %v8997 = vpop.f32.mrf.mxu0
      %v8998 = vpop.f32.mrf.mxu0
      %v8999 = vadd.f32 %v8766, %v8998
      %v9000 = vpop.f32.mrf.mxu0
      %9001 = vmatprep.mubr.bf16.mxu0 %v8672
      %9002 = vmatmul.mubr.bf16.gmra.mxu0 %v8671
      %v9003 = vpop.f32.mrf.mxu0
      %v9004 = vadd.f32 %v8767, %v9003
      %v9005 = vpop.f32.mrf.mxu0
      %v9006 = vpop.f32.mrf.mxu0
      %v9007 = vadd.f32 %v8768, %v9006
      %v9008 = vpop.f32.mrf.mxu0
      %9009 = vmatprep.mubr.bf16.mxu0 %v8674
      %9010 = vmatmul.mubr.bf16.gmra.mxu0 %v8673
      %v9011 = vpop.f32.mrf.mxu0
      %v9012 = vadd.f32 %v8769, %v9011
      %v9013 = vpop.f32.mrf.mxu0
      %v9014 = vpop.f32.mrf.mxu0
      %v9015 = vadd.f32 %v8770, %v9014
      %v9016 = vpop.f32.mrf.mxu0
      %9017 = vmatprep.mubr.bf16.mxu0 %v8676
      %9018 = vmatmul.mubr.bf16.gmra.mxu0 %v8675
      %v9019 = vpop.f32.mrf.mxu0
      %v9020 = vadd.f32 %v8771, %v9019
      %v9021 = vpop.f32.mrf.mxu0
      %v9022 = vpop.f32.mrf.mxu0
      %v9023 = vadd.f32 %v8772, %v9022
      %v9024 = vpop.f32.mrf.mxu0
      %9025 = vmatprep.mubr.bf16.mxu0 %v8678
      %9026 = vmatmul.mubr.bf16.gmra.mxu0 %v8677
      %v9027 = vpop.f32.mrf.mxu0
      %v9028 = vadd.f32 %v8773, %v9027
      %v9029 = vpop.f32.mrf.mxu0
      %v9030 = vpop.f32.mrf.mxu0
      %v9031 = vadd.f32 %v8774, %v9030
      %v9032 = vpop.f32.mrf.mxu0
      %9033 = vmatprep.mubr.bf16.mxu0 %v8680
      %9034 = vmatmul.mubr.bf16.gmra.mxu0 %v8679
      %v9035 = vpop.f32.mrf.mxu0
      %v9036 = vadd.f32 %v8775, %v9035
      %v9037 = vpop.f32.mrf.mxu0
      %v9038 = vpop.f32.mrf.mxu0
      %v9039 = vadd.f32 %v8776, %v9038
      %v9040 = vpop.f32.mrf.mxu0
      %9041 = vmatprep.mubr.bf16.mxu0 %v8682
      %9042 = vmatmul.mubr.bf16.gmra.mxu0 %v8681
      %v9043 = vpop.f32.mrf.mxu0
      %v9044 = vadd.f32 %v8777, %v9043
      %v9045 = vpop.f32.mrf.mxu0
      %v9046 = vpop.f32.mrf.mxu0
      %v9047 = vadd.f32 %v8778, %v9046
      %v9048 = vpop.f32.mrf.mxu0
      %9049 = vmatprep.mubr.bf16.mxu0 %v8684
      %9050 = vmatmul.mubr.bf16.gmra.mxu0 %v8683
      %v9051 = vpop.f32.mrf.mxu0
      %v9052 = vadd.f32 %v8779, %v9051
      %v9053 = vpop.f32.mrf.mxu0
      %v9054 = vpop.f32.mrf.mxu0
      %v9055 = vadd.f32 %v8780, %v9054
      %v9056 = vpop.f32.mrf.mxu0
      %9057 = vmatprep.mubr.bf16.mxu0 %v8686
      %9058 = vmatmul.mubr.bf16.gmra.mxu0 %v8685
      %v9059 = vpop.f32.mrf.mxu0
      %v9060 = vadd.f32 %v8781, %v9059
      %v9061 = vpop.f32.mrf.mxu0
      %v9062 = vpop.f32.mrf.mxu0
      %v9063 = vadd.f32 %v8782, %v9062
      %v9064 = vpop.f32.mrf.mxu0
      %9065 = vmatprep.mubr.bf16.mxu0 %v8688
      %9066 = vmatmul.mubr.bf16.gmra.mxu0 %v8687
      %v9067 = vpop.f32.mrf.mxu0
      %v9068 = vadd.f32 %v8783, %v9067
      %v9069 = vpop.f32.mrf.mxu0
      %v9070 = vpop.f32.mrf.mxu0
      %v9071 = vadd.f32 %v8784, %v9070
      %v9072 = vpop.f32.mrf.mxu0
      %9073 = vmatprep.mubr.bf16.mxu0 %v8690
      %9074 = vmatmul.mubr.bf16.gmra.mxu0 %v8689
      %v9075 = vpop.f32.mrf.mxu0
      %v9076 = vadd.f32 %v8785, %v9075
      %v9077 = vpop.f32.mrf.mxu0
      %v9078 = vpop.f32.mrf.mxu0
      %v9079 = vadd.f32 %v8786, %v9078
      %v9080 = vpop.f32.mrf.mxu0
      %9081 = vmatprep.mubr.bf16.mxu0 %v8692
      %9082 = vmatmul.mubr.bf16.gmra.mxu0 %v8691
      %v9083 = vpop.f32.mrf.mxu0
      %v9084 = vadd.f32 %v8787, %v9083
      %v9085 = vpop.f32.mrf.mxu0
      %v9086 = vpop.f32.mrf.mxu0
      %v9087 = vadd.f32 %v8788, %v9086
      %v9088 = vpop.f32.mrf.mxu0
      %9089 = vmatprep.mubr.bf16.mxu0 %v8694
      %9090 = vmatmul.mubr.bf16.gmra.mxu0 %v8693
      %v9091 = vpop.f32.mrf.mxu0
      %v9092 = vadd.f32 %v8789, %v9091
      %v9093 = vpop.f32.mrf.mxu0
      %v9094 = vpop.f32.mrf.mxu0
      %v9095 = vadd.f32 %v8790, %v9094
      %v9096 = vpop.f32.mrf.mxu0
      %9097 = vmatprep.mubr.bf16.mxu0 %v8696
      %9098 = vmatmul.mubr.bf16.gmra.mxu0 %v8695
      %v9099 = vpop.f32.mrf.mxu0
      %v9100 = vadd.f32 %v8791, %v9099
      %v9101 = vpop.f32.mrf.mxu0
      %v9102 = vpop.f32.mrf.mxu0
      %v9103 = vadd.f32 %v8792, %v9102
      %v9104 = vpop.f32.mrf.mxu0
      %9105 = vmatprep.mubr.bf16.mxu0 %v8698
      %9106 = vmatmul.mubr.bf16.gmra.mxu0 %v8697
      %v9107 = vpop.f32.mrf.mxu0
      %v9108 = vadd.f32 %v8793, %v9107
      %v9109 = vpop.f32.mrf.mxu0
      %v9110 = vpop.f32.mrf.mxu0
      %v9111 = vadd.f32 %v8794, %v9110
      %v9112 = vpop.f32.mrf.mxu0
      %9113 = vmatprep.mubr.bf16.mxu0 %v8700
      %9114 = vmatmul.mubr.bf16.gmra.mxu0 %v8699
      %v9115 = vpop.f32.mrf.mxu0
      %v9116 = vadd.f32 %v8795, %v9115
      %v9117 = vpop.f32.mrf.mxu0
      %v9118 = vpop.f32.mrf.mxu0
      %v9119 = vadd.f32 %v8796, %v9118
      %v9120 = vpop.f32.mrf.mxu0
      %9121 = vmatprep.mubr.bf16.mxu0 %v8702
      %9122 = vmatmul.mubr.bf16.gmra.mxu0 %v8701
      %v9123 = vpop.f32.mrf.mxu0
      %v9124 = vadd.f32 %v8797, %v9123
      %v9125 = vpop.f32.mrf.mxu0
      %v9126 = vpop.f32.mrf.mxu0
      %v9127 = vadd.f32 %v8798, %v9126
      %v9128 = vpop.f32.mrf.mxu0
      %9129 = vmatprep.mubr.bf16.mxu0 %v8704
      %9130 = vmatmul.mubr.bf16.gmra.mxu0 %v8703
      %v9131 = vpop.f32.mrf.mxu0
      %v9132 = vadd.f32 %v8799, %v9131
      %v9133 = vpop.f32.mrf.mxu0
      %v9134 = vpop.f32.mrf.mxu0
      %v9135 = vadd.f32 %v8800, %v9134
      %v9136 = vpop.f32.mrf.mxu0
      %9137 = vmatprep.mubr.bf16.mxu0 %v8706
      %9138 = vmatmul.mubr.bf16.gmra.mxu0 %v8705
      %v9139 = vpop.f32.mrf.mxu0
      %v9140 = vadd.f32 %v8801, %v9139
      %v9141 = vpop.f32.mrf.mxu0
      %v9142 = vpop.f32.mrf.mxu0
      %v9143 = vadd.f32 %v8802, %v9142
      %v9144 = vpop.f32.mrf.mxu0
      %9145 = vmatprep.mubr.bf16.mxu0 %v8708
      %9146 = vmatmul.mubr.bf16.gmra.mxu0 %v8707
      %v9147 = vpop.f32.mrf.mxu0
      %v9148 = vadd.f32 %v8803, %v9147
      %v9149 = vpop.f32.mrf.mxu0
      %v9150 = vpop.f32.mrf.mxu0
      %v9151 = vadd.f32 %v8804, %v9150
      %v9152 = vpop.f32.mrf.mxu0
      %9153 = vmatprep.mubr.bf16.mxu0 %v8710
      %9154 = vmatmul.mubr.bf16.gmra.mxu0 %v8709
      %v9155 = vpop.f32.mrf.mxu0
      %v9156 = vadd.f32 %v8805, %v9155
      %v9157 = vpop.f32.mrf.mxu0
      %v9158 = vpop.f32.mrf.mxu0
      %v9159 = vadd.f32 %v8806, %v9158
      %v9160 = vpop.f32.mrf.mxu0
      %9161 = vmatprep.mubr.bf16.mxu0 %v8712
      %9162 = vmatmul.mubr.bf16.gmra.mxu0 %v8711
      %v9163 = vpop.f32.mrf.mxu0
      %v9164 = vadd.f32 %v8807, %v9163
      %v9165 = vpop.f32.mrf.mxu0
      %v9166 = vpop.f32.mrf.mxu0
      %v9167 = vadd.f32 %v8808, %v9166
      %v9168 = vpop.f32.mrf.mxu0
      %9169 = vmatprep.mubr.bf16.mxu0 %v8714
      %9170 = vmatmul.mubr.bf16.gmra.mxu0 %v8713
      %v9171 = vpop.f32.mrf.mxu0
      %v9172 = vadd.f32 %v8809, %v9171
      %v9173 = vpop.f32.mrf.mxu0
      %v9174 = vpop.f32.mrf.mxu0
      %v9175 = vadd.f32 %v8810, %v9174
      %v9176 = vpop.f32.mrf.mxu0
      %9177 = vmatprep.mubr.bf16.mxu0 %v8716
      %9178 = vmatmul.mubr.bf16.gmra.mxu0 %v8715
      %v9179 = vpop.f32.mrf.mxu0
      %v9180 = vadd.f32 %v8811, %v9179
      %v9181 = vpop.f32.mrf.mxu0
      %v9182 = vpop.f32.mrf.mxu0
      %v9183 = vadd.f32 %v8812, %v9182
      %v9184 = vpop.f32.mrf.mxu0
      %9185 = vmatprep.mubr.bf16.mxu0 %v8718
      %9186 = vmatmul.mubr.bf16.gmra.mxu0 %v8717
      %v9187 = vpop.f32.mrf.mxu0
      %v9188 = vadd.f32 %v8813, %v9187
      %v9189 = vpop.f32.mrf.mxu0
      %v9190 = vpop.f32.mrf.mxu0
      %v9191 = vadd.f32 %v8814, %v9190
      %v9192 = vpop.f32.mrf.mxu0
      %9193 = vmatprep.mubr.bf16.mxu0 %v8720
      %9194 = vmatmul.mubr.bf16.gmra.mxu0 %v8719
      %v9195 = vpop.f32.mrf.mxu0
      %v9196 = vadd.f32 %v8815, %v9195
      %v9197 = vpop.f32.mrf.mxu0
      %v9198 = vpop.f32.mrf.mxu0
      %v9199 = vadd.f32 %v8816, %v9198
      %v9200 = vpop.f32.mrf.mxu0
      %9201 = vdwg.mxu0
      %v9202 = vld [vmem:[%s8] sm:$0x1]
      %v9204 = vlaneseq
      %v9205 = vshrl.u32 %v9204, 7
      %v9206 = vsub.s32 0, %v9205
      %v9207 = vrot.slane %v9202, %v9206
      %v9209 = vadd.f32 %v8948, %v9207
      %v9210 = vadd.f32 %v8951, %v9207
      %v9211 = vadd.f32 %v8956, %v9207
      %v9212 = vadd.f32 %v8959, %v9207
      %v9213 = vadd.f32 %v8964, %v9207
      %v9214 = vadd.f32 %v8967, %v9207
      %v9215 = vadd.f32 %v8972, %v9207
      %v9216 = vadd.f32 %v8975, %v9207
      %v9217 = vadd.f32 %v8980, %v9207
      %v9218 = vadd.f32 %v8983, %v9207
      %v9219 = vadd.f32 %v8988, %v9207
      %v9220 = vadd.f32 %v8991, %v9207
      %v9221 = vadd.f32 %v8996, %v9207
      %v9222 = vadd.f32 %v8999, %v9207
      %v9223 = vadd.f32 %v9004, %v9207
      %v9224 = vadd.f32 %v9007, %v9207
      %v9225 = vadd.f32 %v9012, %v9207
      %v9226 = vadd.f32 %v9015, %v9207
      %v9227 = vadd.f32 %v9020, %v9207
      %v9228 = vadd.f32 %v9023, %v9207
      %v9229 = vadd.f32 %v9028, %v9207
      %v9230 = vadd.f32 %v9031, %v9207
      %v9231 = vadd.f32 %v9036, %v9207
      %v9232 = vadd.f32 %v9039, %v9207
      %v9233 = vadd.f32 %v9044, %v9207
      %v9234 = vadd.f32 %v9047, %v9207
      %v9235 = vadd.f32 %v9052, %v9207
      %v9236 = vadd.f32 %v9055, %v9207
      %v9237 = vadd.f32 %v9060, %v9207
      %v9238 = vadd.f32 %v9063, %v9207
      %v9239 = vadd.f32 %v9068, %v9207
      %v9240 = vadd.f32 %v9071, %v9207
      %v9241 = vadd.f32 %v9076, %v9207
      %v9242 = vadd.f32 %v9079, %v9207
      %v9243 = vadd.f32 %v9084, %v9207
      %v9244 = vadd.f32 %v9087, %v9207
      %v9245 = vadd.f32 %v9092, %v9207
      %v9246 = vadd.f32 %v9095, %v9207
      %v9247 = vadd.f32 %v9100, %v9207
      %v9248 = vadd.f32 %v9103, %v9207
      %v9249 = vadd.f32 %v9108, %v9207
      %v9250 = vadd.f32 %v9111, %v9207
      %v9251 = vadd.f32 %v9116, %v9207
      %v9252 = vadd.f32 %v9119, %v9207
      %v9253 = vadd.f32 %v9124, %v9207
      %v9254 = vadd.f32 %v9127, %v9207
      %v9255 = vadd.f32 %v9132, %v9207
      %v9256 = vadd.f32 %v9135, %v9207
      %v9257 = vadd.f32 %v9140, %v9207
      %v9258 = vadd.f32 %v9143, %v9207
      %v9259 = vadd.f32 %v9148, %v9207
      %v9260 = vadd.f32 %v9151, %v9207
      %v9261 = vadd.f32 %v9156, %v9207
      %v9262 = vadd.f32 %v9159, %v9207
      %v9263 = vadd.f32 %v9164, %v9207
      %v9264 = vadd.f32 %v9167, %v9207
      %v9265 = vadd.f32 %v9172, %v9207
      %v9266 = vadd.f32 %v9175, %v9207
      %v9267 = vadd.f32 %v9180, %v9207
      %v9268 = vadd.f32 %v9183, %v9207
      %v9269 = vadd.f32 %v9188, %v9207
      %v9270 = vadd.f32 %v9191, %v9207
      %v9271 = vadd.f32 %v9196, %v9207
      %v9272 = vadd.f32 %v9199, %v9207
      %v9273 = vmax.f32 %v9209, 0.0
      %v9274 = vmax.f32 %v9210, 0.0
      %v9275 = vmax.f32 %v9211, 0.0
      %v9276 = vmax.f32 %v9212, 0.0
      %v9277 = vmax.f32 %v9213, 0.0
      %v9278 = vmax.f32 %v9214, 0.0
      %v9279 = vmax.f32 %v9215, 0.0
      %v9280 = vmax.f32 %v9216, 0.0
      %v9281 = vmax.f32 %v9217, 0.0
      %v9282 = vmax.f32 %v9218, 0.0
      %v9283 = vmax.f32 %v9219, 0.0
      %v9284 = vmax.f32 %v9220, 0.0
      %v9285 = vmax.f32 %v9221, 0.0
      %v9286 = vmax.f32 %v9222, 0.0
      %v9287 = vmax.f32 %v9223, 0.0
      %v9288 = vmax.f32 %v9224, 0.0
      %v9289 = vmax.f32 %v9225, 0.0
      %v9290 = vmax.f32 %v9226, 0.0
      %v9291 = vmax.f32 %v9227, 0.0
      %v9292 = vmax.f32 %v9228, 0.0
      %v9293 = vmax.f32 %v9229, 0.0
      %v9294 = vmax.f32 %v9230, 0.0
      %v9295 = vmax.f32 %v9231, 0.0
      %v9296 = vmax.f32 %v9232, 0.0
      %v9297 = vmax.f32 %v9233, 0.0
      %v9298 = vmax.f32 %v9234, 0.0
      %v9299 = vmax.f32 %v9235, 0.0
      %v9300 = vmax.f32 %v9236, 0.0
      %v9301 = vmax.f32 %v9237, 0.0
      %v9302 = vmax.f32 %v9238, 0.0
      %v9303 = vmax.f32 %v9239, 0.0
      %v9304 = vmax.f32 %v9240, 0.0
      %v9305 = vmax.f32 %v9241, 0.0
      %v9306 = vmax.f32 %v9242, 0.0
      %v9307 = vmax.f32 %v9243, 0.0
      %v9308 = vmax.f32 %v9244, 0.0
      %v9309 = vmax.f32 %v9245, 0.0
      %v9310 = vmax.f32 %v9246, 0.0
      %v9311 = vmax.f32 %v9247, 0.0
      %v9312 = vmax.f32 %v9248, 0.0
      %v9313 = vmax.f32 %v9249, 0.0
      %v9314 = vmax.f32 %v9250, 0.0
      %v9315 = vmax.f32 %v9251, 0.0
      %v9316 = vmax.f32 %v9252, 0.0
      %v9317 = vmax.f32 %v9253, 0.0
      %v9318 = vmax.f32 %v9254, 0.0
      %v9319 = vmax.f32 %v9255, 0.0
      %v9320 = vmax.f32 %v9256, 0.0
      %v9321 = vmax.f32 %v9257, 0.0
      %v9322 = vmax.f32 %v9258, 0.0
      %v9323 = vmax.f32 %v9259, 0.0
      %v9324 = vmax.f32 %v9260, 0.0
      %v9325 = vmax.f32 %v9261, 0.0
      %v9326 = vmax.f32 %v9262, 0.0
      %v9327 = vmax.f32 %v9263, 0.0
      %v9328 = vmax.f32 %v9264, 0.0
      %v9329 = vmax.f32 %v9265, 0.0
      %v9330 = vmax.f32 %v9266, 0.0
      %v9331 = vmax.f32 %v9267, 0.0
      %v9332 = vmax.f32 %v9268, 0.0
      %v9333 = vmax.f32 %v9269, 0.0
      %v9334 = vmax.f32 %v9270, 0.0
      %v9335 = vmax.f32 %v9271, 0.0
      %v9336 = vmax.f32 %v9272, 0.0
      %v9337 = vpack.c.bf16 %v9274, %v9273
      %v9338 = vpack.c.bf16 %v9276, %v9275
      %v9339 = vpack.c.bf16 %v9278, %v9277
      %v9340 = vpack.c.bf16 %v9280, %v9279
      %v9341 = vpack.c.bf16 %v9282, %v9281
      %v9342 = vpack.c.bf16 %v9284, %v9283
      %v9343 = vpack.c.bf16 %v9286, %v9285
      %v9344 = vpack.c.bf16 %v9288, %v9287
      %v9345 = vpack.c.bf16 %v9290, %v9289
      %v9346 = vpack.c.bf16 %v9292, %v9291
      %v9347 = vpack.c.bf16 %v9294, %v9293
      %v9348 = vpack.c.bf16 %v9296, %v9295
      %v9349 = vpack.c.bf16 %v9298, %v9297
      %v9350 = vpack.c.bf16 %v9300, %v9299
      %v9351 = vpack.c.bf16 %v9302, %v9301
      %v9352 = vpack.c.bf16 %v9304, %v9303
      %v9353 = vpack.c.bf16 %v9306, %v9305
      %v9354 = vpack.c.bf16 %v9308, %v9307
      %v9355 = vpack.c.bf16 %v9310, %v9309
      %v9356 = vpack.c.bf16 %v9312, %v9311
      %v9357 = vpack.c.bf16 %v9314, %v9313
      %v9358 = vpack.c.bf16 %v9316, %v9315
      %v9359 = vpack.c.bf16 %v9318, %v9317
      %v9360 = vpack.c.bf16 %v9320, %v9319
      %v9361 = vpack.c.bf16 %v9322, %v9321
      %v9362 = vpack.c.bf16 %v9324, %v9323
      %v9363 = vpack.c.bf16 %v9326, %v9325
      %v9364 = vpack.c.bf16 %v9328, %v9327
      %v9365 = vpack.c.bf16 %v9330, %v9329
      %v9366 = vpack.c.bf16 %v9332, %v9331
      %v9367 = vpack.c.bf16 %v9334, %v9333
      %v9368 = vpack.c.bf16 %v9336, %v9335
      %v9369 = vld [vmem:[%s9] sm:$0xf]
      %v9370 = vld [vmem:[%s9 + $0x4] sm:$0xf]
      %v9371 = vld [vmem:[%s9 + $0x8] sm:$0xf]
      %v9372 = vld [vmem:[%s9 + $0xc] sm:$0xf]
      %v9373 = vld [vmem:[%s9 + $0x10] sm:$0xf]
      %v9374 = vld [vmem:[%s9 + $0x14] sm:$0xf]
      %v9375 = vld [vmem:[%s9 + $0x18] sm:$0xf]
      %v9376 = vld [vmem:[%s9 + $0x1c] sm:$0xf]
      %v9377 = vld [vmem:[%s9 + $0x20] sm:$0xf]
      %v9378 = vld [vmem:[%s9 + $0x24] sm:$0xf]
      %v9379 = vld [vmem:[%s9 + $0x28] sm:$0xf]
      %v9380 = vld [vmem:[%s9 + $0x2c] sm:$0xf]
      %v9381 = vld [vmem:[%s9 + $0x30] sm:$0xf]
      %v9382 = vld [vmem:[%s9 + $0x34] sm:$0xf]
      %v9383 = vld [vmem:[%s9 + $0x38] sm:$0xf]
      %v9384 = vld [vmem:[%s9 + $0x3c] sm:$0xf]
      %v9401 = vunpack.c.l.b16 %v9369
      %v9402 = vunpack.c.l.b16 %v9370
      %v9403 = vunpack.c.l.b16 %v9371
      %v9404 = vunpack.c.l.b16 %v9372
      %v9405 = vunpack.c.l.b16 %v9373
      %v9406 = vunpack.c.l.b16 %v9374
      %v9407 = vunpack.c.l.b16 %v9375
      %v9408 = vunpack.c.l.b16 %v9376
      %v9409 = vunpack.c.l.b16 %v9377
      %v9410 = vunpack.c.l.b16 %v9378
      %v9411 = vunpack.c.l.b16 %v9379
      %v9412 = vunpack.c.l.b16 %v9380
      %v9413 = vunpack.c.l.b16 %v9381
      %v9414 = vunpack.c.l.b16 %v9382
      %v9415 = vunpack.c.l.b16 %v9383
      %v9416 = vunpack.c.l.b16 %v9384
      %v9417 = vpack.c.b16 %v9402, %v9401
      %v9418 = vpack.c.b16 %v9404, %v9403
      %v9419 = vpack.c.b16 %v9406, %v9405
      %v9420 = vpack.c.b16 %v9408, %v9407
      %v9421 = vpack.c.b16 %v9410, %v9409
      %v9422 = vpack.c.b16 %v9412, %v9411
      %v9423 = vpack.c.b16 %v9414, %v9413
      %v9424 = vpack.c.b16 %v9416, %v9415
      %9433 = vmatprep.subr.bf16.mxu0 0
      %9434 = vmatpush1.bf16.msra.mxu0 %v9424
      %9435 = vmatprep.subr.bf16.mxu0 0
      %9436 = vmatpush1.bf16.msra.mxu0 %v9423
      %9437 = vmatprep.subr.bf16.mxu0 0
      %9438 = vmatpush1.bf16.msra.mxu0 %v9422
      %9439 = vmatprep.subr.bf16.mxu0 0
      %9440 = vmatpush1.bf16.msra.mxu0 %v9421
      %9441 = vmatprep.subr.bf16.mxu0 0
      %9442 = vmatpush1.bf16.msra.mxu0 %v9420
      %9443 = vmatprep.subr.bf16.mxu0 0
      %9444 = vmatpush1.bf16.msra.mxu0 %v9419
      %9445 = vmatprep.subr.bf16.mxu0 0
      %9446 = vmatpush1.bf16.msra.mxu0 %v9418
      %9447 = vmatprep.subr.bf16.mxu0 0
      %9448 = vmatpush1.bf16.msra.mxu0 %v9417
      %9449 = vmatprep.subr.bf16.mxu0 0
      %9450 = vmatpush2.bf16.msra.mxu0 0
      %9451 = vmatprep.subr.bf16.mxu0 0
      %9452 = vmatpush2.bf16.msra.mxu0 0
      %9453 = vmatprep.subr.bf16.mxu0 0
      %9454 = vmatpush2.bf16.msra.mxu0 0
      %9455 = vmatprep.subr.bf16.mxu0 0
      %9456 = vmatpush2.bf16.msra.mxu0 0
      %9457 = vmatprep.subr.bf16.mxu0 0
      %9458 = vmatpush2.bf16.msra.mxu0 0
      %9459 = vmatprep.subr.bf16.mxu0 0
      %9460 = vmatpush2.bf16.msra.mxu0 0
      %9461 = vmatprep.subr.bf16.mxu0 0
      %9462 = vmatpush2.bf16.msra.mxu0 0
      %9463 = vmatprep.subr.bf16.mxu0 0
      %9464 = vmatpush2.bf16.msra.mxu0 0
      %9465 = vmatprep.mubr.bf16.mxu0 0
      %9466 = vmatmul.mubr.bf16.gmra.mxu0 %v9337
      %v9467 = vpop.f32.mrf.mxu0
      %v9468 = vadd.f32 0.0, %v9467
      %v9469 = vpop.f32.mrf.mxu0
      %v9470 = vpop.f32.mrf.mxu0
      %v9471 = vadd.f32 0.0, %v9470
      %v9472 = vpop.f32.mrf.mxu0
      %9473 = vmatprep.mubr.bf16.mxu0 0
      %9474 = vmatmul.mubr.bf16.gmra.mxu0 %v9338
      %v9475 = vpop.f32.mrf.mxu0
      %v9476 = vadd.f32 0.0, %v9475
      %v9477 = vpop.f32.mrf.mxu0
      %v9478 = vpop.f32.mrf.mxu0
      %v9479 = vadd.f32 0.0, %v9478
      %v9480 = vpop.f32.mrf.mxu0
      %9481 = vmatprep.mubr.bf16.mxu0 0
      %9482 = vmatmul.mubr.bf16.gmra.mxu0 %v9339
      %v9483 = vpop.f32.mrf.mxu0
      %v9484 = vadd.f32 0.0, %v9483
      %v9485 = vpop.f32.mrf.mxu0
      %v9486 = vpop.f32.mrf.mxu0
      %v9487 = vadd.f32 0.0, %v9486
      %v9488 = vpop.f32.mrf.mxu0
      %9489 = vmatprep.mubr.bf16.mxu0 0
      %9490 = vmatmul.mubr.bf16.gmra.mxu0 %v9340
      %v9491 = vpop.f32.mrf.mxu0
      %v9492 = vadd.f32 0.0, %v9491
      %v9493 = vpop.f32.mrf.mxu0
      %v9494 = vpop.f32.mrf.mxu0
      %v9495 = vadd.f32 0.0, %v9494
      %v9496 = vpop.f32.mrf.mxu0
      %9497 = vmatprep.mubr.bf16.mxu0 0
      %9498 = vmatmul.mubr.bf16.gmra.mxu0 %v9341
      %v9499 = vpop.f32.mrf.mxu0
      %v9500 = vadd.f32 0.0, %v9499
      %v9501 = vpop.f32.mrf.mxu0
      %v9502 = vpop.f32.mrf.mxu0
      %v9503 = vadd.f32 0.0, %v9502
      %v9504 = vpop.f32.mrf.mxu0
      %9505 = vmatprep.mubr.bf16.mxu0 0
      %9506 = vmatmul.mubr.bf16.gmra.mxu0 %v9342
      %v9507 = vpop.f32.mrf.mxu0
      %v9508 = vadd.f32 0.0, %v9507
      %v9509 = vpop.f32.mrf.mxu0
      %v9510 = vpop.f32.mrf.mxu0
      %v9511 = vadd.f32 0.0, %v9510
      %v9512 = vpop.f32.mrf.mxu0
      %9513 = vmatprep.mubr.bf16.mxu0 0
      %9514 = vmatmul.mubr.bf16.gmra.mxu0 %v9343
      %v9515 = vpop.f32.mrf.mxu0
      %v9516 = vadd.f32 0.0, %v9515
      %v9517 = vpop.f32.mrf.mxu0
      %v9518 = vpop.f32.mrf.mxu0
      %v9519 = vadd.f32 0.0, %v9518
      %v9520 = vpop.f32.mrf.mxu0
      %9521 = vmatprep.mubr.bf16.mxu0 0
      %9522 = vmatmul.mubr.bf16.gmra.mxu0 %v9344
      %v9523 = vpop.f32.mrf.mxu0
      %v9524 = vadd.f32 0.0, %v9523
      %v9525 = vpop.f32.mrf.mxu0
      %v9526 = vpop.f32.mrf.mxu0
      %v9527 = vadd.f32 0.0, %v9526
      %v9528 = vpop.f32.mrf.mxu0
      %9529 = vmatprep.mubr.bf16.mxu0 0
      %9530 = vmatmul.mubr.bf16.gmra.mxu0 %v9345
      %v9531 = vpop.f32.mrf.mxu0
      %v9532 = vadd.f32 0.0, %v9531
      %v9533 = vpop.f32.mrf.mxu0
      %v9534 = vpop.f32.mrf.mxu0
      %v9535 = vadd.f32 0.0, %v9534
      %v9536 = vpop.f32.mrf.mxu0
      %9537 = vmatprep.mubr.bf16.mxu0 0
      %9538 = vmatmul.mubr.bf16.gmra.mxu0 %v9346
      %v9539 = vpop.f32.mrf.mxu0
      %v9540 = vadd.f32 0.0, %v9539
      %v9541 = vpop.f32.mrf.mxu0
      %v9542 = vpop.f32.mrf.mxu0
      %v9543 = vadd.f32 0.0, %v9542
      %v9544 = vpop.f32.mrf.mxu0
      %9545 = vmatprep.mubr.bf16.mxu0 0
      %9546 = vmatmul.mubr.bf16.gmra.mxu0 %v9347
      %v9547 = vpop.f32.mrf.mxu0
      %v9548 = vadd.f32 0.0, %v9547
      %v9549 = vpop.f32.mrf.mxu0
      %v9550 = vpop.f32.mrf.mxu0
      %v9551 = vadd.f32 0.0, %v9550
      %v9552 = vpop.f32.mrf.mxu0
      %9553 = vmatprep.mubr.bf16.mxu0 0
      %9554 = vmatmul.mubr.bf16.gmra.mxu0 %v9348
      %v9555 = vpop.f32.mrf.mxu0
      %v9556 = vadd.f32 0.0, %v9555
      %v9557 = vpop.f32.mrf.mxu0
      %v9558 = vpop.f32.mrf.mxu0
      %v9559 = vadd.f32 0.0, %v9558
      %v9560 = vpop.f32.mrf.mxu0
      %9561 = vmatprep.mubr.bf16.mxu0 0
      %9562 = vmatmul.mubr.bf16.gmra.mxu0 %v9349
      %v9563 = vpop.f32.mrf.mxu0
      %v9564 = vadd.f32 0.0, %v9563
      %v9565 = vpop.f32.mrf.mxu0
      %v9566 = vpop.f32.mrf.mxu0
      %v9567 = vadd.f32 0.0, %v9566
      %v9568 = vpop.f32.mrf.mxu0
      %9569 = vmatprep.mubr.bf16.mxu0 0
      %9570 = vmatmul.mubr.bf16.gmra.mxu0 %v9350
      %v9571 = vpop.f32.mrf.mxu0
      %v9572 = vadd.f32 0.0, %v9571
      %v9573 = vpop.f32.mrf.mxu0
      %v9574 = vpop.f32.mrf.mxu0
      %v9575 = vadd.f32 0.0, %v9574
      %v9576 = vpop.f32.mrf.mxu0
      %9577 = vmatprep.mubr.bf16.mxu0 0
      %9578 = vmatmul.mubr.bf16.gmra.mxu0 %v9351
      %v9579 = vpop.f32.mrf.mxu0
      %v9580 = vadd.f32 0.0, %v9579
      %v9581 = vpop.f32.mrf.mxu0
      %v9582 = vpop.f32.mrf.mxu0
      %v9583 = vadd.f32 0.0, %v9582
      %v9584 = vpop.f32.mrf.mxu0
      %9585 = vmatprep.mubr.bf16.mxu0 0
      %9586 = vmatmul.mubr.bf16.gmra.mxu0 %v9352
      %v9587 = vpop.f32.mrf.mxu0
      %v9588 = vadd.f32 0.0, %v9587
      %v9589 = vpop.f32.mrf.mxu0
      %v9590 = vpop.f32.mrf.mxu0
      %v9591 = vadd.f32 0.0, %v9590
      %v9592 = vpop.f32.mrf.mxu0
      %9593 = vmatprep.mubr.bf16.mxu0 0
      %9594 = vmatmul.mubr.bf16.gmra.mxu0 %v9353
      %v9595 = vpop.f32.mrf.mxu0
      %v9596 = vadd.f32 0.0, %v9595
      %v9597 = vpop.f32.mrf.mxu0
      %v9598 = vpop.f32.mrf.mxu0
      %v9599 = vadd.f32 0.0, %v9598
      %v9600 = vpop.f32.mrf.mxu0
      %9601 = vmatprep.mubr.bf16.mxu0 0
      %9602 = vmatmul.mubr.bf16.gmra.mxu0 %v9354
      %v9603 = vpop.f32.mrf.mxu0
      %v9604 = vadd.f32 0.0, %v9603
      %v9605 = vpop.f32.mrf.mxu0
      %v9606 = vpop.f32.mrf.mxu0
      %v9607 = vadd.f32 0.0, %v9606
      %v9608 = vpop.f32.mrf.mxu0
      %9609 = vmatprep.mubr.bf16.mxu0 0
      %9610 = vmatmul.mubr.bf16.gmra.mxu0 %v9355
      %v9611 = vpop.f32.mrf.mxu0
      %v9612 = vadd.f32 0.0, %v9611
      %v9613 = vpop.f32.mrf.mxu0
      %v9614 = vpop.f32.mrf.mxu0
      %v9615 = vadd.f32 0.0, %v9614
      %v9616 = vpop.f32.mrf.mxu0
      %9617 = vmatprep.mubr.bf16.mxu0 0
      %9618 = vmatmul.mubr.bf16.gmra.mxu0 %v9356
      %v9619 = vpop.f32.mrf.mxu0
      %v9620 = vadd.f32 0.0, %v9619
      %v9621 = vpop.f32.mrf.mxu0
      %v9622 = vpop.f32.mrf.mxu0
      %v9623 = vadd.f32 0.0, %v9622
      %v9624 = vpop.f32.mrf.mxu0
      %9625 = vmatprep.mubr.bf16.mxu0 0
      %9626 = vmatmul.mubr.bf16.gmra.mxu0 %v9357
      %v9627 = vpop.f32.mrf.mxu0
      %v9628 = vadd.f32 0.0, %v9627
      %v9629 = vpop.f32.mrf.mxu0
      %v9630 = vpop.f32.mrf.mxu0
      %v9631 = vadd.f32 0.0, %v9630
      %v9632 = vpop.f32.mrf.mxu0
      %9633 = vmatprep.mubr.bf16.mxu0 0
      %9634 = vmatmul.mubr.bf16.gmra.mxu0 %v9358
      %v9635 = vpop.f32.mrf.mxu0
      %v9636 = vadd.f32 0.0, %v9635
      %v9637 = vpop.f32.mrf.mxu0
      %v9638 = vpop.f32.mrf.mxu0
      %v9639 = vadd.f32 0.0, %v9638
      %v9640 = vpop.f32.mrf.mxu0
      %9641 = vmatprep.mubr.bf16.mxu0 0
      %9642 = vmatmul.mubr.bf16.gmra.mxu0 %v9359
      %v9643 = vpop.f32.mrf.mxu0
      %v9644 = vadd.f32 0.0, %v9643
      %v9645 = vpop.f32.mrf.mxu0
      %v9646 = vpop.f32.mrf.mxu0
      %v9647 = vadd.f32 0.0, %v9646
      %v9648 = vpop.f32.mrf.mxu0
      %9649 = vmatprep.mubr.bf16.mxu0 0
      %9650 = vmatmul.mubr.bf16.gmra.mxu0 %v9360
      %v9651 = vpop.f32.mrf.mxu0
      %v9652 = vadd.f32 0.0, %v9651
      %v9653 = vpop.f32.mrf.mxu0
      %v9654 = vpop.f32.mrf.mxu0
      %v9655 = vadd.f32 0.0, %v9654
      %v9656 = vpop.f32.mrf.mxu0
      %9657 = vmatprep.mubr.bf16.mxu0 0
      %9658 = vmatmul.mubr.bf16.gmra.mxu0 %v9361
      %v9659 = vpop.f32.mrf.mxu0
      %v9660 = vadd.f32 0.0, %v9659
      %v9661 = vpop.f32.mrf.mxu0
      %v9662 = vpop.f32.mrf.mxu0
      %v9663 = vadd.f32 0.0, %v9662
      %v9664 = vpop.f32.mrf.mxu0
      %9665 = vmatprep.mubr.bf16.mxu0 0
      %9666 = vmatmul.mubr.bf16.gmra.mxu0 %v9362
      %v9667 = vpop.f32.mrf.mxu0
      %v9668 = vadd.f32 0.0, %v9667
      %v9669 = vpop.f32.mrf.mxu0
      %v9670 = vpop.f32.mrf.mxu0
      %v9671 = vadd.f32 0.0, %v9670
      %v9672 = vpop.f32.mrf.mxu0
      %9673 = vmatprep.mubr.bf16.mxu0 0
      %9674 = vmatmul.mubr.bf16.gmra.mxu0 %v9363
      %v9675 = vpop.f32.mrf.mxu0
      %v9676 = vadd.f32 0.0, %v9675
      %v9677 = vpop.f32.mrf.mxu0
      %v9678 = vpop.f32.mrf.mxu0
      %v9679 = vadd.f32 0.0, %v9678
      %v9680 = vpop.f32.mrf.mxu0
      %9681 = vmatprep.mubr.bf16.mxu0 0
      %9682 = vmatmul.mubr.bf16.gmra.mxu0 %v9364
      %v9683 = vpop.f32.mrf.mxu0
      %v9684 = vadd.f32 0.0, %v9683
      %v9685 = vpop.f32.mrf.mxu0
      %v9686 = vpop.f32.mrf.mxu0
      %v9687 = vadd.f32 0.0, %v9686
      %v9688 = vpop.f32.mrf.mxu0
      %9689 = vmatprep.mubr.bf16.mxu0 0
      %9690 = vmatmul.mubr.bf16.gmra.mxu0 %v9365
      %v9691 = vpop.f32.mrf.mxu0
      %v9692 = vadd.f32 0.0, %v9691
      %v9693 = vpop.f32.mrf.mxu0
      %v9694 = vpop.f32.mrf.mxu0
      %v9695 = vadd.f32 0.0, %v9694
      %v9696 = vpop.f32.mrf.mxu0
      %9697 = vmatprep.mubr.bf16.mxu0 0
      %9698 = vmatmul.mubr.bf16.gmra.mxu0 %v9366
      %v9699 = vpop.f32.mrf.mxu0
      %v9700 = vadd.f32 0.0, %v9699
      %v9701 = vpop.f32.mrf.mxu0
      %v9702 = vpop.f32.mrf.mxu0
      %v9703 = vadd.f32 0.0, %v9702
      %v9704 = vpop.f32.mrf.mxu0
      %9705 = vmatprep.mubr.bf16.mxu0 0
      %9706 = vmatmul.mubr.bf16.gmra.mxu0 %v9367
      %v9707 = vpop.f32.mrf.mxu0
      %v9708 = vadd.f32 0.0, %v9707
      %v9709 = vpop.f32.mrf.mxu0
      %v9710 = vpop.f32.mrf.mxu0
      %v9711 = vadd.f32 0.0, %v9710
      %v9712 = vpop.f32.mrf.mxu0
      %9713 = vmatprep.mubr.bf16.mxu0 0
      %9714 = vmatmul.mubr.bf16.gmra.mxu0 %v9368
      %v9715 = vpop.f32.mrf.mxu0
      %v9716 = vadd.f32 0.0, %v9715
      %v9717 = vpop.f32.mrf.mxu0
      %v9718 = vpop.f32.mrf.mxu0
      %v9719 = vadd.f32 0.0, %v9718
      %v9720 = vpop.f32.mrf.mxu0
      %9721 = vdwg.mxu0
      %v9722 = vld [vmem:[%s10] sm:$0x1]
      %v9724 = vlaneseq
      %v9725 = vshrl.u32 %v9724, 7
      %v9726 = vsub.s32 0, %v9725
      %v9727 = vrot.slane %v9722, %v9726
      %v9729 = vadd.f32 %v9468, %v9727
      %v9730 = vadd.f32 %v9471, %v9727
      %v9731 = vadd.f32 %v9476, %v9727
      %v9732 = vadd.f32 %v9479, %v9727
      %v9733 = vadd.f32 %v9484, %v9727
      %v9734 = vadd.f32 %v9487, %v9727
      %v9735 = vadd.f32 %v9492, %v9727
      %v9736 = vadd.f32 %v9495, %v9727
      %v9737 = vadd.f32 %v9500, %v9727
      %v9738 = vadd.f32 %v9503, %v9727
      %v9739 = vadd.f32 %v9508, %v9727
      %v9740 = vadd.f32 %v9511, %v9727
      %v9741 = vadd.f32 %v9516, %v9727
      %v9742 = vadd.f32 %v9519, %v9727
      %v9743 = vadd.f32 %v9524, %v9727
      %v9744 = vadd.f32 %v9527, %v9727
      %v9745 = vadd.f32 %v9532, %v9727
      %v9746 = vadd.f32 %v9535, %v9727
      %v9747 = vadd.f32 %v9540, %v9727
      %v9748 = vadd.f32 %v9543, %v9727
      %v9749 = vadd.f32 %v9548, %v9727
      %v9750 = vadd.f32 %v9551, %v9727
      %v9751 = vadd.f32 %v9556, %v9727
      %v9752 = vadd.f32 %v9559, %v9727
      %v9753 = vadd.f32 %v9564, %v9727
      %v9754 = vadd.f32 %v9567, %v9727
      %v9755 = vadd.f32 %v9572, %v9727
      %v9756 = vadd.f32 %v9575, %v9727
      %v9757 = vadd.f32 %v9580, %v9727
      %v9758 = vadd.f32 %v9583, %v9727
      %v9759 = vadd.f32 %v9588, %v9727
      %v9760 = vadd.f32 %v9591, %v9727
      %v9761 = vadd.f32 %v9596, %v9727
      %v9762 = vadd.f32 %v9599, %v9727
      %v9763 = vadd.f32 %v9604, %v9727
      %v9764 = vadd.f32 %v9607, %v9727
      %v9765 = vadd.f32 %v9612, %v9727
      %v9766 = vadd.f32 %v9615, %v9727
      %v9767 = vadd.f32 %v9620, %v9727
      %v9768 = vadd.f32 %v9623, %v9727
      %v9769 = vadd.f32 %v9628, %v9727
      %v9770 = vadd.f32 %v9631, %v9727
      %v9771 = vadd.f32 %v9636, %v9727
      %v9772 = vadd.f32 %v9639, %v9727
      %v9773 = vadd.f32 %v9644, %v9727
      %v9774 = vadd.f32 %v9647, %v9727
      %v9775 = vadd.f32 %v9652, %v9727
      %v9776 = vadd.f32 %v9655, %v9727
      %v9777 = vadd.f32 %v9660, %v9727
      %v9778 = vadd.f32 %v9663, %v9727
      %v9779 = vadd.f32 %v9668, %v9727
      %v9780 = vadd.f32 %v9671, %v9727
      %v9781 = vadd.f32 %v9676, %v9727
      %v9782 = vadd.f32 %v9679, %v9727
      %v9783 = vadd.f32 %v9684, %v9727
      %v9784 = vadd.f32 %v9687, %v9727
      %v9785 = vadd.f32 %v9692, %v9727
      %v9786 = vadd.f32 %v9695, %v9727
      %v9787 = vadd.f32 %v9700, %v9727
      %v9788 = vadd.f32 %v9703, %v9727
      %v9789 = vadd.f32 %v9708, %v9727
      %v9790 = vadd.f32 %v9711, %v9727
      %v9791 = vadd.f32 %v9716, %v9727
      %v9792 = vadd.f32 %v9719, %v9727
      %v9793 = vadd.f32 %v9729, %v8403
      %v9794 = vadd.f32 %v9730, %v8406
      %v9795 = vadd.f32 %v9731, %v8411
      %v9796 = vadd.f32 %v9732, %v8414
      %v9797 = vadd.f32 %v9733, %v8419
      %v9798 = vadd.f32 %v9734, %v8422
      %v9799 = vadd.f32 %v9735, %v8427
      %v9800 = vadd.f32 %v9736, %v8430
      %v9801 = vadd.f32 %v9737, %v8435
      %v9802 = vadd.f32 %v9738, %v8438
      %v9803 = vadd.f32 %v9739, %v8443
      %v9804 = vadd.f32 %v9740, %v8446
      %v9805 = vadd.f32 %v9741, %v8451
      %v9806 = vadd.f32 %v9742, %v8454
      %v9807 = vadd.f32 %v9743, %v8459
      %v9808 = vadd.f32 %v9744, %v8462
      %v9809 = vadd.f32 %v9745, %v8467
      %v9810 = vadd.f32 %v9746, %v8470
      %v9811 = vadd.f32 %v9747, %v8475
      %v9812 = vadd.f32 %v9748, %v8478
      %v9813 = vadd.f32 %v9749, %v8483
      %v9814 = vadd.f32 %v9750, %v8486
      %v9815 = vadd.f32 %v9751, %v8491
      %v9816 = vadd.f32 %v9752, %v8494
      %v9817 = vadd.f32 %v9753, %v8499
      %v9818 = vadd.f32 %v9754, %v8502
      %v9819 = vadd.f32 %v9755, %v8507
      %v9820 = vadd.f32 %v9756, %v8510
      %v9821 = vadd.f32 %v9757, %v8515
      %v9822 = vadd.f32 %v9758, %v8518
      %v9823 = vadd.f32 %v9759, %v8523
      %v9824 = vadd.f32 %v9760, %v8526
      %v9825 = vadd.f32 %v9761, %v8531
      %v9826 = vadd.f32 %v9762, %v8534
      %v9827 = vadd.f32 %v9763, %v8539
      %v9828 = vadd.f32 %v9764, %v8542
      %v9829 = vadd.f32 %v9765, %v8547
      %v9830 = vadd.f32 %v9766, %v8550
      %v9831 = vadd.f32 %v9767, %v8555
      %v9832 = vadd.f32 %v9768, %v8558
      %v9833 = vadd.f32 %v9769, %v8563
      %v9834 = vadd.f32 %v9770, %v8566
      %v9835 = vadd.f32 %v9771, %v8571
      %v9836 = vadd.f32 %v9772, %v8574
      %v9837 = vadd.f32 %v9773, %v8579
      %v9838 = vadd.f32 %v9774, %v8582
      %v9839 = vadd.f32 %v9775, %v8587
      %v9840 = vadd.f32 %v9776, %v8590
      %v9841 = vadd.f32 %v9777, %v8595
      %v9842 = vadd.f32 %v9778, %v8598
      %v9843 = vadd.f32 %v9779, %v8603
      %v9844 = vadd.f32 %v9780, %v8606
      %v9845 = vadd.f32 %v9781, %v8611
      %v9846 = vadd.f32 %v9782, %v8614
      %v9847 = vadd.f32 %v9783, %v8619
      %v9848 = vadd.f32 %v9784, %v8622
      %v9849 = vadd.f32 %v9785, %v8627
      %v9850 = vadd.f32 %v9786, %v8630
      %v9851 = vadd.f32 %v9787, %v8635
      %v9852 = vadd.f32 %v9788, %v8638
      %v9853 = vadd.f32 %v9789, %v8643
      %v9854 = vadd.f32 %v9790, %v8646
      %v9855 = vadd.f32 %v9791, %v8651
      %v9856 = vadd.f32 %v9792, %v8654
      %vm9857 = vcmask 31744
      %9858 = vst.msk [vmem:[%s388] sm:$0xff] %vm9857, %v9793
      %9859 = vst.msk [vmem:[%s388 + $0x8] sm:$0xff] %vm9857, %v9794
      %9860 = vst.msk [vmem:[%s388 + $0x10] sm:$0xff] %vm9857, %v9795
      %9861 = vst.msk [vmem:[%s388 + $0x18] sm:$0xff] %vm9857, %v9796
      %9862 = vst.msk [vmem:[%s388 + $0x20] sm:$0xff] %vm9857, %v9797
      %9863 = vst.msk [vmem:[%s388 + $0x28] sm:$0xff] %vm9857, %v9798
      %9864 = vst.msk [vmem:[%s388 + $0x30] sm:$0xff] %vm9857, %v9799
      %9865 = vst.msk [vmem:[%s388 + $0x38] sm:$0xff] %vm9857, %v9800
      %9866 = vst.msk [vmem:[%s388 + $0x40] sm:$0xff] %vm9857, %v9801
      %9867 = vst.msk [vmem:[%s388 + $0x48] sm:$0xff] %vm9857, %v9802
      %9868 = vst.msk [vmem:[%s388 + $0x50] sm:$0xff] %vm9857, %v9803
      %9869 = vst.msk [vmem:[%s388 + $0x58] sm:$0xff] %vm9857, %v9804
      %9870 = vst.msk [vmem:[%s388 + $0x60] sm:$0xff] %vm9857, %v9805
      %9871 = vst.msk [vmem:[%s388 + $0x68] sm:$0xff] %vm9857, %v9806
      %9872 = vst.msk [vmem:[%s388 + $0x70] sm:$0xff] %vm9857, %v9807
      %9873 = vst.msk [vmem:[%s388 + $0x78] sm:$0xff] %vm9857, %v9808
      %9874 = vst.msk [vmem:[%s388 + $0x80] sm:$0xff] %vm9857, %v9809
      %9875 = vst.msk [vmem:[%s388 + $0x88] sm:$0xff] %vm9857, %v9810
      %9876 = vst.msk [vmem:[%s388 + $0x90] sm:$0xff] %vm9857, %v9811
      %9877 = vst.msk [vmem:[%s388 + $0x98] sm:$0xff] %vm9857, %v9812
      %9878 = vst.msk [vmem:[%s388 + $0xa0] sm:$0xff] %vm9857, %v9813
      %9879 = vst.msk [vmem:[%s388 + $0xa8] sm:$0xff] %vm9857, %v9814
      %9880 = vst.msk [vmem:[%s388 + $0xb0] sm:$0xff] %vm9857, %v9815
      %9881 = vst.msk [vmem:[%s388 + $0xb8] sm:$0xff] %vm9857, %v9816
      %9882 = vst.msk [vmem:[%s388 + $0xc0] sm:$0xff] %vm9857, %v9817
      %9883 = vst.msk [vmem:[%s388 + $0xc8] sm:$0xff] %vm9857, %v9818
      %9884 = vst.msk [vmem:[%s388 + $0xd0] sm:$0xff] %vm9857, %v9819
      %9885 = vst.msk [vmem:[%s388 + $0xd8] sm:$0xff] %vm9857, %v9820
      %9886 = vst.msk [vmem:[%s388 + $0xe0] sm:$0xff] %vm9857, %v9821
      %9887 = vst.msk [vmem:[%s388 + $0xe8] sm:$0xff] %vm9857, %v9822
      %9888 = vst.msk [vmem:[%s388 + $0xf0] sm:$0xff] %vm9857, %v9823
      %9889 = vst.msk [vmem:[%s388 + $0xf8] sm:$0xff] %vm9857, %v9824
      %9890 = vst.msk [vmem:[%s388 + $0x100] sm:$0xff] %vm9857, %v9825
      %9891 = vst.msk [vmem:[%s388 + $0x108] sm:$0xff] %vm9857, %v9826
      %9892 = vst.msk [vmem:[%s388 + $0x110] sm:$0xff] %vm9857, %v9827
      %9893 = vst.msk [vmem:[%s388 + $0x118] sm:$0xff] %vm9857, %v9828
      %9894 = vst.msk [vmem:[%s388 + $0x120] sm:$0xff] %vm9857, %v9829
      %9895 = vst.msk [vmem:[%s388 + $0x128] sm:$0xff] %vm9857, %v9830
      %9896 = vst.msk [vmem:[%s388 + $0x130] sm:$0xff] %vm9857, %v9831
      %9897 = vst.msk [vmem:[%s388 + $0x138] sm:$0xff] %vm9857, %v9832
      %9898 = vst.msk [vmem:[%s388 + $0x140] sm:$0xff] %vm9857, %v9833
      %9899 = vst.msk [vmem:[%s388 + $0x148] sm:$0xff] %vm9857, %v9834
      %9900 = vst.msk [vmem:[%s388 + $0x150] sm:$0xff] %vm9857, %v9835
      %9901 = vst.msk [vmem:[%s388 + $0x158] sm:$0xff] %vm9857, %v9836
      %9902 = vst.msk [vmem:[%s388 + $0x160] sm:$0xff] %vm9857, %v9837
      %9903 = vst.msk [vmem:[%s388 + $0x168] sm:$0xff] %vm9857, %v9838
      %9904 = vst.msk [vmem:[%s388 + $0x170] sm:$0xff] %vm9857, %v9839
      %9905 = vst.msk [vmem:[%s388 + $0x178] sm:$0xff] %vm9857, %v9840
      %9906 = vst.msk [vmem:[%s388 + $0x180] sm:$0xff] %vm9857, %v9841
      %9907 = vst.msk [vmem:[%s388 + $0x188] sm:$0xff] %vm9857, %v9842
      %9908 = vst.msk [vmem:[%s388 + $0x190] sm:$0xff] %vm9857, %v9843
      %9909 = vst.msk [vmem:[%s388 + $0x198] sm:$0xff] %vm9857, %v9844
      %9910 = vst.msk [vmem:[%s388 + $0x1a0] sm:$0xff] %vm9857, %v9845
      %9911 = vst.msk [vmem:[%s388 + $0x1a8] sm:$0xff] %vm9857, %v9846
      %9912 = vst.msk [vmem:[%s388 + $0x1b0] sm:$0xff] %vm9857, %v9847
      %9913 = vst.msk [vmem:[%s388 + $0x1b8] sm:$0xff] %vm9857, %v9848
      %9914 = vst.msk [vmem:[%s388 + $0x1c0] sm:$0xff] %vm9857, %v9849
      %9915 = vst.msk [vmem:[%s388 + $0x1c8] sm:$0xff] %vm9857, %v9850
      %9916 = vst.msk [vmem:[%s388 + $0x1d0] sm:$0xff] %vm9857, %v9851
      %9917 = vst.msk [vmem:[%s388 + $0x1d8] sm:$0xff] %vm9857, %v9852
      %9918 = vst.msk [vmem:[%s388 + $0x1e0] sm:$0xff] %vm9857, %v9853
      %9919 = vst.msk [vmem:[%s388 + $0x1e8] sm:$0xff] %vm9857, %v9854
      %9920 = vst.msk [vmem:[%s388 + $0x1f0] sm:$0xff] %vm9857, %v9855
      %9921 = vst.msk [vmem:[%s388 + $0x1f8] sm:$0xff] %vm9857, %v9856
      %s9922 = smul.u32 64, %s22
      %p9923 = scmp.lt.s32.totalorder %s9922, 127
      %s9924 = scalar_select %p9923, %s9922, 127
      %s9925 = smul.addr %s9924, 8
      %s9926 = scalar_lea.vmem %s11, %s9925
      // Predicated region
      $region65: #{nerf_forward.1} parent=63 // pred_check
        %p9927 = pneg %p276
      $region66: #{nerf_forward.1} parent=63 // pred_check_branch
        %9929 = sbr.rel (%p9927) target = $region68
      $region67: #{nerf_forward.1} parent=63 // pred_region
        %s9930 = smul.u32 64, %s22
      $region68: #{nerf_forward.1} parent=63 // pred_fallthru
        _
    $region64: #{nerf_forward.1} parent=5 // pred_fallthru
      _
    %p9931 = scmp.le.s32.totalorder 2, %s17
    // Predicated region
    $region69: #{nerf_forward.1} parent=5 // pred_check
      %p9932 = pneg %p9931
    $region70: #{nerf_forward.1} parent=5 // pred_check_branch
      %9934 = sbr.rel (%p9932) target = $region72
    $region71: #{nerf_forward.1} parent=5 // pred_region
      %s9935 = ssub.s32 %s17, 2
      // Predicated region
      $region73: #{nerf_forward.1} parent=71 // pred_check
        %p9936 = pneg %p282
      $region74: #{nerf_forward.1} parent=71 // pred_check_branch
        %9938 = sbr.rel (%p9936) target = $region76
      $region75: #{nerf_forward.1} parent=71 // pred_region
        %s9939 = smul.u32 64, %s23
        %p9940 = scmp.lt.s32.totalorder %s9939, 127
        %s9941 = scalar_select %p9940, %s9939, 127
        %s9942 = smul.addr %s9941, 8
        %s9943 = scalar_lea.vmem %s11, %s9942
      $region76: #{nerf_forward.1} parent=71 // pred_fallthru
        _
    $region72: #{nerf_forward.1} parent=5 // pred_fallthru
      _
  $region6: #{nerf_forward.1} parent=0 // loop_footer
    %s21 = sadd.s32 1, %s17
  $region7: #{nerf_forward.1} parent=0 // loop_footer_branch
    %16 = sbr.rel target = $region3
  $region8: #{nerf_forward.1} parent=0 // loop_exit
    _

</llo_original>
